<compile_context>
chip_gen: v5e
topology: v5e:2x2
jax: 0.10.0
libtpu: 0.0.40
codegen_flags: <defaults>
</compile_context>

<pallas_src>
import jax
import jax.numpy as jnp
from jax.experimental import pallas as pl
from jax.experimental.pallas import tpu as pltpu

HIDDEN_DIM = 128      # GravityDyns hidden_dim (module default is 256; kept small here)
SEQ_LEN = 8           # DynsSolver seq_len (module default 25; kept small here)
STEP_SIZE = 0.1       # odeint step_size option
N_INNER = 10          # sample_ts spacing is 1.0 -> 10 fixed RK4 steps per sample


def _dyns_solver_kernel(st_ref, l1_ref, w23_ref, w4d_ref, out_ref):
    """Integrates d/dt [x, v] = [v, mlp([x, v])] and writes states at t = 1..seq_len-1.

    st_ref  : (3, 8)   f32  rows = [state, z0 = P@state, b4dup]
    l1_ref  : (11, H)  f32  rows 0..7 = W1, rows 8/9/10 = b1/b2/b3
    w23_ref : (2, H, H) bf16  [W2, W3]
    w4d_ref : (H, 8)   bf16  W4 duplicated into both lane halves
    """
    # Loop-invariant small loads hoisted once.
    y0 = st_ref[0:1, :]            # (1, 8) f32 initial state [x, v]
    z0 = st_ref[1:2, :]            # (1, 8) f32 P @ state = [v, 0]
    b4d = st_ref[2:3, :]           # (1, 8) f32 duplicated final bias
    b1 = l1_ref[8:9, :]            # (1, H) f32
    b2 = l1_ref[9:10, :]
    b3 = l1_ref[10:11, :]

    lane = jax.lax.broadcasted_iota(jnp.int32, (1, 8), 1)
    is_dv_lane = lane >= 4         # lanes 4..7 carry dv, lanes 0..3 carry dx

    def mlp_dup(y):
        # y: (1, 8) f32.  Returns (1, 8) f32 with mlp(y) duplicated in BOTH lane
        # halves (w4dup places the 4 outputs in lanes 0..3 AND 4..7).
        # Layer 1 is full f32 (K=8 is cheap; avoids quantizing the raw state);
        # layers 2-4 use bf16 operands with f32 MXU accumulation.
        h = jnp.maximum(
            jnp.dot(y, l1_ref[0:8, :], preferred_element_type=jnp.float32) + b1, 0.0)
        h = jnp.maximum(
            jnp.dot(h.astype(jnp.bfloat16), w23_ref[0],
                    preferred_element_type=jnp.float32) + b2, 0.0)
        h = jnp.maximum(
            jnp.dot(h.astype(jnp.bfloat16), w23_ref[1],
                    preferred_element_type=jnp.float32) + b3, 0.0)
        return jnp.dot(h.astype(jnp.bfloat16), w4d_ref[...],
                       preferred_element_type=jnp.float32) + b4d

    def deriv_pair(y, z):
        # Invariant: z == P @ y, i.e. z = [v, 0] (velocity half shifted into lanes
        # 0..3).  Then deriv(y) = z + [0, mlp(y)]  (== torch.cat([dx, dv], -1))
        # and P @ deriv(y) = [mlp(y), 0]  (since P^2 == 0) -- both are cheap VPU
        # selects on the duplicated MLP output; no MXU shift matmul, no lane roll.
        m = mlp_dup(y)
        k = z + jnp.where(is_dv_lane, m, 0.0)
        pk = jnp.where(is_dv_lane, 0.0, m)
        return k, pk

    dt = jnp.float32(STEP_SIZE)
    third = jnp.float32(1.0 / 3.0)

    def rk4_step(y, z):
        # torchdiffeq rk4_alt_step_func (Kutta 3/8 rule), as used by method='rk4'.
        # The z (= P y) recurrence uses the SAME linear combination, so the
        # invariant is preserved exactly.
        k1, p1 = deriv_pair(y, z)
        k2, p2 = deriv_pair(y + dt * third * k1, z + dt * third * p1)
        k3, p3 = deriv_pair(y + dt * (k2 - third * k1), z + dt * (p2 - third * p1))
        k4, p4 = deriv_pair(y + dt * (k1 - k2 + k3), z + dt * (p1 - p2 + p3))
        y_n = y + dt * (k1 + 3.0 * (k2 + k3) + k4) * 0.125
        z_n = z + dt * (p1 + 3.0 * (p2 + p3) + p4) * 0.125
        return y_n, z_n

    def per_sample(i, carry):
        y, z = carry
        for _ in range(N_INNER):      # fully unrolled: 10 static RK4 steps
            y, z = rk4_step(y, z)
        out_ref[pl.ds(i, 1), :] = y
        return (y, z)

    jax.lax.fori_loop(0, SEQ_LEN - 1, per_sample, (y0, z0))


def init_params(key, hidden_dim=HIDDEN_DIM):
    """Deterministic init mirroring torch.nn.Linear default: U(+-1/sqrt(fan_in))."""
    dims = [(8, hidden_dim), (hidden_dim, hidden_dim),
            (hidden_dim, hidden_dim), (hidden_dim, 4)]
    params = []
    for fan_in, fan_out in dims:
        key, kw, kb = jax.random.split(key, 3)
        bound = 1.0 / float(fan_in) ** 0.5
        w = jax.random.uniform(kw, (fan_in, fan_out), jnp.float32, -bound, bound)
        b = jax.random.uniform(kb, (fan_out,), jnp.float32, -bound, bound)
        params.append((w, b))
    return params


@jax.jit
def dyns_solver_forward(state, params):
    """Pallas-backed equivalent of DynsSolver.forward; returns (None, results[1:])."""
    (w1, b1), (w2, b2), (w3, b3), (w4, b4) = params
    state2d = state.reshape(1, 8).astype(jnp.float32)
    # z0 = P @ state: velocity half moved into lanes 0..3, lanes 4..7 zero.  Done
    # host-side once so the kernel never moves data across lanes.
    z2d = jnp.zeros((1, 8), jnp.float32).at[:, :4].set(state2d[:, 4:])
    # Final Linear(hidden, 4) duplicated into both lane halves so the kernel's
    # mlp_dup(y) holds mlp(y) in lanes 0..3 and 4..7 simultaneously.
    w4d = jnp.concatenate([w4, w4], axis=1)                            # (hidden, 8)
    b4d = jnp.concatenate([b4, b4]).reshape(1, 8).astype(jnp.float32)  # (1, 8)

    # Pack the small inputs to cut startup DMA count (10 -> 4).
    st = jnp.concatenate([state2d, z2d, b4d], axis=0)                  # (3, 8) f32
    l1 = jnp.concatenate(
        [w1, b1.reshape(1, -1), b2.reshape(1, -1), b3.reshape(1, -1)],
        axis=0).astype(jnp.float32)                                    # (11, H) f32
    w23 = jnp.stack([w2, w3], axis=0).astype(jnp.bfloat16)             # (2, H, H) bf16

    results = pl.pallas_call(
        _dyns_solver_kernel,
        out_shape=jax.ShapeDtypeStruct((SEQ_LEN - 1, 8), jnp.float32),
        in_specs=[pl.BlockSpec(memory_space=pltpu.MemorySpace.VMEM)] * 4,
        out_specs=pl.BlockSpec(memory_space=pltpu.MemorySpace.VMEM),
    )(st, l1, w23, w4d.astype(jnp.bfloat16))
    return None, results


def _rk4_rollout(deriv, y0):
    dt = STEP_SIZE
    y = y0
    outs = []
    for _ in range(SEQ_LEN - 1):
        for _ in range(N_INNER):
            k1 = deriv(y)
            k2 = deriv(y + dt * k1 / 3.0)
            k3 = deriv(y + dt * (k2 - k1 / 3.0))
            k4 = deriv(y + dt * (k1 - k2 + k3))
            y = y + dt * (k1 + 3.0 * (k2 + k3) + k4) * 0.125
        outs.append(y)
    return jnp.stack(outs, axis=0)


def _reference_forward_f32(state, params):
    """Pure-JAX f32 reference of the module math (drift gate for the mixed kernel)."""
    (w1, b1), (w2, b2), (w3, b3), (w4, b4) = params
    hp = jax.lax.Precision.HIGHEST

    def mlp(s):
        h = jnp.maximum(jnp.dot(s, w1, precision=hp) + b1, 0.0)
        h = jnp.maximum(jnp.dot(h, w2, precision=hp) + b2, 0.0)
        h = jnp.maximum(jnp.dot(h, w3, precision=hp) + b3, 0.0)
        return jnp.dot(h, w4, precision=hp) + b4

    def deriv(s):
        return jnp.concatenate([s[4:], mlp(s)], axis=-1)

    return _rk4_rollout(deriv, state.astype(jnp.float32))


def _reference_forward_mixed(state, params):
    """Pure-JAX reference emulating the kernel's precision: f32 layer 1, bf16
    operands / f32 accumulation for layers 2-4."""
    (w1, b1), (w2, b2), (w3, b3), (w4, b4) = params
    w2 = w2.astype(jnp.bfloat16); w3 = w3.astype(jnp.bfloat16)
    w4 = w4.astype(jnp.bfloat16)

    def mlp(s):
        h = jnp.maximum(jnp.dot(s, w1, preferred_element_type=jnp.float32) + b1, 0.0)
        h = jnp.maximum(jnp.dot(h.astype(jnp.bfloat16), w2,
                                preferred_element_type=jnp.float32) + b2, 0.0)
        h = jnp.maximum(jnp.dot(h.astype(jnp.bfloat16), w3,
                                preferred_element_type=jnp.float32) + b3, 0.0)
        return jnp.dot(h.astype(jnp.bfloat16), w4,
                       preferred_element_type=jnp.float32) + b4

    def deriv(s):
        return jnp.concatenate([s[4:], mlp(s)], axis=-1)

    return _rk4_rollout(deriv, state.astype(jnp.float32))


if __name__ == "__main__":
    key = jax.random.PRNGKey(0)
    key, k_state, k_params = jax.random.split(key, 3)
    # state = [x(4), v(4)]
    state = jax.random.normal(k_state, (8,), jnp.float32)
    params = init_params(k_params)

    none_out, results = dyns_solver_forward(state, params)
    results = jax.block_until_ready(results)
    assert none_out is None
    assert results.shape == (SEQ_LEN - 1, 8) and results.dtype == jnp.float32
    assert bool(jnp.all(jnp.isfinite(results)))

    # Implementation check: kernel vs a reference with identical mixed precision.
    ref_mixed = _reference_forward_mixed(state, params)
    err_impl = float(jnp.max(jnp.abs(results - ref_mixed))
                     / (jnp.max(jnp.abs(ref_mixed)) + 1e-6))
    assert err_impl < 5e-2, f"kernel/mixed-reference mismatch: rel_err={err_impl}"

    # Drift check: mixed-precision kernel vs the full-f32 reference over 70 RK4 steps.
    ref32 = _reference_forward_f32(state, params)
    err_drift = float(jnp.max(jnp.abs(results - ref32))
                      / (jnp.max(jnp.abs(ref32)) + 1e-6))
    assert err_drift < 5e-2, f"mixed-precision drift vs f32 reference: rel_err={err_drift}"

    print("KERNEL_OK")
</pallas_src>

<mosaic_0001>
module attributes {stable_mosaic.version = 11 : i64} {
  func.func @_dyns_solver_kernel(%arg0: memref<3x8xf32, #tpu.memory_space<vmem>>, %arg1: memref<11x128xf32, #tpu.memory_space<vmem>>, %arg2: memref<2x128x128xbf16, #tpu.memory_space<vmem>>, %arg3: memref<128x8xbf16, #tpu.memory_space<vmem>>, %arg4: memref<7x8xf32, #tpu.memory_space<vmem>>) attributes {dimension_semantics = [], scalar_prefetch = 0 : i64, scratch_operands = 0 : i64, tpu.core_type = #tpu.core_type<tc>} {
    %c0 = arith.constant 0 : index
    %c0_0 = arith.constant 0 : index
    %0 = vector.load %arg0[%c0, %c0_0] : memref<3x8xf32, #tpu.memory_space<vmem>>, vector<1x8xf32>
    %c1 = arith.constant 1 : index
    %c0_1 = arith.constant 0 : index
    %1 = vector.load %arg0[%c1, %c0_1] : memref<3x8xf32, #tpu.memory_space<vmem>>, vector<1x8xf32>
    %c2 = arith.constant 2 : index
    %c0_2 = arith.constant 0 : index
    %2 = vector.load %arg0[%c2, %c0_2] : memref<3x8xf32, #tpu.memory_space<vmem>>, vector<1x8xf32>
    %c8 = arith.constant 8 : index
    %c0_3 = arith.constant 0 : index
    %3 = vector.load %arg1[%c8, %c0_3] : memref<11x128xf32, #tpu.memory_space<vmem>>, vector<1x128xf32>
    %c9 = arith.constant 9 : index
    %c0_4 = arith.constant 0 : index
    %4 = vector.load %arg1[%c9, %c0_4] : memref<11x128xf32, #tpu.memory_space<vmem>>, vector<1x128xf32>
    %c10 = arith.constant 10 : index
    %c0_5 = arith.constant 0 : index
    %5 = vector.load %arg1[%c10, %c0_5] : memref<11x128xf32, #tpu.memory_space<vmem>>, vector<1x128xf32>
    %6 = tpu.iota {dimensions = array<i32: 1>} : vector<1x8xi32>
    %c4_i32 = arith.constant 4 : i32
    %7 = vector.broadcast %c4_i32 : i32 to vector<1x8xi32>
    %8 = arith.cmpi sge, %6, %7 : vector<1x8xi32>
    %cst = arith.constant 1.000000e-01 : f32
    %cst_6 = arith.constant 0.333333343 : f32
    %c0_i32 = arith.constant 0 : i32
    %c7_i32 = arith.constant 7 : i32
    %9 = arith.addi %c0_i32, %c7_i32 : i32
    %c1_i32 = arith.constant 1 : i32
    %10:2 = scf.for %arg5 = %c0_i32 to %9 step %c1_i32 iter_args(%arg6 = %0, %arg7 = %1) -> (vector<1x8xf32>, vector<1x8xf32>)  : i32 {
      %c0_8 = arith.constant 0 : index
      %c0_9 = arith.constant 0 : index
      %11 = vector.load %arg1[%c0_8, %c0_9] : memref<11x128xf32, #tpu.memory_space<vmem>>, vector<8x128xf32>
      %cst_10 = arith.constant dense<0.000000e+00> : vector<1x128xf32>
      %12 = tpu.matmul %arg6, %11, %cst_10 {dimension_numbers = #tpu.dot_dimension_numbers<[1], [0], [0], [1], [0, 0, 1, 1], [], []>} : vector<1x8xf32>, vector<8x128xf32>, vector<1x128xf32> -> vector<1x128xf32>
      %13 = arith.addf %12, %3 : vector<1x128xf32>
      %cst_11 = arith.constant 0.000000e+00 : f32
      %14 = vector.broadcast %cst_11 : f32 to vector<1x128xf32>
      %15 = arith.maximumf %13, %14 : vector<1x128xf32>
      %16 = arith.truncf %15 : vector<1x128xf32> to vector<1x128xbf16>
      %c0_12 = arith.constant 0 : index
      %c0_13 = arith.constant 0 : index
      %c0_14 = arith.constant 0 : index
      %17 = vector.load %arg2[%c0_12, %c0_13, %c0_14] : memref<2x128x128xbf16, #tpu.memory_space<vmem>>, vector<1x128x128xbf16>
      %18 = vector.shape_cast %17 : vector<1x128x128xbf16> to vector<128x128xbf16>
      %cst_15 = arith.constant dense<0.000000e+00> : vector<1x128xf32>
      %19 = tpu.matmul %16, %18, %cst_15 {dimension_numbers = #tpu.dot_dimension_numbers<[1], [0], [0], [1], [0, 0, 1, 1], [], []>} : vector<1x128xbf16>, vector<128x128xbf16>, vector<1x128xf32> -> vector<1x128xf32>
      %20 = arith.addf %19, %4 : vector<1x128xf32>
      %cst_16 = arith.constant 0.000000e+00 : f32
      %21 = vector.broadcast %cst_16 : f32 to vector<1x128xf32>
      %22 = arith.maximumf %20, %21 : vector<1x128xf32>
      %23 = arith.truncf %22 : vector<1x128xf32> to vector<1x128xbf16>
      %c1_17 = arith.constant 1 : index
      %c0_18 = arith.constant 0 : index
      %c0_19 = arith.constant 0 : index
      %24 = vector.load %arg2[%c1_17, %c0_18, %c0_19] : memref<2x128x128xbf16, #tpu.memory_space<vmem>>, vector<1x128x128xbf16>
      %25 = vector.shape_cast %24 : vector<1x128x128xbf16> to vector<128x128xbf16>
      %cst_20 = arith.constant dense<0.000000e+00> : vector<1x128xf32>
      %26 = tpu.matmul %23, %25, %cst_20 {dimension_numbers = #tpu.dot_dimension_numbers<[1], [0], [0], [1], [0, 0, 1, 1], [], []>} : vector<1x128xbf16>, vector<128x128xbf16>, vector<1x128xf32> -> vector<1x128xf32>
      %27 = arith.addf %26, %5 : vector<1x128xf32>
      %cst_21 = arith.constant 0.000000e+00 : f32
      %28 = vector.broadcast %cst_21 : f32 to vector<1x128xf32>
      %29 = arith.maximumf %27, %28 : vector<1x128xf32>
      %30 = arith.truncf %29 : vector<1x128xf32> to vector<1x128xbf16>
      %c0_22 = arith.constant 0 : index
      %c0_23 = arith.constant 0 : index
      %31 = vector.load %arg3[%c0_22, %c0_23] : memref<128x8xbf16, #tpu.memory_space<vmem>>, vector<128x8xbf16>
      %cst_24 = arith.constant dense<0.000000e+00> : vector<1x8xf32>
      %32 = tpu.matmul %30, %31, %cst_24 {dimension_numbers = #tpu.dot_dimension_numbers<[1], [0], [0], [1], [0, 0, 1, 1], [], []>} : vector<1x128xbf16>, vector<128x8xbf16>, vector<1x8xf32> -> vector<1x8xf32>
      %33 = arith.addf %32, %2 : vector<1x8xf32>
      %cst_25 = arith.constant 0.000000e+00 : f32
      %34 = vector.broadcast %cst_25 : f32 to vector<1x8xf32>
      %35 = arith.select %8, %33, %34 : vector<1x8xi1>, vector<1x8xf32>
      %36 = arith.addf %arg7, %35 : vector<1x8xf32>
      %cst_26 = arith.constant 0.000000e+00 : f32
      %37 = vector.broadcast %cst_26 : f32 to vector<1x8xf32>
      %38 = arith.select %8, %37, %33 : vector<1x8xi1>, vector<1x8xf32>
      %39 = arith.mulf %cst, %cst_6 : f32
      %40 = vector.broadcast %39 : f32 to vector<1x8xf32>
      %41 = arith.mulf %40, %36 : vector<1x8xf32>
      %42 = arith.addf %arg6, %41 : vector<1x8xf32>
      %43 = arith.mulf %cst, %cst_6 : f32
      %44 = vector.broadcast %43 : f32 to vector<1x8xf32>
      %45 = arith.mulf %44, %38 : vector<1x8xf32>
      %46 = arith.addf %arg7, %45 : vector<1x8xf32>
      %c0_27 = arith.constant 0 : index
      %c0_28 = arith.constant 0 : index
      %47 = vector.load %arg1[%c0_27, %c0_28] : memref<11x128xf32, #tpu.memory_space<vmem>>, vector<8x128xf32>
      %cst_29 = arith.constant dense<0.000000e+00> : vector<1x128xf32>
      %48 = tpu.matmul %42, %47, %cst_29 {dimension_numbers = #tpu.dot_dimension_numbers<[1], [0], [0], [1], [0, 0, 1, 1], [], []>} : vector<1x8xf32>, vector<8x128xf32>, vector<1x128xf32> -> vector<1x128xf32>
      %49 = arith.addf %48, %3 : vector<1x128xf32>
      %cst_30 = arith.constant 0.000000e+00 : f32
      %50 = vector.broadcast %cst_30 : f32 to vector<1x128xf32>
      %51 = arith.maximumf %49, %50 : vector<1x128xf32>
      %52 = arith.truncf %51 : vector<1x128xf32> to vector<1x128xbf16>
      %c0_31 = arith.constant 0 : index
      %c0_32 = arith.constant 0 : index
      %c0_33 = arith.constant 0 : index
      %53 = vector.load %arg2[%c0_31, %c0_32, %c0_33] : memref<2x128x128xbf16, #tpu.memory_space<vmem>>, vector<1x128x128xbf16>
      %54 = vector.shape_cast %53 : vector<1x128x128xbf16> to vector<128x128xbf16>
      %cst_34 = arith.constant dense<0.000000e+00> : vector<1x128xf32>
      %55 = tpu.matmul %52, %54, %cst_34 {dimension_numbers = #tpu.dot_dimension_numbers<[1], [0], [0], [1], [0, 0, 1, 1], [], []>} : vector<1x128xbf16>, vector<128x128xbf16>, vector<1x128xf32> -> vector<1x128xf32>
      %56 = arith.addf %55, %4 : vector<1x128xf32>
      %cst_35 = arith.constant 0.000000e+00 : f32
      %57 = vector.broadcast %cst_35 : f32 to vector<1x128xf32>
      %58 = arith.maximumf %56, %57 : vector<1x128xf32>
      %59 = arith.truncf %58 : vector<1x128xf32> to vector<1x128xbf16>
      %c1_36 = arith.constant 1 : index
      %c0_37 = arith.constant 0 : index
      %c0_38 = arith.constant 0 : index
      %60 = vector.load %arg2[%c1_36, %c0_37, %c0_38] : memref<2x128x128xbf16, #tpu.memory_space<vmem>>, vector<1x128x128xbf16>
      %61 = vector.shape_cast %60 : vector<1x128x128xbf16> to vector<128x128xbf16>
      %cst_39 = arith.constant dense<0.000000e+00> : vector<1x128xf32>
      %62 = tpu.matmul %59, %61, %cst_39 {dimension_numbers = #tpu.dot_dimension_numbers<[1], [0], [0], [1], [0, 0, 1, 1], [], []>} : vector<1x128xbf16>, vector<128x128xbf16>, vector<1x128xf32> -> vector<1x128xf32>
      %63 = arith.addf %62, %5 : vector<1x128xf32>
      %cst_40 = arith.constant 0.000000e+00 : f32
      %64 = vector.broadcast %cst_40 : f32 to vector<1x128xf32>
      %65 = arith.maximumf %63, %64 : vector<1x128xf32>
      %66 = arith.truncf %65 : vector<1x128xf32> to vector<1x128xbf16>
      %c0_41 = arith.constant 0 : index
      %c0_42 = arith.constant 0 : index
      %67 = vector.load %arg3[%c0_41, %c0_42] : memref<128x8xbf16, #tpu.memory_space<vmem>>, vector<128x8xbf16>
      %cst_43 = arith.constant dense<0.000000e+00> : vector<1x8xf32>
      %68 = tpu.matmul %66, %67, %cst_43 {dimension_numbers = #tpu.dot_dimension_numbers<[1], [0], [0], [1], [0, 0, 1, 1], [], []>} : vector<1x128xbf16>, vector<128x8xbf16>, vector<1x8xf32> -> vector<1x8xf32>
      %69 = arith.addf %68, %2 : vector<1x8xf32>
      %cst_44 = arith.constant 0.000000e+00 : f32
      %70 = vector.broadcast %cst_44 : f32 to vector<1x8xf32>
      %71 = arith.select %8, %69, %70 : vector<1x8xi1>, vector<1x8xf32>
      %72 = arith.addf %46, %71 : vector<1x8xf32>
      %cst_45 = arith.constant 0.000000e+00 : f32
      %73 = vector.broadcast %cst_45 : f32 to vector<1x8xf32>
      %74 = arith.select %8, %73, %69 : vector<1x8xi1>, vector<1x8xf32>
      %75 = vector.broadcast %cst_6 : f32 to vector<1x8xf32>
      %76 = arith.mulf %75, %36 : vector<1x8xf32>
      %77 = arith.subf %72, %76 : vector<1x8xf32>
      %78 = vector.broadcast %cst : f32 to vector<1x8xf32>
      %79 = arith.mulf %78, %77 : vector<1x8xf32>
      %80 = arith.addf %arg6, %79 : vector<1x8xf32>
      %81 = vector.broadcast %cst_6 : f32 to vector<1x8xf32>
      %82 = arith.mulf %81, %38 : vector<1x8xf32>
      %83 = arith.subf %74, %82 : vector<1x8xf32>
      %84 = vector.broadcast %cst : f32 to vector<1x8xf32>
      %85 = arith.mulf %84, %83 : vector<1x8xf32>
      %86 = arith.addf %arg7, %85 : vector<1x8xf32>
      %c0_46 = arith.constant 0 : index
      %c0_47 = arith.constant 0 : index
      %87 = vector.load %arg1[%c0_46, %c0_47] : memref<11x128xf32, #tpu.memory_space<vmem>>, vector<8x128xf32>
      %cst_48 = arith.constant dense<0.000000e+00> : vector<1x128xf32>
      %88 = tpu.matmul %80, %87, %cst_48 {dimension_numbers = #tpu.dot_dimension_numbers<[1], [0], [0], [1], [0, 0, 1, 1], [], []>} : vector<1x8xf32>, vector<8x128xf32>, vector<1x128xf32> -> vector<1x128xf32>
      %89 = arith.addf %88, %3 : vector<1x128xf32>
      %cst_49 = arith.constant 0.000000e+00 : f32
      %90 = vector.broadcast %cst_49 : f32 to vector<1x128xf32>
      %91 = arith.maximumf %89, %90 : vector<1x128xf32>
      %92 = arith.truncf %91 : vector<1x128xf32> to vector<1x128xbf16>
      %c0_50 = arith.constant 0 : index
      %c0_51 = arith.constant 0 : index
      %c0_52 = arith.constant 0 : index
      %93 = vector.load %arg2[%c0_50, %c0_51, %c0_52] : memref<2x128x128xbf16, #tpu.memory_space<vmem>>, vector<1x128x128xbf16>
      %94 = vector.shape_cast %93 : vector<1x128x128xbf16> to vector<128x128xbf16>
      %cst_53 = arith.constant dense<0.000000e+00> : vector<1x128xf32>
      %95 = tpu.matmul %92, %94, %cst_53 {dimension_numbers = #tpu.dot_dimension_numbers<[1], [0], [0], [1], [0, 0, 1, 1], [], []>} : vector<1x128xbf16>, vector<128x128xbf16>, vector<1x128xf32> -> vector<1x128xf32>
      %96 = arith.addf %95, %4 : vector<1x128xf32>
      %cst_54 = arith.constant 0.000000e+00 : f32
      %97 = vector.broadcast %cst_54 : f32 to vector<1x128xf32>
      %98 = arith.maximumf %96, %97 : vector<1x128xf32>
      %99 = arith.truncf %98 : vector<1x128xf32> to vector<1x128xbf16>
      %c1_55 = arith.constant 1 : index
      %c0_56 = arith.constant 0 : index
      %c0_57 = arith.constant 0 : index
      %100 = vector.load %arg2[%c1_55, %c0_56, %c0_57] : memref<2x128x128xbf16, #tpu.memory_space<vmem>>, vector<1x128x128xbf16>
      %101 = vector.shape_cast %100 : vector<1x128x128xbf16> to vector<128x128xbf16>
      %cst_58 = arith.constant dense<0.000000e+00> : vector<1x128xf32>
      %102 = tpu.matmul %99, %101, %cst_58 {dimension_numbers = #tpu.dot_dimension_numbers<[1], [0], [0], [1], [0, 0, 1, 1], [], []>} : vector<1x128xbf16>, vector<128x128xbf16>, vector<1x128xf32> -> vector<1x128xf32>
      %103 = arith.addf %102, %5 : vector<1x128xf32>
      %cst_59 = arith.constant 0.000000e+00 : f32
      %104 = vector.broadcast %cst_59 : f32 to vector<1x128xf32>
      %105 = arith.maximumf %103, %104 : vector<1x128xf32>
      %106 = arith.truncf %105 : vector<1x128xf32> to vector<1x128xbf16>
      %c0_60 = arith.constant 0 : index
      %c0_61 = arith.constant 0 : index
      %107 = vector.load %arg3[%c0_60, %c0_61] : memref<128x8xbf16, #tpu.memory_space<vmem>>, vector<128x8xbf16>
      %cst_62 = arith.constant dense<0.000000e+00> : vector<1x8xf32>
      %108 = tpu.matmul %106, %107, %cst_62 {dimension_numbers = #tpu.dot_dimension_numbers<[1], [0], [0], [1], [0, 0, 1, 1], [], []>} : vector<1x128xbf16>, vector<128x8xbf16>, vector<1x8xf32> -> vector<1x8xf32>
      %109 = arith.addf %108, %2 : vector<1x8xf32>
      %cst_63 = arith.constant 0.000000e+00 : f32
      %110 = vector.broadcast %cst_63 : f32 to vector<1x8xf32>
      %111 = arith.select %8, %109, %110 : vector<1x8xi1>, vector<1x8xf32>
      %112 = arith.addf %86, %111 : vector<1x8xf32>
      %cst_64 = arith.constant 0.000000e+00 : f32
      %113 = vector.broadcast %cst_64 : f32 to vector<1x8xf32>
      %114 = arith.select %8, %113, %109 : vector<1x8xi1>, vector<1x8xf32>
      %115 = arith.subf %36, %72 : vector<1x8xf32>
      %116 = arith.addf %115, %112 : vector<1x8xf32>
      %117 = vector.broadcast %cst : f32 to vector<1x8xf32>
      %118 = arith.mulf %117, %116 : vector<1x8xf32>
      %119 = arith.addf %arg6, %118 : vector<1x8xf32>
      %120 = arith.subf %38, %74 : vector<1x8xf32>
      %121 = arith.addf %120, %114 : vector<1x8xf32>
      %122 = vector.broadcast %cst : f32 to vector<1x8xf32>
      %123 = arith.mulf %122, %121 : vector<1x8xf32>
      %124 = arith.addf %arg7, %123 : vector<1x8xf32>
      %c0_65 = arith.constant 0 : index
      %c0_66 = arith.constant 0 : index
      %125 = vector.load %arg1[%c0_65, %c0_66] : memref<11x128xf32, #tpu.memory_space<vmem>>, vector<8x128xf32>
      %cst_67 = arith.constant dense<0.000000e+00> : vector<1x128xf32>
      %126 = tpu.matmul %119, %125, %cst_67 {dimension_numbers = #tpu.dot_dimension_numbers<[1], [0], [0], [1], [0, 0, 1, 1], [], []>} : vector<1x8xf32>, vector<8x128xf32>, vector<1x128xf32> -> vector<1x128xf32>
      %127 = arith.addf %126, %3 : vector<1x128xf32>
      %cst_68 = arith.constant 0.000000e+00 : f32
      %128 = vector.broadcast %cst_68 : f32 to vector<1x128xf32>
      %129 = arith.maximumf %127, %128 : vector<1x128xf32>
      %130 = arith.truncf %129 : vector<1x128xf32> to vector<1x128xbf16>
      %c0_69 = arith.constant 0 : index
      %c0_70 = arith.constant 0 : index
      %c0_71 = arith.constant 0 : index
      %131 = vector.load %arg2[%c0_69, %c0_70, %c0_71] : memref<2x128x128xbf16, #tpu.memory_space<vmem>>, vector<1x128x128xbf16>
      %132 = vector.shape_cast %131 : vector<1x128x128xbf16> to vector<128x128xbf16>
      %cst_72 = arith.constant dense<0.000000e+00> : vector<1x128xf32>
      %133 = tpu.matmul %130, %132, %cst_72 {dimension_numbers = #tpu.dot_dimension_numbers<[1], [0], [0], [1], [0, 0, 1, 1], [], []>} : vector<1x128xbf16>, vector<128x128xbf16>, vector<1x128xf32> -> vector<1x128xf32>
      %134 = arith.addf %133, %4 : vector<1x128xf32>
      %cst_73 = arith.constant 0.000000e+00 : f32
      %135 = vector.broadcast %cst_73 : f32 to vector<1x128xf32>
      %136 = arith.maximumf %134, %135 : vector<1x128xf32>
      %137 = arith.truncf %136 : vector<1x128xf32> to vector<1x128xbf16>
      %c1_74 = arith.constant 1 : index
      %c0_75 = arith.constant 0 : index
      %c0_76 = arith.constant 0 : index
      %138 = vector.load %arg2[%c1_74, %c0_75, %c0_76] : memref<2x128x128xbf16, #tpu.memory_space<vmem>>, vector<1x128x128xbf16>
      %139 = vector.shape_cast %138 : vector<1x128x128xbf16> to vector<128x128xbf16>
      %cst_77 = arith.constant dense<0.000000e+00> : vector<1x128xf32>
      %140 = tpu.matmul %137, %139, %cst_77 {dimension_numbers = #tpu.dot_dimension_numbers<[1], [0], [0], [1], [0, 0, 1, 1], [], []>} : vector<1x128xbf16>, vector<128x128xbf16>, vector<1x128xf32> -> vector<1x128xf32>
      %141 = arith.addf %140, %5 : vector<1x128xf32>
      %cst_78 = arith.constant 0.000000e+00 : f32
      %142 = vector.broadcast %cst_78 : f32 to vector<1x128xf32>
      %143 = arith.maximumf %141, %142 : vector<1x128xf32>
      %144 = arith.truncf %143 : vector<1x128xf32> to vector<1x128xbf16>
      %c0_79 = arith.constant 0 : index
      %c0_80 = arith.constant 0 : index
      %145 = vector.load %arg3[%c0_79, %c0_80] : memref<128x8xbf16, #tpu.memory_space<vmem>>, vector<128x8xbf16>
      %cst_81 = arith.constant dense<0.000000e+00> : vector<1x8xf32>
      %146 = tpu.matmul %144, %145, %cst_81 {dimension_numbers = #tpu.dot_dimension_numbers<[1], [0], [0], [1], [0, 0, 1, 1], [], []>} : vector<1x128xbf16>, vector<128x8xbf16>, vector<1x8xf32> -> vector<1x8xf32>
      %147 = arith.addf %146, %2 : vector<1x8xf32>
      %cst_82 = arith.constant 0.000000e+00 : f32
      %148 = vector.broadcast %cst_82 : f32 to vector<1x8xf32>
      %149 = arith.select %8, %147, %148 : vector<1x8xi1>, vector<1x8xf32>
      %150 = arith.addf %124, %149 : vector<1x8xf32>
      %cst_83 = arith.constant 0.000000e+00 : f32
      %151 = vector.broadcast %cst_83 : f32 to vector<1x8xf32>
      %152 = arith.select %8, %151, %147 : vector<1x8xi1>, vector<1x8xf32>
      %153 = arith.addf %72, %112 : vector<1x8xf32>
      %cst_84 = arith.constant 3.000000e+00 : f32
      %154 = vector.broadcast %cst_84 : f32 to vector<1x8xf32>
      %155 = arith.mulf %154, %153 : vector<1x8xf32>
      %156 = arith.addf %36, %155 : vector<1x8xf32>
      %157 = arith.addf %156, %150 : vector<1x8xf32>
      %158 = vector.broadcast %cst : f32 to vector<1x8xf32>
      %159 = arith.mulf %158, %157 : vector<1x8xf32>
      %cst_85 = arith.constant 1.250000e-01 : f32
      %160 = vector.broadcast %cst_85 : f32 to vector<1x8xf32>
      %161 = arith.mulf %159, %160 : vector<1x8xf32>
      %162 = arith.addf %arg6, %161 : vector<1x8xf32>
      %163 = arith.addf %74, %114 : vector<1x8xf32>
      %cst_86 = arith.constant 3.000000e+00 : f32
      %164 = vector.broadcast %cst_86 : f32 to vector<1x8xf32>
      %165 = arith.mulf %164, %163 : vector<1x8xf32>
      %166 = arith.addf %38, %165 : vector<1x8xf32>
      %167 = arith.addf %166, %152 : vector<1x8xf32>
      %168 = vector.broadcast %cst : f32 to vector<1x8xf32>
      %169 = arith.mulf %168, %167 : vector<1x8xf32>
      %cst_87 = arith.constant 1.250000e-01 : f32
      %170 = vector.broadcast %cst_87 : f32 to vector<1x8xf32>
      %171 = arith.mulf %169, %170 : vector<1x8xf32>
      %172 = arith.addf %arg7, %171 : vector<1x8xf32>
      %c0_88 = arith.constant 0 : index
      %c0_89 = arith.constant 0 : index
      %173 = vector.load %arg1[%c0_88, %c0_89] : memref<11x128xf32, #tpu.memory_space<vmem>>, vector<8x128xf32>
      %cst_90 = arith.constant dense<0.000000e+00> : vector<1x128xf32>
      %174 = tpu.matmul %162, %173, %cst_90 {dimension_numbers = #tpu.dot_dimension_numbers<[1], [0], [0], [1], [0, 0, 1, 1], [], []>} : vector<1x8xf32>, vector<8x128xf32>, vector<1x128xf32> -> vector<1x128xf32>
      %175 = arith.addf %174, %3 : vector<1x128xf32>
      %cst_91 = arith.constant 0.000000e+00 : f32
      %176 = vector.broadcast %cst_91 : f32 to vector<1x128xf32>
      %177 = arith.maximumf %175, %176 : vector<1x128xf32>
      %178 = arith.truncf %177 : vector<1x128xf32> to vector<1x128xbf16>
      %c0_92 = arith.constant 0 : index
      %c0_93 = arith.constant 0 : index
      %c0_94 = arith.constant 0 : index
      %179 = vector.load %arg2[%c0_92, %c0_93, %c0_94] : memref<2x128x128xbf16, #tpu.memory_space<vmem>>, vector<1x128x128xbf16>
      %180 = vector.shape_cast %179 : vector<1x128x128xbf16> to vector<128x128xbf16>
      %cst_95 = arith.constant dense<0.000000e+00> : vector<1x128xf32>
      %181 = tpu.matmul %178, %180, %cst_95 {dimension_numbers = #tpu.dot_dimension_numbers<[1], [0], [0], [1], [0, 0, 1, 1], [], []>} : vector<1x128xbf16>, vector<128x128xbf16>, vector<1x128xf32> -> vector<1x128xf32>
      %182 = arith.addf %181, %4 : vector<1x128xf32>
      %cst_96 = arith.constant 0.000000e+00 : f32
      %183 = vector.broadcast %cst_96 : f32 to vector<1x128xf32>
      %184 = arith.maximumf %182, %183 : vector<1x128xf32>
      %185 = arith.truncf %184 : vector<1x128xf32> to vector<1x128xbf16>
      %c1_97 = arith.constant 1 : index
      %c0_98 = arith.constant 0 : index
      %c0_99 = arith.constant 0 : index
      %186 = vector.load %arg2[%c1_97, %c0_98, %c0_99] : memref<2x128x128xbf16, #tpu.memory_space<vmem>>, vector<1x128x128xbf16>
      %187 = vector.shape_cast %186 : vector<1x128x128xbf16> to vector<128x128xbf16>
      %cst_100 = arith.constant dense<0.000000e+00> : vector<1x128xf32>
      %188 = tpu.matmul %185, %187, %cst_100 {dimension_numbers = #tpu.dot_dimension_numbers<[1], [0], [0], [1], [0, 0, 1, 1], [], []>} : vector<1x128xbf16>, vector<128x128xbf16>, vector<1x128xf32> -> vector<1x128xf32>
      %189 = arith.addf %188, %5 : vector<1x128xf32>
      %cst_101 = arith.constant 0.000000e+00 : f32
      %190 = vector.broadcast %cst_101 : f32 to vector<1x128xf32>
      %191 = arith.maximumf %189, %190 : vector<1x128xf32>
      %192 = arith.truncf %191 : vector<1x128xf32> to vector<1x128xbf16>
      %c0_102 = arith.constant 0 : index
      %c0_103 = arith.constant 0 : index
      %193 = vector.load %arg3[%c0_102, %c0_103] : memref<128x8xbf16, #tpu.memory_space<vmem>>, vector<128x8xbf16>
      %cst_104 = arith.constant dense<0.000000e+00> : vector<1x8xf32>
      %194 = tpu.matmul %192, %193, %cst_104 {dimension_numbers = #tpu.dot_dimension_numbers<[1], [0], [0], [1], [0, 0, 1, 1], [], []>} : vector<1x128xbf16>, vector<128x8xbf16>, vector<1x8xf32> -> vector<1x8xf32>
      %195 = arith.addf %194, %2 : vector<1x8xf32>
      %cst_105 = arith.constant 0.000000e+00 : f32
      %196 = vector.broadcast %cst_105 : f32 to vector<1x8xf32>
      %197 = arith.select %8, %195, %196 : vector<1x8xi1>, vector<1x8xf32>
      %198 = arith.addf %172, %197 : vector<1x8xf32>
      %cst_106 = arith.constant 0.000000e+00 : f32
      %199 = vector.broadcast %cst_106 : f32 to vector<1x8xf32>
      %200 = arith.select %8, %199, %195 : vector<1x8xi1>, vector<1x8xf32>
      %201 = arith.mulf %cst, %cst_6 : f32
      %202 = vector.broadcast %201 : f32 to vector<1x8xf32>
      %203 = arith.mulf %202, %198 : vector<1x8xf32>
      %204 = arith.addf %162, %203 : vector<1x8xf32>
      %205 = arith.mulf %cst, %cst_6 : f32
      %206 = vector.broadcast %205 : f32 to vector<1x8xf32>
      %207 = arith.mulf %206, %200 : vector<1x8xf32>
      %208 = arith.addf %172, %207 : vector<1x8xf32>
      %c0_107 = arith.constant 0 : index
      %c0_108 = arith.constant 0 : index
      %209 = vector.load %arg1[%c0_107, %c0_108] : memref<11x128xf32, #tpu.memory_space<vmem>>, vector<8x128xf32>
      %cst_109 = arith.constant dense<0.000000e+00> : vector<1x128xf32>
      %210 = tpu.matmul %204, %209, %cst_109 {dimension_numbers = #tpu.dot_dimension_numbers<[1], [0], [0], [1], [0, 0, 1, 1], [], []>} : vector<1x8xf32>, vector<8x128xf32>, vector<1x128xf32> -> vector<1x128xf32>
      %211 = arith.addf %210, %3 : vector<1x128xf32>
      %cst_110 = arith.constant 0.000000e+00 : f32
      %212 = vector.broadcast %cst_110 : f32 to vector<1x128xf32>
      %213 = arith.maximumf %211, %212 : vector<1x128xf32>
      %214 = arith.truncf %213 : vector<1x128xf32> to vector<1x128xbf16>
      %c0_111 = arith.constant 0 : index
      %c0_112 = arith.constant 0 : index
      %c0_113 = arith.constant 0 : index
      %215 = vector.load %arg2[%c0_111, %c0_112, %c0_113] : memref<2x128x128xbf16, #tpu.memory_space<vmem>>, vector<1x128x128xbf16>
      %216 = vector.shape_cast %215 : vector<1x128x128xbf16> to vector<128x128xbf16>
      %cst_114 = arith.constant dense<0.000000e+00> : vector<1x128xf32>
      %217 = tpu.matmul %214, %216, %cst_114 {dimension_numbers = #tpu.dot_dimension_numbers<[1], [0], [0], [1], [0, 0, 1, 1], [], []>} : vector<1x128xbf16>, vector<128x128xbf16>, vector<1x128xf32> -> vector<1x128xf32>
      %218 = arith.addf %217, %4 : vector<1x128xf32>
      %cst_115 = arith.constant 0.000000e+00 : f32
      %219 = vector.broadcast %cst_115 : f32 to vector<1x128xf32>
      %220 = arith.maximumf %218, %219 : vector<1x128xf32>
      %221 = arith.truncf %220 : vector<1x128xf32> to vector<1x128xbf16>
      %c1_116 = arith.constant 1 : index
      %c0_117 = arith.constant 0 : index
      %c0_118 = arith.constant 0 : index
      %222 = vector.load %arg2[%c1_116, %c0_117, %c0_118] : memref<2x128x128xbf16, #tpu.memory_space<vmem>>, vector<1x128x128xbf16>
      %223 = vector.shape_cast %222 : vector<1x128x128xbf16> to vector<128x128xbf16>
      %cst_119 = arith.constant dense<0.000000e+00> : vector<1x128xf32>
      %224 = tpu.matmul %221, %223, %cst_119 {dimension_numbers = #tpu.dot_dimension_numbers<[1], [0], [0], [1], [0, 0, 1, 1], [], []>} : vector<1x128xbf16>, vector<128x128xbf16>, vector<1x128xf32> -> vector<1x128xf32>
      %225 = arith.addf %224, %5 : vector<1x128xf32>
      %cst_120 = arith.constant 0.000000e+00 : f32
      %226 = vector.broadcast %cst_120 : f32 to vector<1x128xf32>
      %227 = arith.maximumf %225, %226 : vector<1x128xf32>
      %228 = arith.truncf %227 : vector<1x128xf32> to vector<1x128xbf16>
      %c0_121 = arith.constant 0 : index
      %c0_122 = arith.constant 0 : index
      %229 = vector.load %arg3[%c0_121, %c0_122] : memref<128x8xbf16, #tpu.memory_space<vmem>>, vector<128x8xbf16>
      %cst_123 = arith.constant dense<0.000000e+00> : vector<1x8xf32>
      %230 = tpu.matmul %228, %229, %cst_123 {dimension_numbers = #tpu.dot_dimension_numbers<[1], [0], [0], [1], [0, 0, 1, 1], [], []>} : vector<1x128xbf16>, vector<128x8xbf16>, vector<1x8xf32> -> vector<1x8xf32>
      %231 = arith.addf %230, %2 : vector<1x8xf32>
      %cst_124 = arith.constant 0.000000e+00 : f32
      %232 = vector.broadcast %cst_124 : f32 to vector<1x8xf32>
      %233 = arith.select %8, %231, %232 : vector<1x8xi1>, vector<1x8xf32>
      %234 = arith.addf %208, %233 : vector<1x8xf32>
      %cst_125 = arith.constant 0.000000e+00 : f32
      %235 = vector.broadcast %cst_125 : f32 to vector<1x8xf32>
      %236 = arith.select %8, %235, %231 : vector<1x8xi1>, vector<1x8xf32>
      %237 = vector.broadcast %cst_6 : f32 to vector<1x8xf32>
      %238 = arith.mulf %237, %198 : vector<1x8xf32>
      %239 = arith.subf %234, %238 : vector<1x8xf32>
      %240 = vector.broadcast %cst : f32 to vector<1x8xf32>
      %241 = arith.mulf %240, %239 : vector<1x8xf32>
      %242 = arith.addf %162, %241 : vector<1x8xf32>
      %243 = vector.broadcast %cst_6 : f32 to vector<1x8xf32>
      %244 = arith.mulf %243, %200 : vector<1x8xf32>
      %245 = arith.subf %236, %244 : vector<1x8xf32>
      %246 = vector.broadcast %cst : f32 to vector<1x8xf32>
      %247 = arith.mulf %246, %245 : vector<1x8xf32>
      %248 = arith.addf %172, %247 : vector<1x8xf32>
      %c0_126 = arith.constant 0 : index
      %c0_127 = arith.constant 0 : index
      %249 = vector.load %arg1[%c0_126, %c0_127] : memref<11x128xf32, #tpu.memory_space<vmem>>, vector<8x128xf32>
      %cst_128 = arith.constant dense<0.000000e+00> : vector<1x128xf32>
      %250 = tpu.matmul %242, %249, %cst_128 {dimension_numbers = #tpu.dot_dimension_numbers<[1], [0], [0], [1], [0, 0, 1, 1], [], []>} : vector<1x8xf32>, vector<8x128xf32>, vector<1x128xf32> -> vector<1x128xf32>
      %251 = arith.addf %250, %3 : vector<1x128xf32>
      %cst_129 = arith.constant 0.000000e+00 : f32
      %252 = vector.broadcast %cst_129 : f32 to vector<1x128xf32>
      %253 = arith.maximumf %251, %252 : vector<1x128xf32>
      %254 = arith.truncf %253 : vector<1x128xf32> to vector<1x128xbf16>
      %c0_130 = arith.constant 0 : index
      %c0_131 = arith.constant 0 : index
      %c0_132 = arith.constant 0 : index
      %255 = vector.load %arg2[%c0_130, %c0_131, %c0_132] : memref<2x128x128xbf16, #tpu.memory_space<vmem>>, vector<1x128x128xbf16>
      %256 = vector.shape_cast %255 : vector<1x128x128xbf16> to vector<128x128xbf16>
      %cst_133 = arith.constant dense<0.000000e+00> : vector<1x128xf32>
      %257 = tpu.matmul %254, %256, %cst_133 {dimension_numbers = #tpu.dot_dimension_numbers<[1], [0], [0], [1], [0, 0, 1, 1], [], []>} : vector<1x128xbf16>, vector<128x128xbf16>, vector<1x128xf32> -> vector<1x128xf32>
      %258 = arith.addf %257, %4 : vector<1x128xf32>
      %cst_134 = arith.constant 0.000000e+00 : f32
      %259 = vector.broadcast %cst_134 : f32 to vector<1x128xf32>
      %260 = arith.maximumf %258, %259 : vector<1x128xf32>
      %261 = arith.truncf %260 : vector<1x128xf32> to vector<1x128xbf16>
      %c1_135 = arith.constant 1 : index
      %c0_136 = arith.constant 0 : index
      %c0_137 = arith.constant 0 : index
      %262 = vector.load %arg2[%c1_135, %c0_136, %c0_137] : memref<2x128x128xbf16, #tpu.memory_space<vmem>>, vector<1x128x128xbf16>
      %263 = vector.shape_cast %262 : vector<1x128x128xbf16> to vector<128x128xbf16>
      %cst_138 = arith.constant dense<0.000000e+00> : vector<1x128xf32>
      %264 = tpu.matmul %261, %263, %cst_138 {dimension_numbers = #tpu.dot_dimension_numbers<[1], [0], [0], [1], [0, 0, 1, 1], [], []>} : vector<1x128xbf16>, vector<128x128xbf16>, vector<1x128xf32> -> vector<1x128xf32>
      %265 = arith.addf %264, %5 : vector<1x128xf32>
      %cst_139 = arith.constant 0.000000e+00 : f32
      %266 = vector.broadcast %cst_139 : f32 to vector<1x128xf32>
      %267 = arith.maximumf %265, %266 : vector<1x128xf32>
      %268 = arith.truncf %267 : vector<1x128xf32> to vector<1x128xbf16>
      %c0_140 = arith.constant 0 : index
      %c0_141 = arith.constant 0 : index
      %269 = vector.load %arg3[%c0_140, %c0_141] : memref<128x8xbf16, #tpu.memory_space<vmem>>, vector<128x8xbf16>
      %cst_142 = arith.constant dense<0.000000e+00> : vector<1x8xf32>
      %270 = tpu.matmul %268, %269, %cst_142 {dimension_numbers = #tpu.dot_dimension_numbers<[1], [0], [0], [1], [0, 0, 1, 1], [], []>} : vector<1x128xbf16>, vector<128x8xbf16>, vector<1x8xf32> -> vector<1x8xf32>
      %271 = arith.addf %270, %2 : vector<1x8xf32>
      %cst_143 = arith.constant 0.000000e+00 : f32
      %272 = vector.broadcast %cst_143 : f32 to vector<1x8xf32>
      %273 = arith.select %8, %271, %272 : vector<1x8xi1>, vector<1x8xf32>
      %274 = arith.addf %248, %273 : vector<1x8xf32>
      %cst_144 = arith.constant 0.000000e+00 : f32
      %275 = vector.broadcast %cst_144 : f32 to vector<1x8xf32>
      %276 = arith.select %8, %275, %271 : vector<1x8xi1>, vector<1x8xf32>
      %277 = arith.subf %198, %234 : vector<1x8xf32>
      %278 = arith.addf %277, %274 : vector<1x8xf32>
      %279 = vector.broadcast %cst : f32 to vector<1x8xf32>
      %280 = arith.mulf %279, %278 : vector<1x8xf32>
      %281 = arith.addf %162, %280 : vector<1x8xf32>
      %282 = arith.subf %200, %236 : vector<1x8xf32>
      %283 = arith.addf %282, %276 : vector<1x8xf32>
      %284 = vector.broadcast %cst : f32 to vector<1x8xf32>
      %285 = arith.mulf %284, %283 : vector<1x8xf32>
      %286 = arith.addf %172, %285 : vector<1x8xf32>
      %c0_145 = arith.constant 0 : index
      %c0_146 = arith.constant 0 : index
      %287 = vector.load %arg1[%c0_145, %c0_146] : memref<11x128xf32, #tpu.memory_space<vmem>>, vector<8x128xf32>
      %cst_147 = arith.constant dense<0.000000e+00> : vector<1x128xf32>
      %288 = tpu.matmul %281, %287, %cst_147 {dimension_numbers = #tpu.dot_dimension_numbers<[1], [0], [0], [1], [0, 0, 1, 1], [], []>} : vector<1x8xf32>, vector<8x128xf32>, vector<1x128xf32> -> vector<1x128xf32>
      %289 = arith.addf %288, %3 : vector<1x128xf32>
      %cst_148 = arith.constant 0.000000e+00 : f32
      %290 = vector.broadcast %cst_148 : f32 to vector<1x128xf32>
      %291 = arith.maximumf %289, %290 : vector<1x128xf32>
      %292 = arith.truncf %291 : vector<1x128xf32> to vector<1x128xbf16>
      %c0_149 = arith.constant 0 : index
      %c0_150 = arith.constant 0 : index
      %c0_151 = arith.constant 0 : index
      %293 = vector.load %arg2[%c0_149, %c0_150, %c0_151] : memref<2x128x128xbf16, #tpu.memory_space<vmem>>, vector<1x128x128xbf16>
      %294 = vector.shape_cast %293 : vector<1x128x128xbf16> to vector<128x128xbf16>
      %cst_152 = arith.constant dense<0.000000e+00> : vector<1x128xf32>
      %295 = tpu.matmul %292, %294, %cst_152 {dimension_numbers = #tpu.dot_dimension_numbers<[1], [0], [0], [1], [0, 0, 1, 1], [], []>} : vector<1x128xbf16>, vector<128x128xbf16>, vector<1x128xf32> -> vector<1x128xf32>
      %296 = arith.addf %295, %4 : vector<1x128xf32>
      %cst_153 = arith.constant 0.000000e+00 : f32
      %297 = vector.broadcast %cst_153 : f32 to vector<1x128xf32>
      %298 = arith.maximumf %296, %297 : vector<1x128xf32>
      %299 = arith.truncf %298 : vector<1x128xf32> to vector<1x128xbf16>
      %c1_154 = arith.constant 1 : index
      %c0_155 = arith.constant 0 : index
      %c0_156 = arith.constant 0 : index
      %300 = vector.load %arg2[%c1_154, %c0_155, %c0_156] : memref<2x128x128xbf16, #tpu.memory_space<vmem>>, vector<1x128x128xbf16>
      %301 = vector.shape_cast %300 : vector<1x128x128xbf16> to vector<128x128xbf16>
      %cst_157 = arith.constant dense<0.000000e+00> : vector<1x128xf32>
      %302 = tpu.matmul %299, %301, %cst_157 {dimension_numbers = #tpu.dot_dimension_numbers<[1], [0], [0], [1], [0, 0, 1, 1], [], []>} : vector<1x128xbf16>, vector<128x128xbf16>, vector<1x128xf32> -> vector<1x128xf32>
      %303 = arith.addf %302, %5 : vector<1x128xf32>
      %cst_158 = arith.constant 0.000000e+00 : f32
      %304 = vector.broadcast %cst_158 : f32 to vector<1x128xf32>
      %305 = arith.maximumf %303, %304 : vector<1x128xf32>
      %306 = arith.truncf %305 : vector<1x128xf32> to vector<1x128xbf16>
      %c0_159 = arith.constant 0 : index
      %c0_160 = arith.constant 0 : index
      %307 = vector.load %arg3[%c0_159, %c0_160] : memref<128x8xbf16, #tpu.memory_space<vmem>>, vector<128x8xbf16>
      %cst_161 = arith.constant dense<0.000000e+00> : vector<1x8xf32>
      %308 = tpu.matmul %306, %307, %cst_161 {dimension_numbers = #tpu.dot_dimension_numbers<[1], [0], [0], [1], [0, 0, 1, 1], [], []>} : vector<1x128xbf16>, vector<128x8xbf16>, vector<1x8xf32> -> vector<1x8xf32>
      %309 = arith.addf %308, %2 : vector<1x8xf32>
      %cst_162 = arith.constant 0.000000e+00 : f32
      %310 = vector.broadcast %cst_162 : f32 to vector<1x8xf32>
      %311 = arith.select %8, %309, %310 : vector<1x8xi1>, vector<1x8xf32>
      %312 = arith.addf %286, %311 : vector<1x8xf32>
      %cst_163 = arith.constant 0.000000e+00 : f32
      %313 = vector.broadcast %cst_163 : f32 to vector<1x8xf32>
      %314 = arith.select %8, %313, %309 : vector<1x8xi1>, vector<1x8xf32>
      %315 = arith.addf %234, %274 : vector<1x8xf32>
      %cst_164 = arith.constant 3.000000e+00 : f32
      %316 = vector.broadcast %cst_164 : f32 to vector<1x8xf32>
      %317 = arith.mulf %316, %315 : vector<1x8xf32>
      %318 = arith.addf %198, %317 : vector<1x8xf32>
      %319 = arith.addf %318, %312 : vector<1x8xf32>
      %320 = vector.broadcast %cst : f32 to vector<1x8xf32>
      %321 = arith.mulf %320, %319 : vector<1x8xf32>
      %cst_165 = arith.constant 1.250000e-01 : f32
      %322 = vector.broadcast %cst_165 : f32 to vector<1x8xf32>
      %323 = arith.mulf %321, %322 : vector<1x8xf32>
      %324 = arith.addf %162, %323 : vector<1x8xf32>
      %325 = arith.addf %236, %276 : vector<1x8xf32>
      %cst_166 = arith.constant 3.000000e+00 : f32
      %326 = vector.broadcast %cst_166 : f32 to vector<1x8xf32>
      %327 = arith.mulf %326, %325 : vector<1x8xf32>
      %328 = arith.addf %200, %327 : vector<1x8xf32>
      %329 = arith.addf %328, %314 : vector<1x8xf32>
      %330 = vector.broadcast %cst : f32 to vector<1x8xf32>
      %331 = arith.mulf %330, %329 : vector<1x8xf32>
      %cst_167 = arith.constant 1.250000e-01 : f32
      %332 = vector.broadcast %cst_167 : f32 to vector<1x8xf32>
      %333 = arith.mulf %331, %332 : vector<1x8xf32>
      %334 = arith.addf %172, %333 : vector<1x8xf32>
      %c0_168 = arith.constant 0 : index
      %c0_169 = arith.constant 0 : index
      %335 = vector.load %arg1[%c0_168, %c0_169] : memref<11x128xf32, #tpu.memory_space<vmem>>, vector<8x128xf32>
      %cst_170 = arith.constant dense<0.000000e+00> : vector<1x128xf32>
      %336 = tpu.matmul %324, %335, %cst_170 {dimension_numbers = #tpu.dot_dimension_numbers<[1], [0], [0], [1], [0, 0, 1, 1], [], []>} : vector<1x8xf32>, vector<8x128xf32>, vector<1x128xf32> -> vector<1x128xf32>
      %337 = arith.addf %336, %3 : vector<1x128xf32>
      %cst_171 = arith.constant 0.000000e+00 : f32
      %338 = vector.broadcast %cst_171 : f32 to vector<1x128xf32>
      %339 = arith.maximumf %337, %338 : vector<1x128xf32>
      %340 = arith.truncf %339 : vector<1x128xf32> to vector<1x128xbf16>
      %c0_172 = arith.constant 0 : index
      %c0_173 = arith.constant 0 : index
      %c0_174 = arith.constant 0 : index
      %341 = vector.load %arg2[%c0_172, %c0_173, %c0_174] : memref<2x128x128xbf16, #tpu.memory_space<vmem>>, vector<1x128x128xbf16>
      %342 = vector.shape_cast %341 : vector<1x128x128xbf16> to vector<128x128xbf16>
      %cst_175 = arith.constant dense<0.000000e+00> : vector<1x128xf32>
      %343 = tpu.matmul %340, %342, %cst_175 {dimension_numbers = #tpu.dot_dimension_numbers<[1], [0], [0], [1], [0, 0, 1, 1], [], []>} : vector<1x128xbf16>, vector<128x128xbf16>, vector<1x128xf32> -> vector<1x128xf32>
      %344 = arith.addf %343, %4 : vector<1x128xf32>
      %cst_176 = arith.constant 0.000000e+00 : f32
      %345 = vector.broadcast %cst_176 : f32 to vector<1x128xf32>
      %346 = arith.maximumf %344, %345 : vector<1x128xf32>
      %347 = arith.truncf %346 : vector<1x128xf32> to vector<1x128xbf16>
      %c1_177 = arith.constant 1 : index
      %c0_178 = arith.constant 0 : index
      %c0_179 = arith.constant 0 : index
      %348 = vector.load %arg2[%c1_177, %c0_178, %c0_179] : memref<2x128x128xbf16, #tpu.memory_space<vmem>>, vector<1x128x128xbf16>
      %349 = vector.shape_cast %348 : vector<1x128x128xbf16> to vector<128x128xbf16>
      %cst_180 = arith.constant dense<0.000000e+00> : vector<1x128xf32>
      %350 = tpu.matmul %347, %349, %cst_180 {dimension_numbers = #tpu.dot_dimension_numbers<[1], [0], [0], [1], [0, 0, 1, 1], [], []>} : vector<1x128xbf16>, vector<128x128xbf16>, vector<1x128xf32> -> vector<1x128xf32>
      %351 = arith.addf %350, %5 : vector<1x128xf32>
      %cst_181 = arith.constant 0.000000e+00 : f32
      %352 = vector.broadcast %cst_181 : f32 to vector<1x128xf32>
      %353 = arith.maximumf %351, %352 : vector<1x128xf32>
      %354 = arith.truncf %353 : vector<1x128xf32> to vector<1x128xbf16>
      %c0_182 = arith.constant 0 : index
      %c0_183 = arith.constant 0 : index
      %355 = vector.load %arg3[%c0_182, %c0_183] : memref<128x8xbf16, #tpu.memory_space<vmem>>, vector<128x8xbf16>
      %cst_184 = arith.constant dense<0.000000e+00> : vector<1x8xf32>
      %356 = tpu.matmul %354, %355, %cst_184 {dimension_numbers = #tpu.dot_dimension_numbers<[1], [0], [0], [1], [0, 0, 1, 1], [], []>} : vector<1x128xbf16>, vector<128x8xbf16>, vector<1x8xf32> -> vector<1x8xf32>
      %357 = arith.addf %356, %2 : vector<1x8xf32>
      %cst_185 = arith.constant 0.000000e+00 : f32
      %358 = vector.broadcast %cst_185 : f32 to vector<1x8xf32>
      %359 = arith.select %8, %357, %358 : vector<1x8xi1>, vector<1x8xf32>
      %360 = arith.addf %334, %359 : vector<1x8xf32>
      %cst_186 = arith.constant 0.000000e+00 : f32
      %361 = vector.broadcast %cst_186 : f32 to vector<1x8xf32>
      %362 = arith.select %8, %361, %357 : vector<1x8xi1>, vector<1x8xf32>
      %363 = arith.mulf %cst, %cst_6 : f32
      %364 = vector.broadcast %363 : f32 to vector<1x8xf32>
      %365 = arith.mulf %364, %360 : vector<1x8xf32>
      %366 = arith.addf %324, %365 : vector<1x8xf32>
      %367 = arith.mulf %cst, %cst_6 : f32
      %368 = vector.broadcast %367 : f32 to vector<1x8xf32>
      %369 = arith.mulf %368, %362 : vector<1x8xf32>
      %370 = arith.addf %334, %369 : vector<1x8xf32>
      %c0_187 = arith.constant 0 : index
      %c0_188 = arith.constant 0 : index
      %371 = vector.load %arg1[%c0_187, %c0_188] : memref<11x128xf32, #tpu.memory_space<vmem>>, vector<8x128xf32>
      %cst_189 = arith.constant dense<0.000000e+00> : vector<1x128xf32>
      %372 = tpu.matmul %366, %371, %cst_189 {dimension_numbers = #tpu.dot_dimension_numbers<[1], [0], [0], [1], [0, 0, 1, 1], [], []>} : vector<1x8xf32>, vector<8x128xf32>, vector<1x128xf32> -> vector<1x128xf32>
      %373 = arith.addf %372, %3 : vector<1x128xf32>
      %cst_190 = arith.constant 0.000000e+00 : f32
      %374 = vector.broadcast %cst_190 : f32 to vector<1x128xf32>
      %375 = arith.maximumf %373, %374 : vector<1x128xf32>
      %376 = arith.truncf %375 : vector<1x128xf32> to vector<1x128xbf16>
      %c0_191 = arith.constant 0 : index
      %c0_192 = arith.constant 0 : index
      %c0_193 = arith.constant 0 : index
      %377 = vector.load %arg2[%c0_191, %c0_192, %c0_193] : memref<2x128x128xbf16, #tpu.memory_space<vmem>>, vector<1x128x128xbf16>
      %378 = vector.shape_cast %377 : vector<1x128x128xbf16> to vector<128x128xbf16>
      %cst_194 = arith.constant dense<0.000000e+00> : vector<1x128xf32>
      %379 = tpu.matmul %376, %378, %cst_194 {dimension_numbers = #tpu.dot_dimension_numbers<[1], [0], [0], [1], [0, 0, 1, 1], [], []>} : vector<1x128xbf16>, vector<128x128xbf16>, vector<1x128xf32> -> vector<1x128xf32>
      %380 = arith.addf %379, %4 : vector<1x128xf32>
      %cst_195 = arith.constant 0.000000e+00 : f32
      %381 = vector.broadcast %cst_195 : f32 to vector<1x128xf32>
      %382 = arith.maximumf %380, %381 : vector<1x128xf32>
      %383 = arith.truncf %382 : vector<1x128xf32> to vector<1x128xbf16>
      %c1_196 = arith.constant 1 : index
      %c0_197 = arith.constant 0 : index
      %c0_198 = arith.constant 0 : index
      %384 = vector.load %arg2[%c1_196, %c0_197, %c0_198] : memref<2x128x128xbf16, #tpu.memory_space<vmem>>, vector<1x128x128xbf16>
      %385 = vector.shape_cast %384 : vector<1x128x128xbf16> to vector<128x128xbf16>
      %cst_199 = arith.constant dense<0.000000e+00> : vector<1x128xf32>
      %386 = tpu.matmul %383, %385, %cst_199 {dimension_numbers = #tpu.dot_dimension_numbers<[1], [0], [0], [1], [0, 0, 1, 1], [], []>} : vector<1x128xbf16>, vector<128x128xbf16>, vector<1x128xf32> -> vector<1x128xf32>
      %387 = arith.addf %386, %5 : vector<1x128xf32>
      %cst_200 = arith.constant 0.000000e+00 : f32
      %388 = vector.broadcast %cst_200 : f32 to vector<1x128xf32>
      %389 = arith.maximumf %387, %388 : vector<1x128xf32>
      %390 = arith.truncf %389 : vector<1x128xf32> to vector<1x128xbf16>
      %c0_201 = arith.constant 0 : index
      %c0_202 = arith.constant 0 : index
      %391 = vector.load %arg3[%c0_201, %c0_202] : memref<128x8xbf16, #tpu.memory_space<vmem>>, vector<128x8xbf16>
      %cst_203 = arith.constant dense<0.000000e+00> : vector<1x8xf32>
      %392 = tpu.matmul %390, %391, %cst_203 {dimension_numbers = #tpu.dot_dimension_numbers<[1], [0], [0], [1], [0, 0, 1, 1], [], []>} : vector<1x128xbf16>, vector<128x8xbf16>, vector<1x8xf32> -> vector<1x8xf32>
      %393 = arith.addf %392, %2 : vector<1x8xf32>
      %cst_204 = arith.constant 0.000000e+00 : f32
      %394 = vector.broadcast %cst_204 : f32 to vector<1x8xf32>
      %395 = arith.select %8, %393, %394 : vector<1x8xi1>, vector<1x8xf32>
      %396 = arith.addf %370, %395 : vector<1x8xf32>
      %cst_205 = arith.constant 0.000000e+00 : f32
      %397 = vector.broadcast %cst_205 : f32 to vector<1x8xf32>
      %398 = arith.select %8, %397, %393 : vector<1x8xi1>, vector<1x8xf32>
      %399 = vector.broadcast %cst_6 : f32 to vector<1x8xf32>
      %400 = arith.mulf %399, %360 : vector<1x8xf32>
      %401 = arith.subf %396, %400 : vector<1x8xf32>
      %402 = vector.broadcast %cst : f32 to vector<1x8xf32>
      %403 = arith.mulf %402, %401 : vector<1x8xf32>
      %404 = arith.addf %324, %403 : vector<1x8xf32>
      %405 = vector.broadcast %cst_6 : f32 to vector<1x8xf32>
      %406 = arith.mulf %405, %362 : vector<1x8xf32>
      %407 = arith.subf %398, %406 : vector<1x8xf32>
      %408 = vector.broadcast %cst : f32 to vector<1x8xf32>
      %409 = arith.mulf %408, %407 : vector<1x8xf32>
      %410 = arith.addf %334, %409 : vector<1x8xf32>
      %c0_206 = arith.constant 0 : index
      %c0_207 = arith.constant 0 : index
      %411 = vector.load %arg1[%c0_206, %c0_207] : memref<11x128xf32, #tpu.memory_space<vmem>>, vector<8x128xf32>
      %cst_208 = arith.constant dense<0.000000e+00> : vector<1x128xf32>
      %412 = tpu.matmul %404, %411, %cst_208 {dimension_numbers = #tpu.dot_dimension_numbers<[1], [0], [0], [1], [0, 0, 1, 1], [], []>} : vector<1x8xf32>, vector<8x128xf32>, vector<1x128xf32> -> vector<1x128xf32>
      %413 = arith.addf %412, %3 : vector<1x128xf32>
      %cst_209 = arith.constant 0.000000e+00 : f32
      %414 = vector.broadcast %cst_209 : f32 to vector<1x128xf32>
      %415 = arith.maximumf %413, %414 : vector<1x128xf32>
      %416 = arith.truncf %415 : vector<1x128xf32> to vector<1x128xbf16>
      %c0_210 = arith.constant 0 : index
      %c0_211 = arith.constant 0 : index
      %c0_212 = arith.constant 0 : index
      %417 = vector.load %arg2[%c0_210, %c0_211, %c0_212] : memref<2x128x128xbf16, #tpu.memory_space<vmem>>, vector<1x128x128xbf16>
      %418 = vector.shape_cast %417 : vector<1x128x128xbf16> to vector<128x128xbf16>
      %cst_213 = arith.constant dense<0.000000e+00> : vector<1x128xf32>
      %419 = tpu.matmul %416, %418, %cst_213 {dimension_numbers = #tpu.dot_dimension_numbers<[1], [0], [0], [1], [0, 0, 1, 1], [], []>} : vector<1x128xbf16>, vector<128x128xbf16>, vector<1x128xf32> -> vector<1x128xf32>
      %420 = arith.addf %419, %4 : vector<1x128xf32>
      %cst_214 = arith.constant 0.000000e+00 : f32
      %421 = vector.broadcast %cst_214 : f32 to vector<1x128xf32>
      %422 = arith.maximumf %420, %421 : vector<1x128xf32>
      %423 = arith.truncf %422 : vector<1x128xf32> to vector<1x128xbf16>
      %c1_215 = arith.constant 1 : index
      %c0_216 = arith.constant 0 : index
      %c0_217 = arith.constant 0 : index
      %424 = vector.load %arg2[%c1_215, %c0_216, %c0_217] : memref<2x128x128xbf16, #tpu.memory_space<vmem>>, vector<1x128x128xbf16>
      %425 = vector.shape_cast %424 : vector<1x128x128xbf16> to vector<128x128xbf16>
      %cst_218 = arith.constant dense<0.000000e+00> : vector<1x128xf32>
      %426 = tpu.matmul %423, %425, %cst_218 {dimension_numbers = #tpu.dot_dimension_numbers<[1], [0], [0], [1], [0, 0, 1, 1], [], []>} : vector<1x128xbf16>, vector<128x128xbf16>, vector<1x128xf32> -> vector<1x128xf32>
      %427 = arith.addf %426, %5 : vector<1x128xf32>
      %cst_219 = arith.constant 0.000000e+00 : f32
      %428 = vector.broadcast %cst_219 : f32 to vector<1x128xf32>
      %429 = arith.maximumf %427, %428 : vector<1x128xf32>
      %430 = arith.truncf %429 : vector<1x128xf32> to vector<1x128xbf16>
      %c0_220 = arith.constant 0 : index
      %c0_221 = arith.constant 0 : index
      %431 = vector.load %arg3[%c0_220, %c0_221] : memref<128x8xbf16, #tpu.memory_space<vmem>>, vector<128x8xbf16>
      %cst_222 = arith.constant dense<0.000000e+00> : vector<1x8xf32>
      %432 = tpu.matmul %430, %431, %cst_222 {dimension_numbers = #tpu.dot_dimension_numbers<[1], [0], [0], [1], [0, 0, 1, 1], [], []>} : vector<1x128xbf16>, vector<128x8xbf16>, vector<1x8xf32> -> vector<1x8xf32>
      %433 = arith.addf %432, %2 : vector<1x8xf32>
      %cst_223 = arith.constant 0.000000e+00 : f32
      %434 = vector.broadcast %cst_223 : f32 to vector<1x8xf32>
      %435 = arith.select %8, %433, %434 : vector<1x8xi1>, vector<1x8xf32>
      %436 = arith.addf %410, %435 : vector<1x8xf32>
      %cst_224 = arith.constant 0.000000e+00 : f32
      %437 = vector.broadcast %cst_224 : f32 to vector<1x8xf32>
      %438 = arith.select %8, %437, %433 : vector<1x8xi1>, vector<1x8xf32>
      %439 = arith.subf %360, %396 : vector<1x8xf32>
      %440 = arith.addf %439, %436 : vector<1x8xf32>
      %441 = vector.broadcast %cst : f32 to vector<1x8xf32>
      %442 = arith.mulf %441, %440 : vector<1x8xf32>
      %443 = arith.addf %324, %442 : vector<1x8xf32>
      %444 = arith.subf %362, %398 : vector<1x8xf32>
      %445 = arith.addf %444, %438 : vector<1x8xf32>
      %446 = vector.broadcast %cst : f32 to vector<1x8xf32>
      %447 = arith.mulf %446, %445 : vector<1x8xf32>
      %448 = arith.addf %334, %447 : vector<1x8xf32>
      %c0_225 = arith.constant 0 : index
      %c0_226 = arith.constant 0 : index
      %449 = vector.load %arg1[%c0_225, %c0_226] : memref<11x128xf32, #tpu.memory_space<vmem>>, vector<8x128xf32>
      %cst_227 = arith.constant dense<0.000000e+00> : vector<1x128xf32>
      %450 = tpu.matmul %443, %449, %cst_227 {dimension_numbers = #tpu.dot_dimension_numbers<[1], [0], [0], [1], [0, 0, 1, 1], [], []>} : vector<1x8xf32>, vector<8x128xf32>, vector<1x128xf32> -> vector<1x128xf32>
      %451 = arith.addf %450, %3 : vector<1x128xf32>
      %cst_228 = arith.constant 0.000000e+00 : f32
      %452 = vector.broadcast %cst_228 : f32 to vector<1x128xf32>
      %453 = arith.maximumf %451, %452 : vector<1x128xf32>
      %454 = arith.truncf %453 : vector<1x128xf32> to vector<1x128xbf16>
      %c0_229 = arith.constant 0 : index
      %c0_230 = arith.constant 0 : index
      %c0_231 = arith.constant 0 : index
      %455 = vector.load %arg2[%c0_229, %c0_230, %c0_231] : memref<2x128x128xbf16, #tpu.memory_space<vmem>>, vector<1x128x128xbf16>
      %456 = vector.shape_cast %455 : vector<1x128x128xbf16> to vector<128x128xbf16>
      %cst_232 = arith.constant dense<0.000000e+00> : vector<1x128xf32>
      %457 = tpu.matmul %454, %456, %cst_232 {dimension_numbers = #tpu.dot_dimension_numbers<[1], [0], [0], [1], [0, 0, 1, 1], [], []>} : vector<1x128xbf16>, vector<128x128xbf16>, vector<1x128xf32> -> vector<1x128xf32>
      %458 = arith.addf %457, %4 : vector<1x128xf32>
      %cst_233 = arith.constant 0.000000e+00 : f32
      %459 = vector.broadcast %cst_233 : f32 to vector<1x128xf32>
      %460 = arith.maximumf %458, %459 : vector<1x128xf32>
      %461 = arith.truncf %460 : vector<1x128xf32> to vector<1x128xbf16>
      %c1_234 = arith.constant 1 : index
      %c0_235 = arith.constant 0 : index
      %c0_236 = arith.constant 0 : index
      %462 = vector.load %arg2[%c1_234, %c0_235, %c0_236] : memref<2x128x128xbf16, #tpu.memory_space<vmem>>, vector<1x128x128xbf16>
      %463 = vector.shape_cast %462 : vector<1x128x128xbf16> to vector<128x128xbf16>
      %cst_237 = arith.constant dense<0.000000e+00> : vector<1x128xf32>
      %464 = tpu.matmul %461, %463, %cst_237 {dimension_numbers = #tpu.dot_dimension_numbers<[1], [0], [0], [1], [0, 0, 1, 1], [], []>} : vector<1x128xbf16>, vector<128x128xbf16>, vector<1x128xf32> -> vector<1x128xf32>
      %465 = arith.addf %464, %5 : vector<1x128xf32>
      %cst_238 = arith.constant 0.000000e+00 : f32
      %466 = vector.broadcast %cst_238 : f32 to vector<1x128xf32>
      %467 = arith.maximumf %465, %466 : vector<1x128xf32>
      %468 = arith.truncf %467 : vector<1x128xf32> to vector<1x128xbf16>
      %c0_239 = arith.constant 0 : index
      %c0_240 = arith.constant 0 : index
      %469 = vector.load %arg3[%c0_239, %c0_240] : memref<128x8xbf16, #tpu.memory_space<vmem>>, vector<128x8xbf16>
      %cst_241 = arith.constant dense<0.000000e+00> : vector<1x8xf32>
      %470 = tpu.matmul %468, %469, %cst_241 {dimension_numbers = #tpu.dot_dimension_numbers<[1], [0], [0], [1], [0, 0, 1, 1], [], []>} : vector<1x128xbf16>, vector<128x8xbf16>, vector<1x8xf32> -> vector<1x8xf32>
      %471 = arith.addf %470, %2 : vector<1x8xf32>
      %cst_242 = arith.constant 0.000000e+00 : f32
      %472 = vector.broadcast %cst_242 : f32 to vector<1x8xf32>
      %473 = arith.select %8, %471, %472 : vector<1x8xi1>, vector<1x8xf32>
      %474 = arith.addf %448, %473 : vector<1x8xf32>
      %cst_243 = arith.constant 0.000000e+00 : f32
      %475 = vector.broadcast %cst_243 : f32 to vector<1x8xf32>
      %476 = arith.select %8, %475, %471 : vector<1x8xi1>, vector<1x8xf32>
      %477 = arith.addf %396, %436 : vector<1x8xf32>
      %cst_244 = arith.constant 3.000000e+00 : f32
      %478 = vector.broadcast %cst_244 : f32 to vector<1x8xf32>
      %479 = arith.mulf %478, %477 : vector<1x8xf32>
      %480 = arith.addf %360, %479 : vector<1x8xf32>
      %481 = arith.addf %480, %474 : vector<1x8xf32>
      %482 = vector.broadcast %cst : f32 to vector<1x8xf32>
      %483 = arith.mulf %482, %481 : vector<1x8xf32>
      %cst_245 = arith.constant 1.250000e-01 : f32
      %484 = vector.broadcast %cst_245 : f32 to vector<1x8xf32>
      %485 = arith.mulf %483, %484 : vector<1x8xf32>
      %486 = arith.addf %324, %485 : vector<1x8xf32>
      %487 = arith.addf %398, %438 : vector<1x8xf32>
      %cst_246 = arith.constant 3.000000e+00 : f32
      %488 = vector.broadcast %cst_246 : f32 to vector<1x8xf32>
      %489 = arith.mulf %488, %487 : vector<1x8xf32>
      %490 = arith.addf %362, %489 : vector<1x8xf32>
      %491 = arith.addf %490, %476 : vector<1x8xf32>
      %492 = vector.broadcast %cst : f32 to vector<1x8xf32>
      %493 = arith.mulf %492, %491 : vector<1x8xf32>
      %cst_247 = arith.constant 1.250000e-01 : f32
      %494 = vector.broadcast %cst_247 : f32 to vector<1x8xf32>
      %495 = arith.mulf %493, %494 : vector<1x8xf32>
      %496 = arith.addf %334, %495 : vector<1x8xf32>
      %c0_248 = arith.constant 0 : index
      %c0_249 = arith.constant 0 : index
      %497 = vector.load %arg1[%c0_248, %c0_249] : memref<11x128xf32, #tpu.memory_space<vmem>>, vector<8x128xf32>
      %cst_250 = arith.constant dense<0.000000e+00> : vector<1x128xf32>
      %498 = tpu.matmul %486, %497, %cst_250 {dimension_numbers = #tpu.dot_dimension_numbers<[1], [0], [0], [1], [0, 0, 1, 1], [], []>} : vector<1x8xf32>, vector<8x128xf32>, vector<1x128xf32> -> vector<1x128xf32>
      %499 = arith.addf %498, %3 : vector<1x128xf32>
      %cst_251 = arith.constant 0.000000e+00 : f32
      %500 = vector.broadcast %cst_251 : f32 to vector<1x128xf32>
      %501 = arith.maximumf %499, %500 : vector<1x128xf32>
      %502 = arith.truncf %501 : vector<1x128xf32> to vector<1x128xbf16>
      %c0_252 = arith.constant 0 : index
      %c0_253 = arith.constant 0 : index
      %c0_254 = arith.constant 0 : index
      %503 = vector.load %arg2[%c0_252, %c0_253, %c0_254] : memref<2x128x128xbf16, #tpu.memory_space<vmem>>, vector<1x128x128xbf16>
      %504 = vector.shape_cast %503 : vector<1x128x128xbf16> to vector<128x128xbf16>
      %cst_255 = arith.constant dense<0.000000e+00> : vector<1x128xf32>
      %505 = tpu.matmul %502, %504, %cst_255 {dimension_numbers = #tpu.dot_dimension_numbers<[1], [0], [0], [1], [0, 0, 1, 1], [], []>} : vector<1x128xbf16>, vector<128x128xbf16>, vector<1x128xf32> -> vector<1x128xf32>
      %506 = arith.addf %505, %4 : vector<1x128xf32>
      %cst_256 = arith.constant 0.000000e+00 : f32
      %507 = vector.broadcast %cst_256 : f32 to vector<1x128xf32>
      %508 = arith.maximumf %506, %507 : vector<1x128xf32>
      %509 = arith.truncf %508 : vector<1x128xf32> to vector<1x128xbf16>
      %c1_257 = arith.constant 1 : index
      %c0_258 = arith.constant 0 : index
      %c0_259 = arith.constant 0 : index
      %510 = vector.load %arg2[%c1_257, %c0_258, %c0_259] : memref<2x128x128xbf16, #tpu.memory_space<vmem>>, vector<1x128x128xbf16>
      %511 = vector.shape_cast %510 : vector<1x128x128xbf16> to vector<128x128xbf16>
      %cst_260 = arith.constant dense<0.000000e+00> : vector<1x128xf32>
      %512 = tpu.matmul %509, %511, %cst_260 {dimension_numbers = #tpu.dot_dimension_numbers<[1], [0], [0], [1], [0, 0, 1, 1], [], []>} : vector<1x128xbf16>, vector<128x128xbf16>, vector<1x128xf32> -> vector<1x128xf32>
      %513 = arith.addf %512, %5 : vector<1x128xf32>
      %cst_261 = arith.constant 0.000000e+00 : f32
      %514 = vector.broadcast %cst_261 : f32 to vector<1x128xf32>
      %515 = arith.maximumf %513, %514 : vector<1x128xf32>
      %516 = arith.truncf %515 : vector<1x128xf32> to vector<1x128xbf16>
      %c0_262 = arith.constant 0 : index
      %c0_263 = arith.constant 0 : index
      %517 = vector.load %arg3[%c0_262, %c0_263] : memref<128x8xbf16, #tpu.memory_space<vmem>>, vector<128x8xbf16>
      %cst_264 = arith.constant dense<0.000000e+00> : vector<1x8xf32>
      %518 = tpu.matmul %516, %517, %cst_264 {dimension_numbers = #tpu.dot_dimension_numbers<[1], [0], [0], [1], [0, 0, 1, 1], [], []>} : vector<1x128xbf16>, vector<128x8xbf16>, vector<1x8xf32> -> vector<1x8xf32>
      %519 = arith.addf %518, %2 : vector<1x8xf32>
      %cst_265 = arith.constant 0.000000e+00 : f32
      %520 = vector.broadcast %cst_265 : f32 to vector<1x8xf32>
      %521 = arith.select %8, %519, %520 : vector<1x8xi1>, vector<1x8xf32>
      %522 = arith.addf %496, %521 : vector<1x8xf32>
      %cst_266 = arith.constant 0.000000e+00 : f32
      %523 = vector.broadcast %cst_266 : f32 to vector<1x8xf32>
      %524 = arith.select %8, %523, %519 : vector<1x8xi1>, vector<1x8xf32>
      %525 = arith.mulf %cst, %cst_6 : f32
      %526 = vector.broadcast %525 : f32 to vector<1x8xf32>
      %527 = arith.mulf %526, %522 : vector<1x8xf32>
      %528 = arith.addf %486, %527 : vector<1x8xf32>
      %529 = arith.mulf %cst, %cst_6 : f32
      %530 = vector.broadcast %529 : f32 to vector<1x8xf32>
      %531 = arith.mulf %530, %524 : vector<1x8xf32>
      %532 = arith.addf %496, %531 : vector<1x8xf32>
      %c0_267 = arith.constant 0 : index
      %c0_268 = arith.constant 0 : index
      %533 = vector.load %arg1[%c0_267, %c0_268] : memref<11x128xf32, #tpu.memory_space<vmem>>, vector<8x128xf32>
      %cst_269 = arith.constant dense<0.000000e+00> : vector<1x128xf32>
      %534 = tpu.matmul %528, %533, %cst_269 {dimension_numbers = #tpu.dot_dimension_numbers<[1], [0], [0], [1], [0, 0, 1, 1], [], []>} : vector<1x8xf32>, vector<8x128xf32>, vector<1x128xf32> -> vector<1x128xf32>
      %535 = arith.addf %534, %3 : vector<1x128xf32>
      %cst_270 = arith.constant 0.000000e+00 : f32
      %536 = vector.broadcast %cst_270 : f32 to vector<1x128xf32>
      %537 = arith.maximumf %535, %536 : vector<1x128xf32>
      %538 = arith.truncf %537 : vector<1x128xf32> to vector<1x128xbf16>
      %c0_271 = arith.constant 0 : index
      %c0_272 = arith.constant 0 : index
      %c0_273 = arith.constant 0 : index
      %539 = vector.load %arg2[%c0_271, %c0_272, %c0_273] : memref<2x128x128xbf16, #tpu.memory_space<vmem>>, vector<1x128x128xbf16>
      %540 = vector.shape_cast %539 : vector<1x128x128xbf16> to vector<128x128xbf16>
      %cst_274 = arith.constant dense<0.000000e+00> : vector<1x128xf32>
      %541 = tpu.matmul %538, %540, %cst_274 {dimension_numbers = #tpu.dot_dimension_numbers<[1], [0], [0], [1], [0, 0, 1, 1], [], []>} : vector<1x128xbf16>, vector<128x128xbf16>, vector<1x128xf32> -> vector<1x128xf32>
      %542 = arith.addf %541, %4 : vector<1x128xf32>
      %cst_275 = arith.constant 0.000000e+00 : f32
      %543 = vector.broadcast %cst_275 : f32 to vector<1x128xf32>
      %544 = arith.maximumf %542, %543 : vector<1x128xf32>
      %545 = arith.truncf %544 : vector<1x128xf32> to vector<1x128xbf16>
      %c1_276 = arith.constant 1 : index
      %c0_277 = arith.constant 0 : index
      %c0_278 = arith.constant 0 : index
      %546 = vector.load %arg2[%c1_276, %c0_277, %c0_278] : memref<2x128x128xbf16, #tpu.memory_space<vmem>>, vector<1x128x128xbf16>
      %547 = vector.shape_cast %546 : vector<1x128x128xbf16> to vector<128x128xbf16>
      %cst_279 = arith.constant dense<0.000000e+00> : vector<1x128xf32>
      %548 = tpu.matmul %545, %547, %cst_279 {dimension_numbers = #tpu.dot_dimension_numbers<[1], [0], [0], [1], [0, 0, 1, 1], [], []>} : vector<1x128xbf16>, vector<128x128xbf16>, vector<1x128xf32> -> vector<1x128xf32>
      %549 = arith.addf %548, %5 : vector<1x128xf32>
      %cst_280 = arith.constant 0.000000e+00 : f32
      %550 = vector.broadcast %cst_280 : f32 to vector<1x128xf32>
      %551 = arith.maximumf %549, %550 : vector<1x128xf32>
      %552 = arith.truncf %551 : vector<1x128xf32> to vector<1x128xbf16>
      %c0_281 = arith.constant 0 : index
      %c0_282 = arith.constant 0 : index
      %553 = vector.load %arg3[%c0_281, %c0_282] : memref<128x8xbf16, #tpu.memory_space<vmem>>, vector<128x8xbf16>
      %cst_283 = arith.constant dense<0.000000e+00> : vector<1x8xf32>
      %554 = tpu.matmul %552, %553, %cst_283 {dimension_numbers = #tpu.dot_dimension_numbers<[1], [0], [0], [1], [0, 0, 1, 1], [], []>} : vector<1x128xbf16>, vector<128x8xbf16>, vector<1x8xf32> -> vector<1x8xf32>
      %555 = arith.addf %554, %2 : vector<1x8xf32>
      %cst_284 = arith.constant 0.000000e+00 : f32
      %556 = vector.broadcast %cst_284 : f32 to vector<1x8xf32>
      %557 = arith.select %8, %555, %556 : vector<1x8xi1>, vector<1x8xf32>
      %558 = arith.addf %532, %557 : vector<1x8xf32>
      %cst_285 = arith.constant 0.000000e+00 : f32
      %559 = vector.broadcast %cst_285 : f32 to vector<1x8xf32>
      %560 = arith.select %8, %559, %555 : vector<1x8xi1>, vector<1x8xf32>
      %561 = vector.broadcast %cst_6 : f32 to vector<1x8xf32>
      %562 = arith.mulf %561, %522 : vector<1x8xf32>
      %563 = arith.subf %558, %562 : vector<1x8xf32>
      %564 = vector.broadcast %cst : f32 to vector<1x8xf32>
      %565 = arith.mulf %564, %563 : vector<1x8xf32>
      %566 = arith.addf %486, %565 : vector<1x8xf32>
      %567 = vector.broadcast %cst_6 : f32 to vector<1x8xf32>
      %568 = arith.mulf %567, %524 : vector<1x8xf32>
      %569 = arith.subf %560, %568 : vector<1x8xf32>
      %570 = vector.broadcast %cst : f32 to vector<1x8xf32>
      %571 = arith.mulf %570, %569 : vector<1x8xf32>
      %572 = arith.addf %496, %571 : vector<1x8xf32>
      %c0_286 = arith.constant 0 : index
      %c0_287 = arith.constant 0 : index
      %573 = vector.load %arg1[%c0_286, %c0_287] : memref<11x128xf32, #tpu.memory_space<vmem>>, vector<8x128xf32>
      %cst_288 = arith.constant dense<0.000000e+00> : vector<1x128xf32>
      %574 = tpu.matmul %566, %573, %cst_288 {dimension_numbers = #tpu.dot_dimension_numbers<[1], [0], [0], [1], [0, 0, 1, 1], [], []>} : vector<1x8xf32>, vector<8x128xf32>, vector<1x128xf32> -> vector<1x128xf32>
      %575 = arith.addf %574, %3 : vector<1x128xf32>
      %cst_289 = arith.constant 0.000000e+00 : f32
      %576 = vector.broadcast %cst_289 : f32 to vector<1x128xf32>
      %577 = arith.maximumf %575, %576 : vector<1x128xf32>
      %578 = arith.truncf %577 : vector<1x128xf32> to vector<1x128xbf16>
      %c0_290 = arith.constant 0 : index
      %c0_291 = arith.constant 0 : index
      %c0_292 = arith.constant 0 : index
      %579 = vector.load %arg2[%c0_290, %c0_291, %c0_292] : memref<2x128x128xbf16, #tpu.memory_space<vmem>>, vector<1x128x128xbf16>
      %580 = vector.shape_cast %579 : vector<1x128x128xbf16> to vector<128x128xbf16>
      %cst_293 = arith.constant dense<0.000000e+00> : vector<1x128xf32>
      %581 = tpu.matmul %578, %580, %cst_293 {dimension_numbers = #tpu.dot_dimension_numbers<[1], [0], [0], [1], [0, 0, 1, 1], [], []>} : vector<1x128xbf16>, vector<128x128xbf16>, vector<1x128xf32> -> vector<1x128xf32>
      %582 = arith.addf %581, %4 : vector<1x128xf32>
      %cst_294 = arith.constant 0.000000e+00 : f32
      %583 = vector.broadcast %cst_294 : f32 to vector<1x128xf32>
      %584 = arith.maximumf %582, %583 : vector<1x128xf32>
      %585 = arith.truncf %584 : vector<1x128xf32> to vector<1x128xbf16>
      %c1_295 = arith.constant 1 : index
      %c0_296 = arith.constant 0 : index
      %c0_297 = arith.constant 0 : index
      %586 = vector.load %arg2[%c1_295, %c0_296, %c0_297] : memref<2x128x128xbf16, #tpu.memory_space<vmem>>, vector<1x128x128xbf16>
      %587 = vector.shape_cast %586 : vector<1x128x128xbf16> to vector<128x128xbf16>
      %cst_298 = arith.constant dense<0.000000e+00> : vector<1x128xf32>
      %588 = tpu.matmul %585, %587, %cst_298 {dimension_numbers = #tpu.dot_dimension_numbers<[1], [0], [0], [1], [0, 0, 1, 1], [], []>} : vector<1x128xbf16>, vector<128x128xbf16>, vector<1x128xf32> -> vector<1x128xf32>
      %589 = arith.addf %588, %5 : vector<1x128xf32>
      %cst_299 = arith.constant 0.000000e+00 : f32
      %590 = vector.broadcast %cst_299 : f32 to vector<1x128xf32>
      %591 = arith.maximumf %589, %590 : vector<1x128xf32>
      %592 = arith.truncf %591 : vector<1x128xf32> to vector<1x128xbf16>
      %c0_300 = arith.constant 0 : index
      %c0_301 = arith.constant 0 : index
      %593 = vector.load %arg3[%c0_300, %c0_301] : memref<128x8xbf16, #tpu.memory_space<vmem>>, vector<128x8xbf16>
      %cst_302 = arith.constant dense<0.000000e+00> : vector<1x8xf32>
      %594 = tpu.matmul %592, %593, %cst_302 {dimension_numbers = #tpu.dot_dimension_numbers<[1], [0], [0], [1], [0, 0, 1, 1], [], []>} : vector<1x128xbf16>, vector<128x8xbf16>, vector<1x8xf32> -> vector<1x8xf32>
      %595 = arith.addf %594, %2 : vector<1x8xf32>
      %cst_303 = arith.constant 0.000000e+00 : f32
      %596 = vector.broadcast %cst_303 : f32 to vector<1x8xf32>
      %597 = arith.select %8, %595, %596 : vector<1x8xi1>, vector<1x8xf32>
      %598 = arith.addf %572, %597 : vector<1x8xf32>
      %cst_304 = arith.constant 0.000000e+00 : f32
      %599 = vector.broadcast %cst_304 : f32 to vector<1x8xf32>
      %600 = arith.select %8, %599, %595 : vector<1x8xi1>, vector<1x8xf32>
      %601 = arith.subf %522, %558 : vector<1x8xf32>
      %602 = arith.addf %601, %598 : vector<1x8xf32>
      %603 = vector.broadcast %cst : f32 to vector<1x8xf32>
      %604 = arith.mulf %603, %602 : vector<1x8xf32>
      %605 = arith.addf %486, %604 : vector<1x8xf32>
      %606 = arith.subf %524, %560 : vector<1x8xf32>
      %607 = arith.addf %606, %600 : vector<1x8xf32>
      %608 = vector.broadcast %cst : f32 to vector<1x8xf32>
      %609 = arith.mulf %608, %607 : vector<1x8xf32>
      %610 = arith.addf %496, %609 : vector<1x8xf32>
      %c0_305 = arith.constant 0 : index
      %c0_306 = arith.constant 0 : index
      %611 = vector.load %arg1[%c0_305, %c0_306] : memref<11x128xf32, #tpu.memory_space<vmem>>, vector<8x128xf32>
      %cst_307 = arith.constant dense<0.000000e+00> : vector<1x128xf32>
      %612 = tpu.matmul %605, %611, %cst_307 {dimension_numbers = #tpu.dot_dimension_numbers<[1], [0], [0], [1], [0, 0, 1, 1], [], []>} : vector<1x8xf32>, vector<8x128xf32>, vector<1x128xf32> -> vector<1x128xf32>
      %613 = arith.addf %612, %3 : vector<1x128xf32>
      %cst_308 = arith.constant 0.000000e+00 : f32
      %614 = vector.broadcast %cst_308 : f32 to vector<1x128xf32>
      %615 = arith.maximumf %613, %614 : vector<1x128xf32>
      %616 = arith.truncf %615 : vector<1x128xf32> to vector<1x128xbf16>
      %c0_309 = arith.constant 0 : index
      %c0_310 = arith.constant 0 : index
      %c0_311 = arith.constant 0 : index
      %617 = vector.load %arg2[%c0_309, %c0_310, %c0_311] : memref<2x128x128xbf16, #tpu.memory_space<vmem>>, vector<1x128x128xbf16>
      %618 = vector.shape_cast %617 : vector<1x128x128xbf16> to vector<128x128xbf16>
      %cst_312 = arith.constant dense<0.000000e+00> : vector<1x128xf32>
      %619 = tpu.matmul %616, %618, %cst_312 {dimension_numbers = #tpu.dot_dimension_numbers<[1], [0], [0], [1], [0, 0, 1, 1], [], []>} : vector<1x128xbf16>, vector<128x128xbf16>, vector<1x128xf32> -> vector<1x128xf32>
      %620 = arith.addf %619, %4 : vector<1x128xf32>
      %cst_313 = arith.constant 0.000000e+00 : f32
      %621 = vector.broadcast %cst_313 : f32 to vector<1x128xf32>
      %622 = arith.maximumf %620, %621 : vector<1x128xf32>
      %623 = arith.truncf %622 : vector<1x128xf32> to vector<1x128xbf16>
      %c1_314 = arith.constant 1 : index
      %c0_315 = arith.constant 0 : index
      %c0_316 = arith.constant 0 : index
      %624 = vector.load %arg2[%c1_314, %c0_315, %c0_316] : memref<2x128x128xbf16, #tpu.memory_space<vmem>>, vector<1x128x128xbf16>
      %625 = vector.shape_cast %624 : vector<1x128x128xbf16> to vector<128x128xbf16>
      %cst_317 = arith.constant dense<0.000000e+00> : vector<1x128xf32>
      %626 = tpu.matmul %623, %625, %cst_317 {dimension_numbers = #tpu.dot_dimension_numbers<[1], [0], [0], [1], [0, 0, 1, 1], [], []>} : vector<1x128xbf16>, vector<128x128xbf16>, vector<1x128xf32> -> vector<1x128xf32>
      %627 = arith.addf %626, %5 : vector<1x128xf32>
      %cst_318 = arith.constant 0.000000e+00 : f32
      %628 = vector.broadcast %cst_318 : f32 to vector<1x128xf32>
      %629 = arith.maximumf %627, %628 : vector<1x128xf32>
      %630 = arith.truncf %629 : vector<1x128xf32> to vector<1x128xbf16>
      %c0_319 = arith.constant 0 : index
      %c0_320 = arith.constant 0 : index
      %631 = vector.load %arg3[%c0_319, %c0_320] : memref<128x8xbf16, #tpu.memory_space<vmem>>, vector<128x8xbf16>
      %cst_321 = arith.constant dense<0.000000e+00> : vector<1x8xf32>
      %632 = tpu.matmul %630, %631, %cst_321 {dimension_numbers = #tpu.dot_dimension_numbers<[1], [0], [0], [1], [0, 0, 1, 1], [], []>} : vector<1x128xbf16>, vector<128x8xbf16>, vector<1x8xf32> -> vector<1x8xf32>
      %633 = arith.addf %632, %2 : vector<1x8xf32>
      %cst_322 = arith.constant 0.000000e+00 : f32
      %634 = vector.broadcast %cst_322 : f32 to vector<1x8xf32>
      %635 = arith.select %8, %633, %634 : vector<1x8xi1>, vector<1x8xf32>
      %636 = arith.addf %610, %635 : vector<1x8xf32>
      %cst_323 = arith.constant 0.000000e+00 : f32
      %637 = vector.broadcast %cst_323 : f32 to vector<1x8xf32>
      %638 = arith.select %8, %637, %633 : vector<1x8xi1>, vector<1x8xf32>
      %639 = arith.addf %558, %598 : vector<1x8xf32>
      %cst_324 = arith.constant 3.000000e+00 : f32
      %640 = vector.broadcast %cst_324 : f32 to vector<1x8xf32>
      %641 = arith.mulf %640, %639 : vector<1x8xf32>
      %642 = arith.addf %522, %641 : vector<1x8xf32>
      %643 = arith.addf %642, %636 : vector<1x8xf32>
      %644 = vector.broadcast %cst : f32 to vector<1x8xf32>
      %645 = arith.mulf %644, %643 : vector<1x8xf32>
      %cst_325 = arith.constant 1.250000e-01 : f32
      %646 = vector.broadcast %cst_325 : f32 to vector<1x8xf32>
      %647 = arith.mulf %645, %646 : vector<1x8xf32>
      %648 = arith.addf %486, %647 : vector<1x8xf32>
      %649 = arith.addf %560, %600 : vector<1x8xf32>
      %cst_326 = arith.constant 3.000000e+00 : f32
      %650 = vector.broadcast %cst_326 : f32 to vector<1x8xf32>
      %651 = arith.mulf %650, %649 : vector<1x8xf32>
      %652 = arith.addf %524, %651 : vector<1x8xf32>
      %653 = arith.addf %652, %638 : vector<1x8xf32>
      %654 = vector.broadcast %cst : f32 to vector<1x8xf32>
      %655 = arith.mulf %654, %653 : vector<1x8xf32>
      %cst_327 = arith.constant 1.250000e-01 : f32
      %656 = vector.broadcast %cst_327 : f32 to vector<1x8xf32>
      %657 = arith.mulf %655, %656 : vector<1x8xf32>
      %658 = arith.addf %496, %657 : vector<1x8xf32>
      %c0_328 = arith.constant 0 : index
      %c0_329 = arith.constant 0 : index
      %659 = vector.load %arg1[%c0_328, %c0_329] : memref<11x128xf32, #tpu.memory_space<vmem>>, vector<8x128xf32>
      %cst_330 = arith.constant dense<0.000000e+00> : vector<1x128xf32>
      %660 = tpu.matmul %648, %659, %cst_330 {dimension_numbers = #tpu.dot_dimension_numbers<[1], [0], [0], [1], [0, 0, 1, 1], [], []>} : vector<1x8xf32>, vector<8x128xf32>, vector<1x128xf32> -> vector<1x128xf32>
      %661 = arith.addf %660, %3 : vector<1x128xf32>
      %cst_331 = arith.constant 0.000000e+00 : f32
      %662 = vector.broadcast %cst_331 : f32 to vector<1x128xf32>
      %663 = arith.maximumf %661, %662 : vector<1x128xf32>
      %664 = arith.truncf %663 : vector<1x128xf32> to vector<1x128xbf16>
      %c0_332 = arith.constant 0 : index
      %c0_333 = arith.constant 0 : index
      %c0_334 = arith.constant 0 : index
      %665 = vector.load %arg2[%c0_332, %c0_333, %c0_334] : memref<2x128x128xbf16, #tpu.memory_space<vmem>>, vector<1x128x128xbf16>
      %666 = vector.shape_cast %665 : vector<1x128x128xbf16> to vector<128x128xbf16>
      %cst_335 = arith.constant dense<0.000000e+00> : vector<1x128xf32>
      %667 = tpu.matmul %664, %666, %cst_335 {dimension_numbers = #tpu.dot_dimension_numbers<[1], [0], [0], [1], [0, 0, 1, 1], [], []>} : vector<1x128xbf16>, vector<128x128xbf16>, vector<1x128xf32> -> vector<1x128xf32>
      %668 = arith.addf %667, %4 : vector<1x128xf32>
      %cst_336 = arith.constant 0.000000e+00 : f32
      %669 = vector.broadcast %cst_336 : f32 to vector<1x128xf32>
      %670 = arith.maximumf %668, %669 : vector<1x128xf32>
      %671 = arith.truncf %670 : vector<1x128xf32> to vector<1x128xbf16>
      %c1_337 = arith.constant 1 : index
      %c0_338 = arith.constant 0 : index
      %c0_339 = arith.constant 0 : index
      %672 = vector.load %arg2[%c1_337, %c0_338, %c0_339] : memref<2x128x128xbf16, #tpu.memory_space<vmem>>, vector<1x128x128xbf16>
      %673 = vector.shape_cast %672 : vector<1x128x128xbf16> to vector<128x128xbf16>
      %cst_340 = arith.constant dense<0.000000e+00> : vector<1x128xf32>
      %674 = tpu.matmul %671, %673, %cst_340 {dimension_numbers = #tpu.dot_dimension_numbers<[1], [0], [0], [1], [0, 0, 1, 1], [], []>} : vector<1x128xbf16>, vector<128x128xbf16>, vector<1x128xf32> -> vector<1x128xf32>
      %675 = arith.addf %674, %5 : vector<1x128xf32>
      %cst_341 = arith.constant 0.000000e+00 : f32
      %676 = vector.broadcast %cst_341 : f32 to vector<1x128xf32>
      %677 = arith.maximumf %675, %676 : vector<1x128xf32>
      %678 = arith.truncf %677 : vector<1x128xf32> to vector<1x128xbf16>
      %c0_342 = arith.constant 0 : index
      %c0_343 = arith.constant 0 : index
      %679 = vector.load %arg3[%c0_342, %c0_343] : memref<128x8xbf16, #tpu.memory_space<vmem>>, vector<128x8xbf16>
      %cst_344 = arith.constant dense<0.000000e+00> : vector<1x8xf32>
      %680 = tpu.matmul %678, %679, %cst_344 {dimension_numbers = #tpu.dot_dimension_numbers<[1], [0], [0], [1], [0, 0, 1, 1], [], []>} : vector<1x128xbf16>, vector<128x8xbf16>, vector<1x8xf32> -> vector<1x8xf32>
      %681 = arith.addf %680, %2 : vector<1x8xf32>
      %cst_345 = arith.constant 0.000000e+00 : f32
      %682 = vector.broadcast %cst_345 : f32 to vector<1x8xf32>
      %683 = arith.select %8, %681, %682 : vector<1x8xi1>, vector<1x8xf32>
      %684 = arith.addf %658, %683 : vector<1x8xf32>
      %cst_346 = arith.constant 0.000000e+00 : f32
      %685 = vector.broadcast %cst_346 : f32 to vector<1x8xf32>
      %686 = arith.select %8, %685, %681 : vector<1x8xi1>, vector<1x8xf32>
      %687 = arith.mulf %cst, %cst_6 : f32
      %688 = vector.broadcast %687 : f32 to vector<1x8xf32>
      %689 = arith.mulf %688, %684 : vector<1x8xf32>
      %690 = arith.addf %648, %689 : vector<1x8xf32>
      %691 = arith.mulf %cst, %cst_6 : f32
      %692 = vector.broadcast %691 : f32 to vector<1x8xf32>
      %693 = arith.mulf %692, %686 : vector<1x8xf32>
      %694 = arith.addf %658, %693 : vector<1x8xf32>
      %c0_347 = arith.constant 0 : index
      %c0_348 = arith.constant 0 : index
      %695 = vector.load %arg1[%c0_347, %c0_348] : memref<11x128xf32, #tpu.memory_space<vmem>>, vector<8x128xf32>
      %cst_349 = arith.constant dense<0.000000e+00> : vector<1x128xf32>
      %696 = tpu.matmul %690, %695, %cst_349 {dimension_numbers = #tpu.dot_dimension_numbers<[1], [0], [0], [1], [0, 0, 1, 1], [], []>} : vector<1x8xf32>, vector<8x128xf32>, vector<1x128xf32> -> vector<1x128xf32>
      %697 = arith.addf %696, %3 : vector<1x128xf32>
      %cst_350 = arith.constant 0.000000e+00 : f32
      %698 = vector.broadcast %cst_350 : f32 to vector<1x128xf32>
      %699 = arith.maximumf %697, %698 : vector<1x128xf32>
      %700 = arith.truncf %699 : vector<1x128xf32> to vector<1x128xbf16>
      %c0_351 = arith.constant 0 : index
      %c0_352 = arith.constant 0 : index
      %c0_353 = arith.constant 0 : index
      %701 = vector.load %arg2[%c0_351, %c0_352, %c0_353] : memref<2x128x128xbf16, #tpu.memory_space<vmem>>, vector<1x128x128xbf16>
      %702 = vector.shape_cast %701 : vector<1x128x128xbf16> to vector<128x128xbf16>
      %cst_354 = arith.constant dense<0.000000e+00> : vector<1x128xf32>
      %703 = tpu.matmul %700, %702, %cst_354 {dimension_numbers = #tpu.dot_dimension_numbers<[1], [0], [0], [1], [0, 0, 1, 1], [], []>} : vector<1x128xbf16>, vector<128x128xbf16>, vector<1x128xf32> -> vector<1x128xf32>
      %704 = arith.addf %703, %4 : vector<1x128xf32>
      %cst_355 = arith.constant 0.000000e+00 : f32
      %705 = vector.broadcast %cst_355 : f32 to vector<1x128xf32>
      %706 = arith.maximumf %704, %705 : vector<1x128xf32>
      %707 = arith.truncf %706 : vector<1x128xf32> to vector<1x128xbf16>
      %c1_356 = arith.constant 1 : index
      %c0_357 = arith.constant 0 : index
      %c0_358 = arith.constant 0 : index
      %708 = vector.load %arg2[%c1_356, %c0_357, %c0_358] : memref<2x128x128xbf16, #tpu.memory_space<vmem>>, vector<1x128x128xbf16>
      %709 = vector.shape_cast %708 : vector<1x128x128xbf16> to vector<128x128xbf16>
      %cst_359 = arith.constant dense<0.000000e+00> : vector<1x128xf32>
      %710 = tpu.matmul %707, %709, %cst_359 {dimension_numbers = #tpu.dot_dimension_numbers<[1], [0], [0], [1], [0, 0, 1, 1], [], []>} : vector<1x128xbf16>, vector<128x128xbf16>, vector<1x128xf32> -> vector<1x128xf32>
      %711 = arith.addf %710, %5 : vector<1x128xf32>
      %cst_360 = arith.constant 0.000000e+00 : f32
      %712 = vector.broadcast %cst_360 : f32 to vector<1x128xf32>
      %713 = arith.maximumf %711, %712 : vector<1x128xf32>
      %714 = arith.truncf %713 : vector<1x128xf32> to vector<1x128xbf16>
      %c0_361 = arith.constant 0 : index
      %c0_362 = arith.constant 0 : index
      %715 = vector.load %arg3[%c0_361, %c0_362] : memref<128x8xbf16, #tpu.memory_space<vmem>>, vector<128x8xbf16>
      %cst_363 = arith.constant dense<0.000000e+00> : vector<1x8xf32>
      %716 = tpu.matmul %714, %715, %cst_363 {dimension_numbers = #tpu.dot_dimension_numbers<[1], [0], [0], [1], [0, 0, 1, 1], [], []>} : vector<1x128xbf16>, vector<128x8xbf16>, vector<1x8xf32> -> vector<1x8xf32>
      %717 = arith.addf %716, %2 : vector<1x8xf32>
      %cst_364 = arith.constant 0.000000e+00 : f32
      %718 = vector.broadcast %cst_364 : f32 to vector<1x8xf32>
      %719 = arith.select %8, %717, %718 : vector<1x8xi1>, vector<1x8xf32>
      %720 = arith.addf %694, %719 : vector<1x8xf32>
      %cst_365 = arith.constant 0.000000e+00 : f32
      %721 = vector.broadcast %cst_365 : f32 to vector<1x8xf32>
      %722 = arith.select %8, %721, %717 : vector<1x8xi1>, vector<1x8xf32>
      %723 = vector.broadcast %cst_6 : f32 to vector<1x8xf32>
      %724 = arith.mulf %723, %684 : vector<1x8xf32>
      %725 = arith.subf %720, %724 : vector<1x8xf32>
      %726 = vector.broadcast %cst : f32 to vector<1x8xf32>
      %727 = arith.mulf %726, %725 : vector<1x8xf32>
      %728 = arith.addf %648, %727 : vector<1x8xf32>
      %729 = vector.broadcast %cst_6 : f32 to vector<1x8xf32>
      %730 = arith.mulf %729, %686 : vector<1x8xf32>
      %731 = arith.subf %722, %730 : vector<1x8xf32>
      %732 = vector.broadcast %cst : f32 to vector<1x8xf32>
      %733 = arith.mulf %732, %731 : vector<1x8xf32>
      %734 = arith.addf %658, %733 : vector<1x8xf32>
      %c0_366 = arith.constant 0 : index
      %c0_367 = arith.constant 0 : index
      %735 = vector.load %arg1[%c0_366, %c0_367] : memref<11x128xf32, #tpu.memory_space<vmem>>, vector<8x128xf32>
      %cst_368 = arith.constant dense<0.000000e+00> : vector<1x128xf32>
      %736 = tpu.matmul %728, %735, %cst_368 {dimension_numbers = #tpu.dot_dimension_numbers<[1], [0], [0], [1], [0, 0, 1, 1], [], []>} : vector<1x8xf32>, vector<8x128xf32>, vector<1x128xf32> -> vector<1x128xf32>
      %737 = arith.addf %736, %3 : vector<1x128xf32>
      %cst_369 = arith.constant 0.000000e+00 : f32
      %738 = vector.broadcast %cst_369 : f32 to vector<1x128xf32>
      %739 = arith.maximumf %737, %738 : vector<1x128xf32>
      %740 = arith.truncf %739 : vector<1x128xf32> to vector<1x128xbf16>
      %c0_370 = arith.constant 0 : index
      %c0_371 = arith.constant 0 : index
      %c0_372 = arith.constant 0 : index
      %741 = vector.load %arg2[%c0_370, %c0_371, %c0_372] : memref<2x128x128xbf16, #tpu.memory_space<vmem>>, vector<1x128x128xbf16>
      %742 = vector.shape_cast %741 : vector<1x128x128xbf16> to vector<128x128xbf16>
      %cst_373 = arith.constant dense<0.000000e+00> : vector<1x128xf32>
      %743 = tpu.matmul %740, %742, %cst_373 {dimension_numbers = #tpu.dot_dimension_numbers<[1], [0], [0], [1], [0, 0, 1, 1], [], []>} : vector<1x128xbf16>, vector<128x128xbf16>, vector<1x128xf32> -> vector<1x128xf32>
      %744 = arith.addf %743, %4 : vector<1x128xf32>
      %cst_374 = arith.constant 0.000000e+00 : f32
      %745 = vector.broadcast %cst_374 : f32 to vector<1x128xf32>
      %746 = arith.maximumf %744, %745 : vector<1x128xf32>
      %747 = arith.truncf %746 : vector<1x128xf32> to vector<1x128xbf16>
      %c1_375 = arith.constant 1 : index
      %c0_376 = arith.constant 0 : index
      %c0_377 = arith.constant 0 : index
      %748 = vector.load %arg2[%c1_375, %c0_376, %c0_377] : memref<2x128x128xbf16, #tpu.memory_space<vmem>>, vector<1x128x128xbf16>
      %749 = vector.shape_cast %748 : vector<1x128x128xbf16> to vector<128x128xbf16>
      %cst_378 = arith.constant dense<0.000000e+00> : vector<1x128xf32>
      %750 = tpu.matmul %747, %749, %cst_378 {dimension_numbers = #tpu.dot_dimension_numbers<[1], [0], [0], [1], [0, 0, 1, 1], [], []>} : vector<1x128xbf16>, vector<128x128xbf16>, vector<1x128xf32> -> vector<1x128xf32>
      %751 = arith.addf %750, %5 : vector<1x128xf32>
      %cst_379 = arith.constant 0.000000e+00 : f32
      %752 = vector.broadcast %cst_379 : f32 to vector<1x128xf32>
      %753 = arith.maximumf %751, %752 : vector<1x128xf32>
      %754 = arith.truncf %753 : vector<1x128xf32> to vector<1x128xbf16>
      %c0_380 = arith.constant 0 : index
      %c0_381 = arith.constant 0 : index
      %755 = vector.load %arg3[%c0_380, %c0_381] : memref<128x8xbf16, #tpu.memory_space<vmem>>, vector<128x8xbf16>
      %cst_382 = arith.constant dense<0.000000e+00> : vector<1x8xf32>
      %756 = tpu.matmul %754, %755, %cst_382 {dimension_numbers = #tpu.dot_dimension_numbers<[1], [0], [0], [1], [0, 0, 1, 1], [], []>} : vector<1x128xbf16>, vector<128x8xbf16>, vector<1x8xf32> -> vector<1x8xf32>
      %757 = arith.addf %756, %2 : vector<1x8xf32>
      %cst_383 = arith.constant 0.000000e+00 : f32
      %758 = vector.broadcast %cst_383 : f32 to vector<1x8xf32>
      %759 = arith.select %8, %757, %758 : vector<1x8xi1>, vector<1x8xf32>
      %760 = arith.addf %734, %759 : vector<1x8xf32>
      %cst_384 = arith.constant 0.000000e+00 : f32
      %761 = vector.broadcast %cst_384 : f32 to vector<1x8xf32>
      %762 = arith.select %8, %761, %757 : vector<1x8xi1>, vector<1x8xf32>
      %763 = arith.subf %684, %720 : vector<1x8xf32>
      %764 = arith.addf %763, %760 : vector<1x8xf32>
      %765 = vector.broadcast %cst : f32 to vector<1x8xf32>
      %766 = arith.mulf %765, %764 : vector<1x8xf32>
      %767 = arith.addf %648, %766 : vector<1x8xf32>
      %768 = arith.subf %686, %722 : vector<1x8xf32>
      %769 = arith.addf %768, %762 : vector<1x8xf32>
      %770 = vector.broadcast %cst : f32 to vector<1x8xf32>
      %771 = arith.mulf %770, %769 : vector<1x8xf32>
      %772 = arith.addf %658, %771 : vector<1x8xf32>
      %c0_385 = arith.constant 0 : index
      %c0_386 = arith.constant 0 : index
      %773 = vector.load %arg1[%c0_385, %c0_386] : memref<11x128xf32, #tpu.memory_space<vmem>>, vector<8x128xf32>
      %cst_387 = arith.constant dense<0.000000e+00> : vector<1x128xf32>
      %774 = tpu.matmul %767, %773, %cst_387 {dimension_numbers = #tpu.dot_dimension_numbers<[1], [0], [0], [1], [0, 0, 1, 1], [], []>} : vector<1x8xf32>, vector<8x128xf32>, vector<1x128xf32> -> vector<1x128xf32>
      %775 = arith.addf %774, %3 : vector<1x128xf32>
      %cst_388 = arith.constant 0.000000e+00 : f32
      %776 = vector.broadcast %cst_388 : f32 to vector<1x128xf32>
      %777 = arith.maximumf %775, %776 : vector<1x128xf32>
      %778 = arith.truncf %777 : vector<1x128xf32> to vector<1x128xbf16>
      %c0_389 = arith.constant 0 : index
      %c0_390 = arith.constant 0 : index
      %c0_391 = arith.constant 0 : index
      %779 = vector.load %arg2[%c0_389, %c0_390, %c0_391] : memref<2x128x128xbf16, #tpu.memory_space<vmem>>, vector<1x128x128xbf16>
      %780 = vector.shape_cast %779 : vector<1x128x128xbf16> to vector<128x128xbf16>
      %cst_392 = arith.constant dense<0.000000e+00> : vector<1x128xf32>
      %781 = tpu.matmul %778, %780, %cst_392 {dimension_numbers = #tpu.dot_dimension_numbers<[1], [0], [0], [1], [0, 0, 1, 1], [], []>} : vector<1x128xbf16>, vector<128x128xbf16>, vector<1x128xf32> -> vector<1x128xf32>
      %782 = arith.addf %781, %4 : vector<1x128xf32>
      %cst_393 = arith.constant 0.000000e+00 : f32
      %783 = vector.broadcast %cst_393 : f32 to vector<1x128xf32>
      %784 = arith.maximumf %782, %783 : vector<1x128xf32>
      %785 = arith.truncf %784 : vector<1x128xf32> to vector<1x128xbf16>
      %c1_394 = arith.constant 1 : index
      %c0_395 = arith.constant 0 : index
      %c0_396 = arith.constant 0 : index
      %786 = vector.load %arg2[%c1_394, %c0_395, %c0_396] : memref<2x128x128xbf16, #tpu.memory_space<vmem>>, vector<1x128x128xbf16>
      %787 = vector.shape_cast %786 : vector<1x128x128xbf16> to vector<128x128xbf16>
      %cst_397 = arith.constant dense<0.000000e+00> : vector<1x128xf32>
      %788 = tpu.matmul %785, %787, %cst_397 {dimension_numbers = #tpu.dot_dimension_numbers<[1], [0], [0], [1], [0, 0, 1, 1], [], []>} : vector<1x128xbf16>, vector<128x128xbf16>, vector<1x128xf32> -> vector<1x128xf32>
      %789 = arith.addf %788, %5 : vector<1x128xf32>
      %cst_398 = arith.constant 0.000000e+00 : f32
      %790 = vector.broadcast %cst_398 : f32 to vector<1x128xf32>
      %791 = arith.maximumf %789, %790 : vector<1x128xf32>
      %792 = arith.truncf %791 : vector<1x128xf32> to vector<1x128xbf16>
      %c0_399 = arith.constant 0 : index
      %c0_400 = arith.constant 0 : index
      %793 = vector.load %arg3[%c0_399, %c0_400] : memref<128x8xbf16, #tpu.memory_space<vmem>>, vector<128x8xbf16>
      %cst_401 = arith.constant dense<0.000000e+00> : vector<1x8xf32>
      %794 = tpu.matmul %792, %793, %cst_401 {dimension_numbers = #tpu.dot_dimension_numbers<[1], [0], [0], [1], [0, 0, 1, 1], [], []>} : vector<1x128xbf16>, vector<128x8xbf16>, vector<1x8xf32> -> vector<1x8xf32>
      %795 = arith.addf %794, %2 : vector<1x8xf32>
      %cst_402 = arith.constant 0.000000e+00 : f32
      %796 = vector.broadcast %cst_402 : f32 to vector<1x8xf32>
      %797 = arith.select %8, %795, %796 : vector<1x8xi1>, vector<1x8xf32>
      %798 = arith.addf %772, %797 : vector<1x8xf32>
      %cst_403 = arith.constant 0.000000e+00 : f32
      %799 = vector.broadcast %cst_403 : f32 to vector<1x8xf32>
      %800 = arith.select %8, %799, %795 : vector<1x8xi1>, vector<1x8xf32>
      %801 = arith.addf %720, %760 : vector<1x8xf32>
      %cst_404 = arith.constant 3.000000e+00 : f32
      %802 = vector.broadcast %cst_404 : f32 to vector<1x8xf32>
      %803 = arith.mulf %802, %801 : vector<1x8xf32>
      %804 = arith.addf %684, %803 : vector<1x8xf32>
      %805 = arith.addf %804, %798 : vector<1x8xf32>
      %806 = vector.broadcast %cst : f32 to vector<1x8xf32>
      %807 = arith.mulf %806, %805 : vector<1x8xf32>
      %cst_405 = arith.constant 1.250000e-01 : f32
      %808 = vector.broadcast %cst_405 : f32 to vector<1x8xf32>
      %809 = arith.mulf %807, %808 : vector<1x8xf32>
      %810 = arith.addf %648, %809 : vector<1x8xf32>
      %811 = arith.addf %722, %762 : vector<1x8xf32>
      %cst_406 = arith.constant 3.000000e+00 : f32
      %812 = vector.broadcast %cst_406 : f32 to vector<1x8xf32>
      %813 = arith.mulf %812, %811 : vector<1x8xf32>
      %814 = arith.addf %686, %813 : vector<1x8xf32>
      %815 = arith.addf %814, %800 : vector<1x8xf32>
      %816 = vector.broadcast %cst : f32 to vector<1x8xf32>
      %817 = arith.mulf %816, %815 : vector<1x8xf32>
      %cst_407 = arith.constant 1.250000e-01 : f32
      %818 = vector.broadcast %cst_407 : f32 to vector<1x8xf32>
      %819 = arith.mulf %817, %818 : vector<1x8xf32>
      %820 = arith.addf %658, %819 : vector<1x8xf32>
      %c0_408 = arith.constant 0 : index
      %c0_409 = arith.constant 0 : index
      %821 = vector.load %arg1[%c0_408, %c0_409] : memref<11x128xf32, #tpu.memory_space<vmem>>, vector<8x128xf32>
      %cst_410 = arith.constant dense<0.000000e+00> : vector<1x128xf32>
      %822 = tpu.matmul %810, %821, %cst_410 {dimension_numbers = #tpu.dot_dimension_numbers<[1], [0], [0], [1], [0, 0, 1, 1], [], []>} : vector<1x8xf32>, vector<8x128xf32>, vector<1x128xf32> -> vector<1x128xf32>
      %823 = arith.addf %822, %3 : vector<1x128xf32>
      %cst_411 = arith.constant 0.000000e+00 : f32
      %824 = vector.broadcast %cst_411 : f32 to vector<1x128xf32>
      %825 = arith.maximumf %823, %824 : vector<1x128xf32>
      %826 = arith.truncf %825 : vector<1x128xf32> to vector<1x128xbf16>
      %c0_412 = arith.constant 0 : index
      %c0_413 = arith.constant 0 : index
      %c0_414 = arith.constant 0 : index
      %827 = vector.load %arg2[%c0_412, %c0_413, %c0_414] : memref<2x128x128xbf16, #tpu.memory_space<vmem>>, vector<1x128x128xbf16>
      %828 = vector.shape_cast %827 : vector<1x128x128xbf16> to vector<128x128xbf16>
      %cst_415 = arith.constant dense<0.000000e+00> : vector<1x128xf32>
      %829 = tpu.matmul %826, %828, %cst_415 {dimension_numbers = #tpu.dot_dimension_numbers<[1], [0], [0], [1], [0, 0, 1, 1], [], []>} : vector<1x128xbf16>, vector<128x128xbf16>, vector<1x128xf32> -> vector<1x128xf32>
      %830 = arith.addf %829, %4 : vector<1x128xf32>
      %cst_416 = arith.constant 0.000000e+00 : f32
      %831 = vector.broadcast %cst_416 : f32 to vector<1x128xf32>
      %832 = arith.maximumf %830, %831 : vector<1x128xf32>
      %833 = arith.truncf %832 : vector<1x128xf32> to vector<1x128xbf16>
      %c1_417 = arith.constant 1 : index
      %c0_418 = arith.constant 0 : index
      %c0_419 = arith.constant 0 : index
      %834 = vector.load %arg2[%c1_417, %c0_418, %c0_419] : memref<2x128x128xbf16, #tpu.memory_space<vmem>>, vector<1x128x128xbf16>
      %835 = vector.shape_cast %834 : vector<1x128x128xbf16> to vector<128x128xbf16>
      %cst_420 = arith.constant dense<0.000000e+00> : vector<1x128xf32>
      %836 = tpu.matmul %833, %835, %cst_420 {dimension_numbers = #tpu.dot_dimension_numbers<[1], [0], [0], [1], [0, 0, 1, 1], [], []>} : vector<1x128xbf16>, vector<128x128xbf16>, vector<1x128xf32> -> vector<1x128xf32>
      %837 = arith.addf %836, %5 : vector<1x128xf32>
      %cst_421 = arith.constant 0.000000e+00 : f32
      %838 = vector.broadcast %cst_421 : f32 to vector<1x128xf32>
      %839 = arith.maximumf %837, %838 : vector<1x128xf32>
      %840 = arith.truncf %839 : vector<1x128xf32> to vector<1x128xbf16>
      %c0_422 = arith.constant 0 : index
      %c0_423 = arith.constant 0 : index
      %841 = vector.load %arg3[%c0_422, %c0_423] : memref<128x8xbf16, #tpu.memory_space<vmem>>, vector<128x8xbf16>
      %cst_424 = arith.constant dense<0.000000e+00> : vector<1x8xf32>
      %842 = tpu.matmul %840, %841, %cst_424 {dimension_numbers = #tpu.dot_dimension_numbers<[1], [0], [0], [1], [0, 0, 1, 1], [], []>} : vector<1x128xbf16>, vector<128x8xbf16>, vector<1x8xf32> -> vector<1x8xf32>
      %843 = arith.addf %842, %2 : vector<1x8xf32>
      %cst_425 = arith.constant 0.000000e+00 : f32
      %844 = vector.broadcast %cst_425 : f32 to vector<1x8xf32>
      %845 = arith.select %8, %843, %844 : vector<1x8xi1>, vector<1x8xf32>
      %846 = arith.addf %820, %845 : vector<1x8xf32>
      %cst_426 = arith.constant 0.000000e+00 : f32
      %847 = vector.broadcast %cst_426 : f32 to vector<1x8xf32>
      %848 = arith.select %8, %847, %843 : vector<1x8xi1>, vector<1x8xf32>
      %849 = arith.mulf %cst, %cst_6 : f32
      %850 = vector.broadcast %849 : f32 to vector<1x8xf32>
      %851 = arith.mulf %850, %846 : vector<1x8xf32>
      %852 = arith.addf %810, %851 : vector<1x8xf32>
      %853 = arith.mulf %cst, %cst_6 : f32
      %854 = vector.broadcast %853 : f32 to vector<1x8xf32>
      %855 = arith.mulf %854, %848 : vector<1x8xf32>
      %856 = arith.addf %820, %855 : vector<1x8xf32>
      %c0_427 = arith.constant 0 : index
      %c0_428 = arith.constant 0 : index
      %857 = vector.load %arg1[%c0_427, %c0_428] : memref<11x128xf32, #tpu.memory_space<vmem>>, vector<8x128xf32>
      %cst_429 = arith.constant dense<0.000000e+00> : vector<1x128xf32>
      %858 = tpu.matmul %852, %857, %cst_429 {dimension_numbers = #tpu.dot_dimension_numbers<[1], [0], [0], [1], [0, 0, 1, 1], [], []>} : vector<1x8xf32>, vector<8x128xf32>, vector<1x128xf32> -> vector<1x128xf32>
      %859 = arith.addf %858, %3 : vector<1x128xf32>
      %cst_430 = arith.constant 0.000000e+00 : f32
      %860 = vector.broadcast %cst_430 : f32 to vector<1x128xf32>
      %861 = arith.maximumf %859, %860 : vector<1x128xf32>
      %862 = arith.truncf %861 : vector<1x128xf32> to vector<1x128xbf16>
      %c0_431 = arith.constant 0 : index
      %c0_432 = arith.constant 0 : index
      %c0_433 = arith.constant 0 : index
      %863 = vector.load %arg2[%c0_431, %c0_432, %c0_433] : memref<2x128x128xbf16, #tpu.memory_space<vmem>>, vector<1x128x128xbf16>
      %864 = vector.shape_cast %863 : vector<1x128x128xbf16> to vector<128x128xbf16>
      %cst_434 = arith.constant dense<0.000000e+00> : vector<1x128xf32>
      %865 = tpu.matmul %862, %864, %cst_434 {dimension_numbers = #tpu.dot_dimension_numbers<[1], [0], [0], [1], [0, 0, 1, 1], [], []>} : vector<1x128xbf16>, vector<128x128xbf16>, vector<1x128xf32> -> vector<1x128xf32>
      %866 = arith.addf %865, %4 : vector<1x128xf32>
      %cst_435 = arith.constant 0.000000e+00 : f32
      %867 = vector.broadcast %cst_435 : f32 to vector<1x128xf32>
      %868 = arith.maximumf %866, %867 : vector<1x128xf32>
      %869 = arith.truncf %868 : vector<1x128xf32> to vector<1x128xbf16>
      %c1_436 = arith.constant 1 : index
      %c0_437 = arith.constant 0 : index
      %c0_438 = arith.constant 0 : index
      %870 = vector.load %arg2[%c1_436, %c0_437, %c0_438] : memref<2x128x128xbf16, #tpu.memory_space<vmem>>, vector<1x128x128xbf16>
      %871 = vector.shape_cast %870 : vector<1x128x128xbf16> to vector<128x128xbf16>
      %cst_439 = arith.constant dense<0.000000e+00> : vector<1x128xf32>
      %872 = tpu.matmul %869, %871, %cst_439 {dimension_numbers = #tpu.dot_dimension_numbers<[1], [0], [0], [1], [0, 0, 1, 1], [], []>} : vector<1x128xbf16>, vector<128x128xbf16>, vector<1x128xf32> -> vector<1x128xf32>
      %873 = arith.addf %872, %5 : vector<1x128xf32>
      %cst_440 = arith.constant 0.000000e+00 : f32
      %874 = vector.broadcast %cst_440 : f32 to vector<1x128xf32>
      %875 = arith.maximumf %873, %874 : vector<1x128xf32>
      %876 = arith.truncf %875 : vector<1x128xf32> to vector<1x128xbf16>
      %c0_441 = arith.constant 0 : index
      %c0_442 = arith.constant 0 : index
      %877 = vector.load %arg3[%c0_441, %c0_442] : memref<128x8xbf16, #tpu.memory_space<vmem>>, vector<128x8xbf16>
      %cst_443 = arith.constant dense<0.000000e+00> : vector<1x8xf32>
      %878 = tpu.matmul %876, %877, %cst_443 {dimension_numbers = #tpu.dot_dimension_numbers<[1], [0], [0], [1], [0, 0, 1, 1], [], []>} : vector<1x128xbf16>, vector<128x8xbf16>, vector<1x8xf32> -> vector<1x8xf32>
      %879 = arith.addf %878, %2 : vector<1x8xf32>
      %cst_444 = arith.constant 0.000000e+00 : f32
      %880 = vector.broadcast %cst_444 : f32 to vector<1x8xf32>
      %881 = arith.select %8, %879, %880 : vector<1x8xi1>, vector<1x8xf32>
      %882 = arith.addf %856, %881 : vector<1x8xf32>
      %cst_445 = arith.constant 0.000000e+00 : f32
      %883 = vector.broadcast %cst_445 : f32 to vector<1x8xf32>
      %884 = arith.select %8, %883, %879 : vector<1x8xi1>, vector<1x8xf32>
      %885 = vector.broadcast %cst_6 : f32 to vector<1x8xf32>
      %886 = arith.mulf %885, %846 : vector<1x8xf32>
      %887 = arith.subf %882, %886 : vector<1x8xf32>
      %888 = vector.broadcast %cst : f32 to vector<1x8xf32>
      %889 = arith.mulf %888, %887 : vector<1x8xf32>
      %890 = arith.addf %810, %889 : vector<1x8xf32>
      %891 = vector.broadcast %cst_6 : f32 to vector<1x8xf32>
      %892 = arith.mulf %891, %848 : vector<1x8xf32>
      %893 = arith.subf %884, %892 : vector<1x8xf32>
      %894 = vector.broadcast %cst : f32 to vector<1x8xf32>
      %895 = arith.mulf %894, %893 : vector<1x8xf32>
      %896 = arith.addf %820, %895 : vector<1x8xf32>
      %c0_446 = arith.constant 0 : index
      %c0_447 = arith.constant 0 : index
      %897 = vector.load %arg1[%c0_446, %c0_447] : memref<11x128xf32, #tpu.memory_space<vmem>>, vector<8x128xf32>
      %cst_448 = arith.constant dense<0.000000e+00> : vector<1x128xf32>
      %898 = tpu.matmul %890, %897, %cst_448 {dimension_numbers = #tpu.dot_dimension_numbers<[1], [0], [0], [1], [0, 0, 1, 1], [], []>} : vector<1x8xf32>, vector<8x128xf32>, vector<1x128xf32> -> vector<1x128xf32>
      %899 = arith.addf %898, %3 : vector<1x128xf32>
      %cst_449 = arith.constant 0.000000e+00 : f32
      %900 = vector.broadcast %cst_449 : f32 to vector<1x128xf32>
      %901 = arith.maximumf %899, %900 : vector<1x128xf32>
      %902 = arith.truncf %901 : vector<1x128xf32> to vector<1x128xbf16>
      %c0_450 = arith.constant 0 : index
      %c0_451 = arith.constant 0 : index
      %c0_452 = arith.constant 0 : index
      %903 = vector.load %arg2[%c0_450, %c0_451, %c0_452] : memref<2x128x128xbf16, #tpu.memory_space<vmem>>, vector<1x128x128xbf16>
      %904 = vector.shape_cast %903 : vector<1x128x128xbf16> to vector<128x128xbf16>
      %cst_453 = arith.constant dense<0.000000e+00> : vector<1x128xf32>
      %905 = tpu.matmul %902, %904, %cst_453 {dimension_numbers = #tpu.dot_dimension_numbers<[1], [0], [0], [1], [0, 0, 1, 1], [], []>} : vector<1x128xbf16>, vector<128x128xbf16>, vector<1x128xf32> -> vector<1x128xf32>
      %906 = arith.addf %905, %4 : vector<1x128xf32>
      %cst_454 = arith.constant 0.000000e+00 : f32
      %907 = vector.broadcast %cst_454 : f32 to vector<1x128xf32>
      %908 = arith.maximumf %906, %907 : vector<1x128xf32>
      %909 = arith.truncf %908 : vector<1x128xf32> to vector<1x128xbf16>
      %c1_455 = arith.constant 1 : index
      %c0_456 = arith.constant 0 : index
      %c0_457 = arith.constant 0 : index
      %910 = vector.load %arg2[%c1_455, %c0_456, %c0_457] : memref<2x128x128xbf16, #tpu.memory_space<vmem>>, vector<1x128x128xbf16>
      %911 = vector.shape_cast %910 : vector<1x128x128xbf16> to vector<128x128xbf16>
      %cst_458 = arith.constant dense<0.000000e+00> : vector<1x128xf32>
      %912 = tpu.matmul %909, %911, %cst_458 {dimension_numbers = #tpu.dot_dimension_numbers<[1], [0], [0], [1], [0, 0, 1, 1], [], []>} : vector<1x128xbf16>, vector<128x128xbf16>, vector<1x128xf32> -> vector<1x128xf32>
      %913 = arith.addf %912, %5 : vector<1x128xf32>
      %cst_459 = arith.constant 0.000000e+00 : f32
      %914 = vector.broadcast %cst_459 : f32 to vector<1x128xf32>
      %915 = arith.maximumf %913, %914 : vector<1x128xf32>
      %916 = arith.truncf %915 : vector<1x128xf32> to vector<1x128xbf16>
      %c0_460 = arith.constant 0 : index
      %c0_461 = arith.constant 0 : index
      %917 = vector.load %arg3[%c0_460, %c0_461] : memref<128x8xbf16, #tpu.memory_space<vmem>>, vector<128x8xbf16>
      %cst_462 = arith.constant dense<0.000000e+00> : vector<1x8xf32>
      %918 = tpu.matmul %916, %917, %cst_462 {dimension_numbers = #tpu.dot_dimension_numbers<[1], [0], [0], [1], [0, 0, 1, 1], [], []>} : vector<1x128xbf16>, vector<128x8xbf16>, vector<1x8xf32> -> vector<1x8xf32>
      %919 = arith.addf %918, %2 : vector<1x8xf32>
      %cst_463 = arith.constant 0.000000e+00 : f32
      %920 = vector.broadcast %cst_463 : f32 to vector<1x8xf32>
      %921 = arith.select %8, %919, %920 : vector<1x8xi1>, vector<1x8xf32>
      %922 = arith.addf %896, %921 : vector<1x8xf32>
      %cst_464 = arith.constant 0.000000e+00 : f32
      %923 = vector.broadcast %cst_464 : f32 to vector<1x8xf32>
      %924 = arith.select %8, %923, %919 : vector<1x8xi1>, vector<1x8xf32>
      %925 = arith.subf %846, %882 : vector<1x8xf32>
      %926 = arith.addf %925, %922 : vector<1x8xf32>
      %927 = vector.broadcast %cst : f32 to vector<1x8xf32>
      %928 = arith.mulf %927, %926 : vector<1x8xf32>
      %929 = arith.addf %810, %928 : vector<1x8xf32>
      %930 = arith.subf %848, %884 : vector<1x8xf32>
      %931 = arith.addf %930, %924 : vector<1x8xf32>
      %932 = vector.broadcast %cst : f32 to vector<1x8xf32>
      %933 = arith.mulf %932, %931 : vector<1x8xf32>
      %934 = arith.addf %820, %933 : vector<1x8xf32>
      %c0_465 = arith.constant 0 : index
      %c0_466 = arith.constant 0 : index
      %935 = vector.load %arg1[%c0_465, %c0_466] : memref<11x128xf32, #tpu.memory_space<vmem>>, vector<8x128xf32>
      %cst_467 = arith.constant dense<0.000000e+00> : vector<1x128xf32>
      %936 = tpu.matmul %929, %935, %cst_467 {dimension_numbers = #tpu.dot_dimension_numbers<[1], [0], [0], [1], [0, 0, 1, 1], [], []>} : vector<1x8xf32>, vector<8x128xf32>, vector<1x128xf32> -> vector<1x128xf32>
      %937 = arith.addf %936, %3 : vector<1x128xf32>
      %cst_468 = arith.constant 0.000000e+00 : f32
      %938 = vector.broadcast %cst_468 : f32 to vector<1x128xf32>
      %939 = arith.maximumf %937, %938 : vector<1x128xf32>
      %940 = arith.truncf %939 : vector<1x128xf32> to vector<1x128xbf16>
      %c0_469 = arith.constant 0 : index
      %c0_470 = arith.constant 0 : index
      %c0_471 = arith.constant 0 : index
      %941 = vector.load %arg2[%c0_469, %c0_470, %c0_471] : memref<2x128x128xbf16, #tpu.memory_space<vmem>>, vector<1x128x128xbf16>
      %942 = vector.shape_cast %941 : vector<1x128x128xbf16> to vector<128x128xbf16>
      %cst_472 = arith.constant dense<0.000000e+00> : vector<1x128xf32>
      %943 = tpu.matmul %940, %942, %cst_472 {dimension_numbers = #tpu.dot_dimension_numbers<[1], [0], [0], [1], [0, 0, 1, 1], [], []>} : vector<1x128xbf16>, vector<128x128xbf16>, vector<1x128xf32> -> vector<1x128xf32>
      %944 = arith.addf %943, %4 : vector<1x128xf32>
      %cst_473 = arith.constant 0.000000e+00 : f32
      %945 = vector.broadcast %cst_473 : f32 to vector<1x128xf32>
      %946 = arith.maximumf %944, %945 : vector<1x128xf32>
      %947 = arith.truncf %946 : vector<1x128xf32> to vector<1x128xbf16>
      %c1_474 = arith.constant 1 : index
      %c0_475 = arith.constant 0 : index
      %c0_476 = arith.constant 0 : index
      %948 = vector.load %arg2[%c1_474, %c0_475, %c0_476] : memref<2x128x128xbf16, #tpu.memory_space<vmem>>, vector<1x128x128xbf16>
      %949 = vector.shape_cast %948 : vector<1x128x128xbf16> to vector<128x128xbf16>
      %cst_477 = arith.constant dense<0.000000e+00> : vector<1x128xf32>
      %950 = tpu.matmul %947, %949, %cst_477 {dimension_numbers = #tpu.dot_dimension_numbers<[1], [0], [0], [1], [0, 0, 1, 1], [], []>} : vector<1x128xbf16>, vector<128x128xbf16>, vector<1x128xf32> -> vector<1x128xf32>
      %951 = arith.addf %950, %5 : vector<1x128xf32>
      %cst_478 = arith.constant 0.000000e+00 : f32
      %952 = vector.broadcast %cst_478 : f32 to vector<1x128xf32>
      %953 = arith.maximumf %951, %952 : vector<1x128xf32>
      %954 = arith.truncf %953 : vector<1x128xf32> to vector<1x128xbf16>
      %c0_479 = arith.constant 0 : index
      %c0_480 = arith.constant 0 : index
      %955 = vector.load %arg3[%c0_479, %c0_480] : memref<128x8xbf16, #tpu.memory_space<vmem>>, vector<128x8xbf16>
      %cst_481 = arith.constant dense<0.000000e+00> : vector<1x8xf32>
      %956 = tpu.matmul %954, %955, %cst_481 {dimension_numbers = #tpu.dot_dimension_numbers<[1], [0], [0], [1], [0, 0, 1, 1], [], []>} : vector<1x128xbf16>, vector<128x8xbf16>, vector<1x8xf32> -> vector<1x8xf32>
      %957 = arith.addf %956, %2 : vector<1x8xf32>
      %cst_482 = arith.constant 0.000000e+00 : f32
      %958 = vector.broadcast %cst_482 : f32 to vector<1x8xf32>
      %959 = arith.select %8, %957, %958 : vector<1x8xi1>, vector<1x8xf32>
      %960 = arith.addf %934, %959 : vector<1x8xf32>
      %cst_483 = arith.constant 0.000000e+00 : f32
      %961 = vector.broadcast %cst_483 : f32 to vector<1x8xf32>
      %962 = arith.select %8, %961, %957 : vector<1x8xi1>, vector<1x8xf32>
      %963 = arith.addf %882, %922 : vector<1x8xf32>
      %cst_484 = arith.constant 3.000000e+00 : f32
      %964 = vector.broadcast %cst_484 : f32 to vector<1x8xf32>
      %965 = arith.mulf %964, %963 : vector<1x8xf32>
      %966 = arith.addf %846, %965 : vector<1x8xf32>
      %967 = arith.addf %966, %960 : vector<1x8xf32>
      %968 = vector.broadcast %cst : f32 to vector<1x8xf32>
      %969 = arith.mulf %968, %967 : vector<1x8xf32>
      %cst_485 = arith.constant 1.250000e-01 : f32
      %970 = vector.broadcast %cst_485 : f32 to vector<1x8xf32>
      %971 = arith.mulf %969, %970 : vector<1x8xf32>
      %972 = arith.addf %810, %971 : vector<1x8xf32>
      %973 = arith.addf %884, %924 : vector<1x8xf32>
      %cst_486 = arith.constant 3.000000e+00 : f32
      %974 = vector.broadcast %cst_486 : f32 to vector<1x8xf32>
      %975 = arith.mulf %974, %973 : vector<1x8xf32>
      %976 = arith.addf %848, %975 : vector<1x8xf32>
      %977 = arith.addf %976, %962 : vector<1x8xf32>
      %978 = vector.broadcast %cst : f32 to vector<1x8xf32>
      %979 = arith.mulf %978, %977 : vector<1x8xf32>
      %cst_487 = arith.constant 1.250000e-01 : f32
      %980 = vector.broadcast %cst_487 : f32 to vector<1x8xf32>
      %981 = arith.mulf %979, %980 : vector<1x8xf32>
      %982 = arith.addf %820, %981 : vector<1x8xf32>
      %c0_488 = arith.constant 0 : index
      %c0_489 = arith.constant 0 : index
      %983 = vector.load %arg1[%c0_488, %c0_489] : memref<11x128xf32, #tpu.memory_space<vmem>>, vector<8x128xf32>
      %cst_490 = arith.constant dense<0.000000e+00> : vector<1x128xf32>
      %984 = tpu.matmul %972, %983, %cst_490 {dimension_numbers = #tpu.dot_dimension_numbers<[1], [0], [0], [1], [0, 0, 1, 1], [], []>} : vector<1x8xf32>, vector<8x128xf32>, vector<1x128xf32> -> vector<1x128xf32>
      %985 = arith.addf %984, %3 : vector<1x128xf32>
      %cst_491 = arith.constant 0.000000e+00 : f32
      %986 = vector.broadcast %cst_491 : f32 to vector<1x128xf32>
      %987 = arith.maximumf %985, %986 : vector<1x128xf32>
      %988 = arith.truncf %987 : vector<1x128xf32> to vector<1x128xbf16>
      %c0_492 = arith.constant 0 : index
      %c0_493 = arith.constant 0 : index
      %c0_494 = arith.constant 0 : index
      %989 = vector.load %arg2[%c0_492, %c0_493, %c0_494] : memref<2x128x128xbf16, #tpu.memory_space<vmem>>, vector<1x128x128xbf16>
      %990 = vector.shape_cast %989 : vector<1x128x128xbf16> to vector<128x128xbf16>
      %cst_495 = arith.constant dense<0.000000e+00> : vector<1x128xf32>
      %991 = tpu.matmul %988, %990, %cst_495 {dimension_numbers = #tpu.dot_dimension_numbers<[1], [0], [0], [1], [0, 0, 1, 1], [], []>} : vector<1x128xbf16>, vector<128x128xbf16>, vector<1x128xf32> -> vector<1x128xf32>
      %992 = arith.addf %991, %4 : vector<1x128xf32>
      %cst_496 = arith.constant 0.000000e+00 : f32
      %993 = vector.broadcast %cst_496 : f32 to vector<1x128xf32>
      %994 = arith.maximumf %992, %993 : vector<1x128xf32>
      %995 = arith.truncf %994 : vector<1x128xf32> to vector<1x128xbf16>
      %c1_497 = arith.constant 1 : index
      %c0_498 = arith.constant 0 : index
      %c0_499 = arith.constant 0 : index
      %996 = vector.load %arg2[%c1_497, %c0_498, %c0_499] : memref<2x128x128xbf16, #tpu.memory_space<vmem>>, vector<1x128x128xbf16>
      %997 = vector.shape_cast %996 : vector<1x128x128xbf16> to vector<128x128xbf16>
      %cst_500 = arith.constant dense<0.000000e+00> : vector<1x128xf32>
      %998 = tpu.matmul %995, %997, %cst_500 {dimension_numbers = #tpu.dot_dimension_numbers<[1], [0], [0], [1], [0, 0, 1, 1], [], []>} : vector<1x128xbf16>, vector<128x128xbf16>, vector<1x128xf32> -> vector<1x128xf32>
      %999 = arith.addf %998, %5 : vector<1x128xf32>
      %cst_501 = arith.constant 0.000000e+00 : f32
      %1000 = vector.broadcast %cst_501 : f32 to vector<1x128xf32>
      %1001 = arith.maximumf %999, %1000 : vector<1x128xf32>
      %1002 = arith.truncf %1001 : vector<1x128xf32> to vector<1x128xbf16>
      %c0_502 = arith.constant 0 : index
      %c0_503 = arith.constant 0 : index
      %1003 = vector.load %arg3[%c0_502, %c0_503] : memref<128x8xbf16, #tpu.memory_space<vmem>>, vector<128x8xbf16>
      %cst_504 = arith.constant dense<0.000000e+00> : vector<1x8xf32>
      %1004 = tpu.matmul %1002, %1003, %cst_504 {dimension_numbers = #tpu.dot_dimension_numbers<[1], [0], [0], [1], [0, 0, 1, 1], [], []>} : vector<1x128xbf16>, vector<128x8xbf16>, vector<1x8xf32> -> vector<1x8xf32>
      %1005 = arith.addf %1004, %2 : vector<1x8xf32>
      %cst_505 = arith.constant 0.000000e+00 : f32
      %1006 = vector.broadcast %cst_505 : f32 to vector<1x8xf32>
      %1007 = arith.select %8, %1005, %1006 : vector<1x8xi1>, vector<1x8xf32>
      %1008 = arith.addf %982, %1007 : vector<1x8xf32>
      %cst_506 = arith.constant 0.000000e+00 : f32
      %1009 = vector.broadcast %cst_506 : f32 to vector<1x8xf32>
      %1010 = arith.select %8, %1009, %1005 : vector<1x8xi1>, vector<1x8xf32>
      %1011 = arith.mulf %cst, %cst_6 : f32
      %1012 = vector.broadcast %1011 : f32 to vector<1x8xf32>
      %1013 = arith.mulf %1012, %1008 : vector<1x8xf32>
      %1014 = arith.addf %972, %1013 : vector<1x8xf32>
      %1015 = arith.mulf %cst, %cst_6 : f32
      %1016 = vector.broadcast %1015 : f32 to vector<1x8xf32>
      %1017 = arith.mulf %1016, %1010 : vector<1x8xf32>
      %1018 = arith.addf %982, %1017 : vector<1x8xf32>
      %c0_507 = arith.constant 0 : index
      %c0_508 = arith.constant 0 : index
      %1019 = vector.load %arg1[%c0_507, %c0_508] : memref<11x128xf32, #tpu.memory_space<vmem>>, vector<8x128xf32>
      %cst_509 = arith.constant dense<0.000000e+00> : vector<1x128xf32>
      %1020 = tpu.matmul %1014, %1019, %cst_509 {dimension_numbers = #tpu.dot_dimension_numbers<[1], [0], [0], [1], [0, 0, 1, 1], [], []>} : vector<1x8xf32>, vector<8x128xf32>, vector<1x128xf32> -> vector<1x128xf32>
      %1021 = arith.addf %1020, %3 : vector<1x128xf32>
      %cst_510 = arith.constant 0.000000e+00 : f32
      %1022 = vector.broadcast %cst_510 : f32 to vector<1x128xf32>
      %1023 = arith.maximumf %1021, %1022 : vector<1x128xf32>
      %1024 = arith.truncf %1023 : vector<1x128xf32> to vector<1x128xbf16>
      %c0_511 = arith.constant 0 : index
      %c0_512 = arith.constant 0 : index
      %c0_513 = arith.constant 0 : index
      %1025 = vector.load %arg2[%c0_511, %c0_512, %c0_513] : memref<2x128x128xbf16, #tpu.memory_space<vmem>>, vector<1x128x128xbf16>
      %1026 = vector.shape_cast %1025 : vector<1x128x128xbf16> to vector<128x128xbf16>
      %cst_514 = arith.constant dense<0.000000e+00> : vector<1x128xf32>
      %1027 = tpu.matmul %1024, %1026, %cst_514 {dimension_numbers = #tpu.dot_dimension_numbers<[1], [0], [0], [1], [0, 0, 1, 1], [], []>} : vector<1x128xbf16>, vector<128x128xbf16>, vector<1x128xf32> -> vector<1x128xf32>
      %1028 = arith.addf %1027, %4 : vector<1x128xf32>
      %cst_515 = arith.constant 0.000000e+00 : f32
      %1029 = vector.broadcast %cst_515 : f32 to vector<1x128xf32>
      %1030 = arith.maximumf %1028, %1029 : vector<1x128xf32>
      %1031 = arith.truncf %1030 : vector<1x128xf32> to vector<1x128xbf16>
      %c1_516 = arith.constant 1 : index
      %c0_517 = arith.constant 0 : index
      %c0_518 = arith.constant 0 : index
      %1032 = vector.load %arg2[%c1_516, %c0_517, %c0_518] : memref<2x128x128xbf16, #tpu.memory_space<vmem>>, vector<1x128x128xbf16>
      %1033 = vector.shape_cast %1032 : vector<1x128x128xbf16> to vector<128x128xbf16>
      %cst_519 = arith.constant dense<0.000000e+00> : vector<1x128xf32>
      %1034 = tpu.matmul %1031, %1033, %cst_519 {dimension_numbers = #tpu.dot_dimension_numbers<[1], [0], [0], [1], [0, 0, 1, 1], [], []>} : vector<1x128xbf16>, vector<128x128xbf16>, vector<1x128xf32> -> vector<1x128xf32>
      %1035 = arith.addf %1034, %5 : vector<1x128xf32>
      %cst_520 = arith.constant 0.000000e+00 : f32
      %1036 = vector.broadcast %cst_520 : f32 to vector<1x128xf32>
      %1037 = arith.maximumf %1035, %1036 : vector<1x128xf32>
      %1038 = arith.truncf %1037 : vector<1x128xf32> to vector<1x128xbf16>
      %c0_521 = arith.constant 0 : index
      %c0_522 = arith.constant 0 : index
      %1039 = vector.load %arg3[%c0_521, %c0_522] : memref<128x8xbf16, #tpu.memory_space<vmem>>, vector<128x8xbf16>
      %cst_523 = arith.constant dense<0.000000e+00> : vector<1x8xf32>
      %1040 = tpu.matmul %1038, %1039, %cst_523 {dimension_numbers = #tpu.dot_dimension_numbers<[1], [0], [0], [1], [0, 0, 1, 1], [], []>} : vector<1x128xbf16>, vector<128x8xbf16>, vector<1x8xf32> -> vector<1x8xf32>
      %1041 = arith.addf %1040, %2 : vector<1x8xf32>
      %cst_524 = arith.constant 0.000000e+00 : f32
      %1042 = vector.broadcast %cst_524 : f32 to vector<1x8xf32>
      %1043 = arith.select %8, %1041, %1042 : vector<1x8xi1>, vector<1x8xf32>
      %1044 = arith.addf %1018, %1043 : vector<1x8xf32>
      %cst_525 = arith.constant 0.000000e+00 : f32
      %1045 = vector.broadcast %cst_525 : f32 to vector<1x8xf32>
      %1046 = arith.select %8, %1045, %1041 : vector<1x8xi1>, vector<1x8xf32>
      %1047 = vector.broadcast %cst_6 : f32 to vector<1x8xf32>
      %1048 = arith.mulf %1047, %1008 : vector<1x8xf32>
      %1049 = arith.subf %1044, %1048 : vector<1x8xf32>
      %1050 = vector.broadcast %cst : f32 to vector<1x8xf32>
      %1051 = arith.mulf %1050, %1049 : vector<1x8xf32>
      %1052 = arith.addf %972, %1051 : vector<1x8xf32>
      %1053 = vector.broadcast %cst_6 : f32 to vector<1x8xf32>
      %1054 = arith.mulf %1053, %1010 : vector<1x8xf32>
      %1055 = arith.subf %1046, %1054 : vector<1x8xf32>
      %1056 = vector.broadcast %cst : f32 to vector<1x8xf32>
      %1057 = arith.mulf %1056, %1055 : vector<1x8xf32>
      %1058 = arith.addf %982, %1057 : vector<1x8xf32>
      %c0_526 = arith.constant 0 : index
      %c0_527 = arith.constant 0 : index
      %1059 = vector.load %arg1[%c0_526, %c0_527] : memref<11x128xf32, #tpu.memory_space<vmem>>, vector<8x128xf32>
      %cst_528 = arith.constant dense<0.000000e+00> : vector<1x128xf32>
      %1060 = tpu.matmul %1052, %1059, %cst_528 {dimension_numbers = #tpu.dot_dimension_numbers<[1], [0], [0], [1], [0, 0, 1, 1], [], []>} : vector<1x8xf32>, vector<8x128xf32>, vector<1x128xf32> -> vector<1x128xf32>
      %1061 = arith.addf %1060, %3 : vector<1x128xf32>
      %cst_529 = arith.constant 0.000000e+00 : f32
      %1062 = vector.broadcast %cst_529 : f32 to vector<1x128xf32>
      %1063 = arith.maximumf %1061, %1062 : vector<1x128xf32>
      %1064 = arith.truncf %1063 : vector<1x128xf32> to vector<1x128xbf16>
      %c0_530 = arith.constant 0 : index
      %c0_531 = arith.constant 0 : index
      %c0_532 = arith.constant 0 : index
      %1065 = vector.load %arg2[%c0_530, %c0_531, %c0_532] : memref<2x128x128xbf16, #tpu.memory_space<vmem>>, vector<1x128x128xbf16>
      %1066 = vector.shape_cast %1065 : vector<1x128x128xbf16> to vector<128x128xbf16>
      %cst_533 = arith.constant dense<0.000000e+00> : vector<1x128xf32>
      %1067 = tpu.matmul %1064, %1066, %cst_533 {dimension_numbers = #tpu.dot_dimension_numbers<[1], [0], [0], [1], [0, 0, 1, 1], [], []>} : vector<1x128xbf16>, vector<128x128xbf16>, vector<1x128xf32> -> vector<1x128xf32>
      %1068 = arith.addf %1067, %4 : vector<1x128xf32>
      %cst_534 = arith.constant 0.000000e+00 : f32
      %1069 = vector.broadcast %cst_534 : f32 to vector<1x128xf32>
      %1070 = arith.maximumf %1068, %1069 : vector<1x128xf32>
      %1071 = arith.truncf %1070 : vector<1x128xf32> to vector<1x128xbf16>
      %c1_535 = arith.constant 1 : index
      %c0_536 = arith.constant 0 : index
      %c0_537 = arith.constant 0 : index
      %1072 = vector.load %arg2[%c1_535, %c0_536, %c0_537] : memref<2x128x128xbf16, #tpu.memory_space<vmem>>, vector<1x128x128xbf16>
      %1073 = vector.shape_cast %1072 : vector<1x128x128xbf16> to vector<128x128xbf16>
      %cst_538 = arith.constant dense<0.000000e+00> : vector<1x128xf32>
      %1074 = tpu.matmul %1071, %1073, %cst_538 {dimension_numbers = #tpu.dot_dimension_numbers<[1], [0], [0], [1], [0, 0, 1, 1], [], []>} : vector<1x128xbf16>, vector<128x128xbf16>, vector<1x128xf32> -> vector<1x128xf32>
      %1075 = arith.addf %1074, %5 : vector<1x128xf32>
      %cst_539 = arith.constant 0.000000e+00 : f32
      %1076 = vector.broadcast %cst_539 : f32 to vector<1x128xf32>
      %1077 = arith.maximumf %1075, %1076 : vector<1x128xf32>
      %1078 = arith.truncf %1077 : vector<1x128xf32> to vector<1x128xbf16>
      %c0_540 = arith.constant 0 : index
      %c0_541 = arith.constant 0 : index
      %1079 = vector.load %arg3[%c0_540, %c0_541] : memref<128x8xbf16, #tpu.memory_space<vmem>>, vector<128x8xbf16>
      %cst_542 = arith.constant dense<0.000000e+00> : vector<1x8xf32>
      %1080 = tpu.matmul %1078, %1079, %cst_542 {dimension_numbers = #tpu.dot_dimension_numbers<[1], [0], [0], [1], [0, 0, 1, 1], [], []>} : vector<1x128xbf16>, vector<128x8xbf16>, vector<1x8xf32> -> vector<1x8xf32>
      %1081 = arith.addf %1080, %2 : vector<1x8xf32>
      %cst_543 = arith.constant 0.000000e+00 : f32
      %1082 = vector.broadcast %cst_543 : f32 to vector<1x8xf32>
      %1083 = arith.select %8, %1081, %1082 : vector<1x8xi1>, vector<1x8xf32>
      %1084 = arith.addf %1058, %1083 : vector<1x8xf32>
      %cst_544 = arith.constant 0.000000e+00 : f32
      %1085 = vector.broadcast %cst_544 : f32 to vector<1x8xf32>
      %1086 = arith.select %8, %1085, %1081 : vector<1x8xi1>, vector<1x8xf32>
      %1087 = arith.subf %1008, %1044 : vector<1x8xf32>
      %1088 = arith.addf %1087, %1084 : vector<1x8xf32>
      %1089 = vector.broadcast %cst : f32 to vector<1x8xf32>
      %1090 = arith.mulf %1089, %1088 : vector<1x8xf32>
      %1091 = arith.addf %972, %1090 : vector<1x8xf32>
      %1092 = arith.subf %1010, %1046 : vector<1x8xf32>
      %1093 = arith.addf %1092, %1086 : vector<1x8xf32>
      %1094 = vector.broadcast %cst : f32 to vector<1x8xf32>
      %1095 = arith.mulf %1094, %1093 : vector<1x8xf32>
      %1096 = arith.addf %982, %1095 : vector<1x8xf32>
      %c0_545 = arith.constant 0 : index
      %c0_546 = arith.constant 0 : index
      %1097 = vector.load %arg1[%c0_545, %c0_546] : memref<11x128xf32, #tpu.memory_space<vmem>>, vector<8x128xf32>
      %cst_547 = arith.constant dense<0.000000e+00> : vector<1x128xf32>
      %1098 = tpu.matmul %1091, %1097, %cst_547 {dimension_numbers = #tpu.dot_dimension_numbers<[1], [0], [0], [1], [0, 0, 1, 1], [], []>} : vector<1x8xf32>, vector<8x128xf32>, vector<1x128xf32> -> vector<1x128xf32>
      %1099 = arith.addf %1098, %3 : vector<1x128xf32>
      %cst_548 = arith.constant 0.000000e+00 : f32
      %1100 = vector.broadcast %cst_548 : f32 to vector<1x128xf32>
      %1101 = arith.maximumf %1099, %1100 : vector<1x128xf32>
      %1102 = arith.truncf %1101 : vector<1x128xf32> to vector<1x128xbf16>
      %c0_549 = arith.constant 0 : index
      %c0_550 = arith.constant 0 : index
      %c0_551 = arith.constant 0 : index
      %1103 = vector.load %arg2[%c0_549, %c0_550, %c0_551] : memref<2x128x128xbf16, #tpu.memory_space<vmem>>, vector<1x128x128xbf16>
      %1104 = vector.shape_cast %1103 : vector<1x128x128xbf16> to vector<128x128xbf16>
      %cst_552 = arith.constant dense<0.000000e+00> : vector<1x128xf32>
      %1105 = tpu.matmul %1102, %1104, %cst_552 {dimension_numbers = #tpu.dot_dimension_numbers<[1], [0], [0], [1], [0, 0, 1, 1], [], []>} : vector<1x128xbf16>, vector<128x128xbf16>, vector<1x128xf32> -> vector<1x128xf32>
      %1106 = arith.addf %1105, %4 : vector<1x128xf32>
      %cst_553 = arith.constant 0.000000e+00 : f32
      %1107 = vector.broadcast %cst_553 : f32 to vector<1x128xf32>
      %1108 = arith.maximumf %1106, %1107 : vector<1x128xf32>
      %1109 = arith.truncf %1108 : vector<1x128xf32> to vector<1x128xbf16>
      %c1_554 = arith.constant 1 : index
      %c0_555 = arith.constant 0 : index
      %c0_556 = arith.constant 0 : index
      %1110 = vector.load %arg2[%c1_554, %c0_555, %c0_556] : memref<2x128x128xbf16, #tpu.memory_space<vmem>>, vector<1x128x128xbf16>
      %1111 = vector.shape_cast %1110 : vector<1x128x128xbf16> to vector<128x128xbf16>
      %cst_557 = arith.constant dense<0.000000e+00> : vector<1x128xf32>
      %1112 = tpu.matmul %1109, %1111, %cst_557 {dimension_numbers = #tpu.dot_dimension_numbers<[1], [0], [0], [1], [0, 0, 1, 1], [], []>} : vector<1x128xbf16>, vector<128x128xbf16>, vector<1x128xf32> -> vector<1x128xf32>
      %1113 = arith.addf %1112, %5 : vector<1x128xf32>
      %cst_558 = arith.constant 0.000000e+00 : f32
      %1114 = vector.broadcast %cst_558 : f32 to vector<1x128xf32>
      %1115 = arith.maximumf %1113, %1114 : vector<1x128xf32>
      %1116 = arith.truncf %1115 : vector<1x128xf32> to vector<1x128xbf16>
      %c0_559 = arith.constant 0 : index
      %c0_560 = arith.constant 0 : index
      %1117 = vector.load %arg3[%c0_559, %c0_560] : memref<128x8xbf16, #tpu.memory_space<vmem>>, vector<128x8xbf16>
      %cst_561 = arith.constant dense<0.000000e+00> : vector<1x8xf32>
      %1118 = tpu.matmul %1116, %1117, %cst_561 {dimension_numbers = #tpu.dot_dimension_numbers<[1], [0], [0], [1], [0, 0, 1, 1], [], []>} : vector<1x128xbf16>, vector<128x8xbf16>, vector<1x8xf32> -> vector<1x8xf32>
      %1119 = arith.addf %1118, %2 : vector<1x8xf32>
      %cst_562 = arith.constant 0.000000e+00 : f32
      %1120 = vector.broadcast %cst_562 : f32 to vector<1x8xf32>
      %1121 = arith.select %8, %1119, %1120 : vector<1x8xi1>, vector<1x8xf32>
      %1122 = arith.addf %1096, %1121 : vector<1x8xf32>
      %cst_563 = arith.constant 0.000000e+00 : f32
      %1123 = vector.broadcast %cst_563 : f32 to vector<1x8xf32>
      %1124 = arith.select %8, %1123, %1119 : vector<1x8xi1>, vector<1x8xf32>
      %1125 = arith.addf %1044, %1084 : vector<1x8xf32>
      %cst_564 = arith.constant 3.000000e+00 : f32
      %1126 = vector.broadcast %cst_564 : f32 to vector<1x8xf32>
      %1127 = arith.mulf %1126, %1125 : vector<1x8xf32>
      %1128 = arith.addf %1008, %1127 : vector<1x8xf32>
      %1129 = arith.addf %1128, %1122 : vector<1x8xf32>
      %1130 = vector.broadcast %cst : f32 to vector<1x8xf32>
      %1131 = arith.mulf %1130, %1129 : vector<1x8xf32>
      %cst_565 = arith.constant 1.250000e-01 : f32
      %1132 = vector.broadcast %cst_565 : f32 to vector<1x8xf32>
      %1133 = arith.mulf %1131, %1132 : vector<1x8xf32>
      %1134 = arith.addf %972, %1133 : vector<1x8xf32>
      %1135 = arith.addf %1046, %1086 : vector<1x8xf32>
      %cst_566 = arith.constant 3.000000e+00 : f32
      %1136 = vector.broadcast %cst_566 : f32 to vector<1x8xf32>
      %1137 = arith.mulf %1136, %1135 : vector<1x8xf32>
      %1138 = arith.addf %1010, %1137 : vector<1x8xf32>
      %1139 = arith.addf %1138, %1124 : vector<1x8xf32>
      %1140 = vector.broadcast %cst : f32 to vector<1x8xf32>
      %1141 = arith.mulf %1140, %1139 : vector<1x8xf32>
      %cst_567 = arith.constant 1.250000e-01 : f32
      %1142 = vector.broadcast %cst_567 : f32 to vector<1x8xf32>
      %1143 = arith.mulf %1141, %1142 : vector<1x8xf32>
      %1144 = arith.addf %982, %1143 : vector<1x8xf32>
      %c0_568 = arith.constant 0 : index
      %c0_569 = arith.constant 0 : index
      %1145 = vector.load %arg1[%c0_568, %c0_569] : memref<11x128xf32, #tpu.memory_space<vmem>>, vector<8x128xf32>
      %cst_570 = arith.constant dense<0.000000e+00> : vector<1x128xf32>
      %1146 = tpu.matmul %1134, %1145, %cst_570 {dimension_numbers = #tpu.dot_dimension_numbers<[1], [0], [0], [1], [0, 0, 1, 1], [], []>} : vector<1x8xf32>, vector<8x128xf32>, vector<1x128xf32> -> vector<1x128xf32>
      %1147 = arith.addf %1146, %3 : vector<1x128xf32>
      %cst_571 = arith.constant 0.000000e+00 : f32
      %1148 = vector.broadcast %cst_571 : f32 to vector<1x128xf32>
      %1149 = arith.maximumf %1147, %1148 : vector<1x128xf32>
      %1150 = arith.truncf %1149 : vector<1x128xf32> to vector<1x128xbf16>
      %c0_572 = arith.constant 0 : index
      %c0_573 = arith.constant 0 : index
      %c0_574 = arith.constant 0 : index
      %1151 = vector.load %arg2[%c0_572, %c0_573, %c0_574] : memref<2x128x128xbf16, #tpu.memory_space<vmem>>, vector<1x128x128xbf16>
      %1152 = vector.shape_cast %1151 : vector<1x128x128xbf16> to vector<128x128xbf16>
      %cst_575 = arith.constant dense<0.000000e+00> : vector<1x128xf32>
      %1153 = tpu.matmul %1150, %1152, %cst_575 {dimension_numbers = #tpu.dot_dimension_numbers<[1], [0], [0], [1], [0, 0, 1, 1], [], []>} : vector<1x128xbf16>, vector<128x128xbf16>, vector<1x128xf32> -> vector<1x128xf32>
      %1154 = arith.addf %1153, %4 : vector<1x128xf32>
      %cst_576 = arith.constant 0.000000e+00 : f32
      %1155 = vector.broadcast %cst_576 : f32 to vector<1x128xf32>
      %1156 = arith.maximumf %1154, %1155 : vector<1x128xf32>
      %1157 = arith.truncf %1156 : vector<1x128xf32> to vector<1x128xbf16>
      %c1_577 = arith.constant 1 : index
      %c0_578 = arith.constant 0 : index
      %c0_579 = arith.constant 0 : index
      %1158 = vector.load %arg2[%c1_577, %c0_578, %c0_579] : memref<2x128x128xbf16, #tpu.memory_space<vmem>>, vector<1x128x128xbf16>
      %1159 = vector.shape_cast %1158 : vector<1x128x128xbf16> to vector<128x128xbf16>
      %cst_580 = arith.constant dense<0.000000e+00> : vector<1x128xf32>
      %1160 = tpu.matmul %1157, %1159, %cst_580 {dimension_numbers = #tpu.dot_dimension_numbers<[1], [0], [0], [1], [0, 0, 1, 1], [], []>} : vector<1x128xbf16>, vector<128x128xbf16>, vector<1x128xf32> -> vector<1x128xf32>
      %1161 = arith.addf %1160, %5 : vector<1x128xf32>
      %cst_581 = arith.constant 0.000000e+00 : f32
      %1162 = vector.broadcast %cst_581 : f32 to vector<1x128xf32>
      %1163 = arith.maximumf %1161, %1162 : vector<1x128xf32>
      %1164 = arith.truncf %1163 : vector<1x128xf32> to vector<1x128xbf16>
      %c0_582 = arith.constant 0 : index
      %c0_583 = arith.constant 0 : index
      %1165 = vector.load %arg3[%c0_582, %c0_583] : memref<128x8xbf16, #tpu.memory_space<vmem>>, vector<128x8xbf16>
      %cst_584 = arith.constant dense<0.000000e+00> : vector<1x8xf32>
      %1166 = tpu.matmul %1164, %1165, %cst_584 {dimension_numbers = #tpu.dot_dimension_numbers<[1], [0], [0], [1], [0, 0, 1, 1], [], []>} : vector<1x128xbf16>, vector<128x8xbf16>, vector<1x8xf32> -> vector<1x8xf32>
      %1167 = arith.addf %1166, %2 : vector<1x8xf32>
      %cst_585 = arith.constant 0.000000e+00 : f32
      %1168 = vector.broadcast %cst_585 : f32 to vector<1x8xf32>
      %1169 = arith.select %8, %1167, %1168 : vector<1x8xi1>, vector<1x8xf32>
      %1170 = arith.addf %1144, %1169 : vector<1x8xf32>
      %cst_586 = arith.constant 0.000000e+00 : f32
      %1171 = vector.broadcast %cst_586 : f32 to vector<1x8xf32>
      %1172 = arith.select %8, %1171, %1167 : vector<1x8xi1>, vector<1x8xf32>
      %1173 = arith.mulf %cst, %cst_6 : f32
      %1174 = vector.broadcast %1173 : f32 to vector<1x8xf32>
      %1175 = arith.mulf %1174, %1170 : vector<1x8xf32>
      %1176 = arith.addf %1134, %1175 : vector<1x8xf32>
      %1177 = arith.mulf %cst, %cst_6 : f32
      %1178 = vector.broadcast %1177 : f32 to vector<1x8xf32>
      %1179 = arith.mulf %1178, %1172 : vector<1x8xf32>
      %1180 = arith.addf %1144, %1179 : vector<1x8xf32>
      %c0_587 = arith.constant 0 : index
      %c0_588 = arith.constant 0 : index
      %1181 = vector.load %arg1[%c0_587, %c0_588] : memref<11x128xf32, #tpu.memory_space<vmem>>, vector<8x128xf32>
      %cst_589 = arith.constant dense<0.000000e+00> : vector<1x128xf32>
      %1182 = tpu.matmul %1176, %1181, %cst_589 {dimension_numbers = #tpu.dot_dimension_numbers<[1], [0], [0], [1], [0, 0, 1, 1], [], []>} : vector<1x8xf32>, vector<8x128xf32>, vector<1x128xf32> -> vector<1x128xf32>
      %1183 = arith.addf %1182, %3 : vector<1x128xf32>
      %cst_590 = arith.constant 0.000000e+00 : f32
      %1184 = vector.broadcast %cst_590 : f32 to vector<1x128xf32>
      %1185 = arith.maximumf %1183, %1184 : vector<1x128xf32>
      %1186 = arith.truncf %1185 : vector<1x128xf32> to vector<1x128xbf16>
      %c0_591 = arith.constant 0 : index
      %c0_592 = arith.constant 0 : index
      %c0_593 = arith.constant 0 : index
      %1187 = vector.load %arg2[%c0_591, %c0_592, %c0_593] : memref<2x128x128xbf16, #tpu.memory_space<vmem>>, vector<1x128x128xbf16>
      %1188 = vector.shape_cast %1187 : vector<1x128x128xbf16> to vector<128x128xbf16>
      %cst_594 = arith.constant dense<0.000000e+00> : vector<1x128xf32>
      %1189 = tpu.matmul %1186, %1188, %cst_594 {dimension_numbers = #tpu.dot_dimension_numbers<[1], [0], [0], [1], [0, 0, 1, 1], [], []>} : vector<1x128xbf16>, vector<128x128xbf16>, vector<1x128xf32> -> vector<1x128xf32>
      %1190 = arith.addf %1189, %4 : vector<1x128xf32>
      %cst_595 = arith.constant 0.000000e+00 : f32
      %1191 = vector.broadcast %cst_595 : f32 to vector<1x128xf32>
      %1192 = arith.maximumf %1190, %1191 : vector<1x128xf32>
      %1193 = arith.truncf %1192 : vector<1x128xf32> to vector<1x128xbf16>
      %c1_596 = arith.constant 1 : index
      %c0_597 = arith.constant 0 : index
      %c0_598 = arith.constant 0 : index
      %1194 = vector.load %arg2[%c1_596, %c0_597, %c0_598] : memref<2x128x128xbf16, #tpu.memory_space<vmem>>, vector<1x128x128xbf16>
      %1195 = vector.shape_cast %1194 : vector<1x128x128xbf16> to vector<128x128xbf16>
      %cst_599 = arith.constant dense<0.000000e+00> : vector<1x128xf32>
      %1196 = tpu.matmul %1193, %1195, %cst_599 {dimension_numbers = #tpu.dot_dimension_numbers<[1], [0], [0], [1], [0, 0, 1, 1], [], []>} : vector<1x128xbf16>, vector<128x128xbf16>, vector<1x128xf32> -> vector<1x128xf32>
      %1197 = arith.addf %1196, %5 : vector<1x128xf32>
      %cst_600 = arith.constant 0.000000e+00 : f32
      %1198 = vector.broadcast %cst_600 : f32 to vector<1x128xf32>
      %1199 = arith.maximumf %1197, %1198 : vector<1x128xf32>
      %1200 = arith.truncf %1199 : vector<1x128xf32> to vector<1x128xbf16>
      %c0_601 = arith.constant 0 : index
      %c0_602 = arith.constant 0 : index
      %1201 = vector.load %arg3[%c0_601, %c0_602] : memref<128x8xbf16, #tpu.memory_space<vmem>>, vector<128x8xbf16>
      %cst_603 = arith.constant dense<0.000000e+00> : vector<1x8xf32>
      %1202 = tpu.matmul %1200, %1201, %cst_603 {dimension_numbers = #tpu.dot_dimension_numbers<[1], [0], [0], [1], [0, 0, 1, 1], [], []>} : vector<1x128xbf16>, vector<128x8xbf16>, vector<1x8xf32> -> vector<1x8xf32>
      %1203 = arith.addf %1202, %2 : vector<1x8xf32>
      %cst_604 = arith.constant 0.000000e+00 : f32
      %1204 = vector.broadcast %cst_604 : f32 to vector<1x8xf32>
      %1205 = arith.select %8, %1203, %1204 : vector<1x8xi1>, vector<1x8xf32>
      %1206 = arith.addf %1180, %1205 : vector<1x8xf32>
      %cst_605 = arith.constant 0.000000e+00 : f32
      %1207 = vector.broadcast %cst_605 : f32 to vector<1x8xf32>
      %1208 = arith.select %8, %1207, %1203 : vector<1x8xi1>, vector<1x8xf32>
      %1209 = vector.broadcast %cst_6 : f32 to vector<1x8xf32>
      %1210 = arith.mulf %1209, %1170 : vector<1x8xf32>
      %1211 = arith.subf %1206, %1210 : vector<1x8xf32>
      %1212 = vector.broadcast %cst : f32 to vector<1x8xf32>
      %1213 = arith.mulf %1212, %1211 : vector<1x8xf32>
      %1214 = arith.addf %1134, %1213 : vector<1x8xf32>
      %1215 = vector.broadcast %cst_6 : f32 to vector<1x8xf32>
      %1216 = arith.mulf %1215, %1172 : vector<1x8xf32>
      %1217 = arith.subf %1208, %1216 : vector<1x8xf32>
      %1218 = vector.broadcast %cst : f32 to vector<1x8xf32>
      %1219 = arith.mulf %1218, %1217 : vector<1x8xf32>
      %1220 = arith.addf %1144, %1219 : vector<1x8xf32>
      %c0_606 = arith.constant 0 : index
      %c0_607 = arith.constant 0 : index
      %1221 = vector.load %arg1[%c0_606, %c0_607] : memref<11x128xf32, #tpu.memory_space<vmem>>, vector<8x128xf32>
      %cst_608 = arith.constant dense<0.000000e+00> : vector<1x128xf32>
      %1222 = tpu.matmul %1214, %1221, %cst_608 {dimension_numbers = #tpu.dot_dimension_numbers<[1], [0], [0], [1], [0, 0, 1, 1], [], []>} : vector<1x8xf32>, vector<8x128xf32>, vector<1x128xf32> -> vector<1x128xf32>
      %1223 = arith.addf %1222, %3 : vector<1x128xf32>
      %cst_609 = arith.constant 0.000000e+00 : f32
      %1224 = vector.broadcast %cst_609 : f32 to vector<1x128xf32>
      %1225 = arith.maximumf %1223, %1224 : vector<1x128xf32>
      %1226 = arith.truncf %1225 : vector<1x128xf32> to vector<1x128xbf16>
      %c0_610 = arith.constant 0 : index
      %c0_611 = arith.constant 0 : index
      %c0_612 = arith.constant 0 : index
      %1227 = vector.load %arg2[%c0_610, %c0_611, %c0_612] : memref<2x128x128xbf16, #tpu.memory_space<vmem>>, vector<1x128x128xbf16>
      %1228 = vector.shape_cast %1227 : vector<1x128x128xbf16> to vector<128x128xbf16>
      %cst_613 = arith.constant dense<0.000000e+00> : vector<1x128xf32>
      %1229 = tpu.matmul %1226, %1228, %cst_613 {dimension_numbers = #tpu.dot_dimension_numbers<[1], [0], [0], [1], [0, 0, 1, 1], [], []>} : vector<1x128xbf16>, vector<128x128xbf16>, vector<1x128xf32> -> vector<1x128xf32>
      %1230 = arith.addf %1229, %4 : vector<1x128xf32>
      %cst_614 = arith.constant 0.000000e+00 : f32
      %1231 = vector.broadcast %cst_614 : f32 to vector<1x128xf32>
      %1232 = arith.maximumf %1230, %1231 : vector<1x128xf32>
      %1233 = arith.truncf %1232 : vector<1x128xf32> to vector<1x128xbf16>
      %c1_615 = arith.constant 1 : index
      %c0_616 = arith.constant 0 : index
      %c0_617 = arith.constant 0 : index
      %1234 = vector.load %arg2[%c1_615, %c0_616, %c0_617] : memref<2x128x128xbf16, #tpu.memory_space<vmem>>, vector<1x128x128xbf16>
      %1235 = vector.shape_cast %1234 : vector<1x128x128xbf16> to vector<128x128xbf16>
      %cst_618 = arith.constant dense<0.000000e+00> : vector<1x128xf32>
      %1236 = tpu.matmul %1233, %1235, %cst_618 {dimension_numbers = #tpu.dot_dimension_numbers<[1], [0], [0], [1], [0, 0, 1, 1], [], []>} : vector<1x128xbf16>, vector<128x128xbf16>, vector<1x128xf32> -> vector<1x128xf32>
      %1237 = arith.addf %1236, %5 : vector<1x128xf32>
      %cst_619 = arith.constant 0.000000e+00 : f32
      %1238 = vector.broadcast %cst_619 : f32 to vector<1x128xf32>
      %1239 = arith.maximumf %1237, %1238 : vector<1x128xf32>
      %1240 = arith.truncf %1239 : vector<1x128xf32> to vector<1x128xbf16>
      %c0_620 = arith.constant 0 : index
      %c0_621 = arith.constant 0 : index
      %1241 = vector.load %arg3[%c0_620, %c0_621] : memref<128x8xbf16, #tpu.memory_space<vmem>>, vector<128x8xbf16>
      %cst_622 = arith.constant dense<0.000000e+00> : vector<1x8xf32>
      %1242 = tpu.matmul %1240, %1241, %cst_622 {dimension_numbers = #tpu.dot_dimension_numbers<[1], [0], [0], [1], [0, 0, 1, 1], [], []>} : vector<1x128xbf16>, vector<128x8xbf16>, vector<1x8xf32> -> vector<1x8xf32>
      %1243 = arith.addf %1242, %2 : vector<1x8xf32>
      %cst_623 = arith.constant 0.000000e+00 : f32
      %1244 = vector.broadcast %cst_623 : f32 to vector<1x8xf32>
      %1245 = arith.select %8, %1243, %1244 : vector<1x8xi1>, vector<1x8xf32>
      %1246 = arith.addf %1220, %1245 : vector<1x8xf32>
      %cst_624 = arith.constant 0.000000e+00 : f32
      %1247 = vector.broadcast %cst_624 : f32 to vector<1x8xf32>
      %1248 = arith.select %8, %1247, %1243 : vector<1x8xi1>, vector<1x8xf32>
      %1249 = arith.subf %1170, %1206 : vector<1x8xf32>
      %1250 = arith.addf %1249, %1246 : vector<1x8xf32>
      %1251 = vector.broadcast %cst : f32 to vector<1x8xf32>
      %1252 = arith.mulf %1251, %1250 : vector<1x8xf32>
      %1253 = arith.addf %1134, %1252 : vector<1x8xf32>
      %1254 = arith.subf %1172, %1208 : vector<1x8xf32>
      %1255 = arith.addf %1254, %1248 : vector<1x8xf32>
      %1256 = vector.broadcast %cst : f32 to vector<1x8xf32>
      %1257 = arith.mulf %1256, %1255 : vector<1x8xf32>
      %1258 = arith.addf %1144, %1257 : vector<1x8xf32>
      %c0_625 = arith.constant 0 : index
      %c0_626 = arith.constant 0 : index
      %1259 = vector.load %arg1[%c0_625, %c0_626] : memref<11x128xf32, #tpu.memory_space<vmem>>, vector<8x128xf32>
      %cst_627 = arith.constant dense<0.000000e+00> : vector<1x128xf32>
      %1260 = tpu.matmul %1253, %1259, %cst_627 {dimension_numbers = #tpu.dot_dimension_numbers<[1], [0], [0], [1], [0, 0, 1, 1], [], []>} : vector<1x8xf32>, vector<8x128xf32>, vector<1x128xf32> -> vector<1x128xf32>
      %1261 = arith.addf %1260, %3 : vector<1x128xf32>
      %cst_628 = arith.constant 0.000000e+00 : f32
      %1262 = vector.broadcast %cst_628 : f32 to vector<1x128xf32>
      %1263 = arith.maximumf %1261, %1262 : vector<1x128xf32>
      %1264 = arith.truncf %1263 : vector<1x128xf32> to vector<1x128xbf16>
      %c0_629 = arith.constant 0 : index
      %c0_630 = arith.constant 0 : index
      %c0_631 = arith.constant 0 : index
      %1265 = vector.load %arg2[%c0_629, %c0_630, %c0_631] : memref<2x128x128xbf16, #tpu.memory_space<vmem>>, vector<1x128x128xbf16>
      %1266 = vector.shape_cast %1265 : vector<1x128x128xbf16> to vector<128x128xbf16>
      %cst_632 = arith.constant dense<0.000000e+00> : vector<1x128xf32>
      %1267 = tpu.matmul %1264, %1266, %cst_632 {dimension_numbers = #tpu.dot_dimension_numbers<[1], [0], [0], [1], [0, 0, 1, 1], [], []>} : vector<1x128xbf16>, vector<128x128xbf16>, vector<1x128xf32> -> vector<1x128xf32>
      %1268 = arith.addf %1267, %4 : vector<1x128xf32>
      %cst_633 = arith.constant 0.000000e+00 : f32
      %1269 = vector.broadcast %cst_633 : f32 to vector<1x128xf32>
      %1270 = arith.maximumf %1268, %1269 : vector<1x128xf32>
      %1271 = arith.truncf %1270 : vector<1x128xf32> to vector<1x128xbf16>
      %c1_634 = arith.constant 1 : index
      %c0_635 = arith.constant 0 : index
      %c0_636 = arith.constant 0 : index
      %1272 = vector.load %arg2[%c1_634, %c0_635, %c0_636] : memref<2x128x128xbf16, #tpu.memory_space<vmem>>, vector<1x128x128xbf16>
      %1273 = vector.shape_cast %1272 : vector<1x128x128xbf16> to vector<128x128xbf16>
      %cst_637 = arith.constant dense<0.000000e+00> : vector<1x128xf32>
      %1274 = tpu.matmul %1271, %1273, %cst_637 {dimension_numbers = #tpu.dot_dimension_numbers<[1], [0], [0], [1], [0, 0, 1, 1], [], []>} : vector<1x128xbf16>, vector<128x128xbf16>, vector<1x128xf32> -> vector<1x128xf32>
      %1275 = arith.addf %1274, %5 : vector<1x128xf32>
      %cst_638 = arith.constant 0.000000e+00 : f32
      %1276 = vector.broadcast %cst_638 : f32 to vector<1x128xf32>
      %1277 = arith.maximumf %1275, %1276 : vector<1x128xf32>
      %1278 = arith.truncf %1277 : vector<1x128xf32> to vector<1x128xbf16>
      %c0_639 = arith.constant 0 : index
      %c0_640 = arith.constant 0 : index
      %1279 = vector.load %arg3[%c0_639, %c0_640] : memref<128x8xbf16, #tpu.memory_space<vmem>>, vector<128x8xbf16>
      %cst_641 = arith.constant dense<0.000000e+00> : vector<1x8xf32>
      %1280 = tpu.matmul %1278, %1279, %cst_641 {dimension_numbers = #tpu.dot_dimension_numbers<[1], [0], [0], [1], [0, 0, 1, 1], [], []>} : vector<1x128xbf16>, vector<128x8xbf16>, vector<1x8xf32> -> vector<1x8xf32>
      %1281 = arith.addf %1280, %2 : vector<1x8xf32>
      %cst_642 = arith.constant 0.000000e+00 : f32
      %1282 = vector.broadcast %cst_642 : f32 to vector<1x8xf32>
      %1283 = arith.select %8, %1281, %1282 : vector<1x8xi1>, vector<1x8xf32>
      %1284 = arith.addf %1258, %1283 : vector<1x8xf32>
      %cst_643 = arith.constant 0.000000e+00 : f32
      %1285 = vector.broadcast %cst_643 : f32 to vector<1x8xf32>
      %1286 = arith.select %8, %1285, %1281 : vector<1x8xi1>, vector<1x8xf32>
      %1287 = arith.addf %1206, %1246 : vector<1x8xf32>
      %cst_644 = arith.constant 3.000000e+00 : f32
      %1288 = vector.broadcast %cst_644 : f32 to vector<1x8xf32>
      %1289 = arith.mulf %1288, %1287 : vector<1x8xf32>
      %1290 = arith.addf %1170, %1289 : vector<1x8xf32>
      %1291 = arith.addf %1290, %1284 : vector<1x8xf32>
      %1292 = vector.broadcast %cst : f32 to vector<1x8xf32>
      %1293 = arith.mulf %1292, %1291 : vector<1x8xf32>
      %cst_645 = arith.constant 1.250000e-01 : f32
      %1294 = vector.broadcast %cst_645 : f32 to vector<1x8xf32>
      %1295 = arith.mulf %1293, %1294 : vector<1x8xf32>
      %1296 = arith.addf %1134, %1295 : vector<1x8xf32>
      %1297 = arith.addf %1208, %1248 : vector<1x8xf32>
      %cst_646 = arith.constant 3.000000e+00 : f32
      %1298 = vector.broadcast %cst_646 : f32 to vector<1x8xf32>
      %1299 = arith.mulf %1298, %1297 : vector<1x8xf32>
      %1300 = arith.addf %1172, %1299 : vector<1x8xf32>
      %1301 = arith.addf %1300, %1286 : vector<1x8xf32>
      %1302 = vector.broadcast %cst : f32 to vector<1x8xf32>
      %1303 = arith.mulf %1302, %1301 : vector<1x8xf32>
      %cst_647 = arith.constant 1.250000e-01 : f32
      %1304 = vector.broadcast %cst_647 : f32 to vector<1x8xf32>
      %1305 = arith.mulf %1303, %1304 : vector<1x8xf32>
      %1306 = arith.addf %1144, %1305 : vector<1x8xf32>
      %c0_648 = arith.constant 0 : index
      %c0_649 = arith.constant 0 : index
      %1307 = vector.load %arg1[%c0_648, %c0_649] : memref<11x128xf32, #tpu.memory_space<vmem>>, vector<8x128xf32>
      %cst_650 = arith.constant dense<0.000000e+00> : vector<1x128xf32>
      %1308 = tpu.matmul %1296, %1307, %cst_650 {dimension_numbers = #tpu.dot_dimension_numbers<[1], [0], [0], [1], [0, 0, 1, 1], [], []>} : vector<1x8xf32>, vector<8x128xf32>, vector<1x128xf32> -> vector<1x128xf32>
      %1309 = arith.addf %1308, %3 : vector<1x128xf32>
      %cst_651 = arith.constant 0.000000e+00 : f32
      %1310 = vector.broadcast %cst_651 : f32 to vector<1x128xf32>
      %1311 = arith.maximumf %1309, %1310 : vector<1x128xf32>
      %1312 = arith.truncf %1311 : vector<1x128xf32> to vector<1x128xbf16>
      %c0_652 = arith.constant 0 : index
      %c0_653 = arith.constant 0 : index
      %c0_654 = arith.constant 0 : index
      %1313 = vector.load %arg2[%c0_652, %c0_653, %c0_654] : memref<2x128x128xbf16, #tpu.memory_space<vmem>>, vector<1x128x128xbf16>
      %1314 = vector.shape_cast %1313 : vector<1x128x128xbf16> to vector<128x128xbf16>
      %cst_655 = arith.constant dense<0.000000e+00> : vector<1x128xf32>
      %1315 = tpu.matmul %1312, %1314, %cst_655 {dimension_numbers = #tpu.dot_dimension_numbers<[1], [0], [0], [1], [0, 0, 1, 1], [], []>} : vector<1x128xbf16>, vector<128x128xbf16>, vector<1x128xf32> -> vector<1x128xf32>
      %1316 = arith.addf %1315, %4 : vector<1x128xf32>
      %cst_656 = arith.constant 0.000000e+00 : f32
      %1317 = vector.broadcast %cst_656 : f32 to vector<1x128xf32>
      %1318 = arith.maximumf %1316, %1317 : vector<1x128xf32>
      %1319 = arith.truncf %1318 : vector<1x128xf32> to vector<1x128xbf16>
      %c1_657 = arith.constant 1 : index
      %c0_658 = arith.constant 0 : index
      %c0_659 = arith.constant 0 : index
      %1320 = vector.load %arg2[%c1_657, %c0_658, %c0_659] : memref<2x128x128xbf16, #tpu.memory_space<vmem>>, vector<1x128x128xbf16>
      %1321 = vector.shape_cast %1320 : vector<1x128x128xbf16> to vector<128x128xbf16>
      %cst_660 = arith.constant dense<0.000000e+00> : vector<1x128xf32>
      %1322 = tpu.matmul %1319, %1321, %cst_660 {dimension_numbers = #tpu.dot_dimension_numbers<[1], [0], [0], [1], [0, 0, 1, 1], [], []>} : vector<1x128xbf16>, vector<128x128xbf16>, vector<1x128xf32> -> vector<1x128xf32>
      %1323 = arith.addf %1322, %5 : vector<1x128xf32>
      %cst_661 = arith.constant 0.000000e+00 : f32
      %1324 = vector.broadcast %cst_661 : f32 to vector<1x128xf32>
      %1325 = arith.maximumf %1323, %1324 : vector<1x128xf32>
      %1326 = arith.truncf %1325 : vector<1x128xf32> to vector<1x128xbf16>
      %c0_662 = arith.constant 0 : index
      %c0_663 = arith.constant 0 : index
      %1327 = vector.load %arg3[%c0_662, %c0_663] : memref<128x8xbf16, #tpu.memory_space<vmem>>, vector<128x8xbf16>
      %cst_664 = arith.constant dense<0.000000e+00> : vector<1x8xf32>
      %1328 = tpu.matmul %1326, %1327, %cst_664 {dimension_numbers = #tpu.dot_dimension_numbers<[1], [0], [0], [1], [0, 0, 1, 1], [], []>} : vector<1x128xbf16>, vector<128x8xbf16>, vector<1x8xf32> -> vector<1x8xf32>
      %1329 = arith.addf %1328, %2 : vector<1x8xf32>
      %cst_665 = arith.constant 0.000000e+00 : f32
      %1330 = vector.broadcast %cst_665 : f32 to vector<1x8xf32>
      %1331 = arith.select %8, %1329, %1330 : vector<1x8xi1>, vector<1x8xf32>
      %1332 = arith.addf %1306, %1331 : vector<1x8xf32>
      %cst_666 = arith.constant 0.000000e+00 : f32
      %1333 = vector.broadcast %cst_666 : f32 to vector<1x8xf32>
      %1334 = arith.select %8, %1333, %1329 : vector<1x8xi1>, vector<1x8xf32>
      %1335 = arith.mulf %cst, %cst_6 : f32
      %1336 = vector.broadcast %1335 : f32 to vector<1x8xf32>
      %1337 = arith.mulf %1336, %1332 : vector<1x8xf32>
      %1338 = arith.addf %1296, %1337 : vector<1x8xf32>
      %1339 = arith.mulf %cst, %cst_6 : f32
      %1340 = vector.broadcast %1339 : f32 to vector<1x8xf32>
      %1341 = arith.mulf %1340, %1334 : vector<1x8xf32>
      %1342 = arith.addf %1306, %1341 : vector<1x8xf32>
      %c0_667 = arith.constant 0 : index
      %c0_668 = arith.constant 0 : index
      %1343 = vector.load %arg1[%c0_667, %c0_668] : memref<11x128xf32, #tpu.memory_space<vmem>>, vector<8x128xf32>
      %cst_669 = arith.constant dense<0.000000e+00> : vector<1x128xf32>
      %1344 = tpu.matmul %1338, %1343, %cst_669 {dimension_numbers = #tpu.dot_dimension_numbers<[1], [0], [0], [1], [0, 0, 1, 1], [], []>} : vector<1x8xf32>, vector<8x128xf32>, vector<1x128xf32> -> vector<1x128xf32>
      %1345 = arith.addf %1344, %3 : vector<1x128xf32>
      %cst_670 = arith.constant 0.000000e+00 : f32
      %1346 = vector.broadcast %cst_670 : f32 to vector<1x128xf32>
      %1347 = arith.maximumf %1345, %1346 : vector<1x128xf32>
      %1348 = arith.truncf %1347 : vector<1x128xf32> to vector<1x128xbf16>
      %c0_671 = arith.constant 0 : index
      %c0_672 = arith.constant 0 : index
      %c0_673 = arith.constant 0 : index
      %1349 = vector.load %arg2[%c0_671, %c0_672, %c0_673] : memref<2x128x128xbf16, #tpu.memory_space<vmem>>, vector<1x128x128xbf16>
      %1350 = vector.shape_cast %1349 : vector<1x128x128xbf16> to vector<128x128xbf16>
      %cst_674 = arith.constant dense<0.000000e+00> : vector<1x128xf32>
      %1351 = tpu.matmul %1348, %1350, %cst_674 {dimension_numbers = #tpu.dot_dimension_numbers<[1], [0], [0], [1], [0, 0, 1, 1], [], []>} : vector<1x128xbf16>, vector<128x128xbf16>, vector<1x128xf32> -> vector<1x128xf32>
      %1352 = arith.addf %1351, %4 : vector<1x128xf32>
      %cst_675 = arith.constant 0.000000e+00 : f32
      %1353 = vector.broadcast %cst_675 : f32 to vector<1x128xf32>
      %1354 = arith.maximumf %1352, %1353 : vector<1x128xf32>
      %1355 = arith.truncf %1354 : vector<1x128xf32> to vector<1x128xbf16>
      %c1_676 = arith.constant 1 : index
      %c0_677 = arith.constant 0 : index
      %c0_678 = arith.constant 0 : index
      %1356 = vector.load %arg2[%c1_676, %c0_677, %c0_678] : memref<2x128x128xbf16, #tpu.memory_space<vmem>>, vector<1x128x128xbf16>
      %1357 = vector.shape_cast %1356 : vector<1x128x128xbf16> to vector<128x128xbf16>
      %cst_679 = arith.constant dense<0.000000e+00> : vector<1x128xf32>
      %1358 = tpu.matmul %1355, %1357, %cst_679 {dimension_numbers = #tpu.dot_dimension_numbers<[1], [0], [0], [1], [0, 0, 1, 1], [], []>} : vector<1x128xbf16>, vector<128x128xbf16>, vector<1x128xf32> -> vector<1x128xf32>
      %1359 = arith.addf %1358, %5 : vector<1x128xf32>
      %cst_680 = arith.constant 0.000000e+00 : f32
      %1360 = vector.broadcast %cst_680 : f32 to vector<1x128xf32>
      %1361 = arith.maximumf %1359, %1360 : vector<1x128xf32>
      %1362 = arith.truncf %1361 : vector<1x128xf32> to vector<1x128xbf16>
      %c0_681 = arith.constant 0 : index
      %c0_682 = arith.constant 0 : index
      %1363 = vector.load %arg3[%c0_681, %c0_682] : memref<128x8xbf16, #tpu.memory_space<vmem>>, vector<128x8xbf16>
      %cst_683 = arith.constant dense<0.000000e+00> : vector<1x8xf32>
      %1364 = tpu.matmul %1362, %1363, %cst_683 {dimension_numbers = #tpu.dot_dimension_numbers<[1], [0], [0], [1], [0, 0, 1, 1], [], []>} : vector<1x128xbf16>, vector<128x8xbf16>, vector<1x8xf32> -> vector<1x8xf32>
      %1365 = arith.addf %1364, %2 : vector<1x8xf32>
      %cst_684 = arith.constant 0.000000e+00 : f32
      %1366 = vector.broadcast %cst_684 : f32 to vector<1x8xf32>
      %1367 = arith.select %8, %1365, %1366 : vector<1x8xi1>, vector<1x8xf32>
      %1368 = arith.addf %1342, %1367 : vector<1x8xf32>
      %cst_685 = arith.constant 0.000000e+00 : f32
      %1369 = vector.broadcast %cst_685 : f32 to vector<1x8xf32>
      %1370 = arith.select %8, %1369, %1365 : vector<1x8xi1>, vector<1x8xf32>
      %1371 = vector.broadcast %cst_6 : f32 to vector<1x8xf32>
      %1372 = arith.mulf %1371, %1332 : vector<1x8xf32>
      %1373 = arith.subf %1368, %1372 : vector<1x8xf32>
      %1374 = vector.broadcast %cst : f32 to vector<1x8xf32>
      %1375 = arith.mulf %1374, %1373 : vector<1x8xf32>
      %1376 = arith.addf %1296, %1375 : vector<1x8xf32>
      %1377 = vector.broadcast %cst_6 : f32 to vector<1x8xf32>
      %1378 = arith.mulf %1377, %1334 : vector<1x8xf32>
      %1379 = arith.subf %1370, %1378 : vector<1x8xf32>
      %1380 = vector.broadcast %cst : f32 to vector<1x8xf32>
      %1381 = arith.mulf %1380, %1379 : vector<1x8xf32>
      %1382 = arith.addf %1306, %1381 : vector<1x8xf32>
      %c0_686 = arith.constant 0 : index
      %c0_687 = arith.constant 0 : index
      %1383 = vector.load %arg1[%c0_686, %c0_687] : memref<11x128xf32, #tpu.memory_space<vmem>>, vector<8x128xf32>
      %cst_688 = arith.constant dense<0.000000e+00> : vector<1x128xf32>
      %1384 = tpu.matmul %1376, %1383, %cst_688 {dimension_numbers = #tpu.dot_dimension_numbers<[1], [0], [0], [1], [0, 0, 1, 1], [], []>} : vector<1x8xf32>, vector<8x128xf32>, vector<1x128xf32> -> vector<1x128xf32>
      %1385 = arith.addf %1384, %3 : vector<1x128xf32>
      %cst_689 = arith.constant 0.000000e+00 : f32
      %1386 = vector.broadcast %cst_689 : f32 to vector<1x128xf32>
      %1387 = arith.maximumf %1385, %1386 : vector<1x128xf32>
      %1388 = arith.truncf %1387 : vector<1x128xf32> to vector<1x128xbf16>
      %c0_690 = arith.constant 0 : index
      %c0_691 = arith.constant 0 : index
      %c0_692 = arith.constant 0 : index
      %1389 = vector.load %arg2[%c0_690, %c0_691, %c0_692] : memref<2x128x128xbf16, #tpu.memory_space<vmem>>, vector<1x128x128xbf16>
      %1390 = vector.shape_cast %1389 : vector<1x128x128xbf16> to vector<128x128xbf16>
      %cst_693 = arith.constant dense<0.000000e+00> : vector<1x128xf32>
      %1391 = tpu.matmul %1388, %1390, %cst_693 {dimension_numbers = #tpu.dot_dimension_numbers<[1], [0], [0], [1], [0, 0, 1, 1], [], []>} : vector<1x128xbf16>, vector<128x128xbf16>, vector<1x128xf32> -> vector<1x128xf32>
      %1392 = arith.addf %1391, %4 : vector<1x128xf32>
      %cst_694 = arith.constant 0.000000e+00 : f32
      %1393 = vector.broadcast %cst_694 : f32 to vector<1x128xf32>
      %1394 = arith.maximumf %1392, %1393 : vector<1x128xf32>
      %1395 = arith.truncf %1394 : vector<1x128xf32> to vector<1x128xbf16>
      %c1_695 = arith.constant 1 : index
      %c0_696 = arith.constant 0 : index
      %c0_697 = arith.constant 0 : index
      %1396 = vector.load %arg2[%c1_695, %c0_696, %c0_697] : memref<2x128x128xbf16, #tpu.memory_space<vmem>>, vector<1x128x128xbf16>
      %1397 = vector.shape_cast %1396 : vector<1x128x128xbf16> to vector<128x128xbf16>
      %cst_698 = arith.constant dense<0.000000e+00> : vector<1x128xf32>
      %1398 = tpu.matmul %1395, %1397, %cst_698 {dimension_numbers = #tpu.dot_dimension_numbers<[1], [0], [0], [1], [0, 0, 1, 1], [], []>} : vector<1x128xbf16>, vector<128x128xbf16>, vector<1x128xf32> -> vector<1x128xf32>
      %1399 = arith.addf %1398, %5 : vector<1x128xf32>
      %cst_699 = arith.constant 0.000000e+00 : f32
      %1400 = vector.broadcast %cst_699 : f32 to vector<1x128xf32>
      %1401 = arith.maximumf %1399, %1400 : vector<1x128xf32>
      %1402 = arith.truncf %1401 : vector<1x128xf32> to vector<1x128xbf16>
      %c0_700 = arith.constant 0 : index
      %c0_701 = arith.constant 0 : index
      %1403 = vector.load %arg3[%c0_700, %c0_701] : memref<128x8xbf16, #tpu.memory_space<vmem>>, vector<128x8xbf16>
      %cst_702 = arith.constant dense<0.000000e+00> : vector<1x8xf32>
      %1404 = tpu.matmul %1402, %1403, %cst_702 {dimension_numbers = #tpu.dot_dimension_numbers<[1], [0], [0], [1], [0, 0, 1, 1], [], []>} : vector<1x128xbf16>, vector<128x8xbf16>, vector<1x8xf32> -> vector<1x8xf32>
      %1405 = arith.addf %1404, %2 : vector<1x8xf32>
      %cst_703 = arith.constant 0.000000e+00 : f32
      %1406 = vector.broadcast %cst_703 : f32 to vector<1x8xf32>
      %1407 = arith.select %8, %1405, %1406 : vector<1x8xi1>, vector<1x8xf32>
      %1408 = arith.addf %1382, %1407 : vector<1x8xf32>
      %cst_704 = arith.constant 0.000000e+00 : f32
      %1409 = vector.broadcast %cst_704 : f32 to vector<1x8xf32>
      %1410 = arith.select %8, %1409, %1405 : vector<1x8xi1>, vector<1x8xf32>
      %1411 = arith.subf %1332, %1368 : vector<1x8xf32>
      %1412 = arith.addf %1411, %1408 : vector<1x8xf32>
      %1413 = vector.broadcast %cst : f32 to vector<1x8xf32>
      %1414 = arith.mulf %1413, %1412 : vector<1x8xf32>
      %1415 = arith.addf %1296, %1414 : vector<1x8xf32>
      %1416 = arith.subf %1334, %1370 : vector<1x8xf32>
      %1417 = arith.addf %1416, %1410 : vector<1x8xf32>
      %1418 = vector.broadcast %cst : f32 to vector<1x8xf32>
      %1419 = arith.mulf %1418, %1417 : vector<1x8xf32>
      %1420 = arith.addf %1306, %1419 : vector<1x8xf32>
      %c0_705 = arith.constant 0 : index
      %c0_706 = arith.constant 0 : index
      %1421 = vector.load %arg1[%c0_705, %c0_706] : memref<11x128xf32, #tpu.memory_space<vmem>>, vector<8x128xf32>
      %cst_707 = arith.constant dense<0.000000e+00> : vector<1x128xf32>
      %1422 = tpu.matmul %1415, %1421, %cst_707 {dimension_numbers = #tpu.dot_dimension_numbers<[1], [0], [0], [1], [0, 0, 1, 1], [], []>} : vector<1x8xf32>, vector<8x128xf32>, vector<1x128xf32> -> vector<1x128xf32>
      %1423 = arith.addf %1422, %3 : vector<1x128xf32>
      %cst_708 = arith.constant 0.000000e+00 : f32
      %1424 = vector.broadcast %cst_708 : f32 to vector<1x128xf32>
      %1425 = arith.maximumf %1423, %1424 : vector<1x128xf32>
      %1426 = arith.truncf %1425 : vector<1x128xf32> to vector<1x128xbf16>
      %c0_709 = arith.constant 0 : index
      %c0_710 = arith.constant 0 : index
      %c0_711 = arith.constant 0 : index
      %1427 = vector.load %arg2[%c0_709, %c0_710, %c0_711] : memref<2x128x128xbf16, #tpu.memory_space<vmem>>, vector<1x128x128xbf16>
      %1428 = vector.shape_cast %1427 : vector<1x128x128xbf16> to vector<128x128xbf16>
      %cst_712 = arith.constant dense<0.000000e+00> : vector<1x128xf32>
      %1429 = tpu.matmul %1426, %1428, %cst_712 {dimension_numbers = #tpu.dot_dimension_numbers<[1], [0], [0], [1], [0, 0, 1, 1], [], []>} : vector<1x128xbf16>, vector<128x128xbf16>, vector<1x128xf32> -> vector<1x128xf32>
      %1430 = arith.addf %1429, %4 : vector<1x128xf32>
      %cst_713 = arith.constant 0.000000e+00 : f32
      %1431 = vector.broadcast %cst_713 : f32 to vector<1x128xf32>
      %1432 = arith.maximumf %1430, %1431 : vector<1x128xf32>
      %1433 = arith.truncf %1432 : vector<1x128xf32> to vector<1x128xbf16>
      %c1_714 = arith.constant 1 : index
      %c0_715 = arith.constant 0 : index
      %c0_716 = arith.constant 0 : index
      %1434 = vector.load %arg2[%c1_714, %c0_715, %c0_716] : memref<2x128x128xbf16, #tpu.memory_space<vmem>>, vector<1x128x128xbf16>
      %1435 = vector.shape_cast %1434 : vector<1x128x128xbf16> to vector<128x128xbf16>
      %cst_717 = arith.constant dense<0.000000e+00> : vector<1x128xf32>
      %1436 = tpu.matmul %1433, %1435, %cst_717 {dimension_numbers = #tpu.dot_dimension_numbers<[1], [0], [0], [1], [0, 0, 1, 1], [], []>} : vector<1x128xbf16>, vector<128x128xbf16>, vector<1x128xf32> -> vector<1x128xf32>
      %1437 = arith.addf %1436, %5 : vector<1x128xf32>
      %cst_718 = arith.constant 0.000000e+00 : f32
      %1438 = vector.broadcast %cst_718 : f32 to vector<1x128xf32>
      %1439 = arith.maximumf %1437, %1438 : vector<1x128xf32>
      %1440 = arith.truncf %1439 : vector<1x128xf32> to vector<1x128xbf16>
      %c0_719 = arith.constant 0 : index
      %c0_720 = arith.constant 0 : index
      %1441 = vector.load %arg3[%c0_719, %c0_720] : memref<128x8xbf16, #tpu.memory_space<vmem>>, vector<128x8xbf16>
      %cst_721 = arith.constant dense<0.000000e+00> : vector<1x8xf32>
      %1442 = tpu.matmul %1440, %1441, %cst_721 {dimension_numbers = #tpu.dot_dimension_numbers<[1], [0], [0], [1], [0, 0, 1, 1], [], []>} : vector<1x128xbf16>, vector<128x8xbf16>, vector<1x8xf32> -> vector<1x8xf32>
      %1443 = arith.addf %1442, %2 : vector<1x8xf32>
      %cst_722 = arith.constant 0.000000e+00 : f32
      %1444 = vector.broadcast %cst_722 : f32 to vector<1x8xf32>
      %1445 = arith.select %8, %1443, %1444 : vector<1x8xi1>, vector<1x8xf32>
      %1446 = arith.addf %1420, %1445 : vector<1x8xf32>
      %cst_723 = arith.constant 0.000000e+00 : f32
      %1447 = vector.broadcast %cst_723 : f32 to vector<1x8xf32>
      %1448 = arith.select %8, %1447, %1443 : vector<1x8xi1>, vector<1x8xf32>
      %1449 = arith.addf %1368, %1408 : vector<1x8xf32>
      %cst_724 = arith.constant 3.000000e+00 : f32
      %1450 = vector.broadcast %cst_724 : f32 to vector<1x8xf32>
      %1451 = arith.mulf %1450, %1449 : vector<1x8xf32>
      %1452 = arith.addf %1332, %1451 : vector<1x8xf32>
      %1453 = arith.addf %1452, %1446 : vector<1x8xf32>
      %1454 = vector.broadcast %cst : f32 to vector<1x8xf32>
      %1455 = arith.mulf %1454, %1453 : vector<1x8xf32>
      %cst_725 = arith.constant 1.250000e-01 : f32
      %1456 = vector.broadcast %cst_725 : f32 to vector<1x8xf32>
      %1457 = arith.mulf %1455, %1456 : vector<1x8xf32>
      %1458 = arith.addf %1296, %1457 : vector<1x8xf32>
      %1459 = arith.addf %1370, %1410 : vector<1x8xf32>
      %cst_726 = arith.constant 3.000000e+00 : f32
      %1460 = vector.broadcast %cst_726 : f32 to vector<1x8xf32>
      %1461 = arith.mulf %1460, %1459 : vector<1x8xf32>
      %1462 = arith.addf %1334, %1461 : vector<1x8xf32>
      %1463 = arith.addf %1462, %1448 : vector<1x8xf32>
      %1464 = vector.broadcast %cst : f32 to vector<1x8xf32>
      %1465 = arith.mulf %1464, %1463 : vector<1x8xf32>
      %cst_727 = arith.constant 1.250000e-01 : f32
      %1466 = vector.broadcast %cst_727 : f32 to vector<1x8xf32>
      %1467 = arith.mulf %1465, %1466 : vector<1x8xf32>
      %1468 = arith.addf %1306, %1467 : vector<1x8xf32>
      %c0_728 = arith.constant 0 : index
      %c0_729 = arith.constant 0 : index
      %1469 = vector.load %arg1[%c0_728, %c0_729] : memref<11x128xf32, #tpu.memory_space<vmem>>, vector<8x128xf32>
      %cst_730 = arith.constant dense<0.000000e+00> : vector<1x128xf32>
      %1470 = tpu.matmul %1458, %1469, %cst_730 {dimension_numbers = #tpu.dot_dimension_numbers<[1], [0], [0], [1], [0, 0, 1, 1], [], []>} : vector<1x8xf32>, vector<8x128xf32>, vector<1x128xf32> -> vector<1x128xf32>
      %1471 = arith.addf %1470, %3 : vector<1x128xf32>
      %cst_731 = arith.constant 0.000000e+00 : f32
      %1472 = vector.broadcast %cst_731 : f32 to vector<1x128xf32>
      %1473 = arith.maximumf %1471, %1472 : vector<1x128xf32>
      %1474 = arith.truncf %1473 : vector<1x128xf32> to vector<1x128xbf16>
      %c0_732 = arith.constant 0 : index
      %c0_733 = arith.constant 0 : index
      %c0_734 = arith.constant 0 : index
      %1475 = vector.load %arg2[%c0_732, %c0_733, %c0_734] : memref<2x128x128xbf16, #tpu.memory_space<vmem>>, vector<1x128x128xbf16>
      %1476 = vector.shape_cast %1475 : vector<1x128x128xbf16> to vector<128x128xbf16>
      %cst_735 = arith.constant dense<0.000000e+00> : vector<1x128xf32>
      %1477 = tpu.matmul %1474, %1476, %cst_735 {dimension_numbers = #tpu.dot_dimension_numbers<[1], [0], [0], [1], [0, 0, 1, 1], [], []>} : vector<1x128xbf16>, vector<128x128xbf16>, vector<1x128xf32> -> vector<1x128xf32>
      %1478 = arith.addf %1477, %4 : vector<1x128xf32>
      %cst_736 = arith.constant 0.000000e+00 : f32
      %1479 = vector.broadcast %cst_736 : f32 to vector<1x128xf32>
      %1480 = arith.maximumf %1478, %1479 : vector<1x128xf32>
      %1481 = arith.truncf %1480 : vector<1x128xf32> to vector<1x128xbf16>
      %c1_737 = arith.constant 1 : index
      %c0_738 = arith.constant 0 : index
      %c0_739 = arith.constant 0 : index
      %1482 = vector.load %arg2[%c1_737, %c0_738, %c0_739] : memref<2x128x128xbf16, #tpu.memory_space<vmem>>, vector<1x128x128xbf16>
      %1483 = vector.shape_cast %1482 : vector<1x128x128xbf16> to vector<128x128xbf16>
      %cst_740 = arith.constant dense<0.000000e+00> : vector<1x128xf32>
      %1484 = tpu.matmul %1481, %1483, %cst_740 {dimension_numbers = #tpu.dot_dimension_numbers<[1], [0], [0], [1], [0, 0, 1, 1], [], []>} : vector<1x128xbf16>, vector<128x128xbf16>, vector<1x128xf32> -> vector<1x128xf32>
      %1485 = arith.addf %1484, %5 : vector<1x128xf32>
      %cst_741 = arith.constant 0.000000e+00 : f32
      %1486 = vector.broadcast %cst_741 : f32 to vector<1x128xf32>
      %1487 = arith.maximumf %1485, %1486 : vector<1x128xf32>
      %1488 = arith.truncf %1487 : vector<1x128xf32> to vector<1x128xbf16>
      %c0_742 = arith.constant 0 : index
      %c0_743 = arith.constant 0 : index
      %1489 = vector.load %arg3[%c0_742, %c0_743] : memref<128x8xbf16, #tpu.memory_space<vmem>>, vector<128x8xbf16>
      %cst_744 = arith.constant dense<0.000000e+00> : vector<1x8xf32>
      %1490 = tpu.matmul %1488, %1489, %cst_744 {dimension_numbers = #tpu.dot_dimension_numbers<[1], [0], [0], [1], [0, 0, 1, 1], [], []>} : vector<1x128xbf16>, vector<128x8xbf16>, vector<1x8xf32> -> vector<1x8xf32>
      %1491 = arith.addf %1490, %2 : vector<1x8xf32>
      %cst_745 = arith.constant 0.000000e+00 : f32
      %1492 = vector.broadcast %cst_745 : f32 to vector<1x8xf32>
      %1493 = arith.select %8, %1491, %1492 : vector<1x8xi1>, vector<1x8xf32>
      %1494 = arith.addf %1468, %1493 : vector<1x8xf32>
      %cst_746 = arith.constant 0.000000e+00 : f32
      %1495 = vector.broadcast %cst_746 : f32 to vector<1x8xf32>
      %1496 = arith.select %8, %1495, %1491 : vector<1x8xi1>, vector<1x8xf32>
      %1497 = arith.mulf %cst, %cst_6 : f32
      %1498 = vector.broadcast %1497 : f32 to vector<1x8xf32>
      %1499 = arith.mulf %1498, %1494 : vector<1x8xf32>
      %1500 = arith.addf %1458, %1499 : vector<1x8xf32>
      %1501 = arith.mulf %cst, %cst_6 : f32
      %1502 = vector.broadcast %1501 : f32 to vector<1x8xf32>
      %1503 = arith.mulf %1502, %1496 : vector<1x8xf32>
      %1504 = arith.addf %1468, %1503 : vector<1x8xf32>
      %c0_747 = arith.constant 0 : index
      %c0_748 = arith.constant 0 : index
      %1505 = vector.load %arg1[%c0_747, %c0_748] : memref<11x128xf32, #tpu.memory_space<vmem>>, vector<8x128xf32>
      %cst_749 = arith.constant dense<0.000000e+00> : vector<1x128xf32>
      %1506 = tpu.matmul %1500, %1505, %cst_749 {dimension_numbers = #tpu.dot_dimension_numbers<[1], [0], [0], [1], [0, 0, 1, 1], [], []>} : vector<1x8xf32>, vector<8x128xf32>, vector<1x128xf32> -> vector<1x128xf32>
      %1507 = arith.addf %1506, %3 : vector<1x128xf32>
      %cst_750 = arith.constant 0.000000e+00 : f32
      %1508 = vector.broadcast %cst_750 : f32 to vector<1x128xf32>
      %1509 = arith.maximumf %1507, %1508 : vector<1x128xf32>
      %1510 = arith.truncf %1509 : vector<1x128xf32> to vector<1x128xbf16>
      %c0_751 = arith.constant 0 : index
      %c0_752 = arith.constant 0 : index
      %c0_753 = arith.constant 0 : index
      %1511 = vector.load %arg2[%c0_751, %c0_752, %c0_753] : memref<2x128x128xbf16, #tpu.memory_space<vmem>>, vector<1x128x128xbf16>
      %1512 = vector.shape_cast %1511 : vector<1x128x128xbf16> to vector<128x128xbf16>
      %cst_754 = arith.constant dense<0.000000e+00> : vector<1x128xf32>
      %1513 = tpu.matmul %1510, %1512, %cst_754 {dimension_numbers = #tpu.dot_dimension_numbers<[1], [0], [0], [1], [0, 0, 1, 1], [], []>} : vector<1x128xbf16>, vector<128x128xbf16>, vector<1x128xf32> -> vector<1x128xf32>
      %1514 = arith.addf %1513, %4 : vector<1x128xf32>
      %cst_755 = arith.constant 0.000000e+00 : f32
      %1515 = vector.broadcast %cst_755 : f32 to vector<1x128xf32>
      %1516 = arith.maximumf %1514, %1515 : vector<1x128xf32>
      %1517 = arith.truncf %1516 : vector<1x128xf32> to vector<1x128xbf16>
      %c1_756 = arith.constant 1 : index
      %c0_757 = arith.constant 0 : index
      %c0_758 = arith.constant 0 : index
      %1518 = vector.load %arg2[%c1_756, %c0_757, %c0_758] : memref<2x128x128xbf16, #tpu.memory_space<vmem>>, vector<1x128x128xbf16>
      %1519 = vector.shape_cast %1518 : vector<1x128x128xbf16> to vector<128x128xbf16>
      %cst_759 = arith.constant dense<0.000000e+00> : vector<1x128xf32>
      %1520 = tpu.matmul %1517, %1519, %cst_759 {dimension_numbers = #tpu.dot_dimension_numbers<[1], [0], [0], [1], [0, 0, 1, 1], [], []>} : vector<1x128xbf16>, vector<128x128xbf16>, vector<1x128xf32> -> vector<1x128xf32>
      %1521 = arith.addf %1520, %5 : vector<1x128xf32>
      %cst_760 = arith.constant 0.000000e+00 : f32
      %1522 = vector.broadcast %cst_760 : f32 to vector<1x128xf32>
      %1523 = arith.maximumf %1521, %1522 : vector<1x128xf32>
      %1524 = arith.truncf %1523 : vector<1x128xf32> to vector<1x128xbf16>
      %c0_761 = arith.constant 0 : index
      %c0_762 = arith.constant 0 : index
      %1525 = vector.load %arg3[%c0_761, %c0_762] : memref<128x8xbf16, #tpu.memory_space<vmem>>, vector<128x8xbf16>
      %cst_763 = arith.constant dense<0.000000e+00> : vector<1x8xf32>
      %1526 = tpu.matmul %1524, %1525, %cst_763 {dimension_numbers = #tpu.dot_dimension_numbers<[1], [0], [0], [1], [0, 0, 1, 1], [], []>} : vector<1x128xbf16>, vector<128x8xbf16>, vector<1x8xf32> -> vector<1x8xf32>
      %1527 = arith.addf %1526, %2 : vector<1x8xf32>
      %cst_764 = arith.constant 0.000000e+00 : f32
      %1528 = vector.broadcast %cst_764 : f32 to vector<1x8xf32>
      %1529 = arith.select %8, %1527, %1528 : vector<1x8xi1>, vector<1x8xf32>
      %1530 = arith.addf %1504, %1529 : vector<1x8xf32>
      %cst_765 = arith.constant 0.000000e+00 : f32
      %1531 = vector.broadcast %cst_765 : f32 to vector<1x8xf32>
      %1532 = arith.select %8, %1531, %1527 : vector<1x8xi1>, vector<1x8xf32>
      %1533 = vector.broadcast %cst_6 : f32 to vector<1x8xf32>
      %1534 = arith.mulf %1533, %1494 : vector<1x8xf32>
      %1535 = arith.subf %1530, %1534 : vector<1x8xf32>
      %1536 = vector.broadcast %cst : f32 to vector<1x8xf32>
      %1537 = arith.mulf %1536, %1535 : vector<1x8xf32>
      %1538 = arith.addf %1458, %1537 : vector<1x8xf32>
      %1539 = vector.broadcast %cst_6 : f32 to vector<1x8xf32>
      %1540 = arith.mulf %1539, %1496 : vector<1x8xf32>
      %1541 = arith.subf %1532, %1540 : vector<1x8xf32>
      %1542 = vector.broadcast %cst : f32 to vector<1x8xf32>
      %1543 = arith.mulf %1542, %1541 : vector<1x8xf32>
      %1544 = arith.addf %1468, %1543 : vector<1x8xf32>
      %c0_766 = arith.constant 0 : index
      %c0_767 = arith.constant 0 : index
      %1545 = vector.load %arg1[%c0_766, %c0_767] : memref<11x128xf32, #tpu.memory_space<vmem>>, vector<8x128xf32>
      %cst_768 = arith.constant dense<0.000000e+00> : vector<1x128xf32>
      %1546 = tpu.matmul %1538, %1545, %cst_768 {dimension_numbers = #tpu.dot_dimension_numbers<[1], [0], [0], [1], [0, 0, 1, 1], [], []>} : vector<1x8xf32>, vector<8x128xf32>, vector<1x128xf32> -> vector<1x128xf32>
      %1547 = arith.addf %1546, %3 : vector<1x128xf32>
      %cst_769 = arith.constant 0.000000e+00 : f32
      %1548 = vector.broadcast %cst_769 : f32 to vector<1x128xf32>
      %1549 = arith.maximumf %1547, %1548 : vector<1x128xf32>
      %1550 = arith.truncf %1549 : vector<1x128xf32> to vector<1x128xbf16>
      %c0_770 = arith.constant 0 : index
      %c0_771 = arith.constant 0 : index
      %c0_772 = arith.constant 0 : index
      %1551 = vector.load %arg2[%c0_770, %c0_771, %c0_772] : memref<2x128x128xbf16, #tpu.memory_space<vmem>>, vector<1x128x128xbf16>
      %1552 = vector.shape_cast %1551 : vector<1x128x128xbf16> to vector<128x128xbf16>
      %cst_773 = arith.constant dense<0.000000e+00> : vector<1x128xf32>
      %1553 = tpu.matmul %1550, %1552, %cst_773 {dimension_numbers = #tpu.dot_dimension_numbers<[1], [0], [0], [1], [0, 0, 1, 1], [], []>} : vector<1x128xbf16>, vector<128x128xbf16>, vector<1x128xf32> -> vector<1x128xf32>
      %1554 = arith.addf %1553, %4 : vector<1x128xf32>
      %cst_774 = arith.constant 0.000000e+00 : f32
      %1555 = vector.broadcast %cst_774 : f32 to vector<1x128xf32>
      %1556 = arith.maximumf %1554, %1555 : vector<1x128xf32>
      %1557 = arith.truncf %1556 : vector<1x128xf32> to vector<1x128xbf16>
      %c1_775 = arith.constant 1 : index
      %c0_776 = arith.constant 0 : index
      %c0_777 = arith.constant 0 : index
      %1558 = vector.load %arg2[%c1_775, %c0_776, %c0_777] : memref<2x128x128xbf16, #tpu.memory_space<vmem>>, vector<1x128x128xbf16>
      %1559 = vector.shape_cast %1558 : vector<1x128x128xbf16> to vector<128x128xbf16>
      %cst_778 = arith.constant dense<0.000000e+00> : vector<1x128xf32>
      %1560 = tpu.matmul %1557, %1559, %cst_778 {dimension_numbers = #tpu.dot_dimension_numbers<[1], [0], [0], [1], [0, 0, 1, 1], [], []>} : vector<1x128xbf16>, vector<128x128xbf16>, vector<1x128xf32> -> vector<1x128xf32>
      %1561 = arith.addf %1560, %5 : vector<1x128xf32>
      %cst_779 = arith.constant 0.000000e+00 : f32
      %1562 = vector.broadcast %cst_779 : f32 to vector<1x128xf32>
      %1563 = arith.maximumf %1561, %1562 : vector<1x128xf32>
      %1564 = arith.truncf %1563 : vector<1x128xf32> to vector<1x128xbf16>
      %c0_780 = arith.constant 0 : index
      %c0_781 = arith.constant 0 : index
      %1565 = vector.load %arg3[%c0_780, %c0_781] : memref<128x8xbf16, #tpu.memory_space<vmem>>, vector<128x8xbf16>
      %cst_782 = arith.constant dense<0.000000e+00> : vector<1x8xf32>
      %1566 = tpu.matmul %1564, %1565, %cst_782 {dimension_numbers = #tpu.dot_dimension_numbers<[1], [0], [0], [1], [0, 0, 1, 1], [], []>} : vector<1x128xbf16>, vector<128x8xbf16>, vector<1x8xf32> -> vector<1x8xf32>
      %1567 = arith.addf %1566, %2 : vector<1x8xf32>
      %cst_783 = arith.constant 0.000000e+00 : f32
      %1568 = vector.broadcast %cst_783 : f32 to vector<1x8xf32>
      %1569 = arith.select %8, %1567, %1568 : vector<1x8xi1>, vector<1x8xf32>
      %1570 = arith.addf %1544, %1569 : vector<1x8xf32>
      %cst_784 = arith.constant 0.000000e+00 : f32
      %1571 = vector.broadcast %cst_784 : f32 to vector<1x8xf32>
      %1572 = arith.select %8, %1571, %1567 : vector<1x8xi1>, vector<1x8xf32>
      %1573 = arith.subf %1494, %1530 : vector<1x8xf32>
      %1574 = arith.addf %1573, %1570 : vector<1x8xf32>
      %1575 = vector.broadcast %cst : f32 to vector<1x8xf32>
      %1576 = arith.mulf %1575, %1574 : vector<1x8xf32>
      %1577 = arith.addf %1458, %1576 : vector<1x8xf32>
      %1578 = arith.subf %1496, %1532 : vector<1x8xf32>
      %1579 = arith.addf %1578, %1572 : vector<1x8xf32>
      %1580 = vector.broadcast %cst : f32 to vector<1x8xf32>
      %1581 = arith.mulf %1580, %1579 : vector<1x8xf32>
      %1582 = arith.addf %1468, %1581 : vector<1x8xf32>
      %c0_785 = arith.constant 0 : index
      %c0_786 = arith.constant 0 : index
      %1583 = vector.load %arg1[%c0_785, %c0_786] : memref<11x128xf32, #tpu.memory_space<vmem>>, vector<8x128xf32>
      %cst_787 = arith.constant dense<0.000000e+00> : vector<1x128xf32>
      %1584 = tpu.matmul %1577, %1583, %cst_787 {dimension_numbers = #tpu.dot_dimension_numbers<[1], [0], [0], [1], [0, 0, 1, 1], [], []>} : vector<1x8xf32>, vector<8x128xf32>, vector<1x128xf32> -> vector<1x128xf32>
      %1585 = arith.addf %1584, %3 : vector<1x128xf32>
      %cst_788 = arith.constant 0.000000e+00 : f32
      %1586 = vector.broadcast %cst_788 : f32 to vector<1x128xf32>
      %1587 = arith.maximumf %1585, %1586 : vector<1x128xf32>
      %1588 = arith.truncf %1587 : vector<1x128xf32> to vector<1x128xbf16>
      %c0_789 = arith.constant 0 : index
      %c0_790 = arith.constant 0 : index
      %c0_791 = arith.constant 0 : index
      %1589 = vector.load %arg2[%c0_789, %c0_790, %c0_791] : memref<2x128x128xbf16, #tpu.memory_space<vmem>>, vector<1x128x128xbf16>
      %1590 = vector.shape_cast %1589 : vector<1x128x128xbf16> to vector<128x128xbf16>
      %cst_792 = arith.constant dense<0.000000e+00> : vector<1x128xf32>
      %1591 = tpu.matmul %1588, %1590, %cst_792 {dimension_numbers = #tpu.dot_dimension_numbers<[1], [0], [0], [1], [0, 0, 1, 1], [], []>} : vector<1x128xbf16>, vector<128x128xbf16>, vector<1x128xf32> -> vector<1x128xf32>
      %1592 = arith.addf %1591, %4 : vector<1x128xf32>
      %cst_793 = arith.constant 0.000000e+00 : f32
      %1593 = vector.broadcast %cst_793 : f32 to vector<1x128xf32>
      %1594 = arith.maximumf %1592, %1593 : vector<1x128xf32>
      %1595 = arith.truncf %1594 : vector<1x128xf32> to vector<1x128xbf16>
      %c1_794 = arith.constant 1 : index
      %c0_795 = arith.constant 0 : index
      %c0_796 = arith.constant 0 : index
      %1596 = vector.load %arg2[%c1_794, %c0_795, %c0_796] : memref<2x128x128xbf16, #tpu.memory_space<vmem>>, vector<1x128x128xbf16>
      %1597 = vector.shape_cast %1596 : vector<1x128x128xbf16> to vector<128x128xbf16>
      %cst_797 = arith.constant dense<0.000000e+00> : vector<1x128xf32>
      %1598 = tpu.matmul %1595, %1597, %cst_797 {dimension_numbers = #tpu.dot_dimension_numbers<[1], [0], [0], [1], [0, 0, 1, 1], [], []>} : vector<1x128xbf16>, vector<128x128xbf16>, vector<1x128xf32> -> vector<1x128xf32>
      %1599 = arith.addf %1598, %5 : vector<1x128xf32>
      %cst_798 = arith.constant 0.000000e+00 : f32
      %1600 = vector.broadcast %cst_798 : f32 to vector<1x128xf32>
      %1601 = arith.maximumf %1599, %1600 : vector<1x128xf32>
      %1602 = arith.truncf %1601 : vector<1x128xf32> to vector<1x128xbf16>
      %c0_799 = arith.constant 0 : index
      %c0_800 = arith.constant 0 : index
      %1603 = vector.load %arg3[%c0_799, %c0_800] : memref<128x8xbf16, #tpu.memory_space<vmem>>, vector<128x8xbf16>
      %cst_801 = arith.constant dense<0.000000e+00> : vector<1x8xf32>
      %1604 = tpu.matmul %1602, %1603, %cst_801 {dimension_numbers = #tpu.dot_dimension_numbers<[1], [0], [0], [1], [0, 0, 1, 1], [], []>} : vector<1x128xbf16>, vector<128x8xbf16>, vector<1x8xf32> -> vector<1x8xf32>
      %1605 = arith.addf %1604, %2 : vector<1x8xf32>
      %cst_802 = arith.constant 0.000000e+00 : f32
      %1606 = vector.broadcast %cst_802 : f32 to vector<1x8xf32>
      %1607 = arith.select %8, %1605, %1606 : vector<1x8xi1>, vector<1x8xf32>
      %1608 = arith.addf %1582, %1607 : vector<1x8xf32>
      %cst_803 = arith.constant 0.000000e+00 : f32
      %1609 = vector.broadcast %cst_803 : f32 to vector<1x8xf32>
      %1610 = arith.select %8, %1609, %1605 : vector<1x8xi1>, vector<1x8xf32>
      %1611 = arith.addf %1530, %1570 : vector<1x8xf32>
      %cst_804 = arith.constant 3.000000e+00 : f32
      %1612 = vector.broadcast %cst_804 : f32 to vector<1x8xf32>
      %1613 = arith.mulf %1612, %1611 : vector<1x8xf32>
      %1614 = arith.addf %1494, %1613 : vector<1x8xf32>
      %1615 = arith.addf %1614, %1608 : vector<1x8xf32>
      %1616 = vector.broadcast %cst : f32 to vector<1x8xf32>
      %1617 = arith.mulf %1616, %1615 : vector<1x8xf32>
      %cst_805 = arith.constant 1.250000e-01 : f32
      %1618 = vector.broadcast %cst_805 : f32 to vector<1x8xf32>
      %1619 = arith.mulf %1617, %1618 : vector<1x8xf32>
      %1620 = arith.addf %1458, %1619 : vector<1x8xf32>
      %1621 = arith.addf %1532, %1572 : vector<1x8xf32>
      %cst_806 = arith.constant 3.000000e+00 : f32
      %1622 = vector.broadcast %cst_806 : f32 to vector<1x8xf32>
      %1623 = arith.mulf %1622, %1621 : vector<1x8xf32>
      %1624 = arith.addf %1496, %1623 : vector<1x8xf32>
      %1625 = arith.addf %1624, %1610 : vector<1x8xf32>
      %1626 = vector.broadcast %cst : f32 to vector<1x8xf32>
      %1627 = arith.mulf %1626, %1625 : vector<1x8xf32>
      %cst_807 = arith.constant 1.250000e-01 : f32
      %1628 = vector.broadcast %cst_807 : f32 to vector<1x8xf32>
      %1629 = arith.mulf %1627, %1628 : vector<1x8xf32>
      %1630 = arith.addf %1468, %1629 : vector<1x8xf32>
      %1631 = arith.index_cast %arg5 : i32 to index
      %c0_808 = arith.constant 0 : index
      %1632 = vector.load %arg4[%1631, %c0_808] : memref<7x8xf32, #tpu.memory_space<vmem>>, vector<1x8xf32>
      tpu.vector_store %arg4[%1631, %c0_808], %1620 {strides = array<i32>} : memref<7x8xf32, #tpu.memory_space<vmem>>, vector<1x8xf32>,
      scf.yield %1620, %1630 : vector<1x8xf32>, vector<1x8xf32>
    }
    %c7_i32_7 = arith.constant 7 : i32
    return
  }
}

</mosaic_0001>

<llo_original>
// kernel: dyns_solver_forward.1
$region0: #{dyns_solver_forward.1}
  #allocation0 [shape = 'u32[]', space=smem, size = 0x4, offset = 0x4, fixed_abs, tag = 'smem constant byte address 0x4 - core index']
  #allocation1 [shape = 'u32[72,128]{1,0:T(1,128)}', space=vmem, size = 0x9000, scoped, tag = 'internal scratch']
  %s0 = inlined_call_operand.vmem [shape: f32[3,8], index: 0, kind: input, shape index: {}]
  %s1 = inlined_call_operand.vmem [shape: f32[11,128], index: 1, kind: input, shape index: {}]
  %s2 = inlined_call_operand.vmem [shape: bf16[2,128,128], index: 2, kind: input, shape index: {}]
  %s3 = inlined_call_operand.vmem [shape: bf16[128,8], index: 3, kind: input, shape index: {}]
  %s4 = inlined_call_operand.hbm [shape: f32[7,8], index: 4, kind: output, shape index: {}]
  %s5 = sld [smem:[#allocation0]]
  $region33: #{dyns_solver_forward.1} parent=0
    _
  %s7 = ssub.s32 1, %s5
  %s8 = scalar_select 0, %s7, %s5
  $region1: #{dyns_solver_forward.1} parent=0
    #allocation2 [shape = 'u8[4096]{0}', space=vmem, size = 0x1000, scoped, tag = 'output window, operand 0, single buffered']
    #allocation3 [shape = 's32[1]{0}', space=sflag, size = 0x4, scoped, tag = 'scoped memory for dyns_solver_forward.1']
    %9 = vsyncpa [#allocation3], 0
    // Predicated region
    $region2: #{dyns_solver_forward.1} parent=1 // pred_check
      _
    $region3: #{dyns_solver_forward.1} parent=1 // pred_check_branch
      %11 = sbr.rel (0) target = $region5
    $region4: #{dyns_solver_forward.1} parent=1 // pred_region
      _
    $region5: #{dyns_solver_forward.1} parent=1 // pred_fallthru
      _
    // Predicated region
    $region6: #{dyns_solver_forward.1} parent=1 // pred_check
      _
    $region7: #{dyns_solver_forward.1} parent=1 // pred_check_branch
      %13 = sbr.rel (0) target = $region9
    $region8: #{dyns_solver_forward.1} parent=1 // pred_region
      _
    $region9: #{dyns_solver_forward.1} parent=1 // pred_fallthru
      _
    // Predicated region
    $region10: #{dyns_solver_forward.1} parent=1 // pred_check
      _
    $region11: #{dyns_solver_forward.1} parent=1 // pred_check_branch
      %15 = sbr.rel (0) target = $region13
    $region12: #{dyns_solver_forward.1} parent=1 // pred_region
      _
    $region13: #{dyns_solver_forward.1} parent=1 // pred_fallthru
      _
    // Predicated region
    $region14: #{dyns_solver_forward.1} parent=1 // pred_check
      _
    $region15: #{dyns_solver_forward.1} parent=1 // pred_check_branch
      %17 = sbr.rel (0) target = $region17
    $region16: #{dyns_solver_forward.1} parent=1 // pred_region
      _
    $region17: #{dyns_solver_forward.1} parent=1 // pred_fallthru
      _
    %v18 = vld [vmem:[%s0] sm:$0x1]
    %v19 = vld [vmem:[%s0 + $0x1] sm:$0x1]
    %v20 = vld [vmem:[%s0 + $0x2] sm:$0x1]
    %v21 = vld [vmem:[%s1 + $0x8] sm:$0x1]
    %v22 = vld [vmem:[%s1 + $0x9] sm:$0x1]
    %v23 = vld [vmem:[%s1 + $0xa] sm:$0x1]
    %v24 = vlaneseq
    %v25 = vand.u32 %v24, 127
    %vm26 = vcmp.ge.s32.totalorder %v25, 4
    loop: start=0, step=1, limit=7
    $region18: #{dyns_solver_forward.1} parent=1 // loop_pre_header
      _
    $region19: #{dyns_solver_forward.1} parent=1 // loop_header
      %s28 = sphi 0, %s32
      %p29 = scmp.ge.s32.totalorder %s28, 7
      %v33 = vphi %v18, %v3402
      %v34 = vphi %v19, %v3409
    $region20: #{dyns_solver_forward.1} parent=1 // loop_header_branch
      %31 = sbr.rel (%p29) target = $region24
    $region21: #{dyns_solver_forward.1} parent=1 // loop_body
      %v35 = vld [vmem:[%s1] sm:$0xff]
      %vm36 = vcmask 64512
      %v38 = vsel %vm36, %v33, 0
      %40 = vmatpush.msra.mxu0 0.0
      %41 = vmatpush.msra.mxu0 0.0
      %42 = vmatpush.msra.mxu0 0.0
      %43 = vmatpush.msra.mxu0 0.0
      %44 = vmatpush.msra.mxu0 0.0
      %45 = vmatpush.msra.mxu0 0.0
      %46 = vmatpush.msra.mxu0 0.0
      %47 = vmatpush.msra.mxu0 0.0
      %48 = vmatpush.msra.mxu0 0.0
      %49 = vmatpush.msra.mxu0 0.0
      %50 = vmatpush.msra.mxu0 0.0
      %51 = vmatpush.msra.mxu0 0.0
      %52 = vmatpush.msra.mxu0 0.0
      %53 = vmatpush.msra.mxu0 0.0
      %54 = vmatpush.msra.mxu0 0.0
      %55 = vmatpush.msra.mxu0 %v35
      %56 = vmatmul.f32.gmra.mxu0 %v38
      %v57 = vpop.f32.mrf.mxu0
      %v58 = vadd.f32 %v21, %v57
      %59 = vdwg.mxu0
      %v60 = vmax.f32 %v58, 0.0
      %v61 = vpack.c.bf16 %v60, %v60
      %v62 = vld [vmem:[%s2] sm:$0xf]
      %v63 = vld [vmem:[%s2 + $0x4] sm:$0xf]
      %v64 = vld [vmem:[%s2 + $0x8] sm:$0xf]
      %v65 = vld [vmem:[%s2 + $0xc] sm:$0xf]
      %v66 = vld [vmem:[%s2 + $0x10] sm:$0xf]
      %v67 = vld [vmem:[%s2 + $0x14] sm:$0xf]
      %v68 = vld [vmem:[%s2 + $0x18] sm:$0xf]
      %v69 = vld [vmem:[%s2 + $0x1c] sm:$0xf]
      %v70 = vld [vmem:[%s2 + $0x20] sm:$0xf]
      %v71 = vld [vmem:[%s2 + $0x24] sm:$0xf]
      %v72 = vld [vmem:[%s2 + $0x28] sm:$0xf]
      %v73 = vld [vmem:[%s2 + $0x2c] sm:$0xf]
      %v74 = vld [vmem:[%s2 + $0x30] sm:$0xf]
      %v75 = vld [vmem:[%s2 + $0x34] sm:$0xf]
      %v76 = vld [vmem:[%s2 + $0x38] sm:$0xf]
      %v77 = vld [vmem:[%s2 + $0x3c] sm:$0xf]
      %v94 = vunpack.c.l.b16 %v62
      %v95 = vunpack.c.l.b16 %v63
      %v96 = vunpack.c.l.b16 %v64
      %v97 = vunpack.c.l.b16 %v65
      %v98 = vunpack.c.l.b16 %v66
      %v99 = vunpack.c.l.b16 %v67
      %v100 = vunpack.c.l.b16 %v68
      %v101 = vunpack.c.l.b16 %v69
      %v102 = vunpack.c.l.b16 %v70
      %v103 = vunpack.c.l.b16 %v71
      %v104 = vunpack.c.l.b16 %v72
      %v105 = vunpack.c.l.b16 %v73
      %v106 = vunpack.c.l.b16 %v74
      %v107 = vunpack.c.l.b16 %v75
      %v108 = vunpack.c.l.b16 %v76
      %v109 = vunpack.c.l.b16 %v77
      %v110 = vpack.c.b16 %v95, %v94
      %v111 = vpack.c.b16 %v97, %v96
      %v112 = vpack.c.b16 %v99, %v98
      %v113 = vpack.c.b16 %v101, %v100
      %v114 = vpack.c.b16 %v103, %v102
      %v115 = vpack.c.b16 %v105, %v104
      %v116 = vpack.c.b16 %v107, %v106
      %v117 = vpack.c.b16 %v109, %v108
      %126 = vmatpush.bf16.msra.mxu0 %v117
      %127 = vmatpush.bf16.msra.mxu0 %v116
      %128 = vmatpush.bf16.msra.mxu0 %v115
      %129 = vmatpush.bf16.msra.mxu0 %v114
      %130 = vmatpush.bf16.msra.mxu0 %v113
      %131 = vmatpush.bf16.msra.mxu0 %v112
      %132 = vmatpush.bf16.msra.mxu0 %v111
      %133 = vmatpush.bf16.msra.mxu0 %v110
      %134 = vmatmul.bf16.gmra.mxu0 %v61
      %v135 = vpop.f32.mrf.mxu0
      %v136 = vadd.f32 %v22, %v135
      %v137 = vpop.f32.mrf.mxu0
      %138 = vdwg.mxu0
      %v139 = vmax.f32 %v136, 0.0
      %v140 = vpack.c.bf16 %v139, %v139
      %s141 = scalar_lea.vmem %s2, 64
      %v142 = vld [vmem:[%s141] sm:$0xf]
      %v143 = vld [vmem:[%s141 + $0x4] sm:$0xf]
      %v144 = vld [vmem:[%s141 + $0x8] sm:$0xf]
      %v145 = vld [vmem:[%s141 + $0xc] sm:$0xf]
      %v146 = vld [vmem:[%s141 + $0x10] sm:$0xf]
      %v147 = vld [vmem:[%s141 + $0x14] sm:$0xf]
      %v148 = vld [vmem:[%s141 + $0x18] sm:$0xf]
      %v149 = vld [vmem:[%s141 + $0x1c] sm:$0xf]
      %v150 = vld [vmem:[%s141 + $0x20] sm:$0xf]
      %v151 = vld [vmem:[%s141 + $0x24] sm:$0xf]
      %v152 = vld [vmem:[%s141 + $0x28] sm:$0xf]
      %v153 = vld [vmem:[%s141 + $0x2c] sm:$0xf]
      %v154 = vld [vmem:[%s141 + $0x30] sm:$0xf]
      %v155 = vld [vmem:[%s141 + $0x34] sm:$0xf]
      %v156 = vld [vmem:[%s141 + $0x38] sm:$0xf]
      %v157 = vld [vmem:[%s141 + $0x3c] sm:$0xf]
      %v174 = vunpack.c.l.b16 %v142
      %v175 = vunpack.c.l.b16 %v143
      %v176 = vunpack.c.l.b16 %v144
      %v177 = vunpack.c.l.b16 %v145
      %v178 = vunpack.c.l.b16 %v146
      %v179 = vunpack.c.l.b16 %v147
      %v180 = vunpack.c.l.b16 %v148
      %v181 = vunpack.c.l.b16 %v149
      %v182 = vunpack.c.l.b16 %v150
      %v183 = vunpack.c.l.b16 %v151
      %v184 = vunpack.c.l.b16 %v152
      %v185 = vunpack.c.l.b16 %v153
      %v186 = vunpack.c.l.b16 %v154
      %v187 = vunpack.c.l.b16 %v155
      %v188 = vunpack.c.l.b16 %v156
      %v189 = vunpack.c.l.b16 %v157
      %v190 = vpack.c.b16 %v175, %v174
      %v191 = vpack.c.b16 %v177, %v176
      %v192 = vpack.c.b16 %v179, %v178
      %v193 = vpack.c.b16 %v181, %v180
      %v194 = vpack.c.b16 %v183, %v182
      %v195 = vpack.c.b16 %v185, %v184
      %v196 = vpack.c.b16 %v187, %v186
      %v197 = vpack.c.b16 %v189, %v188
      %206 = vmatpush.bf16.msra.mxu0 %v197
      %207 = vmatpush.bf16.msra.mxu0 %v196
      %208 = vmatpush.bf16.msra.mxu0 %v195
      %209 = vmatpush.bf16.msra.mxu0 %v194
      %210 = vmatpush.bf16.msra.mxu0 %v193
      %211 = vmatpush.bf16.msra.mxu0 %v192
      %212 = vmatpush.bf16.msra.mxu0 %v191
      %213 = vmatpush.bf16.msra.mxu0 %v190
      %214 = vmatmul.bf16.gmra.mxu0 %v140
      %v215 = vpop.f32.mrf.mxu0
      %v216 = vadd.f32 %v23, %v215
      %v217 = vpop.f32.mrf.mxu0
      %218 = vdwg.mxu0
      %v219 = vmax.f32 %v216, 0.0
      %v220 = vpack.c.bf16 %v219, %v219
      %v221 = vld [vmem:[%s3] sm:$0xf]
      %v222 = vld [vmem:[%s3 + $0x4] sm:$0xf]
      %v223 = vld [vmem:[%s3 + $0x8] sm:$0xf]
      %v224 = vld [vmem:[%s3 + $0xc] sm:$0xf]
      %v225 = vld [vmem:[%s3 + $0x10] sm:$0xf]
      %v226 = vld [vmem:[%s3 + $0x14] sm:$0xf]
      %v227 = vld [vmem:[%s3 + $0x18] sm:$0xf]
      %v228 = vld [vmem:[%s3 + $0x1c] sm:$0xf]
      %v229 = vld [vmem:[%s3 + $0x20] sm:$0xf]
      %v230 = vld [vmem:[%s3 + $0x24] sm:$0xf]
      %v231 = vld [vmem:[%s3 + $0x28] sm:$0xf]
      %v232 = vld [vmem:[%s3 + $0x2c] sm:$0xf]
      %v233 = vld [vmem:[%s3 + $0x30] sm:$0xf]
      %v234 = vld [vmem:[%s3 + $0x34] sm:$0xf]
      %v235 = vld [vmem:[%s3 + $0x38] sm:$0xf]
      %v236 = vld [vmem:[%s3 + $0x3c] sm:$0xf]
      %v253 = vunpack.c.l.b16 %v221
      %v254 = vunpack.c.l.b16 %v222
      %v255 = vunpack.c.l.b16 %v223
      %v256 = vunpack.c.l.b16 %v224
      %v257 = vunpack.c.l.b16 %v225
      %v258 = vunpack.c.l.b16 %v226
      %v259 = vunpack.c.l.b16 %v227
      %v260 = vunpack.c.l.b16 %v228
      %v261 = vunpack.c.l.b16 %v229
      %v262 = vunpack.c.l.b16 %v230
      %v263 = vunpack.c.l.b16 %v231
      %v264 = vunpack.c.l.b16 %v232
      %v265 = vunpack.c.l.b16 %v233
      %v266 = vunpack.c.l.b16 %v234
      %v267 = vunpack.c.l.b16 %v235
      %v268 = vunpack.c.l.b16 %v236
      %v269 = vpack.c.b16 %v254, %v253
      %v270 = vpack.c.b16 %v256, %v255
      %v271 = vpack.c.b16 %v258, %v257
      %v272 = vpack.c.b16 %v260, %v259
      %v273 = vpack.c.b16 %v262, %v261
      %v274 = vpack.c.b16 %v264, %v263
      %v275 = vpack.c.b16 %v266, %v265
      %v276 = vpack.c.b16 %v268, %v267
      %285 = vmatpush.bf16.msra.mxu0 %v276
      %286 = vmatpush.bf16.msra.mxu0 %v275
      %287 = vmatpush.bf16.msra.mxu0 %v274
      %288 = vmatpush.bf16.msra.mxu0 %v273
      %289 = vmatpush.bf16.msra.mxu0 %v272
      %290 = vmatpush.bf16.msra.mxu0 %v271
      %291 = vmatpush.bf16.msra.mxu0 %v270
      %292 = vmatpush.bf16.msra.mxu0 %v269
      %293 = vmatmul.bf16.gmra.mxu0 %v220
      %v294 = vpop.f32.mrf.mxu0
      %v295 = vadd.f32 %v20, %v294
      %v296 = vpop.f32.mrf.mxu0
      %297 = vdwg.mxu0
      %v298 = vsel %vm26, %v295, 0.0
      %v299 = vadd.f32 %v34, %v298
      %v300 = vsel %vm26, 0.0, %v295
      %v301 = vmul.f32 %v299, 0.033333335
      %v302 = vadd.f32 %v33, %v301
      %v303 = vmul.f32 %v300, 0.033333335
      %v304 = vadd.f32 %v34, %v303
      %v306 = vsel %vm36, %v302, 0
      %308 = vmatpush.msra.mxu0 0.0
      %309 = vmatpush.msra.mxu0 0.0
      %310 = vmatpush.msra.mxu0 0.0
      %311 = vmatpush.msra.mxu0 0.0
      %312 = vmatpush.msra.mxu0 0.0
      %313 = vmatpush.msra.mxu0 0.0
      %314 = vmatpush.msra.mxu0 0.0
      %315 = vmatpush.msra.mxu0 0.0
      %316 = vmatpush.msra.mxu0 0.0
      %317 = vmatpush.msra.mxu0 0.0
      %318 = vmatpush.msra.mxu0 0.0
      %319 = vmatpush.msra.mxu0 0.0
      %320 = vmatpush.msra.mxu0 0.0
      %321 = vmatpush.msra.mxu0 0.0
      %322 = vmatpush.msra.mxu0 0.0
      %323 = vmatpush.msra.mxu0 %v35
      %324 = vmatmul.f32.gmra.mxu0 %v306
      %v325 = vpop.f32.mrf.mxu0
      %v326 = vadd.f32 %v21, %v325
      %327 = vdwg.mxu0
      %v328 = vmax.f32 %v326, 0.0
      %v329 = vpack.c.bf16 %v328, %v328
      %330 = vmatpush.bf16.msra.mxu0 %v117
      %331 = vmatpush.bf16.msra.mxu0 %v116
      %332 = vmatpush.bf16.msra.mxu0 %v115
      %333 = vmatpush.bf16.msra.mxu0 %v114
      %334 = vmatpush.bf16.msra.mxu0 %v113
      %335 = vmatpush.bf16.msra.mxu0 %v112
      %336 = vmatpush.bf16.msra.mxu0 %v111
      %337 = vmatpush.bf16.msra.mxu0 %v110
      %338 = vmatmul.bf16.gmra.mxu0 %v329
      %v339 = vpop.f32.mrf.mxu0
      %v340 = vadd.f32 %v22, %v339
      %v341 = vpop.f32.mrf.mxu0
      %342 = vdwg.mxu0
      %v343 = vmax.f32 %v340, 0.0
      %v344 = vpack.c.bf16 %v343, %v343
      %345 = vmatpush.bf16.msra.mxu0 %v197
      %346 = vmatpush.bf16.msra.mxu0 %v196
      %347 = vmatpush.bf16.msra.mxu0 %v195
      %348 = vmatpush.bf16.msra.mxu0 %v194
      %349 = vmatpush.bf16.msra.mxu0 %v193
      %350 = vmatpush.bf16.msra.mxu0 %v192
      %351 = vmatpush.bf16.msra.mxu0 %v191
      %352 = vmatpush.bf16.msra.mxu0 %v190
      %353 = vmatmul.bf16.gmra.mxu0 %v344
      %v354 = vpop.f32.mrf.mxu0
      %v355 = vadd.f32 %v23, %v354
      %v356 = vpop.f32.mrf.mxu0
      %357 = vdwg.mxu0
      %v358 = vmax.f32 %v355, 0.0
      %v359 = vpack.c.bf16 %v358, %v358
      %360 = vmatpush.bf16.msra.mxu0 %v276
      %361 = vmatpush.bf16.msra.mxu0 %v275
      %362 = vmatpush.bf16.msra.mxu0 %v274
      %363 = vmatpush.bf16.msra.mxu0 %v273
      %364 = vmatpush.bf16.msra.mxu0 %v272
      %365 = vmatpush.bf16.msra.mxu0 %v271
      %366 = vmatpush.bf16.msra.mxu0 %v270
      %367 = vmatpush.bf16.msra.mxu0 %v269
      %368 = vmatmul.bf16.gmra.mxu0 %v359
      %v369 = vpop.f32.mrf.mxu0
      %v370 = vadd.f32 %v20, %v369
      %v371 = vpop.f32.mrf.mxu0
      %372 = vdwg.mxu0
      %v373 = vsel %vm26, %v370, 0.0
      %v374 = vadd.f32 %v304, %v373
      %v375 = vsel %vm26, 0.0, %v370
      %v376 = vmul.f32 %v299, 0.33333334
      %v377 = vsub.f32 %v374, %v376
      %v378 = vmul.f32 %v377, 0.1
      %v379 = vadd.f32 %v33, %v378
      %v380 = vmul.f32 %v300, 0.33333334
      %v381 = vsub.f32 %v375, %v380
      %v382 = vmul.f32 %v381, 0.1
      %v383 = vadd.f32 %v34, %v382
      %v385 = vsel %vm36, %v379, 0
      %387 = vmatpush.msra.mxu0 0.0
      %388 = vmatpush.msra.mxu0 0.0
      %389 = vmatpush.msra.mxu0 0.0
      %390 = vmatpush.msra.mxu0 0.0
      %391 = vmatpush.msra.mxu0 0.0
      %392 = vmatpush.msra.mxu0 0.0
      %393 = vmatpush.msra.mxu0 0.0
      %394 = vmatpush.msra.mxu0 0.0
      %395 = vmatpush.msra.mxu0 0.0
      %396 = vmatpush.msra.mxu0 0.0
      %397 = vmatpush.msra.mxu0 0.0
      %398 = vmatpush.msra.mxu0 0.0
      %399 = vmatpush.msra.mxu0 0.0
      %400 = vmatpush.msra.mxu0 0.0
      %401 = vmatpush.msra.mxu0 0.0
      %402 = vmatpush.msra.mxu0 %v35
      %403 = vmatmul.f32.gmra.mxu0 %v385
      %v404 = vpop.f32.mrf.mxu0
      %v405 = vadd.f32 %v21, %v404
      %406 = vdwg.mxu0
      %v407 = vmax.f32 %v405, 0.0
      %v408 = vpack.c.bf16 %v407, %v407
      %409 = vmatpush.bf16.msra.mxu0 %v117
      %410 = vmatpush.bf16.msra.mxu0 %v116
      %411 = vmatpush.bf16.msra.mxu0 %v115
      %412 = vmatpush.bf16.msra.mxu0 %v114
      %413 = vmatpush.bf16.msra.mxu0 %v113
      %414 = vmatpush.bf16.msra.mxu0 %v112
      %415 = vmatpush.bf16.msra.mxu0 %v111
      %416 = vmatpush.bf16.msra.mxu0 %v110
      %417 = vmatmul.bf16.gmra.mxu0 %v408
      %v418 = vpop.f32.mrf.mxu0
      %v419 = vadd.f32 %v22, %v418
      %v420 = vpop.f32.mrf.mxu0
      %421 = vdwg.mxu0
      %v422 = vmax.f32 %v419, 0.0
      %v423 = vpack.c.bf16 %v422, %v422
      %424 = vmatpush.bf16.msra.mxu0 %v197
      %425 = vmatpush.bf16.msra.mxu0 %v196
      %426 = vmatpush.bf16.msra.mxu0 %v195
      %427 = vmatpush.bf16.msra.mxu0 %v194
      %428 = vmatpush.bf16.msra.mxu0 %v193
      %429 = vmatpush.bf16.msra.mxu0 %v192
      %430 = vmatpush.bf16.msra.mxu0 %v191
      %431 = vmatpush.bf16.msra.mxu0 %v190
      %432 = vmatmul.bf16.gmra.mxu0 %v423
      %v433 = vpop.f32.mrf.mxu0
      %v434 = vadd.f32 %v23, %v433
      %v435 = vpop.f32.mrf.mxu0
      %436 = vdwg.mxu0
      %v437 = vmax.f32 %v434, 0.0
      %v438 = vpack.c.bf16 %v437, %v437
      %439 = vmatpush.bf16.msra.mxu0 %v276
      %440 = vmatpush.bf16.msra.mxu0 %v275
      %441 = vmatpush.bf16.msra.mxu0 %v274
      %442 = vmatpush.bf16.msra.mxu0 %v273
      %443 = vmatpush.bf16.msra.mxu0 %v272
      %444 = vmatpush.bf16.msra.mxu0 %v271
      %445 = vmatpush.bf16.msra.mxu0 %v270
      %446 = vmatpush.bf16.msra.mxu0 %v269
      %447 = vmatmul.bf16.gmra.mxu0 %v438
      %v448 = vpop.f32.mrf.mxu0
      %v449 = vadd.f32 %v20, %v448
      %v450 = vpop.f32.mrf.mxu0
      %451 = vdwg.mxu0
      %v452 = vsel %vm26, %v449, 0.0
      %v453 = vadd.f32 %v383, %v452
      %v454 = vsel %vm26, 0.0, %v449
      %v455 = vsub.f32 %v299, %v374
      %v456 = vadd.f32 %v455, %v453
      %v457 = vmul.f32 %v456, 0.1
      %v458 = vadd.f32 %v33, %v457
      %v459 = vsub.f32 %v300, %v375
      %v460 = vadd.f32 %v459, %v454
      %v461 = vmul.f32 %v460, 0.1
      %v462 = vadd.f32 %v34, %v461
      %v464 = vsel %vm36, %v458, 0
      %466 = vmatpush.msra.mxu0 0.0
      %467 = vmatpush.msra.mxu0 0.0
      %468 = vmatpush.msra.mxu0 0.0
      %469 = vmatpush.msra.mxu0 0.0
      %470 = vmatpush.msra.mxu0 0.0
      %471 = vmatpush.msra.mxu0 0.0
      %472 = vmatpush.msra.mxu0 0.0
      %473 = vmatpush.msra.mxu0 0.0
      %474 = vmatpush.msra.mxu0 0.0
      %475 = vmatpush.msra.mxu0 0.0
      %476 = vmatpush.msra.mxu0 0.0
      %477 = vmatpush.msra.mxu0 0.0
      %478 = vmatpush.msra.mxu0 0.0
      %479 = vmatpush.msra.mxu0 0.0
      %480 = vmatpush.msra.mxu0 0.0
      %481 = vmatpush.msra.mxu0 %v35
      %482 = vmatmul.f32.gmra.mxu0 %v464
      %v483 = vpop.f32.mrf.mxu0
      %v484 = vadd.f32 %v21, %v483
      %485 = vdwg.mxu0
      %v486 = vmax.f32 %v484, 0.0
      %v487 = vpack.c.bf16 %v486, %v486
      %488 = vmatpush.bf16.msra.mxu0 %v117
      %489 = vmatpush.bf16.msra.mxu0 %v116
      %490 = vmatpush.bf16.msra.mxu0 %v115
      %491 = vmatpush.bf16.msra.mxu0 %v114
      %492 = vmatpush.bf16.msra.mxu0 %v113
      %493 = vmatpush.bf16.msra.mxu0 %v112
      %494 = vmatpush.bf16.msra.mxu0 %v111
      %495 = vmatpush.bf16.msra.mxu0 %v110
      %496 = vmatmul.bf16.gmra.mxu0 %v487
      %v497 = vpop.f32.mrf.mxu0
      %v498 = vadd.f32 %v22, %v497
      %v499 = vpop.f32.mrf.mxu0
      %500 = vdwg.mxu0
      %v501 = vmax.f32 %v498, 0.0
      %v502 = vpack.c.bf16 %v501, %v501
      %503 = vmatpush.bf16.msra.mxu0 %v197
      %504 = vmatpush.bf16.msra.mxu0 %v196
      %505 = vmatpush.bf16.msra.mxu0 %v195
      %506 = vmatpush.bf16.msra.mxu0 %v194
      %507 = vmatpush.bf16.msra.mxu0 %v193
      %508 = vmatpush.bf16.msra.mxu0 %v192
      %509 = vmatpush.bf16.msra.mxu0 %v191
      %510 = vmatpush.bf16.msra.mxu0 %v190
      %511 = vmatmul.bf16.gmra.mxu0 %v502
      %v512 = vpop.f32.mrf.mxu0
      %v513 = vadd.f32 %v23, %v512
      %v514 = vpop.f32.mrf.mxu0
      %515 = vdwg.mxu0
      %v516 = vmax.f32 %v513, 0.0
      %v517 = vpack.c.bf16 %v516, %v516
      %518 = vmatpush.bf16.msra.mxu0 %v276
      %519 = vmatpush.bf16.msra.mxu0 %v275
      %520 = vmatpush.bf16.msra.mxu0 %v274
      %521 = vmatpush.bf16.msra.mxu0 %v273
      %522 = vmatpush.bf16.msra.mxu0 %v272
      %523 = vmatpush.bf16.msra.mxu0 %v271
      %524 = vmatpush.bf16.msra.mxu0 %v270
      %525 = vmatpush.bf16.msra.mxu0 %v269
      %526 = vmatmul.bf16.gmra.mxu0 %v517
      %v527 = vpop.f32.mrf.mxu0
      %v528 = vadd.f32 %v20, %v527
      %v529 = vpop.f32.mrf.mxu0
      %530 = vdwg.mxu0
      %v531 = vsel %vm26, %v528, 0.0
      %v532 = vadd.f32 %v462, %v531
      %v533 = vsel %vm26, 0.0, %v528
      %v534 = vadd.f32 %v374, %v453
      %v535 = vmul.f32 %v534, 3.0
      %v536 = vadd.f32 %v299, %v535
      %v537 = vadd.f32 %v536, %v532
      %v538 = vmul.f32 %v537, 0.1
      %v539 = vmul.f32 %v538, 0.125
      %v540 = vadd.f32 %v33, %v539
      %v541 = vadd.f32 %v375, %v454
      %v542 = vmul.f32 %v541, 3.0
      %v543 = vadd.f32 %v300, %v542
      %v544 = vadd.f32 %v543, %v533
      %v545 = vmul.f32 %v544, 0.1
      %v546 = vmul.f32 %v545, 0.125
      %v547 = vadd.f32 %v34, %v546
      %v549 = vsel %vm36, %v540, 0
      %551 = vmatpush.msra.mxu0 0.0
      %552 = vmatpush.msra.mxu0 0.0
      %553 = vmatpush.msra.mxu0 0.0
      %554 = vmatpush.msra.mxu0 0.0
      %555 = vmatpush.msra.mxu0 0.0
      %556 = vmatpush.msra.mxu0 0.0
      %557 = vmatpush.msra.mxu0 0.0
      %558 = vmatpush.msra.mxu0 0.0
      %559 = vmatpush.msra.mxu0 0.0
      %560 = vmatpush.msra.mxu0 0.0
      %561 = vmatpush.msra.mxu0 0.0
      %562 = vmatpush.msra.mxu0 0.0
      %563 = vmatpush.msra.mxu0 0.0
      %564 = vmatpush.msra.mxu0 0.0
      %565 = vmatpush.msra.mxu0 0.0
      %566 = vmatpush.msra.mxu0 %v35
      %567 = vmatmul.f32.gmra.mxu0 %v549
      %v568 = vpop.f32.mrf.mxu0
      %v569 = vadd.f32 %v21, %v568
      %570 = vdwg.mxu0
      %v571 = vmax.f32 %v569, 0.0
      %v572 = vpack.c.bf16 %v571, %v571
      %573 = vmatpush.bf16.msra.mxu0 %v117
      %574 = vmatpush.bf16.msra.mxu0 %v116
      %575 = vmatpush.bf16.msra.mxu0 %v115
      %576 = vmatpush.bf16.msra.mxu0 %v114
      %577 = vmatpush.bf16.msra.mxu0 %v113
      %578 = vmatpush.bf16.msra.mxu0 %v112
      %579 = vmatpush.bf16.msra.mxu0 %v111
      %580 = vmatpush.bf16.msra.mxu0 %v110
      %581 = vmatmul.bf16.gmra.mxu0 %v572
      %v582 = vpop.f32.mrf.mxu0
      %v583 = vadd.f32 %v22, %v582
      %v584 = vpop.f32.mrf.mxu0
      %585 = vdwg.mxu0
      %v586 = vmax.f32 %v583, 0.0
      %v587 = vpack.c.bf16 %v586, %v586
      %588 = vmatpush.bf16.msra.mxu0 %v197
      %589 = vmatpush.bf16.msra.mxu0 %v196
      %590 = vmatpush.bf16.msra.mxu0 %v195
      %591 = vmatpush.bf16.msra.mxu0 %v194
      %592 = vmatpush.bf16.msra.mxu0 %v193
      %593 = vmatpush.bf16.msra.mxu0 %v192
      %594 = vmatpush.bf16.msra.mxu0 %v191
      %595 = vmatpush.bf16.msra.mxu0 %v190
      %596 = vmatmul.bf16.gmra.mxu0 %v587
      %v597 = vpop.f32.mrf.mxu0
      %v598 = vadd.f32 %v23, %v597
      %v599 = vpop.f32.mrf.mxu0
      %600 = vdwg.mxu0
      %v601 = vmax.f32 %v598, 0.0
      %v602 = vpack.c.bf16 %v601, %v601
      %603 = vmatpush.bf16.msra.mxu0 %v276
      %604 = vmatpush.bf16.msra.mxu0 %v275
      %605 = vmatpush.bf16.msra.mxu0 %v274
      %606 = vmatpush.bf16.msra.mxu0 %v273
      %607 = vmatpush.bf16.msra.mxu0 %v272
      %608 = vmatpush.bf16.msra.mxu0 %v271
      %609 = vmatpush.bf16.msra.mxu0 %v270
      %610 = vmatpush.bf16.msra.mxu0 %v269
      %611 = vmatmul.bf16.gmra.mxu0 %v602
      %v612 = vpop.f32.mrf.mxu0
      %v613 = vadd.f32 %v20, %v612
      %v614 = vpop.f32.mrf.mxu0
      %615 = vdwg.mxu0
      %v616 = vsel %vm26, %v613, 0.0
      %v617 = vadd.f32 %v547, %v616
      %v618 = vsel %vm26, 0.0, %v613
      %v619 = vmul.f32 %v617, 0.033333335
      %v620 = vadd.f32 %v540, %v619
      %v621 = vmul.f32 %v618, 0.033333335
      %v622 = vadd.f32 %v547, %v621
      %v624 = vsel %vm36, %v620, 0
      %626 = vmatpush.msra.mxu0 0.0
      %627 = vmatpush.msra.mxu0 0.0
      %628 = vmatpush.msra.mxu0 0.0
      %629 = vmatpush.msra.mxu0 0.0
      %630 = vmatpush.msra.mxu0 0.0
      %631 = vmatpush.msra.mxu0 0.0
      %632 = vmatpush.msra.mxu0 0.0
      %633 = vmatpush.msra.mxu0 0.0
      %634 = vmatpush.msra.mxu0 0.0
      %635 = vmatpush.msra.mxu0 0.0
      %636 = vmatpush.msra.mxu0 0.0
      %637 = vmatpush.msra.mxu0 0.0
      %638 = vmatpush.msra.mxu0 0.0
      %639 = vmatpush.msra.mxu0 0.0
      %640 = vmatpush.msra.mxu0 0.0
      %641 = vmatpush.msra.mxu0 %v35
      %642 = vmatmul.f32.gmra.mxu0 %v624
      %v643 = vpop.f32.mrf.mxu0
      %v644 = vadd.f32 %v21, %v643
      %645 = vdwg.mxu0
      %v646 = vmax.f32 %v644, 0.0
      %v647 = vpack.c.bf16 %v646, %v646
      %648 = vmatpush.bf16.msra.mxu0 %v117
      %649 = vmatpush.bf16.msra.mxu0 %v116
      %650 = vmatpush.bf16.msra.mxu0 %v115
      %651 = vmatpush.bf16.msra.mxu0 %v114
      %652 = vmatpush.bf16.msra.mxu0 %v113
      %653 = vmatpush.bf16.msra.mxu0 %v112
      %654 = vmatpush.bf16.msra.mxu0 %v111
      %655 = vmatpush.bf16.msra.mxu0 %v110
      %656 = vmatmul.bf16.gmra.mxu0 %v647
      %v657 = vpop.f32.mrf.mxu0
      %v658 = vadd.f32 %v22, %v657
      %v659 = vpop.f32.mrf.mxu0
      %660 = vdwg.mxu0
      %v661 = vmax.f32 %v658, 0.0
      %v662 = vpack.c.bf16 %v661, %v661
      %663 = vmatpush.bf16.msra.mxu0 %v197
      %664 = vmatpush.bf16.msra.mxu0 %v196
      %665 = vmatpush.bf16.msra.mxu0 %v195
      %666 = vmatpush.bf16.msra.mxu0 %v194
      %667 = vmatpush.bf16.msra.mxu0 %v193
      %668 = vmatpush.bf16.msra.mxu0 %v192
      %669 = vmatpush.bf16.msra.mxu0 %v191
      %670 = vmatpush.bf16.msra.mxu0 %v190
      %671 = vmatmul.bf16.gmra.mxu0 %v662
      %v672 = vpop.f32.mrf.mxu0
      %v673 = vadd.f32 %v23, %v672
      %v674 = vpop.f32.mrf.mxu0
      %675 = vdwg.mxu0
      %v676 = vmax.f32 %v673, 0.0
      %v677 = vpack.c.bf16 %v676, %v676
      %678 = vmatpush.bf16.msra.mxu0 %v276
      %679 = vmatpush.bf16.msra.mxu0 %v275
      %680 = vmatpush.bf16.msra.mxu0 %v274
      %681 = vmatpush.bf16.msra.mxu0 %v273
      %682 = vmatpush.bf16.msra.mxu0 %v272
      %683 = vmatpush.bf16.msra.mxu0 %v271
      %684 = vmatpush.bf16.msra.mxu0 %v270
      %685 = vmatpush.bf16.msra.mxu0 %v269
      %686 = vmatmul.bf16.gmra.mxu0 %v677
      %v687 = vpop.f32.mrf.mxu0
      %v688 = vadd.f32 %v20, %v687
      %v689 = vpop.f32.mrf.mxu0
      %690 = vdwg.mxu0
      %v691 = vsel %vm26, %v688, 0.0
      %v692 = vadd.f32 %v622, %v691
      %v693 = vsel %vm26, 0.0, %v688
      %v694 = vmul.f32 %v617, 0.33333334
      %v695 = vsub.f32 %v692, %v694
      %v696 = vmul.f32 %v695, 0.1
      %v697 = vadd.f32 %v540, %v696
      %v698 = vmul.f32 %v618, 0.33333334
      %v699 = vsub.f32 %v693, %v698
      %v700 = vmul.f32 %v699, 0.1
      %v701 = vadd.f32 %v547, %v700
      %v703 = vsel %vm36, %v697, 0
      %705 = vmatpush.msra.mxu0 0.0
      %706 = vmatpush.msra.mxu0 0.0
      %707 = vmatpush.msra.mxu0 0.0
      %708 = vmatpush.msra.mxu0 0.0
      %709 = vmatpush.msra.mxu0 0.0
      %710 = vmatpush.msra.mxu0 0.0
      %711 = vmatpush.msra.mxu0 0.0
      %712 = vmatpush.msra.mxu0 0.0
      %713 = vmatpush.msra.mxu0 0.0
      %714 = vmatpush.msra.mxu0 0.0
      %715 = vmatpush.msra.mxu0 0.0
      %716 = vmatpush.msra.mxu0 0.0
      %717 = vmatpush.msra.mxu0 0.0
      %718 = vmatpush.msra.mxu0 0.0
      %719 = vmatpush.msra.mxu0 0.0
      %720 = vmatpush.msra.mxu0 %v35
      %721 = vmatmul.f32.gmra.mxu0 %v703
      %v722 = vpop.f32.mrf.mxu0
      %v723 = vadd.f32 %v21, %v722
      %724 = vdwg.mxu0
      %v725 = vmax.f32 %v723, 0.0
      %v726 = vpack.c.bf16 %v725, %v725
      %727 = vmatpush.bf16.msra.mxu0 %v117
      %728 = vmatpush.bf16.msra.mxu0 %v116
      %729 = vmatpush.bf16.msra.mxu0 %v115
      %730 = vmatpush.bf16.msra.mxu0 %v114
      %731 = vmatpush.bf16.msra.mxu0 %v113
      %732 = vmatpush.bf16.msra.mxu0 %v112
      %733 = vmatpush.bf16.msra.mxu0 %v111
      %734 = vmatpush.bf16.msra.mxu0 %v110
      %735 = vmatmul.bf16.gmra.mxu0 %v726
      %v736 = vpop.f32.mrf.mxu0
      %v737 = vadd.f32 %v22, %v736
      %v738 = vpop.f32.mrf.mxu0
      %739 = vdwg.mxu0
      %v740 = vmax.f32 %v737, 0.0
      %v741 = vpack.c.bf16 %v740, %v740
      %742 = vmatpush.bf16.msra.mxu0 %v197
      %743 = vmatpush.bf16.msra.mxu0 %v196
      %744 = vmatpush.bf16.msra.mxu0 %v195
      %745 = vmatpush.bf16.msra.mxu0 %v194
      %746 = vmatpush.bf16.msra.mxu0 %v193
      %747 = vmatpush.bf16.msra.mxu0 %v192
      %748 = vmatpush.bf16.msra.mxu0 %v191
      %749 = vmatpush.bf16.msra.mxu0 %v190
      %750 = vmatmul.bf16.gmra.mxu0 %v741
      %v751 = vpop.f32.mrf.mxu0
      %v752 = vadd.f32 %v23, %v751
      %v753 = vpop.f32.mrf.mxu0
      %754 = vdwg.mxu0
      %v755 = vmax.f32 %v752, 0.0
      %v756 = vpack.c.bf16 %v755, %v755
      %757 = vmatpush.bf16.msra.mxu0 %v276
      %758 = vmatpush.bf16.msra.mxu0 %v275
      %759 = vmatpush.bf16.msra.mxu0 %v274
      %760 = vmatpush.bf16.msra.mxu0 %v273
      %761 = vmatpush.bf16.msra.mxu0 %v272
      %762 = vmatpush.bf16.msra.mxu0 %v271
      %763 = vmatpush.bf16.msra.mxu0 %v270
      %764 = vmatpush.bf16.msra.mxu0 %v269
      %765 = vmatmul.bf16.gmra.mxu0 %v756
      %v766 = vpop.f32.mrf.mxu0
      %v767 = vadd.f32 %v20, %v766
      %v768 = vpop.f32.mrf.mxu0
      %769 = vdwg.mxu0
      %v770 = vsel %vm26, %v767, 0.0
      %v771 = vadd.f32 %v701, %v770
      %v772 = vsel %vm26, 0.0, %v767
      %v773 = vsub.f32 %v617, %v692
      %v774 = vadd.f32 %v773, %v771
      %v775 = vmul.f32 %v774, 0.1
      %v776 = vadd.f32 %v540, %v775
      %v777 = vsub.f32 %v618, %v693
      %v778 = vadd.f32 %v777, %v772
      %v779 = vmul.f32 %v778, 0.1
      %v780 = vadd.f32 %v547, %v779
      %v782 = vsel %vm36, %v776, 0
      %784 = vmatpush.msra.mxu0 0.0
      %785 = vmatpush.msra.mxu0 0.0
      %786 = vmatpush.msra.mxu0 0.0
      %787 = vmatpush.msra.mxu0 0.0
      %788 = vmatpush.msra.mxu0 0.0
      %789 = vmatpush.msra.mxu0 0.0
      %790 = vmatpush.msra.mxu0 0.0
      %791 = vmatpush.msra.mxu0 0.0
      %792 = vmatpush.msra.mxu0 0.0
      %793 = vmatpush.msra.mxu0 0.0
      %794 = vmatpush.msra.mxu0 0.0
      %795 = vmatpush.msra.mxu0 0.0
      %796 = vmatpush.msra.mxu0 0.0
      %797 = vmatpush.msra.mxu0 0.0
      %798 = vmatpush.msra.mxu0 0.0
      %799 = vmatpush.msra.mxu0 %v35
      %800 = vmatmul.f32.gmra.mxu0 %v782
      %v801 = vpop.f32.mrf.mxu0
      %v802 = vadd.f32 %v21, %v801
      %803 = vdwg.mxu0
      %v804 = vmax.f32 %v802, 0.0
      %v805 = vpack.c.bf16 %v804, %v804
      %806 = vmatpush.bf16.msra.mxu0 %v117
      %807 = vmatpush.bf16.msra.mxu0 %v116
      %808 = vmatpush.bf16.msra.mxu0 %v115
      %809 = vmatpush.bf16.msra.mxu0 %v114
      %810 = vmatpush.bf16.msra.mxu0 %v113
      %811 = vmatpush.bf16.msra.mxu0 %v112
      %812 = vmatpush.bf16.msra.mxu0 %v111
      %813 = vmatpush.bf16.msra.mxu0 %v110
      %814 = vmatmul.bf16.gmra.mxu0 %v805
      %v815 = vpop.f32.mrf.mxu0
      %v816 = vadd.f32 %v22, %v815
      %v817 = vpop.f32.mrf.mxu0
      %818 = vdwg.mxu0
      %v819 = vmax.f32 %v816, 0.0
      %v820 = vpack.c.bf16 %v819, %v819
      %821 = vmatpush.bf16.msra.mxu0 %v197
      %822 = vmatpush.bf16.msra.mxu0 %v196
      %823 = vmatpush.bf16.msra.mxu0 %v195
      %824 = vmatpush.bf16.msra.mxu0 %v194
      %825 = vmatpush.bf16.msra.mxu0 %v193
      %826 = vmatpush.bf16.msra.mxu0 %v192
      %827 = vmatpush.bf16.msra.mxu0 %v191
      %828 = vmatpush.bf16.msra.mxu0 %v190
      %829 = vmatmul.bf16.gmra.mxu0 %v820
      %v830 = vpop.f32.mrf.mxu0
      %v831 = vadd.f32 %v23, %v830
      %v832 = vpop.f32.mrf.mxu0
      %833 = vdwg.mxu0
      %v834 = vmax.f32 %v831, 0.0
      %v835 = vpack.c.bf16 %v834, %v834
      %836 = vmatpush.bf16.msra.mxu0 %v276
      %837 = vmatpush.bf16.msra.mxu0 %v275
      %838 = vmatpush.bf16.msra.mxu0 %v274
      %839 = vmatpush.bf16.msra.mxu0 %v273
      %840 = vmatpush.bf16.msra.mxu0 %v272
      %841 = vmatpush.bf16.msra.mxu0 %v271
      %842 = vmatpush.bf16.msra.mxu0 %v270
      %843 = vmatpush.bf16.msra.mxu0 %v269
      %844 = vmatmul.bf16.gmra.mxu0 %v835
      %v845 = vpop.f32.mrf.mxu0
      %v846 = vadd.f32 %v20, %v845
      %v847 = vpop.f32.mrf.mxu0
      %848 = vdwg.mxu0
      %v849 = vsel %vm26, %v846, 0.0
      %v850 = vadd.f32 %v780, %v849
      %v851 = vsel %vm26, 0.0, %v846
      %v852 = vadd.f32 %v692, %v771
      %v853 = vmul.f32 %v852, 3.0
      %v854 = vadd.f32 %v617, %v853
      %v855 = vadd.f32 %v854, %v850
      %v856 = vmul.f32 %v855, 0.1
      %v857 = vmul.f32 %v856, 0.125
      %v858 = vadd.f32 %v540, %v857
      %v859 = vadd.f32 %v693, %v772
      %v860 = vmul.f32 %v859, 3.0
      %v861 = vadd.f32 %v618, %v860
      %v862 = vadd.f32 %v861, %v851
      %v863 = vmul.f32 %v862, 0.1
      %v864 = vmul.f32 %v863, 0.125
      %v865 = vadd.f32 %v547, %v864
      %v867 = vsel %vm36, %v858, 0
      %869 = vmatpush.msra.mxu0 0.0
      %870 = vmatpush.msra.mxu0 0.0
      %871 = vmatpush.msra.mxu0 0.0
      %872 = vmatpush.msra.mxu0 0.0
      %873 = vmatpush.msra.mxu0 0.0
      %874 = vmatpush.msra.mxu0 0.0
      %875 = vmatpush.msra.mxu0 0.0
      %876 = vmatpush.msra.mxu0 0.0
      %877 = vmatpush.msra.mxu0 0.0
      %878 = vmatpush.msra.mxu0 0.0
      %879 = vmatpush.msra.mxu0 0.0
      %880 = vmatpush.msra.mxu0 0.0
      %881 = vmatpush.msra.mxu0 0.0
      %882 = vmatpush.msra.mxu0 0.0
      %883 = vmatpush.msra.mxu0 0.0
      %884 = vmatpush.msra.mxu0 %v35
      %885 = vmatmul.f32.gmra.mxu0 %v867
      %v886 = vpop.f32.mrf.mxu0
      %v887 = vadd.f32 %v21, %v886
      %888 = vdwg.mxu0
      %v889 = vmax.f32 %v887, 0.0
      %v890 = vpack.c.bf16 %v889, %v889
      %891 = vmatpush.bf16.msra.mxu0 %v117
      %892 = vmatpush.bf16.msra.mxu0 %v116
      %893 = vmatpush.bf16.msra.mxu0 %v115
      %894 = vmatpush.bf16.msra.mxu0 %v114
      %895 = vmatpush.bf16.msra.mxu0 %v113
      %896 = vmatpush.bf16.msra.mxu0 %v112
      %897 = vmatpush.bf16.msra.mxu0 %v111
      %898 = vmatpush.bf16.msra.mxu0 %v110
      %899 = vmatmul.bf16.gmra.mxu0 %v890
      %v900 = vpop.f32.mrf.mxu0
      %v901 = vadd.f32 %v22, %v900
      %v902 = vpop.f32.mrf.mxu0
      %903 = vdwg.mxu0
      %v904 = vmax.f32 %v901, 0.0
      %v905 = vpack.c.bf16 %v904, %v904
      %906 = vmatpush.bf16.msra.mxu0 %v197
      %907 = vmatpush.bf16.msra.mxu0 %v196
      %908 = vmatpush.bf16.msra.mxu0 %v195
      %909 = vmatpush.bf16.msra.mxu0 %v194
      %910 = vmatpush.bf16.msra.mxu0 %v193
      %911 = vmatpush.bf16.msra.mxu0 %v192
      %912 = vmatpush.bf16.msra.mxu0 %v191
      %913 = vmatpush.bf16.msra.mxu0 %v190
      %914 = vmatmul.bf16.gmra.mxu0 %v905
      %v915 = vpop.f32.mrf.mxu0
      %v916 = vadd.f32 %v23, %v915
      %v917 = vpop.f32.mrf.mxu0
      %918 = vdwg.mxu0
      %v919 = vmax.f32 %v916, 0.0
      %v920 = vpack.c.bf16 %v919, %v919
      %921 = vmatpush.bf16.msra.mxu0 %v276
      %922 = vmatpush.bf16.msra.mxu0 %v275
      %923 = vmatpush.bf16.msra.mxu0 %v274
      %924 = vmatpush.bf16.msra.mxu0 %v273
      %925 = vmatpush.bf16.msra.mxu0 %v272
      %926 = vmatpush.bf16.msra.mxu0 %v271
      %927 = vmatpush.bf16.msra.mxu0 %v270
      %928 = vmatpush.bf16.msra.mxu0 %v269
      %929 = vmatmul.bf16.gmra.mxu0 %v920
      %v930 = vpop.f32.mrf.mxu0
      %v931 = vadd.f32 %v20, %v930
      %v932 = vpop.f32.mrf.mxu0
      %933 = vdwg.mxu0
      %v934 = vsel %vm26, %v931, 0.0
      %v935 = vadd.f32 %v865, %v934
      %v936 = vsel %vm26, 0.0, %v931
      %v937 = vmul.f32 %v935, 0.033333335
      %v938 = vadd.f32 %v858, %v937
      %v939 = vmul.f32 %v936, 0.033333335
      %v940 = vadd.f32 %v865, %v939
      %v942 = vsel %vm36, %v938, 0
      %944 = vmatpush.msra.mxu0 0.0
      %945 = vmatpush.msra.mxu0 0.0
      %946 = vmatpush.msra.mxu0 0.0
      %947 = vmatpush.msra.mxu0 0.0
      %948 = vmatpush.msra.mxu0 0.0
      %949 = vmatpush.msra.mxu0 0.0
      %950 = vmatpush.msra.mxu0 0.0
      %951 = vmatpush.msra.mxu0 0.0
      %952 = vmatpush.msra.mxu0 0.0
      %953 = vmatpush.msra.mxu0 0.0
      %954 = vmatpush.msra.mxu0 0.0
      %955 = vmatpush.msra.mxu0 0.0
      %956 = vmatpush.msra.mxu0 0.0
      %957 = vmatpush.msra.mxu0 0.0
      %958 = vmatpush.msra.mxu0 0.0
      %959 = vmatpush.msra.mxu0 %v35
      %960 = vmatmul.f32.gmra.mxu0 %v942
      %v961 = vpop.f32.mrf.mxu0
      %v962 = vadd.f32 %v21, %v961
      %963 = vdwg.mxu0
      %v964 = vmax.f32 %v962, 0.0
      %v965 = vpack.c.bf16 %v964, %v964
      %966 = vmatpush.bf16.msra.mxu0 %v117
      %967 = vmatpush.bf16.msra.mxu0 %v116
      %968 = vmatpush.bf16.msra.mxu0 %v115
      %969 = vmatpush.bf16.msra.mxu0 %v114
      %970 = vmatpush.bf16.msra.mxu0 %v113
      %971 = vmatpush.bf16.msra.mxu0 %v112
      %972 = vmatpush.bf16.msra.mxu0 %v111
      %973 = vmatpush.bf16.msra.mxu0 %v110
      %974 = vmatmul.bf16.gmra.mxu0 %v965
      %v975 = vpop.f32.mrf.mxu0
      %v976 = vadd.f32 %v22, %v975
      %v977 = vpop.f32.mrf.mxu0
      %978 = vdwg.mxu0
      %v979 = vmax.f32 %v976, 0.0
      %v980 = vpack.c.bf16 %v979, %v979
      %981 = vmatpush.bf16.msra.mxu0 %v197
      %982 = vmatpush.bf16.msra.mxu0 %v196
      %983 = vmatpush.bf16.msra.mxu0 %v195
      %984 = vmatpush.bf16.msra.mxu0 %v194
      %985 = vmatpush.bf16.msra.mxu0 %v193
      %986 = vmatpush.bf16.msra.mxu0 %v192
      %987 = vmatpush.bf16.msra.mxu0 %v191
      %988 = vmatpush.bf16.msra.mxu0 %v190
      %989 = vmatmul.bf16.gmra.mxu0 %v980
      %v990 = vpop.f32.mrf.mxu0
      %v991 = vadd.f32 %v23, %v990
      %v992 = vpop.f32.mrf.mxu0
      %993 = vdwg.mxu0
      %v994 = vmax.f32 %v991, 0.0
      %v995 = vpack.c.bf16 %v994, %v994
      %996 = vmatpush.bf16.msra.mxu0 %v276
      %997 = vmatpush.bf16.msra.mxu0 %v275
      %998 = vmatpush.bf16.msra.mxu0 %v274
      %999 = vmatpush.bf16.msra.mxu0 %v273
      %1000 = vmatpush.bf16.msra.mxu0 %v272
      %1001 = vmatpush.bf16.msra.mxu0 %v271
      %1002 = vmatpush.bf16.msra.mxu0 %v270
      %1003 = vmatpush.bf16.msra.mxu0 %v269
      %1004 = vmatmul.bf16.gmra.mxu0 %v995
      %v1005 = vpop.f32.mrf.mxu0
      %v1006 = vadd.f32 %v20, %v1005
      %v1007 = vpop.f32.mrf.mxu0
      %1008 = vdwg.mxu0
      %v1009 = vsel %vm26, %v1006, 0.0
      %v1010 = vadd.f32 %v940, %v1009
      %v1011 = vsel %vm26, 0.0, %v1006
      %v1012 = vmul.f32 %v935, 0.33333334
      %v1013 = vsub.f32 %v1010, %v1012
      %v1014 = vmul.f32 %v1013, 0.1
      %v1015 = vadd.f32 %v858, %v1014
      %v1016 = vmul.f32 %v936, 0.33333334
      %v1017 = vsub.f32 %v1011, %v1016
      %v1018 = vmul.f32 %v1017, 0.1
      %v1019 = vadd.f32 %v865, %v1018
      %v1021 = vsel %vm36, %v1015, 0
      %1023 = vmatpush.msra.mxu0 0.0
      %1024 = vmatpush.msra.mxu0 0.0
      %1025 = vmatpush.msra.mxu0 0.0
      %1026 = vmatpush.msra.mxu0 0.0
      %1027 = vmatpush.msra.mxu0 0.0
      %1028 = vmatpush.msra.mxu0 0.0
      %1029 = vmatpush.msra.mxu0 0.0
      %1030 = vmatpush.msra.mxu0 0.0
      %1031 = vmatpush.msra.mxu0 0.0
      %1032 = vmatpush.msra.mxu0 0.0
      %1033 = vmatpush.msra.mxu0 0.0
      %1034 = vmatpush.msra.mxu0 0.0
      %1035 = vmatpush.msra.mxu0 0.0
      %1036 = vmatpush.msra.mxu0 0.0
      %1037 = vmatpush.msra.mxu0 0.0
      %1038 = vmatpush.msra.mxu0 %v35
      %1039 = vmatmul.f32.gmra.mxu0 %v1021
      %v1040 = vpop.f32.mrf.mxu0
      %v1041 = vadd.f32 %v21, %v1040
      %1042 = vdwg.mxu0
      %v1043 = vmax.f32 %v1041, 0.0
      %v1044 = vpack.c.bf16 %v1043, %v1043
      %1045 = vmatpush.bf16.msra.mxu0 %v117
      %1046 = vmatpush.bf16.msra.mxu0 %v116
      %1047 = vmatpush.bf16.msra.mxu0 %v115
      %1048 = vmatpush.bf16.msra.mxu0 %v114
      %1049 = vmatpush.bf16.msra.mxu0 %v113
      %1050 = vmatpush.bf16.msra.mxu0 %v112
      %1051 = vmatpush.bf16.msra.mxu0 %v111
      %1052 = vmatpush.bf16.msra.mxu0 %v110
      %1053 = vmatmul.bf16.gmra.mxu0 %v1044
      %v1054 = vpop.f32.mrf.mxu0
      %v1055 = vadd.f32 %v22, %v1054
      %v1056 = vpop.f32.mrf.mxu0
      %1057 = vdwg.mxu0
      %v1058 = vmax.f32 %v1055, 0.0
      %v1059 = vpack.c.bf16 %v1058, %v1058
      %1060 = vmatpush.bf16.msra.mxu0 %v197
      %1061 = vmatpush.bf16.msra.mxu0 %v196
      %1062 = vmatpush.bf16.msra.mxu0 %v195
      %1063 = vmatpush.bf16.msra.mxu0 %v194
      %1064 = vmatpush.bf16.msra.mxu0 %v193
      %1065 = vmatpush.bf16.msra.mxu0 %v192
      %1066 = vmatpush.bf16.msra.mxu0 %v191
      %1067 = vmatpush.bf16.msra.mxu0 %v190
      %1068 = vmatmul.bf16.gmra.mxu0 %v1059
      %v1069 = vpop.f32.mrf.mxu0
      %v1070 = vadd.f32 %v23, %v1069
      %v1071 = vpop.f32.mrf.mxu0
      %1072 = vdwg.mxu0
      %v1073 = vmax.f32 %v1070, 0.0
      %v1074 = vpack.c.bf16 %v1073, %v1073
      %1075 = vmatpush.bf16.msra.mxu0 %v276
      %1076 = vmatpush.bf16.msra.mxu0 %v275
      %1077 = vmatpush.bf16.msra.mxu0 %v274
      %1078 = vmatpush.bf16.msra.mxu0 %v273
      %1079 = vmatpush.bf16.msra.mxu0 %v272
      %1080 = vmatpush.bf16.msra.mxu0 %v271
      %1081 = vmatpush.bf16.msra.mxu0 %v270
      %1082 = vmatpush.bf16.msra.mxu0 %v269
      %1083 = vmatmul.bf16.gmra.mxu0 %v1074
      %v1084 = vpop.f32.mrf.mxu0
      %v1085 = vadd.f32 %v20, %v1084
      %v1086 = vpop.f32.mrf.mxu0
      %1087 = vdwg.mxu0
      %v1088 = vsel %vm26, %v1085, 0.0
      %v1089 = vadd.f32 %v1019, %v1088
      %v1090 = vsel %vm26, 0.0, %v1085
      %v1091 = vsub.f32 %v935, %v1010
      %v1092 = vadd.f32 %v1091, %v1089
      %v1093 = vmul.f32 %v1092, 0.1
      %v1094 = vadd.f32 %v858, %v1093
      %v1095 = vsub.f32 %v936, %v1011
      %v1096 = vadd.f32 %v1095, %v1090
      %v1097 = vmul.f32 %v1096, 0.1
      %v1098 = vadd.f32 %v865, %v1097
      %v1100 = vsel %vm36, %v1094, 0
      %1102 = vmatpush.msra.mxu0 0.0
      %1103 = vmatpush.msra.mxu0 0.0
      %1104 = vmatpush.msra.mxu0 0.0
      %1105 = vmatpush.msra.mxu0 0.0
      %1106 = vmatpush.msra.mxu0 0.0
      %1107 = vmatpush.msra.mxu0 0.0
      %1108 = vmatpush.msra.mxu0 0.0
      %1109 = vmatpush.msra.mxu0 0.0
      %1110 = vmatpush.msra.mxu0 0.0
      %1111 = vmatpush.msra.mxu0 0.0
      %1112 = vmatpush.msra.mxu0 0.0
      %1113 = vmatpush.msra.mxu0 0.0
      %1114 = vmatpush.msra.mxu0 0.0
      %1115 = vmatpush.msra.mxu0 0.0
      %1116 = vmatpush.msra.mxu0 0.0
      %1117 = vmatpush.msra.mxu0 %v35
      %1118 = vmatmul.f32.gmra.mxu0 %v1100
      %v1119 = vpop.f32.mrf.mxu0
      %v1120 = vadd.f32 %v21, %v1119
      %1121 = vdwg.mxu0
      %v1122 = vmax.f32 %v1120, 0.0
      %v1123 = vpack.c.bf16 %v1122, %v1122
      %1124 = vmatpush.bf16.msra.mxu0 %v117
      %1125 = vmatpush.bf16.msra.mxu0 %v116
      %1126 = vmatpush.bf16.msra.mxu0 %v115
      %1127 = vmatpush.bf16.msra.mxu0 %v114
      %1128 = vmatpush.bf16.msra.mxu0 %v113
      %1129 = vmatpush.bf16.msra.mxu0 %v112
      %1130 = vmatpush.bf16.msra.mxu0 %v111
      %1131 = vmatpush.bf16.msra.mxu0 %v110
      %1132 = vmatmul.bf16.gmra.mxu0 %v1123
      %v1133 = vpop.f32.mrf.mxu0
      %v1134 = vadd.f32 %v22, %v1133
      %v1135 = vpop.f32.mrf.mxu0
      %1136 = vdwg.mxu0
      %v1137 = vmax.f32 %v1134, 0.0
      %v1138 = vpack.c.bf16 %v1137, %v1137
      %1139 = vmatpush.bf16.msra.mxu0 %v197
      %1140 = vmatpush.bf16.msra.mxu0 %v196
      %1141 = vmatpush.bf16.msra.mxu0 %v195
      %1142 = vmatpush.bf16.msra.mxu0 %v194
      %1143 = vmatpush.bf16.msra.mxu0 %v193
      %1144 = vmatpush.bf16.msra.mxu0 %v192
      %1145 = vmatpush.bf16.msra.mxu0 %v191
      %1146 = vmatpush.bf16.msra.mxu0 %v190
      %1147 = vmatmul.bf16.gmra.mxu0 %v1138
      %v1148 = vpop.f32.mrf.mxu0
      %v1149 = vadd.f32 %v23, %v1148
      %v1150 = vpop.f32.mrf.mxu0
      %1151 = vdwg.mxu0
      %v1152 = vmax.f32 %v1149, 0.0
      %v1153 = vpack.c.bf16 %v1152, %v1152
      %1154 = vmatpush.bf16.msra.mxu0 %v276
      %1155 = vmatpush.bf16.msra.mxu0 %v275
      %1156 = vmatpush.bf16.msra.mxu0 %v274
      %1157 = vmatpush.bf16.msra.mxu0 %v273
      %1158 = vmatpush.bf16.msra.mxu0 %v272
      %1159 = vmatpush.bf16.msra.mxu0 %v271
      %1160 = vmatpush.bf16.msra.mxu0 %v270
      %1161 = vmatpush.bf16.msra.mxu0 %v269
      %1162 = vmatmul.bf16.gmra.mxu0 %v1153
      %v1163 = vpop.f32.mrf.mxu0
      %v1164 = vadd.f32 %v20, %v1163
      %v1165 = vpop.f32.mrf.mxu0
      %1166 = vdwg.mxu0
      %v1167 = vsel %vm26, %v1164, 0.0
      %v1168 = vadd.f32 %v1098, %v1167
      %v1169 = vsel %vm26, 0.0, %v1164
      %v1170 = vadd.f32 %v1010, %v1089
      %v1171 = vmul.f32 %v1170, 3.0
      %v1172 = vadd.f32 %v935, %v1171
      %v1173 = vadd.f32 %v1172, %v1168
      %v1174 = vmul.f32 %v1173, 0.1
      %v1175 = vmul.f32 %v1174, 0.125
      %v1176 = vadd.f32 %v858, %v1175
      %v1177 = vadd.f32 %v1011, %v1090
      %v1178 = vmul.f32 %v1177, 3.0
      %v1179 = vadd.f32 %v936, %v1178
      %v1180 = vadd.f32 %v1179, %v1169
      %v1181 = vmul.f32 %v1180, 0.1
      %v1182 = vmul.f32 %v1181, 0.125
      %v1183 = vadd.f32 %v865, %v1182
      %v1185 = vsel %vm36, %v1176, 0
      %1187 = vmatpush.msra.mxu0 0.0
      %1188 = vmatpush.msra.mxu0 0.0
      %1189 = vmatpush.msra.mxu0 0.0
      %1190 = vmatpush.msra.mxu0 0.0
      %1191 = vmatpush.msra.mxu0 0.0
      %1192 = vmatpush.msra.mxu0 0.0
      %1193 = vmatpush.msra.mxu0 0.0
      %1194 = vmatpush.msra.mxu0 0.0
      %1195 = vmatpush.msra.mxu0 0.0
      %1196 = vmatpush.msra.mxu0 0.0
      %1197 = vmatpush.msra.mxu0 0.0
      %1198 = vmatpush.msra.mxu0 0.0
      %1199 = vmatpush.msra.mxu0 0.0
      %1200 = vmatpush.msra.mxu0 0.0
      %1201 = vmatpush.msra.mxu0 0.0
      %1202 = vmatpush.msra.mxu0 %v35
      %1203 = vmatmul.f32.gmra.mxu0 %v1185
      %v1204 = vpop.f32.mrf.mxu0
      %v1205 = vadd.f32 %v21, %v1204
      %1206 = vdwg.mxu0
      %v1207 = vmax.f32 %v1205, 0.0
      %v1208 = vpack.c.bf16 %v1207, %v1207
      %1209 = vmatpush.bf16.msra.mxu0 %v117
      %1210 = vmatpush.bf16.msra.mxu0 %v116
      %1211 = vmatpush.bf16.msra.mxu0 %v115
      %1212 = vmatpush.bf16.msra.mxu0 %v114
      %1213 = vmatpush.bf16.msra.mxu0 %v113
      %1214 = vmatpush.bf16.msra.mxu0 %v112
      %1215 = vmatpush.bf16.msra.mxu0 %v111
      %1216 = vmatpush.bf16.msra.mxu0 %v110
      %1217 = vmatmul.bf16.gmra.mxu0 %v1208
      %v1218 = vpop.f32.mrf.mxu0
      %v1219 = vadd.f32 %v22, %v1218
      %v1220 = vpop.f32.mrf.mxu0
      %1221 = vdwg.mxu0
      %v1222 = vmax.f32 %v1219, 0.0
      %v1223 = vpack.c.bf16 %v1222, %v1222
      %1224 = vmatpush.bf16.msra.mxu0 %v197
      %1225 = vmatpush.bf16.msra.mxu0 %v196
      %1226 = vmatpush.bf16.msra.mxu0 %v195
      %1227 = vmatpush.bf16.msra.mxu0 %v194
      %1228 = vmatpush.bf16.msra.mxu0 %v193
      %1229 = vmatpush.bf16.msra.mxu0 %v192
      %1230 = vmatpush.bf16.msra.mxu0 %v191
      %1231 = vmatpush.bf16.msra.mxu0 %v190
      %1232 = vmatmul.bf16.gmra.mxu0 %v1223
      %v1233 = vpop.f32.mrf.mxu0
      %v1234 = vadd.f32 %v23, %v1233
      %v1235 = vpop.f32.mrf.mxu0
      %1236 = vdwg.mxu0
      %v1237 = vmax.f32 %v1234, 0.0
      %v1238 = vpack.c.bf16 %v1237, %v1237
      %1239 = vmatpush.bf16.msra.mxu0 %v276
      %1240 = vmatpush.bf16.msra.mxu0 %v275
      %1241 = vmatpush.bf16.msra.mxu0 %v274
      %1242 = vmatpush.bf16.msra.mxu0 %v273
      %1243 = vmatpush.bf16.msra.mxu0 %v272
      %1244 = vmatpush.bf16.msra.mxu0 %v271
      %1245 = vmatpush.bf16.msra.mxu0 %v270
      %1246 = vmatpush.bf16.msra.mxu0 %v269
      %1247 = vmatmul.bf16.gmra.mxu0 %v1238
      %v1248 = vpop.f32.mrf.mxu0
      %v1249 = vadd.f32 %v20, %v1248
      %v1250 = vpop.f32.mrf.mxu0
      %1251 = vdwg.mxu0
      %v1252 = vsel %vm26, %v1249, 0.0
      %v1253 = vadd.f32 %v1183, %v1252
      %v1254 = vsel %vm26, 0.0, %v1249
      %v1255 = vmul.f32 %v1253, 0.033333335
      %v1256 = vadd.f32 %v1176, %v1255
      %v1257 = vmul.f32 %v1254, 0.033333335
      %v1258 = vadd.f32 %v1183, %v1257
      %v1260 = vsel %vm36, %v1256, 0
      %1262 = vmatpush.msra.mxu0 0.0
      %1263 = vmatpush.msra.mxu0 0.0
      %1264 = vmatpush.msra.mxu0 0.0
      %1265 = vmatpush.msra.mxu0 0.0
      %1266 = vmatpush.msra.mxu0 0.0
      %1267 = vmatpush.msra.mxu0 0.0
      %1268 = vmatpush.msra.mxu0 0.0
      %1269 = vmatpush.msra.mxu0 0.0
      %1270 = vmatpush.msra.mxu0 0.0
      %1271 = vmatpush.msra.mxu0 0.0
      %1272 = vmatpush.msra.mxu0 0.0
      %1273 = vmatpush.msra.mxu0 0.0
      %1274 = vmatpush.msra.mxu0 0.0
      %1275 = vmatpush.msra.mxu0 0.0
      %1276 = vmatpush.msra.mxu0 0.0
      %1277 = vmatpush.msra.mxu0 %v35
      %1278 = vmatmul.f32.gmra.mxu0 %v1260
      %v1279 = vpop.f32.mrf.mxu0
      %v1280 = vadd.f32 %v21, %v1279
      %1281 = vdwg.mxu0
      %v1282 = vmax.f32 %v1280, 0.0
      %v1283 = vpack.c.bf16 %v1282, %v1282
      %1284 = vmatpush.bf16.msra.mxu0 %v117
      %1285 = vmatpush.bf16.msra.mxu0 %v116
      %1286 = vmatpush.bf16.msra.mxu0 %v115
      %1287 = vmatpush.bf16.msra.mxu0 %v114
      %1288 = vmatpush.bf16.msra.mxu0 %v113
      %1289 = vmatpush.bf16.msra.mxu0 %v112
      %1290 = vmatpush.bf16.msra.mxu0 %v111
      %1291 = vmatpush.bf16.msra.mxu0 %v110
      %1292 = vmatmul.bf16.gmra.mxu0 %v1283
      %v1293 = vpop.f32.mrf.mxu0
      %v1294 = vadd.f32 %v22, %v1293
      %v1295 = vpop.f32.mrf.mxu0
      %1296 = vdwg.mxu0
      %v1297 = vmax.f32 %v1294, 0.0
      %v1298 = vpack.c.bf16 %v1297, %v1297
      %1299 = vmatpush.bf16.msra.mxu0 %v197
      %1300 = vmatpush.bf16.msra.mxu0 %v196
      %1301 = vmatpush.bf16.msra.mxu0 %v195
      %1302 = vmatpush.bf16.msra.mxu0 %v194
      %1303 = vmatpush.bf16.msra.mxu0 %v193
      %1304 = vmatpush.bf16.msra.mxu0 %v192
      %1305 = vmatpush.bf16.msra.mxu0 %v191
      %1306 = vmatpush.bf16.msra.mxu0 %v190
      %1307 = vmatmul.bf16.gmra.mxu0 %v1298
      %v1308 = vpop.f32.mrf.mxu0
      %v1309 = vadd.f32 %v23, %v1308
      %v1310 = vpop.f32.mrf.mxu0
      %1311 = vdwg.mxu0
      %v1312 = vmax.f32 %v1309, 0.0
      %v1313 = vpack.c.bf16 %v1312, %v1312
      %1314 = vmatpush.bf16.msra.mxu0 %v276
      %1315 = vmatpush.bf16.msra.mxu0 %v275
      %1316 = vmatpush.bf16.msra.mxu0 %v274
      %1317 = vmatpush.bf16.msra.mxu0 %v273
      %1318 = vmatpush.bf16.msra.mxu0 %v272
      %1319 = vmatpush.bf16.msra.mxu0 %v271
      %1320 = vmatpush.bf16.msra.mxu0 %v270
      %1321 = vmatpush.bf16.msra.mxu0 %v269
      %1322 = vmatmul.bf16.gmra.mxu0 %v1313
      %v1323 = vpop.f32.mrf.mxu0
      %v1324 = vadd.f32 %v20, %v1323
      %v1325 = vpop.f32.mrf.mxu0
      %1326 = vdwg.mxu0
      %v1327 = vsel %vm26, %v1324, 0.0
      %v1328 = vadd.f32 %v1258, %v1327
      %v1329 = vsel %vm26, 0.0, %v1324
      %v1330 = vmul.f32 %v1253, 0.33333334
      %v1331 = vsub.f32 %v1328, %v1330
      %v1332 = vmul.f32 %v1331, 0.1
      %v1333 = vadd.f32 %v1176, %v1332
      %v1334 = vmul.f32 %v1254, 0.33333334
      %v1335 = vsub.f32 %v1329, %v1334
      %v1336 = vmul.f32 %v1335, 0.1
      %v1337 = vadd.f32 %v1183, %v1336
      %v1339 = vsel %vm36, %v1333, 0
      %1341 = vmatpush.msra.mxu0 0.0
      %1342 = vmatpush.msra.mxu0 0.0
      %1343 = vmatpush.msra.mxu0 0.0
      %1344 = vmatpush.msra.mxu0 0.0
      %1345 = vmatpush.msra.mxu0 0.0
      %1346 = vmatpush.msra.mxu0 0.0
      %1347 = vmatpush.msra.mxu0 0.0
      %1348 = vmatpush.msra.mxu0 0.0
      %1349 = vmatpush.msra.mxu0 0.0
      %1350 = vmatpush.msra.mxu0 0.0
      %1351 = vmatpush.msra.mxu0 0.0
      %1352 = vmatpush.msra.mxu0 0.0
      %1353 = vmatpush.msra.mxu0 0.0
      %1354 = vmatpush.msra.mxu0 0.0
      %1355 = vmatpush.msra.mxu0 0.0
      %1356 = vmatpush.msra.mxu0 %v35
      %1357 = vmatmul.f32.gmra.mxu0 %v1339
      %v1358 = vpop.f32.mrf.mxu0
      %v1359 = vadd.f32 %v21, %v1358
      %1360 = vdwg.mxu0
      %v1361 = vmax.f32 %v1359, 0.0
      %v1362 = vpack.c.bf16 %v1361, %v1361
      %1363 = vmatpush.bf16.msra.mxu0 %v117
      %1364 = vmatpush.bf16.msra.mxu0 %v116
      %1365 = vmatpush.bf16.msra.mxu0 %v115
      %1366 = vmatpush.bf16.msra.mxu0 %v114
      %1367 = vmatpush.bf16.msra.mxu0 %v113
      %1368 = vmatpush.bf16.msra.mxu0 %v112
      %1369 = vmatpush.bf16.msra.mxu0 %v111
      %1370 = vmatpush.bf16.msra.mxu0 %v110
      %1371 = vmatmul.bf16.gmra.mxu0 %v1362
      %v1372 = vpop.f32.mrf.mxu0
      %v1373 = vadd.f32 %v22, %v1372
      %v1374 = vpop.f32.mrf.mxu0
      %1375 = vdwg.mxu0
      %v1376 = vmax.f32 %v1373, 0.0
      %v1377 = vpack.c.bf16 %v1376, %v1376
      %1378 = vmatpush.bf16.msra.mxu0 %v197
      %1379 = vmatpush.bf16.msra.mxu0 %v196
      %1380 = vmatpush.bf16.msra.mxu0 %v195
      %1381 = vmatpush.bf16.msra.mxu0 %v194
      %1382 = vmatpush.bf16.msra.mxu0 %v193
      %1383 = vmatpush.bf16.msra.mxu0 %v192
      %1384 = vmatpush.bf16.msra.mxu0 %v191
      %1385 = vmatpush.bf16.msra.mxu0 %v190
      %1386 = vmatmul.bf16.gmra.mxu0 %v1377
      %v1387 = vpop.f32.mrf.mxu0
      %v1388 = vadd.f32 %v23, %v1387
      %v1389 = vpop.f32.mrf.mxu0
      %1390 = vdwg.mxu0
      %v1391 = vmax.f32 %v1388, 0.0
      %v1392 = vpack.c.bf16 %v1391, %v1391
      %1393 = vmatpush.bf16.msra.mxu0 %v276
      %1394 = vmatpush.bf16.msra.mxu0 %v275
      %1395 = vmatpush.bf16.msra.mxu0 %v274
      %1396 = vmatpush.bf16.msra.mxu0 %v273
      %1397 = vmatpush.bf16.msra.mxu0 %v272
      %1398 = vmatpush.bf16.msra.mxu0 %v271
      %1399 = vmatpush.bf16.msra.mxu0 %v270
      %1400 = vmatpush.bf16.msra.mxu0 %v269
      %1401 = vmatmul.bf16.gmra.mxu0 %v1392
      %v1402 = vpop.f32.mrf.mxu0
      %v1403 = vadd.f32 %v20, %v1402
      %v1404 = vpop.f32.mrf.mxu0
      %1405 = vdwg.mxu0
      %v1406 = vsel %vm26, %v1403, 0.0
      %v1407 = vadd.f32 %v1337, %v1406
      %v1408 = vsel %vm26, 0.0, %v1403
      %v1409 = vsub.f32 %v1253, %v1328
      %v1410 = vadd.f32 %v1409, %v1407
      %v1411 = vmul.f32 %v1410, 0.1
      %v1412 = vadd.f32 %v1176, %v1411
      %v1413 = vsub.f32 %v1254, %v1329
      %v1414 = vadd.f32 %v1413, %v1408
      %v1415 = vmul.f32 %v1414, 0.1
      %v1416 = vadd.f32 %v1183, %v1415
      %v1418 = vsel %vm36, %v1412, 0
      %1420 = vmatpush.msra.mxu0 0.0
      %1421 = vmatpush.msra.mxu0 0.0
      %1422 = vmatpush.msra.mxu0 0.0
      %1423 = vmatpush.msra.mxu0 0.0
      %1424 = vmatpush.msra.mxu0 0.0
      %1425 = vmatpush.msra.mxu0 0.0
      %1426 = vmatpush.msra.mxu0 0.0
      %1427 = vmatpush.msra.mxu0 0.0
      %1428 = vmatpush.msra.mxu0 0.0
      %1429 = vmatpush.msra.mxu0 0.0
      %1430 = vmatpush.msra.mxu0 0.0
      %1431 = vmatpush.msra.mxu0 0.0
      %1432 = vmatpush.msra.mxu0 0.0
      %1433 = vmatpush.msra.mxu0 0.0
      %1434 = vmatpush.msra.mxu0 0.0
      %1435 = vmatpush.msra.mxu0 %v35
      %1436 = vmatmul.f32.gmra.mxu0 %v1418
      %v1437 = vpop.f32.mrf.mxu0
      %v1438 = vadd.f32 %v21, %v1437
      %1439 = vdwg.mxu0
      %v1440 = vmax.f32 %v1438, 0.0
      %v1441 = vpack.c.bf16 %v1440, %v1440
      %1442 = vmatpush.bf16.msra.mxu0 %v117
      %1443 = vmatpush.bf16.msra.mxu0 %v116
      %1444 = vmatpush.bf16.msra.mxu0 %v115
      %1445 = vmatpush.bf16.msra.mxu0 %v114
      %1446 = vmatpush.bf16.msra.mxu0 %v113
      %1447 = vmatpush.bf16.msra.mxu0 %v112
      %1448 = vmatpush.bf16.msra.mxu0 %v111
      %1449 = vmatpush.bf16.msra.mxu0 %v110
      %1450 = vmatmul.bf16.gmra.mxu0 %v1441
      %v1451 = vpop.f32.mrf.mxu0
      %v1452 = vadd.f32 %v22, %v1451
      %v1453 = vpop.f32.mrf.mxu0
      %1454 = vdwg.mxu0
      %v1455 = vmax.f32 %v1452, 0.0
      %v1456 = vpack.c.bf16 %v1455, %v1455
      %1457 = vmatpush.bf16.msra.mxu0 %v197
      %1458 = vmatpush.bf16.msra.mxu0 %v196
      %1459 = vmatpush.bf16.msra.mxu0 %v195
      %1460 = vmatpush.bf16.msra.mxu0 %v194
      %1461 = vmatpush.bf16.msra.mxu0 %v193
      %1462 = vmatpush.bf16.msra.mxu0 %v192
      %1463 = vmatpush.bf16.msra.mxu0 %v191
      %1464 = vmatpush.bf16.msra.mxu0 %v190
      %1465 = vmatmul.bf16.gmra.mxu0 %v1456
      %v1466 = vpop.f32.mrf.mxu0
      %v1467 = vadd.f32 %v23, %v1466
      %v1468 = vpop.f32.mrf.mxu0
      %1469 = vdwg.mxu0
      %v1470 = vmax.f32 %v1467, 0.0
      %v1471 = vpack.c.bf16 %v1470, %v1470
      %1472 = vmatpush.bf16.msra.mxu0 %v276
      %1473 = vmatpush.bf16.msra.mxu0 %v275
      %1474 = vmatpush.bf16.msra.mxu0 %v274
      %1475 = vmatpush.bf16.msra.mxu0 %v273
      %1476 = vmatpush.bf16.msra.mxu0 %v272
      %1477 = vmatpush.bf16.msra.mxu0 %v271
      %1478 = vmatpush.bf16.msra.mxu0 %v270
      %1479 = vmatpush.bf16.msra.mxu0 %v269
      %1480 = vmatmul.bf16.gmra.mxu0 %v1471
      %v1481 = vpop.f32.mrf.mxu0
      %v1482 = vadd.f32 %v20, %v1481
      %v1483 = vpop.f32.mrf.mxu0
      %1484 = vdwg.mxu0
      %v1485 = vsel %vm26, %v1482, 0.0
      %v1486 = vadd.f32 %v1416, %v1485
      %v1487 = vsel %vm26, 0.0, %v1482
      %v1488 = vadd.f32 %v1328, %v1407
      %v1489 = vmul.f32 %v1488, 3.0
      %v1490 = vadd.f32 %v1253, %v1489
      %v1491 = vadd.f32 %v1490, %v1486
      %v1492 = vmul.f32 %v1491, 0.1
      %v1493 = vmul.f32 %v1492, 0.125
      %v1494 = vadd.f32 %v1176, %v1493
      %v1495 = vadd.f32 %v1329, %v1408
      %v1496 = vmul.f32 %v1495, 3.0
      %v1497 = vadd.f32 %v1254, %v1496
      %v1498 = vadd.f32 %v1497, %v1487
      %v1499 = vmul.f32 %v1498, 0.1
      %v1500 = vmul.f32 %v1499, 0.125
      %v1501 = vadd.f32 %v1183, %v1500
      %v1503 = vsel %vm36, %v1494, 0
      %1505 = vmatpush.msra.mxu0 0.0
      %1506 = vmatpush.msra.mxu0 0.0
      %1507 = vmatpush.msra.mxu0 0.0
      %1508 = vmatpush.msra.mxu0 0.0
      %1509 = vmatpush.msra.mxu0 0.0
      %1510 = vmatpush.msra.mxu0 0.0
      %1511 = vmatpush.msra.mxu0 0.0
      %1512 = vmatpush.msra.mxu0 0.0
      %1513 = vmatpush.msra.mxu0 0.0
      %1514 = vmatpush.msra.mxu0 0.0
      %1515 = vmatpush.msra.mxu0 0.0
      %1516 = vmatpush.msra.mxu0 0.0
      %1517 = vmatpush.msra.mxu0 0.0
      %1518 = vmatpush.msra.mxu0 0.0
      %1519 = vmatpush.msra.mxu0 0.0
      %1520 = vmatpush.msra.mxu0 %v35
      %1521 = vmatmul.f32.gmra.mxu0 %v1503
      %v1522 = vpop.f32.mrf.mxu0
      %v1523 = vadd.f32 %v21, %v1522
      %1524 = vdwg.mxu0
      %v1525 = vmax.f32 %v1523, 0.0
      %v1526 = vpack.c.bf16 %v1525, %v1525
      %1527 = vmatpush.bf16.msra.mxu0 %v117
      %1528 = vmatpush.bf16.msra.mxu0 %v116
      %1529 = vmatpush.bf16.msra.mxu0 %v115
      %1530 = vmatpush.bf16.msra.mxu0 %v114
      %1531 = vmatpush.bf16.msra.mxu0 %v113
      %1532 = vmatpush.bf16.msra.mxu0 %v112
      %1533 = vmatpush.bf16.msra.mxu0 %v111
      %1534 = vmatpush.bf16.msra.mxu0 %v110
      %1535 = vmatmul.bf16.gmra.mxu0 %v1526
      %v1536 = vpop.f32.mrf.mxu0
      %v1537 = vadd.f32 %v22, %v1536
      %v1538 = vpop.f32.mrf.mxu0
      %1539 = vdwg.mxu0
      %v1540 = vmax.f32 %v1537, 0.0
      %v1541 = vpack.c.bf16 %v1540, %v1540
      %1542 = vmatpush.bf16.msra.mxu0 %v197
      %1543 = vmatpush.bf16.msra.mxu0 %v196
      %1544 = vmatpush.bf16.msra.mxu0 %v195
      %1545 = vmatpush.bf16.msra.mxu0 %v194
      %1546 = vmatpush.bf16.msra.mxu0 %v193
      %1547 = vmatpush.bf16.msra.mxu0 %v192
      %1548 = vmatpush.bf16.msra.mxu0 %v191
      %1549 = vmatpush.bf16.msra.mxu0 %v190
      %1550 = vmatmul.bf16.gmra.mxu0 %v1541
      %v1551 = vpop.f32.mrf.mxu0
      %v1552 = vadd.f32 %v23, %v1551
      %v1553 = vpop.f32.mrf.mxu0
      %1554 = vdwg.mxu0
      %v1555 = vmax.f32 %v1552, 0.0
      %v1556 = vpack.c.bf16 %v1555, %v1555
      %1557 = vmatpush.bf16.msra.mxu0 %v276
      %1558 = vmatpush.bf16.msra.mxu0 %v275
      %1559 = vmatpush.bf16.msra.mxu0 %v274
      %1560 = vmatpush.bf16.msra.mxu0 %v273
      %1561 = vmatpush.bf16.msra.mxu0 %v272
      %1562 = vmatpush.bf16.msra.mxu0 %v271
      %1563 = vmatpush.bf16.msra.mxu0 %v270
      %1564 = vmatpush.bf16.msra.mxu0 %v269
      %1565 = vmatmul.bf16.gmra.mxu0 %v1556
      %v1566 = vpop.f32.mrf.mxu0
      %v1567 = vadd.f32 %v20, %v1566
      %v1568 = vpop.f32.mrf.mxu0
      %1569 = vdwg.mxu0
      %v1570 = vsel %vm26, %v1567, 0.0
      %v1571 = vadd.f32 %v1501, %v1570
      %v1572 = vsel %vm26, 0.0, %v1567
      %v1573 = vmul.f32 %v1571, 0.033333335
      %v1574 = vadd.f32 %v1494, %v1573
      %v1575 = vmul.f32 %v1572, 0.033333335
      %v1576 = vadd.f32 %v1501, %v1575
      %v1578 = vsel %vm36, %v1574, 0
      %1580 = vmatpush.msra.mxu0 0.0
      %1581 = vmatpush.msra.mxu0 0.0
      %1582 = vmatpush.msra.mxu0 0.0
      %1583 = vmatpush.msra.mxu0 0.0
      %1584 = vmatpush.msra.mxu0 0.0
      %1585 = vmatpush.msra.mxu0 0.0
      %1586 = vmatpush.msra.mxu0 0.0
      %1587 = vmatpush.msra.mxu0 0.0
      %1588 = vmatpush.msra.mxu0 0.0
      %1589 = vmatpush.msra.mxu0 0.0
      %1590 = vmatpush.msra.mxu0 0.0
      %1591 = vmatpush.msra.mxu0 0.0
      %1592 = vmatpush.msra.mxu0 0.0
      %1593 = vmatpush.msra.mxu0 0.0
      %1594 = vmatpush.msra.mxu0 0.0
      %1595 = vmatpush.msra.mxu0 %v35
      %1596 = vmatmul.f32.gmra.mxu0 %v1578
      %v1597 = vpop.f32.mrf.mxu0
      %v1598 = vadd.f32 %v21, %v1597
      %1599 = vdwg.mxu0
      %v1600 = vmax.f32 %v1598, 0.0
      %v1601 = vpack.c.bf16 %v1600, %v1600
      %1602 = vmatpush.bf16.msra.mxu0 %v117
      %1603 = vmatpush.bf16.msra.mxu0 %v116
      %1604 = vmatpush.bf16.msra.mxu0 %v115
      %1605 = vmatpush.bf16.msra.mxu0 %v114
      %1606 = vmatpush.bf16.msra.mxu0 %v113
      %1607 = vmatpush.bf16.msra.mxu0 %v112
      %1608 = vmatpush.bf16.msra.mxu0 %v111
      %1609 = vmatpush.bf16.msra.mxu0 %v110
      %1610 = vmatmul.bf16.gmra.mxu0 %v1601
      %v1611 = vpop.f32.mrf.mxu0
      %v1612 = vadd.f32 %v22, %v1611
      %v1613 = vpop.f32.mrf.mxu0
      %1614 = vdwg.mxu0
      %v1615 = vmax.f32 %v1612, 0.0
      %v1616 = vpack.c.bf16 %v1615, %v1615
      %1617 = vmatpush.bf16.msra.mxu0 %v197
      %1618 = vmatpush.bf16.msra.mxu0 %v196
      %1619 = vmatpush.bf16.msra.mxu0 %v195
      %1620 = vmatpush.bf16.msra.mxu0 %v194
      %1621 = vmatpush.bf16.msra.mxu0 %v193
      %1622 = vmatpush.bf16.msra.mxu0 %v192
      %1623 = vmatpush.bf16.msra.mxu0 %v191
      %1624 = vmatpush.bf16.msra.mxu0 %v190
      %1625 = vmatmul.bf16.gmra.mxu0 %v1616
      %v1626 = vpop.f32.mrf.mxu0
      %v1627 = vadd.f32 %v23, %v1626
      %v1628 = vpop.f32.mrf.mxu0
      %1629 = vdwg.mxu0
      %v1630 = vmax.f32 %v1627, 0.0
      %v1631 = vpack.c.bf16 %v1630, %v1630
      %1632 = vmatpush.bf16.msra.mxu0 %v276
      %1633 = vmatpush.bf16.msra.mxu0 %v275
      %1634 = vmatpush.bf16.msra.mxu0 %v274
      %1635 = vmatpush.bf16.msra.mxu0 %v273
      %1636 = vmatpush.bf16.msra.mxu0 %v272
      %1637 = vmatpush.bf16.msra.mxu0 %v271
      %1638 = vmatpush.bf16.msra.mxu0 %v270
      %1639 = vmatpush.bf16.msra.mxu0 %v269
      %1640 = vmatmul.bf16.gmra.mxu0 %v1631
      %v1641 = vpop.f32.mrf.mxu0
      %v1642 = vadd.f32 %v20, %v1641
      %v1643 = vpop.f32.mrf.mxu0
      %1644 = vdwg.mxu0
      %v1645 = vsel %vm26, %v1642, 0.0
      %v1646 = vadd.f32 %v1576, %v1645
      %v1647 = vsel %vm26, 0.0, %v1642
      %v1648 = vmul.f32 %v1571, 0.33333334
      %v1649 = vsub.f32 %v1646, %v1648
      %v1650 = vmul.f32 %v1649, 0.1
      %v1651 = vadd.f32 %v1494, %v1650
      %v1652 = vmul.f32 %v1572, 0.33333334
      %v1653 = vsub.f32 %v1647, %v1652
      %v1654 = vmul.f32 %v1653, 0.1
      %v1655 = vadd.f32 %v1501, %v1654
      %v1657 = vsel %vm36, %v1651, 0
      %1659 = vmatpush.msra.mxu0 0.0
      %1660 = vmatpush.msra.mxu0 0.0
      %1661 = vmatpush.msra.mxu0 0.0
      %1662 = vmatpush.msra.mxu0 0.0
      %1663 = vmatpush.msra.mxu0 0.0
      %1664 = vmatpush.msra.mxu0 0.0
      %1665 = vmatpush.msra.mxu0 0.0
      %1666 = vmatpush.msra.mxu0 0.0
      %1667 = vmatpush.msra.mxu0 0.0
      %1668 = vmatpush.msra.mxu0 0.0
      %1669 = vmatpush.msra.mxu0 0.0
      %1670 = vmatpush.msra.mxu0 0.0
      %1671 = vmatpush.msra.mxu0 0.0
      %1672 = vmatpush.msra.mxu0 0.0
      %1673 = vmatpush.msra.mxu0 0.0
      %1674 = vmatpush.msra.mxu0 %v35
      %1675 = vmatmul.f32.gmra.mxu0 %v1657
      %v1676 = vpop.f32.mrf.mxu0
      %v1677 = vadd.f32 %v21, %v1676
      %1678 = vdwg.mxu0
      %v1679 = vmax.f32 %v1677, 0.0
      %v1680 = vpack.c.bf16 %v1679, %v1679
      %1681 = vmatpush.bf16.msra.mxu0 %v117
      %1682 = vmatpush.bf16.msra.mxu0 %v116
      %1683 = vmatpush.bf16.msra.mxu0 %v115
      %1684 = vmatpush.bf16.msra.mxu0 %v114
      %1685 = vmatpush.bf16.msra.mxu0 %v113
      %1686 = vmatpush.bf16.msra.mxu0 %v112
      %1687 = vmatpush.bf16.msra.mxu0 %v111
      %1688 = vmatpush.bf16.msra.mxu0 %v110
      %1689 = vmatmul.bf16.gmra.mxu0 %v1680
      %v1690 = vpop.f32.mrf.mxu0
      %v1691 = vadd.f32 %v22, %v1690
      %v1692 = vpop.f32.mrf.mxu0
      %1693 = vdwg.mxu0
      %v1694 = vmax.f32 %v1691, 0.0
      %v1695 = vpack.c.bf16 %v1694, %v1694
      %1696 = vmatpush.bf16.msra.mxu0 %v197
      %1697 = vmatpush.bf16.msra.mxu0 %v196
      %1698 = vmatpush.bf16.msra.mxu0 %v195
      %1699 = vmatpush.bf16.msra.mxu0 %v194
      %1700 = vmatpush.bf16.msra.mxu0 %v193
      %1701 = vmatpush.bf16.msra.mxu0 %v192
      %1702 = vmatpush.bf16.msra.mxu0 %v191
      %1703 = vmatpush.bf16.msra.mxu0 %v190
      %1704 = vmatmul.bf16.gmra.mxu0 %v1695
      %v1705 = vpop.f32.mrf.mxu0
      %v1706 = vadd.f32 %v23, %v1705
      %v1707 = vpop.f32.mrf.mxu0
      %1708 = vdwg.mxu0
      %v1709 = vmax.f32 %v1706, 0.0
      %v1710 = vpack.c.bf16 %v1709, %v1709
      %1711 = vmatpush.bf16.msra.mxu0 %v276
      %1712 = vmatpush.bf16.msra.mxu0 %v275
      %1713 = vmatpush.bf16.msra.mxu0 %v274
      %1714 = vmatpush.bf16.msra.mxu0 %v273
      %1715 = vmatpush.bf16.msra.mxu0 %v272
      %1716 = vmatpush.bf16.msra.mxu0 %v271
      %1717 = vmatpush.bf16.msra.mxu0 %v270
      %1718 = vmatpush.bf16.msra.mxu0 %v269
      %1719 = vmatmul.bf16.gmra.mxu0 %v1710
      %v1720 = vpop.f32.mrf.mxu0
      %v1721 = vadd.f32 %v20, %v1720
      %v1722 = vpop.f32.mrf.mxu0
      %1723 = vdwg.mxu0
      %v1724 = vsel %vm26, %v1721, 0.0
      %v1725 = vadd.f32 %v1655, %v1724
      %v1726 = vsel %vm26, 0.0, %v1721
      %v1727 = vsub.f32 %v1571, %v1646
      %v1728 = vadd.f32 %v1727, %v1725
      %v1729 = vmul.f32 %v1728, 0.1
      %v1730 = vadd.f32 %v1494, %v1729
      %v1731 = vsub.f32 %v1572, %v1647
      %v1732 = vadd.f32 %v1731, %v1726
      %v1733 = vmul.f32 %v1732, 0.1
      %v1734 = vadd.f32 %v1501, %v1733
      %v1736 = vsel %vm36, %v1730, 0
      %1738 = vmatpush.msra.mxu0 0.0
      %1739 = vmatpush.msra.mxu0 0.0
      %1740 = vmatpush.msra.mxu0 0.0
      %1741 = vmatpush.msra.mxu0 0.0
      %1742 = vmatpush.msra.mxu0 0.0
      %1743 = vmatpush.msra.mxu0 0.0
      %1744 = vmatpush.msra.mxu0 0.0
      %1745 = vmatpush.msra.mxu0 0.0
      %1746 = vmatpush.msra.mxu0 0.0
      %1747 = vmatpush.msra.mxu0 0.0
      %1748 = vmatpush.msra.mxu0 0.0
      %1749 = vmatpush.msra.mxu0 0.0
      %1750 = vmatpush.msra.mxu0 0.0
      %1751 = vmatpush.msra.mxu0 0.0
      %1752 = vmatpush.msra.mxu0 0.0
      %1753 = vmatpush.msra.mxu0 %v35
      %1754 = vmatmul.f32.gmra.mxu0 %v1736
      %v1755 = vpop.f32.mrf.mxu0
      %v1756 = vadd.f32 %v21, %v1755
      %1757 = vdwg.mxu0
      %v1758 = vmax.f32 %v1756, 0.0
      %v1759 = vpack.c.bf16 %v1758, %v1758
      %1760 = vmatpush.bf16.msra.mxu0 %v117
      %1761 = vmatpush.bf16.msra.mxu0 %v116
      %1762 = vmatpush.bf16.msra.mxu0 %v115
      %1763 = vmatpush.bf16.msra.mxu0 %v114
      %1764 = vmatpush.bf16.msra.mxu0 %v113
      %1765 = vmatpush.bf16.msra.mxu0 %v112
      %1766 = vmatpush.bf16.msra.mxu0 %v111
      %1767 = vmatpush.bf16.msra.mxu0 %v110
      %1768 = vmatmul.bf16.gmra.mxu0 %v1759
      %v1769 = vpop.f32.mrf.mxu0
      %v1770 = vadd.f32 %v22, %v1769
      %v1771 = vpop.f32.mrf.mxu0
      %1772 = vdwg.mxu0
      %v1773 = vmax.f32 %v1770, 0.0
      %v1774 = vpack.c.bf16 %v1773, %v1773
      %1775 = vmatpush.bf16.msra.mxu0 %v197
      %1776 = vmatpush.bf16.msra.mxu0 %v196
      %1777 = vmatpush.bf16.msra.mxu0 %v195
      %1778 = vmatpush.bf16.msra.mxu0 %v194
      %1779 = vmatpush.bf16.msra.mxu0 %v193
      %1780 = vmatpush.bf16.msra.mxu0 %v192
      %1781 = vmatpush.bf16.msra.mxu0 %v191
      %1782 = vmatpush.bf16.msra.mxu0 %v190
      %1783 = vmatmul.bf16.gmra.mxu0 %v1774
      %v1784 = vpop.f32.mrf.mxu0
      %v1785 = vadd.f32 %v23, %v1784
      %v1786 = vpop.f32.mrf.mxu0
      %1787 = vdwg.mxu0
      %v1788 = vmax.f32 %v1785, 0.0
      %v1789 = vpack.c.bf16 %v1788, %v1788
      %1790 = vmatpush.bf16.msra.mxu0 %v276
      %1791 = vmatpush.bf16.msra.mxu0 %v275
      %1792 = vmatpush.bf16.msra.mxu0 %v274
      %1793 = vmatpush.bf16.msra.mxu0 %v273
      %1794 = vmatpush.bf16.msra.mxu0 %v272
      %1795 = vmatpush.bf16.msra.mxu0 %v271
      %1796 = vmatpush.bf16.msra.mxu0 %v270
      %1797 = vmatpush.bf16.msra.mxu0 %v269
      %1798 = vmatmul.bf16.gmra.mxu0 %v1789
      %v1799 = vpop.f32.mrf.mxu0
      %v1800 = vadd.f32 %v20, %v1799
      %v1801 = vpop.f32.mrf.mxu0
      %1802 = vdwg.mxu0
      %v1803 = vsel %vm26, %v1800, 0.0
      %v1804 = vadd.f32 %v1734, %v1803
      %v1805 = vsel %vm26, 0.0, %v1800
      %v1806 = vadd.f32 %v1646, %v1725
      %v1807 = vmul.f32 %v1806, 3.0
      %v1808 = vadd.f32 %v1571, %v1807
      %v1809 = vadd.f32 %v1808, %v1804
      %v1810 = vmul.f32 %v1809, 0.1
      %v1811 = vmul.f32 %v1810, 0.125
      %v1812 = vadd.f32 %v1494, %v1811
      %v1813 = vadd.f32 %v1647, %v1726
      %v1814 = vmul.f32 %v1813, 3.0
      %v1815 = vadd.f32 %v1572, %v1814
      %v1816 = vadd.f32 %v1815, %v1805
      %v1817 = vmul.f32 %v1816, 0.1
      %v1818 = vmul.f32 %v1817, 0.125
      %v1819 = vadd.f32 %v1501, %v1818
      %v1821 = vsel %vm36, %v1812, 0
      %1823 = vmatpush.msra.mxu0 0.0
      %1824 = vmatpush.msra.mxu0 0.0
      %1825 = vmatpush.msra.mxu0 0.0
      %1826 = vmatpush.msra.mxu0 0.0
      %1827 = vmatpush.msra.mxu0 0.0
      %1828 = vmatpush.msra.mxu0 0.0
      %1829 = vmatpush.msra.mxu0 0.0
      %1830 = vmatpush.msra.mxu0 0.0
      %1831 = vmatpush.msra.mxu0 0.0
      %1832 = vmatpush.msra.mxu0 0.0
      %1833 = vmatpush.msra.mxu0 0.0
      %1834 = vmatpush.msra.mxu0 0.0
      %1835 = vmatpush.msra.mxu0 0.0
      %1836 = vmatpush.msra.mxu0 0.0
      %1837 = vmatpush.msra.mxu0 0.0
      %1838 = vmatpush.msra.mxu0 %v35
      %1839 = vmatmul.f32.gmra.mxu0 %v1821
      %v1840 = vpop.f32.mrf.mxu0
      %v1841 = vadd.f32 %v21, %v1840
      %1842 = vdwg.mxu0
      %v1843 = vmax.f32 %v1841, 0.0
      %v1844 = vpack.c.bf16 %v1843, %v1843
      %1845 = vmatpush.bf16.msra.mxu0 %v117
      %1846 = vmatpush.bf16.msra.mxu0 %v116
      %1847 = vmatpush.bf16.msra.mxu0 %v115
      %1848 = vmatpush.bf16.msra.mxu0 %v114
      %1849 = vmatpush.bf16.msra.mxu0 %v113
      %1850 = vmatpush.bf16.msra.mxu0 %v112
      %1851 = vmatpush.bf16.msra.mxu0 %v111
      %1852 = vmatpush.bf16.msra.mxu0 %v110
      %1853 = vmatmul.bf16.gmra.mxu0 %v1844
      %v1854 = vpop.f32.mrf.mxu0
      %v1855 = vadd.f32 %v22, %v1854
      %v1856 = vpop.f32.mrf.mxu0
      %1857 = vdwg.mxu0
      %v1858 = vmax.f32 %v1855, 0.0
      %v1859 = vpack.c.bf16 %v1858, %v1858
      %1860 = vmatpush.bf16.msra.mxu0 %v197
      %1861 = vmatpush.bf16.msra.mxu0 %v196
      %1862 = vmatpush.bf16.msra.mxu0 %v195
      %1863 = vmatpush.bf16.msra.mxu0 %v194
      %1864 = vmatpush.bf16.msra.mxu0 %v193
      %1865 = vmatpush.bf16.msra.mxu0 %v192
      %1866 = vmatpush.bf16.msra.mxu0 %v191
      %1867 = vmatpush.bf16.msra.mxu0 %v190
      %1868 = vmatmul.bf16.gmra.mxu0 %v1859
      %v1869 = vpop.f32.mrf.mxu0
      %v1870 = vadd.f32 %v23, %v1869
      %v1871 = vpop.f32.mrf.mxu0
      %1872 = vdwg.mxu0
      %v1873 = vmax.f32 %v1870, 0.0
      %v1874 = vpack.c.bf16 %v1873, %v1873
      %1875 = vmatpush.bf16.msra.mxu0 %v276
      %1876 = vmatpush.bf16.msra.mxu0 %v275
      %1877 = vmatpush.bf16.msra.mxu0 %v274
      %1878 = vmatpush.bf16.msra.mxu0 %v273
      %1879 = vmatpush.bf16.msra.mxu0 %v272
      %1880 = vmatpush.bf16.msra.mxu0 %v271
      %1881 = vmatpush.bf16.msra.mxu0 %v270
      %1882 = vmatpush.bf16.msra.mxu0 %v269
      %1883 = vmatmul.bf16.gmra.mxu0 %v1874
      %v1884 = vpop.f32.mrf.mxu0
      %v1885 = vadd.f32 %v20, %v1884
      %v1886 = vpop.f32.mrf.mxu0
      %1887 = vdwg.mxu0
      %v1888 = vsel %vm26, %v1885, 0.0
      %v1889 = vadd.f32 %v1819, %v1888
      %v1890 = vsel %vm26, 0.0, %v1885
      %v1891 = vmul.f32 %v1889, 0.033333335
      %v1892 = vadd.f32 %v1812, %v1891
      %v1893 = vmul.f32 %v1890, 0.033333335
      %v1894 = vadd.f32 %v1819, %v1893
      %v1896 = vsel %vm36, %v1892, 0
      %1898 = vmatpush.msra.mxu0 0.0
      %1899 = vmatpush.msra.mxu0 0.0
      %1900 = vmatpush.msra.mxu0 0.0
      %1901 = vmatpush.msra.mxu0 0.0
      %1902 = vmatpush.msra.mxu0 0.0
      %1903 = vmatpush.msra.mxu0 0.0
      %1904 = vmatpush.msra.mxu0 0.0
      %1905 = vmatpush.msra.mxu0 0.0
      %1906 = vmatpush.msra.mxu0 0.0
      %1907 = vmatpush.msra.mxu0 0.0
      %1908 = vmatpush.msra.mxu0 0.0
      %1909 = vmatpush.msra.mxu0 0.0
      %1910 = vmatpush.msra.mxu0 0.0
      %1911 = vmatpush.msra.mxu0 0.0
      %1912 = vmatpush.msra.mxu0 0.0
      %1913 = vmatpush.msra.mxu0 %v35
      %1914 = vmatmul.f32.gmra.mxu0 %v1896
      %v1915 = vpop.f32.mrf.mxu0
      %v1916 = vadd.f32 %v21, %v1915
      %1917 = vdwg.mxu0
      %v1918 = vmax.f32 %v1916, 0.0
      %v1919 = vpack.c.bf16 %v1918, %v1918
      %1920 = vmatpush.bf16.msra.mxu0 %v117
      %1921 = vmatpush.bf16.msra.mxu0 %v116
      %1922 = vmatpush.bf16.msra.mxu0 %v115
      %1923 = vmatpush.bf16.msra.mxu0 %v114
      %1924 = vmatpush.bf16.msra.mxu0 %v113
      %1925 = vmatpush.bf16.msra.mxu0 %v112
      %1926 = vmatpush.bf16.msra.mxu0 %v111
      %1927 = vmatpush.bf16.msra.mxu0 %v110
      %1928 = vmatmul.bf16.gmra.mxu0 %v1919
      %v1929 = vpop.f32.mrf.mxu0
      %v1930 = vadd.f32 %v22, %v1929
      %v1931 = vpop.f32.mrf.mxu0
      %1932 = vdwg.mxu0
      %v1933 = vmax.f32 %v1930, 0.0
      %v1934 = vpack.c.bf16 %v1933, %v1933
      %1935 = vmatpush.bf16.msra.mxu0 %v197
      %1936 = vmatpush.bf16.msra.mxu0 %v196
      %1937 = vmatpush.bf16.msra.mxu0 %v195
      %1938 = vmatpush.bf16.msra.mxu0 %v194
      %1939 = vmatpush.bf16.msra.mxu0 %v193
      %1940 = vmatpush.bf16.msra.mxu0 %v192
      %1941 = vmatpush.bf16.msra.mxu0 %v191
      %1942 = vmatpush.bf16.msra.mxu0 %v190
      %1943 = vmatmul.bf16.gmra.mxu0 %v1934
      %v1944 = vpop.f32.mrf.mxu0
      %v1945 = vadd.f32 %v23, %v1944
      %v1946 = vpop.f32.mrf.mxu0
      %1947 = vdwg.mxu0
      %v1948 = vmax.f32 %v1945, 0.0
      %v1949 = vpack.c.bf16 %v1948, %v1948
      %1950 = vmatpush.bf16.msra.mxu0 %v276
      %1951 = vmatpush.bf16.msra.mxu0 %v275
      %1952 = vmatpush.bf16.msra.mxu0 %v274
      %1953 = vmatpush.bf16.msra.mxu0 %v273
      %1954 = vmatpush.bf16.msra.mxu0 %v272
      %1955 = vmatpush.bf16.msra.mxu0 %v271
      %1956 = vmatpush.bf16.msra.mxu0 %v270
      %1957 = vmatpush.bf16.msra.mxu0 %v269
      %1958 = vmatmul.bf16.gmra.mxu0 %v1949
      %v1959 = vpop.f32.mrf.mxu0
      %v1960 = vadd.f32 %v20, %v1959
      %v1961 = vpop.f32.mrf.mxu0
      %1962 = vdwg.mxu0
      %v1963 = vsel %vm26, %v1960, 0.0
      %v1964 = vadd.f32 %v1894, %v1963
      %v1965 = vsel %vm26, 0.0, %v1960
      %v1966 = vmul.f32 %v1889, 0.33333334
      %v1967 = vsub.f32 %v1964, %v1966
      %v1968 = vmul.f32 %v1967, 0.1
      %v1969 = vadd.f32 %v1812, %v1968
      %v1970 = vmul.f32 %v1890, 0.33333334
      %v1971 = vsub.f32 %v1965, %v1970
      %v1972 = vmul.f32 %v1971, 0.1
      %v1973 = vadd.f32 %v1819, %v1972
      %v1975 = vsel %vm36, %v1969, 0
      %1977 = vmatpush.msra.mxu0 0.0
      %1978 = vmatpush.msra.mxu0 0.0
      %1979 = vmatpush.msra.mxu0 0.0
      %1980 = vmatpush.msra.mxu0 0.0
      %1981 = vmatpush.msra.mxu0 0.0
      %1982 = vmatpush.msra.mxu0 0.0
      %1983 = vmatpush.msra.mxu0 0.0
      %1984 = vmatpush.msra.mxu0 0.0
      %1985 = vmatpush.msra.mxu0 0.0
      %1986 = vmatpush.msra.mxu0 0.0
      %1987 = vmatpush.msra.mxu0 0.0
      %1988 = vmatpush.msra.mxu0 0.0
      %1989 = vmatpush.msra.mxu0 0.0
      %1990 = vmatpush.msra.mxu0 0.0
      %1991 = vmatpush.msra.mxu0 0.0
      %1992 = vmatpush.msra.mxu0 %v35
      %1993 = vmatmul.f32.gmra.mxu0 %v1975
      %v1994 = vpop.f32.mrf.mxu0
      %v1995 = vadd.f32 %v21, %v1994
      %1996 = vdwg.mxu0
      %v1997 = vmax.f32 %v1995, 0.0
      %v1998 = vpack.c.bf16 %v1997, %v1997
      %1999 = vmatpush.bf16.msra.mxu0 %v117
      %2000 = vmatpush.bf16.msra.mxu0 %v116
      %2001 = vmatpush.bf16.msra.mxu0 %v115
      %2002 = vmatpush.bf16.msra.mxu0 %v114
      %2003 = vmatpush.bf16.msra.mxu0 %v113
      %2004 = vmatpush.bf16.msra.mxu0 %v112
      %2005 = vmatpush.bf16.msra.mxu0 %v111
      %2006 = vmatpush.bf16.msra.mxu0 %v110
      %2007 = vmatmul.bf16.gmra.mxu0 %v1998
      %v2008 = vpop.f32.mrf.mxu0
      %v2009 = vadd.f32 %v22, %v2008
      %v2010 = vpop.f32.mrf.mxu0
      %2011 = vdwg.mxu0
      %v2012 = vmax.f32 %v2009, 0.0
      %v2013 = vpack.c.bf16 %v2012, %v2012
      %2014 = vmatpush.bf16.msra.mxu0 %v197
      %2015 = vmatpush.bf16.msra.mxu0 %v196
      %2016 = vmatpush.bf16.msra.mxu0 %v195
      %2017 = vmatpush.bf16.msra.mxu0 %v194
      %2018 = vmatpush.bf16.msra.mxu0 %v193
      %2019 = vmatpush.bf16.msra.mxu0 %v192
      %2020 = vmatpush.bf16.msra.mxu0 %v191
      %2021 = vmatpush.bf16.msra.mxu0 %v190
      %2022 = vmatmul.bf16.gmra.mxu0 %v2013
      %v2023 = vpop.f32.mrf.mxu0
      %v2024 = vadd.f32 %v23, %v2023
      %v2025 = vpop.f32.mrf.mxu0
      %2026 = vdwg.mxu0
      %v2027 = vmax.f32 %v2024, 0.0
      %v2028 = vpack.c.bf16 %v2027, %v2027
      %2029 = vmatpush.bf16.msra.mxu0 %v276
      %2030 = vmatpush.bf16.msra.mxu0 %v275
      %2031 = vmatpush.bf16.msra.mxu0 %v274
      %2032 = vmatpush.bf16.msra.mxu0 %v273
      %2033 = vmatpush.bf16.msra.mxu0 %v272
      %2034 = vmatpush.bf16.msra.mxu0 %v271
      %2035 = vmatpush.bf16.msra.mxu0 %v270
      %2036 = vmatpush.bf16.msra.mxu0 %v269
      %2037 = vmatmul.bf16.gmra.mxu0 %v2028
      %v2038 = vpop.f32.mrf.mxu0
      %v2039 = vadd.f32 %v20, %v2038
      %v2040 = vpop.f32.mrf.mxu0
      %2041 = vdwg.mxu0
      %v2042 = vsel %vm26, %v2039, 0.0
      %v2043 = vadd.f32 %v1973, %v2042
      %v2044 = vsel %vm26, 0.0, %v2039
      %v2045 = vsub.f32 %v1889, %v1964
      %v2046 = vadd.f32 %v2045, %v2043
      %v2047 = vmul.f32 %v2046, 0.1
      %v2048 = vadd.f32 %v1812, %v2047
      %v2049 = vsub.f32 %v1890, %v1965
      %v2050 = vadd.f32 %v2049, %v2044
      %v2051 = vmul.f32 %v2050, 0.1
      %v2052 = vadd.f32 %v1819, %v2051
      %v2054 = vsel %vm36, %v2048, 0
      %2056 = vmatpush.msra.mxu0 0.0
      %2057 = vmatpush.msra.mxu0 0.0
      %2058 = vmatpush.msra.mxu0 0.0
      %2059 = vmatpush.msra.mxu0 0.0
      %2060 = vmatpush.msra.mxu0 0.0
      %2061 = vmatpush.msra.mxu0 0.0
      %2062 = vmatpush.msra.mxu0 0.0
      %2063 = vmatpush.msra.mxu0 0.0
      %2064 = vmatpush.msra.mxu0 0.0
      %2065 = vmatpush.msra.mxu0 0.0
      %2066 = vmatpush.msra.mxu0 0.0
      %2067 = vmatpush.msra.mxu0 0.0
      %2068 = vmatpush.msra.mxu0 0.0
      %2069 = vmatpush.msra.mxu0 0.0
      %2070 = vmatpush.msra.mxu0 0.0
      %2071 = vmatpush.msra.mxu0 %v35
      %2072 = vmatmul.f32.gmra.mxu0 %v2054
      %v2073 = vpop.f32.mrf.mxu0
      %v2074 = vadd.f32 %v21, %v2073
      %2075 = vdwg.mxu0
      %v2076 = vmax.f32 %v2074, 0.0
      %v2077 = vpack.c.bf16 %v2076, %v2076
      %2078 = vmatpush.bf16.msra.mxu0 %v117
      %2079 = vmatpush.bf16.msra.mxu0 %v116
      %2080 = vmatpush.bf16.msra.mxu0 %v115
      %2081 = vmatpush.bf16.msra.mxu0 %v114
      %2082 = vmatpush.bf16.msra.mxu0 %v113
      %2083 = vmatpush.bf16.msra.mxu0 %v112
      %2084 = vmatpush.bf16.msra.mxu0 %v111
      %2085 = vmatpush.bf16.msra.mxu0 %v110
      %2086 = vmatmul.bf16.gmra.mxu0 %v2077
      %v2087 = vpop.f32.mrf.mxu0
      %v2088 = vadd.f32 %v22, %v2087
      %v2089 = vpop.f32.mrf.mxu0
      %2090 = vdwg.mxu0
      %v2091 = vmax.f32 %v2088, 0.0
      %v2092 = vpack.c.bf16 %v2091, %v2091
      %2093 = vmatpush.bf16.msra.mxu0 %v197
      %2094 = vmatpush.bf16.msra.mxu0 %v196
      %2095 = vmatpush.bf16.msra.mxu0 %v195
      %2096 = vmatpush.bf16.msra.mxu0 %v194
      %2097 = vmatpush.bf16.msra.mxu0 %v193
      %2098 = vmatpush.bf16.msra.mxu0 %v192
      %2099 = vmatpush.bf16.msra.mxu0 %v191
      %2100 = vmatpush.bf16.msra.mxu0 %v190
      %2101 = vmatmul.bf16.gmra.mxu0 %v2092
      %v2102 = vpop.f32.mrf.mxu0
      %v2103 = vadd.f32 %v23, %v2102
      %v2104 = vpop.f32.mrf.mxu0
      %2105 = vdwg.mxu0
      %v2106 = vmax.f32 %v2103, 0.0
      %v2107 = vpack.c.bf16 %v2106, %v2106
      %2108 = vmatpush.bf16.msra.mxu0 %v276
      %2109 = vmatpush.bf16.msra.mxu0 %v275
      %2110 = vmatpush.bf16.msra.mxu0 %v274
      %2111 = vmatpush.bf16.msra.mxu0 %v273
      %2112 = vmatpush.bf16.msra.mxu0 %v272
      %2113 = vmatpush.bf16.msra.mxu0 %v271
      %2114 = vmatpush.bf16.msra.mxu0 %v270
      %2115 = vmatpush.bf16.msra.mxu0 %v269
      %2116 = vmatmul.bf16.gmra.mxu0 %v2107
      %v2117 = vpop.f32.mrf.mxu0
      %v2118 = vadd.f32 %v20, %v2117
      %v2119 = vpop.f32.mrf.mxu0
      %2120 = vdwg.mxu0
      %v2121 = vsel %vm26, %v2118, 0.0
      %v2122 = vadd.f32 %v2052, %v2121
      %v2123 = vsel %vm26, 0.0, %v2118
      %v2124 = vadd.f32 %v1964, %v2043
      %v2125 = vmul.f32 %v2124, 3.0
      %v2126 = vadd.f32 %v1889, %v2125
      %v2127 = vadd.f32 %v2126, %v2122
      %v2128 = vmul.f32 %v2127, 0.1
      %v2129 = vmul.f32 %v2128, 0.125
      %v2130 = vadd.f32 %v1812, %v2129
      %v2131 = vadd.f32 %v1965, %v2044
      %v2132 = vmul.f32 %v2131, 3.0
      %v2133 = vadd.f32 %v1890, %v2132
      %v2134 = vadd.f32 %v2133, %v2123
      %v2135 = vmul.f32 %v2134, 0.1
      %v2136 = vmul.f32 %v2135, 0.125
      %v2137 = vadd.f32 %v1819, %v2136
      %v2139 = vsel %vm36, %v2130, 0
      %2141 = vmatpush.msra.mxu0 0.0
      %2142 = vmatpush.msra.mxu0 0.0
      %2143 = vmatpush.msra.mxu0 0.0
      %2144 = vmatpush.msra.mxu0 0.0
      %2145 = vmatpush.msra.mxu0 0.0
      %2146 = vmatpush.msra.mxu0 0.0
      %2147 = vmatpush.msra.mxu0 0.0
      %2148 = vmatpush.msra.mxu0 0.0
      %2149 = vmatpush.msra.mxu0 0.0
      %2150 = vmatpush.msra.mxu0 0.0
      %2151 = vmatpush.msra.mxu0 0.0
      %2152 = vmatpush.msra.mxu0 0.0
      %2153 = vmatpush.msra.mxu0 0.0
      %2154 = vmatpush.msra.mxu0 0.0
      %2155 = vmatpush.msra.mxu0 0.0
      %2156 = vmatpush.msra.mxu0 %v35
      %2157 = vmatmul.f32.gmra.mxu0 %v2139
      %v2158 = vpop.f32.mrf.mxu0
      %v2159 = vadd.f32 %v21, %v2158
      %2160 = vdwg.mxu0
      %v2161 = vmax.f32 %v2159, 0.0
      %v2162 = vpack.c.bf16 %v2161, %v2161
      %2163 = vmatpush.bf16.msra.mxu0 %v117
      %2164 = vmatpush.bf16.msra.mxu0 %v116
      %2165 = vmatpush.bf16.msra.mxu0 %v115
      %2166 = vmatpush.bf16.msra.mxu0 %v114
      %2167 = vmatpush.bf16.msra.mxu0 %v113
      %2168 = vmatpush.bf16.msra.mxu0 %v112
      %2169 = vmatpush.bf16.msra.mxu0 %v111
      %2170 = vmatpush.bf16.msra.mxu0 %v110
      %2171 = vmatmul.bf16.gmra.mxu0 %v2162
      %v2172 = vpop.f32.mrf.mxu0
      %v2173 = vadd.f32 %v22, %v2172
      %v2174 = vpop.f32.mrf.mxu0
      %2175 = vdwg.mxu0
      %v2176 = vmax.f32 %v2173, 0.0
      %v2177 = vpack.c.bf16 %v2176, %v2176
      %2178 = vmatpush.bf16.msra.mxu0 %v197
      %2179 = vmatpush.bf16.msra.mxu0 %v196
      %2180 = vmatpush.bf16.msra.mxu0 %v195
      %2181 = vmatpush.bf16.msra.mxu0 %v194
      %2182 = vmatpush.bf16.msra.mxu0 %v193
      %2183 = vmatpush.bf16.msra.mxu0 %v192
      %2184 = vmatpush.bf16.msra.mxu0 %v191
      %2185 = vmatpush.bf16.msra.mxu0 %v190
      %2186 = vmatmul.bf16.gmra.mxu0 %v2177
      %v2187 = vpop.f32.mrf.mxu0
      %v2188 = vadd.f32 %v23, %v2187
      %v2189 = vpop.f32.mrf.mxu0
      %2190 = vdwg.mxu0
      %v2191 = vmax.f32 %v2188, 0.0
      %v2192 = vpack.c.bf16 %v2191, %v2191
      %2193 = vmatpush.bf16.msra.mxu0 %v276
      %2194 = vmatpush.bf16.msra.mxu0 %v275
      %2195 = vmatpush.bf16.msra.mxu0 %v274
      %2196 = vmatpush.bf16.msra.mxu0 %v273
      %2197 = vmatpush.bf16.msra.mxu0 %v272
      %2198 = vmatpush.bf16.msra.mxu0 %v271
      %2199 = vmatpush.bf16.msra.mxu0 %v270
      %2200 = vmatpush.bf16.msra.mxu0 %v269
      %2201 = vmatmul.bf16.gmra.mxu0 %v2192
      %v2202 = vpop.f32.mrf.mxu0
      %v2203 = vadd.f32 %v20, %v2202
      %v2204 = vpop.f32.mrf.mxu0
      %2205 = vdwg.mxu0
      %v2206 = vsel %vm26, %v2203, 0.0
      %v2207 = vadd.f32 %v2137, %v2206
      %v2208 = vsel %vm26, 0.0, %v2203
      %v2209 = vmul.f32 %v2207, 0.033333335
      %v2210 = vadd.f32 %v2130, %v2209
      %v2211 = vmul.f32 %v2208, 0.033333335
      %v2212 = vadd.f32 %v2137, %v2211
      %v2214 = vsel %vm36, %v2210, 0
      %2216 = vmatpush.msra.mxu0 0.0
      %2217 = vmatpush.msra.mxu0 0.0
      %2218 = vmatpush.msra.mxu0 0.0
      %2219 = vmatpush.msra.mxu0 0.0
      %2220 = vmatpush.msra.mxu0 0.0
      %2221 = vmatpush.msra.mxu0 0.0
      %2222 = vmatpush.msra.mxu0 0.0
      %2223 = vmatpush.msra.mxu0 0.0
      %2224 = vmatpush.msra.mxu0 0.0
      %2225 = vmatpush.msra.mxu0 0.0
      %2226 = vmatpush.msra.mxu0 0.0
      %2227 = vmatpush.msra.mxu0 0.0
      %2228 = vmatpush.msra.mxu0 0.0
      %2229 = vmatpush.msra.mxu0 0.0
      %2230 = vmatpush.msra.mxu0 0.0
      %2231 = vmatpush.msra.mxu0 %v35
      %2232 = vmatmul.f32.gmra.mxu0 %v2214
      %v2233 = vpop.f32.mrf.mxu0
      %v2234 = vadd.f32 %v21, %v2233
      %2235 = vdwg.mxu0
      %v2236 = vmax.f32 %v2234, 0.0
      %v2237 = vpack.c.bf16 %v2236, %v2236
      %2238 = vmatpush.bf16.msra.mxu0 %v117
      %2239 = vmatpush.bf16.msra.mxu0 %v116
      %2240 = vmatpush.bf16.msra.mxu0 %v115
      %2241 = vmatpush.bf16.msra.mxu0 %v114
      %2242 = vmatpush.bf16.msra.mxu0 %v113
      %2243 = vmatpush.bf16.msra.mxu0 %v112
      %2244 = vmatpush.bf16.msra.mxu0 %v111
      %2245 = vmatpush.bf16.msra.mxu0 %v110
      %2246 = vmatmul.bf16.gmra.mxu0 %v2237
      %v2247 = vpop.f32.mrf.mxu0
      %v2248 = vadd.f32 %v22, %v2247
      %v2249 = vpop.f32.mrf.mxu0
      %2250 = vdwg.mxu0
      %v2251 = vmax.f32 %v2248, 0.0
      %v2252 = vpack.c.bf16 %v2251, %v2251
      %2253 = vmatpush.bf16.msra.mxu0 %v197
      %2254 = vmatpush.bf16.msra.mxu0 %v196
      %2255 = vmatpush.bf16.msra.mxu0 %v195
      %2256 = vmatpush.bf16.msra.mxu0 %v194
      %2257 = vmatpush.bf16.msra.mxu0 %v193
      %2258 = vmatpush.bf16.msra.mxu0 %v192
      %2259 = vmatpush.bf16.msra.mxu0 %v191
      %2260 = vmatpush.bf16.msra.mxu0 %v190
      %2261 = vmatmul.bf16.gmra.mxu0 %v2252
      %v2262 = vpop.f32.mrf.mxu0
      %v2263 = vadd.f32 %v23, %v2262
      %v2264 = vpop.f32.mrf.mxu0
      %2265 = vdwg.mxu0
      %v2266 = vmax.f32 %v2263, 0.0
      %v2267 = vpack.c.bf16 %v2266, %v2266
      %2268 = vmatpush.bf16.msra.mxu0 %v276
      %2269 = vmatpush.bf16.msra.mxu0 %v275
      %2270 = vmatpush.bf16.msra.mxu0 %v274
      %2271 = vmatpush.bf16.msra.mxu0 %v273
      %2272 = vmatpush.bf16.msra.mxu0 %v272
      %2273 = vmatpush.bf16.msra.mxu0 %v271
      %2274 = vmatpush.bf16.msra.mxu0 %v270
      %2275 = vmatpush.bf16.msra.mxu0 %v269
      %2276 = vmatmul.bf16.gmra.mxu0 %v2267
      %v2277 = vpop.f32.mrf.mxu0
      %v2278 = vadd.f32 %v20, %v2277
      %v2279 = vpop.f32.mrf.mxu0
      %2280 = vdwg.mxu0
      %v2281 = vsel %vm26, %v2278, 0.0
      %v2282 = vadd.f32 %v2212, %v2281
      %v2283 = vsel %vm26, 0.0, %v2278
      %v2284 = vmul.f32 %v2207, 0.33333334
      %v2285 = vsub.f32 %v2282, %v2284
      %v2286 = vmul.f32 %v2285, 0.1
      %v2287 = vadd.f32 %v2130, %v2286
      %v2288 = vmul.f32 %v2208, 0.33333334
      %v2289 = vsub.f32 %v2283, %v2288
      %v2290 = vmul.f32 %v2289, 0.1
      %v2291 = vadd.f32 %v2137, %v2290
      %v2293 = vsel %vm36, %v2287, 0
      %2295 = vmatpush.msra.mxu0 0.0
      %2296 = vmatpush.msra.mxu0 0.0
      %2297 = vmatpush.msra.mxu0 0.0
      %2298 = vmatpush.msra.mxu0 0.0
      %2299 = vmatpush.msra.mxu0 0.0
      %2300 = vmatpush.msra.mxu0 0.0
      %2301 = vmatpush.msra.mxu0 0.0
      %2302 = vmatpush.msra.mxu0 0.0
      %2303 = vmatpush.msra.mxu0 0.0
      %2304 = vmatpush.msra.mxu0 0.0
      %2305 = vmatpush.msra.mxu0 0.0
      %2306 = vmatpush.msra.mxu0 0.0
      %2307 = vmatpush.msra.mxu0 0.0
      %2308 = vmatpush.msra.mxu0 0.0
      %2309 = vmatpush.msra.mxu0 0.0
      %2310 = vmatpush.msra.mxu0 %v35
      %2311 = vmatmul.f32.gmra.mxu0 %v2293
      %v2312 = vpop.f32.mrf.mxu0
      %v2313 = vadd.f32 %v21, %v2312
      %2314 = vdwg.mxu0
      %v2315 = vmax.f32 %v2313, 0.0
      %v2316 = vpack.c.bf16 %v2315, %v2315
      %2317 = vmatpush.bf16.msra.mxu0 %v117
      %2318 = vmatpush.bf16.msra.mxu0 %v116
      %2319 = vmatpush.bf16.msra.mxu0 %v115
      %2320 = vmatpush.bf16.msra.mxu0 %v114
      %2321 = vmatpush.bf16.msra.mxu0 %v113
      %2322 = vmatpush.bf16.msra.mxu0 %v112
      %2323 = vmatpush.bf16.msra.mxu0 %v111
      %2324 = vmatpush.bf16.msra.mxu0 %v110
      %2325 = vmatmul.bf16.gmra.mxu0 %v2316
      %v2326 = vpop.f32.mrf.mxu0
      %v2327 = vadd.f32 %v22, %v2326
      %v2328 = vpop.f32.mrf.mxu0
      %2329 = vdwg.mxu0
      %v2330 = vmax.f32 %v2327, 0.0
      %v2331 = vpack.c.bf16 %v2330, %v2330
      %2332 = vmatpush.bf16.msra.mxu0 %v197
      %2333 = vmatpush.bf16.msra.mxu0 %v196
      %2334 = vmatpush.bf16.msra.mxu0 %v195
      %2335 = vmatpush.bf16.msra.mxu0 %v194
      %2336 = vmatpush.bf16.msra.mxu0 %v193
      %2337 = vmatpush.bf16.msra.mxu0 %v192
      %2338 = vmatpush.bf16.msra.mxu0 %v191
      %2339 = vmatpush.bf16.msra.mxu0 %v190
      %2340 = vmatmul.bf16.gmra.mxu0 %v2331
      %v2341 = vpop.f32.mrf.mxu0
      %v2342 = vadd.f32 %v23, %v2341
      %v2343 = vpop.f32.mrf.mxu0
      %2344 = vdwg.mxu0
      %v2345 = vmax.f32 %v2342, 0.0
      %v2346 = vpack.c.bf16 %v2345, %v2345
      %2347 = vmatpush.bf16.msra.mxu0 %v276
      %2348 = vmatpush.bf16.msra.mxu0 %v275
      %2349 = vmatpush.bf16.msra.mxu0 %v274
      %2350 = vmatpush.bf16.msra.mxu0 %v273
      %2351 = vmatpush.bf16.msra.mxu0 %v272
      %2352 = vmatpush.bf16.msra.mxu0 %v271
      %2353 = vmatpush.bf16.msra.mxu0 %v270
      %2354 = vmatpush.bf16.msra.mxu0 %v269
      %2355 = vmatmul.bf16.gmra.mxu0 %v2346
      %v2356 = vpop.f32.mrf.mxu0
      %v2357 = vadd.f32 %v20, %v2356
      %v2358 = vpop.f32.mrf.mxu0
      %2359 = vdwg.mxu0
      %v2360 = vsel %vm26, %v2357, 0.0
      %v2361 = vadd.f32 %v2291, %v2360
      %v2362 = vsel %vm26, 0.0, %v2357
      %v2363 = vsub.f32 %v2207, %v2282
      %v2364 = vadd.f32 %v2363, %v2361
      %v2365 = vmul.f32 %v2364, 0.1
      %v2366 = vadd.f32 %v2130, %v2365
      %v2367 = vsub.f32 %v2208, %v2283
      %v2368 = vadd.f32 %v2367, %v2362
      %v2369 = vmul.f32 %v2368, 0.1
      %v2370 = vadd.f32 %v2137, %v2369
      %v2372 = vsel %vm36, %v2366, 0
      %2374 = vmatpush.msra.mxu0 0.0
      %2375 = vmatpush.msra.mxu0 0.0
      %2376 = vmatpush.msra.mxu0 0.0
      %2377 = vmatpush.msra.mxu0 0.0
      %2378 = vmatpush.msra.mxu0 0.0
      %2379 = vmatpush.msra.mxu0 0.0
      %2380 = vmatpush.msra.mxu0 0.0
      %2381 = vmatpush.msra.mxu0 0.0
      %2382 = vmatpush.msra.mxu0 0.0
      %2383 = vmatpush.msra.mxu0 0.0
      %2384 = vmatpush.msra.mxu0 0.0
      %2385 = vmatpush.msra.mxu0 0.0
      %2386 = vmatpush.msra.mxu0 0.0
      %2387 = vmatpush.msra.mxu0 0.0
      %2388 = vmatpush.msra.mxu0 0.0
      %2389 = vmatpush.msra.mxu0 %v35
      %2390 = vmatmul.f32.gmra.mxu0 %v2372
      %v2391 = vpop.f32.mrf.mxu0
      %v2392 = vadd.f32 %v21, %v2391
      %2393 = vdwg.mxu0
      %v2394 = vmax.f32 %v2392, 0.0
      %v2395 = vpack.c.bf16 %v2394, %v2394
      %2396 = vmatpush.bf16.msra.mxu0 %v117
      %2397 = vmatpush.bf16.msra.mxu0 %v116
      %2398 = vmatpush.bf16.msra.mxu0 %v115
      %2399 = vmatpush.bf16.msra.mxu0 %v114
      %2400 = vmatpush.bf16.msra.mxu0 %v113
      %2401 = vmatpush.bf16.msra.mxu0 %v112
      %2402 = vmatpush.bf16.msra.mxu0 %v111
      %2403 = vmatpush.bf16.msra.mxu0 %v110
      %2404 = vmatmul.bf16.gmra.mxu0 %v2395
      %v2405 = vpop.f32.mrf.mxu0
      %v2406 = vadd.f32 %v22, %v2405
      %v2407 = vpop.f32.mrf.mxu0
      %2408 = vdwg.mxu0
      %v2409 = vmax.f32 %v2406, 0.0
      %v2410 = vpack.c.bf16 %v2409, %v2409
      %2411 = vmatpush.bf16.msra.mxu0 %v197
      %2412 = vmatpush.bf16.msra.mxu0 %v196
      %2413 = vmatpush.bf16.msra.mxu0 %v195
      %2414 = vmatpush.bf16.msra.mxu0 %v194
      %2415 = vmatpush.bf16.msra.mxu0 %v193
      %2416 = vmatpush.bf16.msra.mxu0 %v192
      %2417 = vmatpush.bf16.msra.mxu0 %v191
      %2418 = vmatpush.bf16.msra.mxu0 %v190
      %2419 = vmatmul.bf16.gmra.mxu0 %v2410
      %v2420 = vpop.f32.mrf.mxu0
      %v2421 = vadd.f32 %v23, %v2420
      %v2422 = vpop.f32.mrf.mxu0
      %2423 = vdwg.mxu0
      %v2424 = vmax.f32 %v2421, 0.0
      %v2425 = vpack.c.bf16 %v2424, %v2424
      %2426 = vmatpush.bf16.msra.mxu0 %v276
      %2427 = vmatpush.bf16.msra.mxu0 %v275
      %2428 = vmatpush.bf16.msra.mxu0 %v274
      %2429 = vmatpush.bf16.msra.mxu0 %v273
      %2430 = vmatpush.bf16.msra.mxu0 %v272
      %2431 = vmatpush.bf16.msra.mxu0 %v271
      %2432 = vmatpush.bf16.msra.mxu0 %v270
      %2433 = vmatpush.bf16.msra.mxu0 %v269
      %2434 = vmatmul.bf16.gmra.mxu0 %v2425
      %v2435 = vpop.f32.mrf.mxu0
      %v2436 = vadd.f32 %v20, %v2435
      %v2437 = vpop.f32.mrf.mxu0
      %2438 = vdwg.mxu0
      %v2439 = vsel %vm26, %v2436, 0.0
      %v2440 = vadd.f32 %v2370, %v2439
      %v2441 = vsel %vm26, 0.0, %v2436
      %v2442 = vadd.f32 %v2282, %v2361
      %v2443 = vmul.f32 %v2442, 3.0
      %v2444 = vadd.f32 %v2207, %v2443
      %v2445 = vadd.f32 %v2444, %v2440
      %v2446 = vmul.f32 %v2445, 0.1
      %v2447 = vmul.f32 %v2446, 0.125
      %v2448 = vadd.f32 %v2130, %v2447
      %v2449 = vadd.f32 %v2283, %v2362
      %v2450 = vmul.f32 %v2449, 3.0
      %v2451 = vadd.f32 %v2208, %v2450
      %v2452 = vadd.f32 %v2451, %v2441
      %v2453 = vmul.f32 %v2452, 0.1
      %v2454 = vmul.f32 %v2453, 0.125
      %v2455 = vadd.f32 %v2137, %v2454
      %v2457 = vsel %vm36, %v2448, 0
      %2459 = vmatpush.msra.mxu0 0.0
      %2460 = vmatpush.msra.mxu0 0.0
      %2461 = vmatpush.msra.mxu0 0.0
      %2462 = vmatpush.msra.mxu0 0.0
      %2463 = vmatpush.msra.mxu0 0.0
      %2464 = vmatpush.msra.mxu0 0.0
      %2465 = vmatpush.msra.mxu0 0.0
      %2466 = vmatpush.msra.mxu0 0.0
      %2467 = vmatpush.msra.mxu0 0.0
      %2468 = vmatpush.msra.mxu0 0.0
      %2469 = vmatpush.msra.mxu0 0.0
      %2470 = vmatpush.msra.mxu0 0.0
      %2471 = vmatpush.msra.mxu0 0.0
      %2472 = vmatpush.msra.mxu0 0.0
      %2473 = vmatpush.msra.mxu0 0.0
      %2474 = vmatpush.msra.mxu0 %v35
      %2475 = vmatmul.f32.gmra.mxu0 %v2457
      %v2476 = vpop.f32.mrf.mxu0
      %v2477 = vadd.f32 %v21, %v2476
      %2478 = vdwg.mxu0
      %v2479 = vmax.f32 %v2477, 0.0
      %v2480 = vpack.c.bf16 %v2479, %v2479
      %2481 = vmatpush.bf16.msra.mxu0 %v117
      %2482 = vmatpush.bf16.msra.mxu0 %v116
      %2483 = vmatpush.bf16.msra.mxu0 %v115
      %2484 = vmatpush.bf16.msra.mxu0 %v114
      %2485 = vmatpush.bf16.msra.mxu0 %v113
      %2486 = vmatpush.bf16.msra.mxu0 %v112
      %2487 = vmatpush.bf16.msra.mxu0 %v111
      %2488 = vmatpush.bf16.msra.mxu0 %v110
      %2489 = vmatmul.bf16.gmra.mxu0 %v2480
      %v2490 = vpop.f32.mrf.mxu0
      %v2491 = vadd.f32 %v22, %v2490
      %v2492 = vpop.f32.mrf.mxu0
      %2493 = vdwg.mxu0
      %v2494 = vmax.f32 %v2491, 0.0
      %v2495 = vpack.c.bf16 %v2494, %v2494
      %2496 = vmatpush.bf16.msra.mxu0 %v197
      %2497 = vmatpush.bf16.msra.mxu0 %v196
      %2498 = vmatpush.bf16.msra.mxu0 %v195
      %2499 = vmatpush.bf16.msra.mxu0 %v194
      %2500 = vmatpush.bf16.msra.mxu0 %v193
      %2501 = vmatpush.bf16.msra.mxu0 %v192
      %2502 = vmatpush.bf16.msra.mxu0 %v191
      %2503 = vmatpush.bf16.msra.mxu0 %v190
      %2504 = vmatmul.bf16.gmra.mxu0 %v2495
      %v2505 = vpop.f32.mrf.mxu0
      %v2506 = vadd.f32 %v23, %v2505
      %v2507 = vpop.f32.mrf.mxu0
      %2508 = vdwg.mxu0
      %v2509 = vmax.f32 %v2506, 0.0
      %v2510 = vpack.c.bf16 %v2509, %v2509
      %2511 = vmatpush.bf16.msra.mxu0 %v276
      %2512 = vmatpush.bf16.msra.mxu0 %v275
      %2513 = vmatpush.bf16.msra.mxu0 %v274
      %2514 = vmatpush.bf16.msra.mxu0 %v273
      %2515 = vmatpush.bf16.msra.mxu0 %v272
      %2516 = vmatpush.bf16.msra.mxu0 %v271
      %2517 = vmatpush.bf16.msra.mxu0 %v270
      %2518 = vmatpush.bf16.msra.mxu0 %v269
      %2519 = vmatmul.bf16.gmra.mxu0 %v2510
      %v2520 = vpop.f32.mrf.mxu0
      %v2521 = vadd.f32 %v20, %v2520
      %v2522 = vpop.f32.mrf.mxu0
      %2523 = vdwg.mxu0
      %v2524 = vsel %vm26, %v2521, 0.0
      %v2525 = vadd.f32 %v2455, %v2524
      %v2526 = vsel %vm26, 0.0, %v2521
      %v2527 = vmul.f32 %v2525, 0.033333335
      %v2528 = vadd.f32 %v2448, %v2527
      %v2529 = vmul.f32 %v2526, 0.033333335
      %v2530 = vadd.f32 %v2455, %v2529
      %v2532 = vsel %vm36, %v2528, 0
      %2534 = vmatpush.msra.mxu0 0.0
      %2535 = vmatpush.msra.mxu0 0.0
      %2536 = vmatpush.msra.mxu0 0.0
      %2537 = vmatpush.msra.mxu0 0.0
      %2538 = vmatpush.msra.mxu0 0.0
      %2539 = vmatpush.msra.mxu0 0.0
      %2540 = vmatpush.msra.mxu0 0.0
      %2541 = vmatpush.msra.mxu0 0.0
      %2542 = vmatpush.msra.mxu0 0.0
      %2543 = vmatpush.msra.mxu0 0.0
      %2544 = vmatpush.msra.mxu0 0.0
      %2545 = vmatpush.msra.mxu0 0.0
      %2546 = vmatpush.msra.mxu0 0.0
      %2547 = vmatpush.msra.mxu0 0.0
      %2548 = vmatpush.msra.mxu0 0.0
      %2549 = vmatpush.msra.mxu0 %v35
      %2550 = vmatmul.f32.gmra.mxu0 %v2532
      %v2551 = vpop.f32.mrf.mxu0
      %v2552 = vadd.f32 %v21, %v2551
      %2553 = vdwg.mxu0
      %v2554 = vmax.f32 %v2552, 0.0
      %v2555 = vpack.c.bf16 %v2554, %v2554
      %2556 = vmatpush.bf16.msra.mxu0 %v117
      %2557 = vmatpush.bf16.msra.mxu0 %v116
      %2558 = vmatpush.bf16.msra.mxu0 %v115
      %2559 = vmatpush.bf16.msra.mxu0 %v114
      %2560 = vmatpush.bf16.msra.mxu0 %v113
      %2561 = vmatpush.bf16.msra.mxu0 %v112
      %2562 = vmatpush.bf16.msra.mxu0 %v111
      %2563 = vmatpush.bf16.msra.mxu0 %v110
      %2564 = vmatmul.bf16.gmra.mxu0 %v2555
      %v2565 = vpop.f32.mrf.mxu0
      %v2566 = vadd.f32 %v22, %v2565
      %v2567 = vpop.f32.mrf.mxu0
      %2568 = vdwg.mxu0
      %v2569 = vmax.f32 %v2566, 0.0
      %v2570 = vpack.c.bf16 %v2569, %v2569
      %2571 = vmatpush.bf16.msra.mxu0 %v197
      %2572 = vmatpush.bf16.msra.mxu0 %v196
      %2573 = vmatpush.bf16.msra.mxu0 %v195
      %2574 = vmatpush.bf16.msra.mxu0 %v194
      %2575 = vmatpush.bf16.msra.mxu0 %v193
      %2576 = vmatpush.bf16.msra.mxu0 %v192
      %2577 = vmatpush.bf16.msra.mxu0 %v191
      %2578 = vmatpush.bf16.msra.mxu0 %v190
      %2579 = vmatmul.bf16.gmra.mxu0 %v2570
      %v2580 = vpop.f32.mrf.mxu0
      %v2581 = vadd.f32 %v23, %v2580
      %v2582 = vpop.f32.mrf.mxu0
      %2583 = vdwg.mxu0
      %v2584 = vmax.f32 %v2581, 0.0
      %v2585 = vpack.c.bf16 %v2584, %v2584
      %2586 = vmatpush.bf16.msra.mxu0 %v276
      %2587 = vmatpush.bf16.msra.mxu0 %v275
      %2588 = vmatpush.bf16.msra.mxu0 %v274
      %2589 = vmatpush.bf16.msra.mxu0 %v273
      %2590 = vmatpush.bf16.msra.mxu0 %v272
      %2591 = vmatpush.bf16.msra.mxu0 %v271
      %2592 = vmatpush.bf16.msra.mxu0 %v270
      %2593 = vmatpush.bf16.msra.mxu0 %v269
      %2594 = vmatmul.bf16.gmra.mxu0 %v2585
      %v2595 = vpop.f32.mrf.mxu0
      %v2596 = vadd.f32 %v20, %v2595
      %v2597 = vpop.f32.mrf.mxu0
      %2598 = vdwg.mxu0
      %v2599 = vsel %vm26, %v2596, 0.0
      %v2600 = vadd.f32 %v2530, %v2599
      %v2601 = vsel %vm26, 0.0, %v2596
      %v2602 = vmul.f32 %v2525, 0.33333334
      %v2603 = vsub.f32 %v2600, %v2602
      %v2604 = vmul.f32 %v2603, 0.1
      %v2605 = vadd.f32 %v2448, %v2604
      %v2606 = vmul.f32 %v2526, 0.33333334
      %v2607 = vsub.f32 %v2601, %v2606
      %v2608 = vmul.f32 %v2607, 0.1
      %v2609 = vadd.f32 %v2455, %v2608
      %v2611 = vsel %vm36, %v2605, 0
      %2613 = vmatpush.msra.mxu0 0.0
      %2614 = vmatpush.msra.mxu0 0.0
      %2615 = vmatpush.msra.mxu0 0.0
      %2616 = vmatpush.msra.mxu0 0.0
      %2617 = vmatpush.msra.mxu0 0.0
      %2618 = vmatpush.msra.mxu0 0.0
      %2619 = vmatpush.msra.mxu0 0.0
      %2620 = vmatpush.msra.mxu0 0.0
      %2621 = vmatpush.msra.mxu0 0.0
      %2622 = vmatpush.msra.mxu0 0.0
      %2623 = vmatpush.msra.mxu0 0.0
      %2624 = vmatpush.msra.mxu0 0.0
      %2625 = vmatpush.msra.mxu0 0.0
      %2626 = vmatpush.msra.mxu0 0.0
      %2627 = vmatpush.msra.mxu0 0.0
      %2628 = vmatpush.msra.mxu0 %v35
      %2629 = vmatmul.f32.gmra.mxu0 %v2611
      %v2630 = vpop.f32.mrf.mxu0
      %v2631 = vadd.f32 %v21, %v2630
      %2632 = vdwg.mxu0
      %v2633 = vmax.f32 %v2631, 0.0
      %v2634 = vpack.c.bf16 %v2633, %v2633
      %2635 = vmatpush.bf16.msra.mxu0 %v117
      %2636 = vmatpush.bf16.msra.mxu0 %v116
      %2637 = vmatpush.bf16.msra.mxu0 %v115
      %2638 = vmatpush.bf16.msra.mxu0 %v114
      %2639 = vmatpush.bf16.msra.mxu0 %v113
      %2640 = vmatpush.bf16.msra.mxu0 %v112
      %2641 = vmatpush.bf16.msra.mxu0 %v111
      %2642 = vmatpush.bf16.msra.mxu0 %v110
      %2643 = vmatmul.bf16.gmra.mxu0 %v2634
      %v2644 = vpop.f32.mrf.mxu0
      %v2645 = vadd.f32 %v22, %v2644
      %v2646 = vpop.f32.mrf.mxu0
      %2647 = vdwg.mxu0
      %v2648 = vmax.f32 %v2645, 0.0
      %v2649 = vpack.c.bf16 %v2648, %v2648
      %2650 = vmatpush.bf16.msra.mxu0 %v197
      %2651 = vmatpush.bf16.msra.mxu0 %v196
      %2652 = vmatpush.bf16.msra.mxu0 %v195
      %2653 = vmatpush.bf16.msra.mxu0 %v194
      %2654 = vmatpush.bf16.msra.mxu0 %v193
      %2655 = vmatpush.bf16.msra.mxu0 %v192
      %2656 = vmatpush.bf16.msra.mxu0 %v191
      %2657 = vmatpush.bf16.msra.mxu0 %v190
      %2658 = vmatmul.bf16.gmra.mxu0 %v2649
      %v2659 = vpop.f32.mrf.mxu0
      %v2660 = vadd.f32 %v23, %v2659
      %v2661 = vpop.f32.mrf.mxu0
      %2662 = vdwg.mxu0
      %v2663 = vmax.f32 %v2660, 0.0
      %v2664 = vpack.c.bf16 %v2663, %v2663
      %2665 = vmatpush.bf16.msra.mxu0 %v276
      %2666 = vmatpush.bf16.msra.mxu0 %v275
      %2667 = vmatpush.bf16.msra.mxu0 %v274
      %2668 = vmatpush.bf16.msra.mxu0 %v273
      %2669 = vmatpush.bf16.msra.mxu0 %v272
      %2670 = vmatpush.bf16.msra.mxu0 %v271
      %2671 = vmatpush.bf16.msra.mxu0 %v270
      %2672 = vmatpush.bf16.msra.mxu0 %v269
      %2673 = vmatmul.bf16.gmra.mxu0 %v2664
      %v2674 = vpop.f32.mrf.mxu0
      %v2675 = vadd.f32 %v20, %v2674
      %v2676 = vpop.f32.mrf.mxu0
      %2677 = vdwg.mxu0
      %v2678 = vsel %vm26, %v2675, 0.0
      %v2679 = vadd.f32 %v2609, %v2678
      %v2680 = vsel %vm26, 0.0, %v2675
      %v2681 = vsub.f32 %v2525, %v2600
      %v2682 = vadd.f32 %v2681, %v2679
      %v2683 = vmul.f32 %v2682, 0.1
      %v2684 = vadd.f32 %v2448, %v2683
      %v2685 = vsub.f32 %v2526, %v2601
      %v2686 = vadd.f32 %v2685, %v2680
      %v2687 = vmul.f32 %v2686, 0.1
      %v2688 = vadd.f32 %v2455, %v2687
      %v2690 = vsel %vm36, %v2684, 0
      %2692 = vmatpush.msra.mxu0 0.0
      %2693 = vmatpush.msra.mxu0 0.0
      %2694 = vmatpush.msra.mxu0 0.0
      %2695 = vmatpush.msra.mxu0 0.0
      %2696 = vmatpush.msra.mxu0 0.0
      %2697 = vmatpush.msra.mxu0 0.0
      %2698 = vmatpush.msra.mxu0 0.0
      %2699 = vmatpush.msra.mxu0 0.0
      %2700 = vmatpush.msra.mxu0 0.0
      %2701 = vmatpush.msra.mxu0 0.0
      %2702 = vmatpush.msra.mxu0 0.0
      %2703 = vmatpush.msra.mxu0 0.0
      %2704 = vmatpush.msra.mxu0 0.0
      %2705 = vmatpush.msra.mxu0 0.0
      %2706 = vmatpush.msra.mxu0 0.0
      %2707 = vmatpush.msra.mxu0 %v35
      %2708 = vmatmul.f32.gmra.mxu0 %v2690
      %v2709 = vpop.f32.mrf.mxu0
      %v2710 = vadd.f32 %v21, %v2709
      %2711 = vdwg.mxu0
      %v2712 = vmax.f32 %v2710, 0.0
      %v2713 = vpack.c.bf16 %v2712, %v2712
      %2714 = vmatpush.bf16.msra.mxu0 %v117
      %2715 = vmatpush.bf16.msra.mxu0 %v116
      %2716 = vmatpush.bf16.msra.mxu0 %v115
      %2717 = vmatpush.bf16.msra.mxu0 %v114
      %2718 = vmatpush.bf16.msra.mxu0 %v113
      %2719 = vmatpush.bf16.msra.mxu0 %v112
      %2720 = vmatpush.bf16.msra.mxu0 %v111
      %2721 = vmatpush.bf16.msra.mxu0 %v110
      %2722 = vmatmul.bf16.gmra.mxu0 %v2713
      %v2723 = vpop.f32.mrf.mxu0
      %v2724 = vadd.f32 %v22, %v2723
      %v2725 = vpop.f32.mrf.mxu0
      %2726 = vdwg.mxu0
      %v2727 = vmax.f32 %v2724, 0.0
      %v2728 = vpack.c.bf16 %v2727, %v2727
      %2729 = vmatpush.bf16.msra.mxu0 %v197
      %2730 = vmatpush.bf16.msra.mxu0 %v196
      %2731 = vmatpush.bf16.msra.mxu0 %v195
      %2732 = vmatpush.bf16.msra.mxu0 %v194
      %2733 = vmatpush.bf16.msra.mxu0 %v193
      %2734 = vmatpush.bf16.msra.mxu0 %v192
      %2735 = vmatpush.bf16.msra.mxu0 %v191
      %2736 = vmatpush.bf16.msra.mxu0 %v190
      %2737 = vmatmul.bf16.gmra.mxu0 %v2728
      %v2738 = vpop.f32.mrf.mxu0
      %v2739 = vadd.f32 %v23, %v2738
      %v2740 = vpop.f32.mrf.mxu0
      %2741 = vdwg.mxu0
      %v2742 = vmax.f32 %v2739, 0.0
      %v2743 = vpack.c.bf16 %v2742, %v2742
      %2744 = vmatpush.bf16.msra.mxu0 %v276
      %2745 = vmatpush.bf16.msra.mxu0 %v275
      %2746 = vmatpush.bf16.msra.mxu0 %v274
      %2747 = vmatpush.bf16.msra.mxu0 %v273
      %2748 = vmatpush.bf16.msra.mxu0 %v272
      %2749 = vmatpush.bf16.msra.mxu0 %v271
      %2750 = vmatpush.bf16.msra.mxu0 %v270
      %2751 = vmatpush.bf16.msra.mxu0 %v269
      %2752 = vmatmul.bf16.gmra.mxu0 %v2743
      %v2753 = vpop.f32.mrf.mxu0
      %v2754 = vadd.f32 %v20, %v2753
      %v2755 = vpop.f32.mrf.mxu0
      %2756 = vdwg.mxu0
      %v2757 = vsel %vm26, %v2754, 0.0
      %v2758 = vadd.f32 %v2688, %v2757
      %v2759 = vsel %vm26, 0.0, %v2754
      %v2760 = vadd.f32 %v2600, %v2679
      %v2761 = vmul.f32 %v2760, 3.0
      %v2762 = vadd.f32 %v2525, %v2761
      %v2763 = vadd.f32 %v2762, %v2758
      %v2764 = vmul.f32 %v2763, 0.1
      %v2765 = vmul.f32 %v2764, 0.125
      %v2766 = vadd.f32 %v2448, %v2765
      %v2767 = vadd.f32 %v2601, %v2680
      %v2768 = vmul.f32 %v2767, 3.0
      %v2769 = vadd.f32 %v2526, %v2768
      %v2770 = vadd.f32 %v2769, %v2759
      %v2771 = vmul.f32 %v2770, 0.1
      %v2772 = vmul.f32 %v2771, 0.125
      %v2773 = vadd.f32 %v2455, %v2772
      %v2775 = vsel %vm36, %v2766, 0
      %2777 = vmatpush.msra.mxu0 0.0
      %2778 = vmatpush.msra.mxu0 0.0
      %2779 = vmatpush.msra.mxu0 0.0
      %2780 = vmatpush.msra.mxu0 0.0
      %2781 = vmatpush.msra.mxu0 0.0
      %2782 = vmatpush.msra.mxu0 0.0
      %2783 = vmatpush.msra.mxu0 0.0
      %2784 = vmatpush.msra.mxu0 0.0
      %2785 = vmatpush.msra.mxu0 0.0
      %2786 = vmatpush.msra.mxu0 0.0
      %2787 = vmatpush.msra.mxu0 0.0
      %2788 = vmatpush.msra.mxu0 0.0
      %2789 = vmatpush.msra.mxu0 0.0
      %2790 = vmatpush.msra.mxu0 0.0
      %2791 = vmatpush.msra.mxu0 0.0
      %2792 = vmatpush.msra.mxu0 %v35
      %2793 = vmatmul.f32.gmra.mxu0 %v2775
      %v2794 = vpop.f32.mrf.mxu0
      %v2795 = vadd.f32 %v21, %v2794
      %2796 = vdwg.mxu0
      %v2797 = vmax.f32 %v2795, 0.0
      %v2798 = vpack.c.bf16 %v2797, %v2797
      %2799 = vmatpush.bf16.msra.mxu0 %v117
      %2800 = vmatpush.bf16.msra.mxu0 %v116
      %2801 = vmatpush.bf16.msra.mxu0 %v115
      %2802 = vmatpush.bf16.msra.mxu0 %v114
      %2803 = vmatpush.bf16.msra.mxu0 %v113
      %2804 = vmatpush.bf16.msra.mxu0 %v112
      %2805 = vmatpush.bf16.msra.mxu0 %v111
      %2806 = vmatpush.bf16.msra.mxu0 %v110
      %2807 = vmatmul.bf16.gmra.mxu0 %v2798
      %v2808 = vpop.f32.mrf.mxu0
      %v2809 = vadd.f32 %v22, %v2808
      %v2810 = vpop.f32.mrf.mxu0
      %2811 = vdwg.mxu0
      %v2812 = vmax.f32 %v2809, 0.0
      %v2813 = vpack.c.bf16 %v2812, %v2812
      %2814 = vmatpush.bf16.msra.mxu0 %v197
      %2815 = vmatpush.bf16.msra.mxu0 %v196
      %2816 = vmatpush.bf16.msra.mxu0 %v195
      %2817 = vmatpush.bf16.msra.mxu0 %v194
      %2818 = vmatpush.bf16.msra.mxu0 %v193
      %2819 = vmatpush.bf16.msra.mxu0 %v192
      %2820 = vmatpush.bf16.msra.mxu0 %v191
      %2821 = vmatpush.bf16.msra.mxu0 %v190
      %2822 = vmatmul.bf16.gmra.mxu0 %v2813
      %v2823 = vpop.f32.mrf.mxu0
      %v2824 = vadd.f32 %v23, %v2823
      %v2825 = vpop.f32.mrf.mxu0
      %2826 = vdwg.mxu0
      %v2827 = vmax.f32 %v2824, 0.0
      %v2828 = vpack.c.bf16 %v2827, %v2827
      %2829 = vmatpush.bf16.msra.mxu0 %v276
      %2830 = vmatpush.bf16.msra.mxu0 %v275
      %2831 = vmatpush.bf16.msra.mxu0 %v274
      %2832 = vmatpush.bf16.msra.mxu0 %v273
      %2833 = vmatpush.bf16.msra.mxu0 %v272
      %2834 = vmatpush.bf16.msra.mxu0 %v271
      %2835 = vmatpush.bf16.msra.mxu0 %v270
      %2836 = vmatpush.bf16.msra.mxu0 %v269
      %2837 = vmatmul.bf16.gmra.mxu0 %v2828
      %v2838 = vpop.f32.mrf.mxu0
      %v2839 = vadd.f32 %v20, %v2838
      %v2840 = vpop.f32.mrf.mxu0
      %2841 = vdwg.mxu0
      %v2842 = vsel %vm26, %v2839, 0.0
      %v2843 = vadd.f32 %v2773, %v2842
      %v2844 = vsel %vm26, 0.0, %v2839
      %v2845 = vmul.f32 %v2843, 0.033333335
      %v2846 = vadd.f32 %v2766, %v2845
      %v2847 = vmul.f32 %v2844, 0.033333335
      %v2848 = vadd.f32 %v2773, %v2847
      %v2850 = vsel %vm36, %v2846, 0
      %2852 = vmatpush.msra.mxu0 0.0
      %2853 = vmatpush.msra.mxu0 0.0
      %2854 = vmatpush.msra.mxu0 0.0
      %2855 = vmatpush.msra.mxu0 0.0
      %2856 = vmatpush.msra.mxu0 0.0
      %2857 = vmatpush.msra.mxu0 0.0
      %2858 = vmatpush.msra.mxu0 0.0
      %2859 = vmatpush.msra.mxu0 0.0
      %2860 = vmatpush.msra.mxu0 0.0
      %2861 = vmatpush.msra.mxu0 0.0
      %2862 = vmatpush.msra.mxu0 0.0
      %2863 = vmatpush.msra.mxu0 0.0
      %2864 = vmatpush.msra.mxu0 0.0
      %2865 = vmatpush.msra.mxu0 0.0
      %2866 = vmatpush.msra.mxu0 0.0
      %2867 = vmatpush.msra.mxu0 %v35
      %2868 = vmatmul.f32.gmra.mxu0 %v2850
      %v2869 = vpop.f32.mrf.mxu0
      %v2870 = vadd.f32 %v21, %v2869
      %2871 = vdwg.mxu0
      %v2872 = vmax.f32 %v2870, 0.0
      %v2873 = vpack.c.bf16 %v2872, %v2872
      %2874 = vmatpush.bf16.msra.mxu0 %v117
      %2875 = vmatpush.bf16.msra.mxu0 %v116
      %2876 = vmatpush.bf16.msra.mxu0 %v115
      %2877 = vmatpush.bf16.msra.mxu0 %v114
      %2878 = vmatpush.bf16.msra.mxu0 %v113
      %2879 = vmatpush.bf16.msra.mxu0 %v112
      %2880 = vmatpush.bf16.msra.mxu0 %v111
      %2881 = vmatpush.bf16.msra.mxu0 %v110
      %2882 = vmatmul.bf16.gmra.mxu0 %v2873
      %v2883 = vpop.f32.mrf.mxu0
      %v2884 = vadd.f32 %v22, %v2883
      %v2885 = vpop.f32.mrf.mxu0
      %2886 = vdwg.mxu0
      %v2887 = vmax.f32 %v2884, 0.0
      %v2888 = vpack.c.bf16 %v2887, %v2887
      %2889 = vmatpush.bf16.msra.mxu0 %v197
      %2890 = vmatpush.bf16.msra.mxu0 %v196
      %2891 = vmatpush.bf16.msra.mxu0 %v195
      %2892 = vmatpush.bf16.msra.mxu0 %v194
      %2893 = vmatpush.bf16.msra.mxu0 %v193
      %2894 = vmatpush.bf16.msra.mxu0 %v192
      %2895 = vmatpush.bf16.msra.mxu0 %v191
      %2896 = vmatpush.bf16.msra.mxu0 %v190
      %2897 = vmatmul.bf16.gmra.mxu0 %v2888
      %v2898 = vpop.f32.mrf.mxu0
      %v2899 = vadd.f32 %v23, %v2898
      %v2900 = vpop.f32.mrf.mxu0
      %2901 = vdwg.mxu0
      %v2902 = vmax.f32 %v2899, 0.0
      %v2903 = vpack.c.bf16 %v2902, %v2902
      %2904 = vmatpush.bf16.msra.mxu0 %v276
      %2905 = vmatpush.bf16.msra.mxu0 %v275
      %2906 = vmatpush.bf16.msra.mxu0 %v274
      %2907 = vmatpush.bf16.msra.mxu0 %v273
      %2908 = vmatpush.bf16.msra.mxu0 %v272
      %2909 = vmatpush.bf16.msra.mxu0 %v271
      %2910 = vmatpush.bf16.msra.mxu0 %v270
      %2911 = vmatpush.bf16.msra.mxu0 %v269
      %2912 = vmatmul.bf16.gmra.mxu0 %v2903
      %v2913 = vpop.f32.mrf.mxu0
      %v2914 = vadd.f32 %v20, %v2913
      %v2915 = vpop.f32.mrf.mxu0
      %2916 = vdwg.mxu0
      %v2917 = vsel %vm26, %v2914, 0.0
      %v2918 = vadd.f32 %v2848, %v2917
      %v2919 = vsel %vm26, 0.0, %v2914
      %v2920 = vmul.f32 %v2843, 0.33333334
      %v2921 = vsub.f32 %v2918, %v2920
      %v2922 = vmul.f32 %v2921, 0.1
      %v2923 = vadd.f32 %v2766, %v2922
      %v2924 = vmul.f32 %v2844, 0.33333334
      %v2925 = vsub.f32 %v2919, %v2924
      %v2926 = vmul.f32 %v2925, 0.1
      %v2927 = vadd.f32 %v2773, %v2926
      %v2929 = vsel %vm36, %v2923, 0
      %2931 = vmatpush.msra.mxu0 0.0
      %2932 = vmatpush.msra.mxu0 0.0
      %2933 = vmatpush.msra.mxu0 0.0
      %2934 = vmatpush.msra.mxu0 0.0
      %2935 = vmatpush.msra.mxu0 0.0
      %2936 = vmatpush.msra.mxu0 0.0
      %2937 = vmatpush.msra.mxu0 0.0
      %2938 = vmatpush.msra.mxu0 0.0
      %2939 = vmatpush.msra.mxu0 0.0
      %2940 = vmatpush.msra.mxu0 0.0
      %2941 = vmatpush.msra.mxu0 0.0
      %2942 = vmatpush.msra.mxu0 0.0
      %2943 = vmatpush.msra.mxu0 0.0
      %2944 = vmatpush.msra.mxu0 0.0
      %2945 = vmatpush.msra.mxu0 0.0
      %2946 = vmatpush.msra.mxu0 %v35
      %2947 = vmatmul.f32.gmra.mxu0 %v2929
      %v2948 = vpop.f32.mrf.mxu0
      %v2949 = vadd.f32 %v21, %v2948
      %2950 = vdwg.mxu0
      %v2951 = vmax.f32 %v2949, 0.0
      %v2952 = vpack.c.bf16 %v2951, %v2951
      %2953 = vmatpush.bf16.msra.mxu0 %v117
      %2954 = vmatpush.bf16.msra.mxu0 %v116
      %2955 = vmatpush.bf16.msra.mxu0 %v115
      %2956 = vmatpush.bf16.msra.mxu0 %v114
      %2957 = vmatpush.bf16.msra.mxu0 %v113
      %2958 = vmatpush.bf16.msra.mxu0 %v112
      %2959 = vmatpush.bf16.msra.mxu0 %v111
      %2960 = vmatpush.bf16.msra.mxu0 %v110
      %2961 = vmatmul.bf16.gmra.mxu0 %v2952
      %v2962 = vpop.f32.mrf.mxu0
      %v2963 = vadd.f32 %v22, %v2962
      %v2964 = vpop.f32.mrf.mxu0
      %2965 = vdwg.mxu0
      %v2966 = vmax.f32 %v2963, 0.0
      %v2967 = vpack.c.bf16 %v2966, %v2966
      %2968 = vmatpush.bf16.msra.mxu0 %v197
      %2969 = vmatpush.bf16.msra.mxu0 %v196
      %2970 = vmatpush.bf16.msra.mxu0 %v195
      %2971 = vmatpush.bf16.msra.mxu0 %v194
      %2972 = vmatpush.bf16.msra.mxu0 %v193
      %2973 = vmatpush.bf16.msra.mxu0 %v192
      %2974 = vmatpush.bf16.msra.mxu0 %v191
      %2975 = vmatpush.bf16.msra.mxu0 %v190
      %2976 = vmatmul.bf16.gmra.mxu0 %v2967
      %v2977 = vpop.f32.mrf.mxu0
      %v2978 = vadd.f32 %v23, %v2977
      %v2979 = vpop.f32.mrf.mxu0
      %2980 = vdwg.mxu0
      %v2981 = vmax.f32 %v2978, 0.0
      %v2982 = vpack.c.bf16 %v2981, %v2981
      %2983 = vmatpush.bf16.msra.mxu0 %v276
      %2984 = vmatpush.bf16.msra.mxu0 %v275
      %2985 = vmatpush.bf16.msra.mxu0 %v274
      %2986 = vmatpush.bf16.msra.mxu0 %v273
      %2987 = vmatpush.bf16.msra.mxu0 %v272
      %2988 = vmatpush.bf16.msra.mxu0 %v271
      %2989 = vmatpush.bf16.msra.mxu0 %v270
      %2990 = vmatpush.bf16.msra.mxu0 %v269
      %2991 = vmatmul.bf16.gmra.mxu0 %v2982
      %v2992 = vpop.f32.mrf.mxu0
      %v2993 = vadd.f32 %v20, %v2992
      %v2994 = vpop.f32.mrf.mxu0
      %2995 = vdwg.mxu0
      %v2996 = vsel %vm26, %v2993, 0.0
      %v2997 = vadd.f32 %v2927, %v2996
      %v2998 = vsel %vm26, 0.0, %v2993
      %v2999 = vsub.f32 %v2843, %v2918
      %v3000 = vadd.f32 %v2999, %v2997
      %v3001 = vmul.f32 %v3000, 0.1
      %v3002 = vadd.f32 %v2766, %v3001
      %v3003 = vsub.f32 %v2844, %v2919
      %v3004 = vadd.f32 %v3003, %v2998
      %v3005 = vmul.f32 %v3004, 0.1
      %v3006 = vadd.f32 %v2773, %v3005
      %v3008 = vsel %vm36, %v3002, 0
      %3010 = vmatpush.msra.mxu0 0.0
      %3011 = vmatpush.msra.mxu0 0.0
      %3012 = vmatpush.msra.mxu0 0.0
      %3013 = vmatpush.msra.mxu0 0.0
      %3014 = vmatpush.msra.mxu0 0.0
      %3015 = vmatpush.msra.mxu0 0.0
      %3016 = vmatpush.msra.mxu0 0.0
      %3017 = vmatpush.msra.mxu0 0.0
      %3018 = vmatpush.msra.mxu0 0.0
      %3019 = vmatpush.msra.mxu0 0.0
      %3020 = vmatpush.msra.mxu0 0.0
      %3021 = vmatpush.msra.mxu0 0.0
      %3022 = vmatpush.msra.mxu0 0.0
      %3023 = vmatpush.msra.mxu0 0.0
      %3024 = vmatpush.msra.mxu0 0.0
      %3025 = vmatpush.msra.mxu0 %v35
      %3026 = vmatmul.f32.gmra.mxu0 %v3008
      %v3027 = vpop.f32.mrf.mxu0
      %v3028 = vadd.f32 %v21, %v3027
      %3029 = vdwg.mxu0
      %v3030 = vmax.f32 %v3028, 0.0
      %v3031 = vpack.c.bf16 %v3030, %v3030
      %3032 = vmatpush.bf16.msra.mxu0 %v117
      %3033 = vmatpush.bf16.msra.mxu0 %v116
      %3034 = vmatpush.bf16.msra.mxu0 %v115
      %3035 = vmatpush.bf16.msra.mxu0 %v114
      %3036 = vmatpush.bf16.msra.mxu0 %v113
      %3037 = vmatpush.bf16.msra.mxu0 %v112
      %3038 = vmatpush.bf16.msra.mxu0 %v111
      %3039 = vmatpush.bf16.msra.mxu0 %v110
      %3040 = vmatmul.bf16.gmra.mxu0 %v3031
      %v3041 = vpop.f32.mrf.mxu0
      %v3042 = vadd.f32 %v22, %v3041
      %v3043 = vpop.f32.mrf.mxu0
      %3044 = vdwg.mxu0
      %v3045 = vmax.f32 %v3042, 0.0
      %v3046 = vpack.c.bf16 %v3045, %v3045
      %3047 = vmatpush.bf16.msra.mxu0 %v197
      %3048 = vmatpush.bf16.msra.mxu0 %v196
      %3049 = vmatpush.bf16.msra.mxu0 %v195
      %3050 = vmatpush.bf16.msra.mxu0 %v194
      %3051 = vmatpush.bf16.msra.mxu0 %v193
      %3052 = vmatpush.bf16.msra.mxu0 %v192
      %3053 = vmatpush.bf16.msra.mxu0 %v191
      %3054 = vmatpush.bf16.msra.mxu0 %v190
      %3055 = vmatmul.bf16.gmra.mxu0 %v3046
      %v3056 = vpop.f32.mrf.mxu0
      %v3057 = vadd.f32 %v23, %v3056
      %v3058 = vpop.f32.mrf.mxu0
      %3059 = vdwg.mxu0
      %v3060 = vmax.f32 %v3057, 0.0
      %v3061 = vpack.c.bf16 %v3060, %v3060
      %3062 = vmatpush.bf16.msra.mxu0 %v276
      %3063 = vmatpush.bf16.msra.mxu0 %v275
      %3064 = vmatpush.bf16.msra.mxu0 %v274
      %3065 = vmatpush.bf16.msra.mxu0 %v273
      %3066 = vmatpush.bf16.msra.mxu0 %v272
      %3067 = vmatpush.bf16.msra.mxu0 %v271
      %3068 = vmatpush.bf16.msra.mxu0 %v270
      %3069 = vmatpush.bf16.msra.mxu0 %v269
      %3070 = vmatmul.bf16.gmra.mxu0 %v3061
      %v3071 = vpop.f32.mrf.mxu0
      %v3072 = vadd.f32 %v20, %v3071
      %v3073 = vpop.f32.mrf.mxu0
      %3074 = vdwg.mxu0
      %v3075 = vsel %vm26, %v3072, 0.0
      %v3076 = vadd.f32 %v3006, %v3075
      %v3077 = vsel %vm26, 0.0, %v3072
      %v3078 = vadd.f32 %v2918, %v2997
      %v3079 = vmul.f32 %v3078, 3.0
      %v3080 = vadd.f32 %v2843, %v3079
      %v3081 = vadd.f32 %v3080, %v3076
      %v3082 = vmul.f32 %v3081, 0.1
      %v3083 = vmul.f32 %v3082, 0.125
      %v3084 = vadd.f32 %v2766, %v3083
      %v3085 = vadd.f32 %v2919, %v2998
      %v3086 = vmul.f32 %v3085, 3.0
      %v3087 = vadd.f32 %v2844, %v3086
      %v3088 = vadd.f32 %v3087, %v3077
      %v3089 = vmul.f32 %v3088, 0.1
      %v3090 = vmul.f32 %v3089, 0.125
      %v3091 = vadd.f32 %v2773, %v3090
      %v3093 = vsel %vm36, %v3084, 0
      %3095 = vmatpush.msra.mxu0 0.0
      %3096 = vmatpush.msra.mxu0 0.0
      %3097 = vmatpush.msra.mxu0 0.0
      %3098 = vmatpush.msra.mxu0 0.0
      %3099 = vmatpush.msra.mxu0 0.0
      %3100 = vmatpush.msra.mxu0 0.0
      %3101 = vmatpush.msra.mxu0 0.0
      %3102 = vmatpush.msra.mxu0 0.0
      %3103 = vmatpush.msra.mxu0 0.0
      %3104 = vmatpush.msra.mxu0 0.0
      %3105 = vmatpush.msra.mxu0 0.0
      %3106 = vmatpush.msra.mxu0 0.0
      %3107 = vmatpush.msra.mxu0 0.0
      %3108 = vmatpush.msra.mxu0 0.0
      %3109 = vmatpush.msra.mxu0 0.0
      %3110 = vmatpush.msra.mxu0 %v35
      %3111 = vmatmul.f32.gmra.mxu0 %v3093
      %v3112 = vpop.f32.mrf.mxu0
      %v3113 = vadd.f32 %v21, %v3112
      %3114 = vdwg.mxu0
      %v3115 = vmax.f32 %v3113, 0.0
      %v3116 = vpack.c.bf16 %v3115, %v3115
      %3117 = vmatpush.bf16.msra.mxu0 %v117
      %3118 = vmatpush.bf16.msra.mxu0 %v116
      %3119 = vmatpush.bf16.msra.mxu0 %v115
      %3120 = vmatpush.bf16.msra.mxu0 %v114
      %3121 = vmatpush.bf16.msra.mxu0 %v113
      %3122 = vmatpush.bf16.msra.mxu0 %v112
      %3123 = vmatpush.bf16.msra.mxu0 %v111
      %3124 = vmatpush.bf16.msra.mxu0 %v110
      %3125 = vmatmul.bf16.gmra.mxu0 %v3116
      %v3126 = vpop.f32.mrf.mxu0
      %v3127 = vadd.f32 %v22, %v3126
      %v3128 = vpop.f32.mrf.mxu0
      %3129 = vdwg.mxu0
      %v3130 = vmax.f32 %v3127, 0.0
      %v3131 = vpack.c.bf16 %v3130, %v3130
      %3132 = vmatpush.bf16.msra.mxu0 %v197
      %3133 = vmatpush.bf16.msra.mxu0 %v196
      %3134 = vmatpush.bf16.msra.mxu0 %v195
      %3135 = vmatpush.bf16.msra.mxu0 %v194
      %3136 = vmatpush.bf16.msra.mxu0 %v193
      %3137 = vmatpush.bf16.msra.mxu0 %v192
      %3138 = vmatpush.bf16.msra.mxu0 %v191
      %3139 = vmatpush.bf16.msra.mxu0 %v190
      %3140 = vmatmul.bf16.gmra.mxu0 %v3131
      %v3141 = vpop.f32.mrf.mxu0
      %v3142 = vadd.f32 %v23, %v3141
      %v3143 = vpop.f32.mrf.mxu0
      %3144 = vdwg.mxu0
      %v3145 = vmax.f32 %v3142, 0.0
      %v3146 = vpack.c.bf16 %v3145, %v3145
      %3147 = vmatpush.bf16.msra.mxu0 %v276
      %3148 = vmatpush.bf16.msra.mxu0 %v275
      %3149 = vmatpush.bf16.msra.mxu0 %v274
      %3150 = vmatpush.bf16.msra.mxu0 %v273
      %3151 = vmatpush.bf16.msra.mxu0 %v272
      %3152 = vmatpush.bf16.msra.mxu0 %v271
      %3153 = vmatpush.bf16.msra.mxu0 %v270
      %3154 = vmatpush.bf16.msra.mxu0 %v269
      %3155 = vmatmul.bf16.gmra.mxu0 %v3146
      %v3156 = vpop.f32.mrf.mxu0
      %v3157 = vadd.f32 %v20, %v3156
      %v3158 = vpop.f32.mrf.mxu0
      %3159 = vdwg.mxu0
      %v3160 = vsel %vm26, %v3157, 0.0
      %v3161 = vadd.f32 %v3091, %v3160
      %v3162 = vsel %vm26, 0.0, %v3157
      %v3163 = vmul.f32 %v3161, 0.033333335
      %v3164 = vadd.f32 %v3084, %v3163
      %v3165 = vmul.f32 %v3162, 0.033333335
      %v3166 = vadd.f32 %v3091, %v3165
      %v3168 = vsel %vm36, %v3164, 0
      %3170 = vmatpush.msra.mxu0 0.0
      %3171 = vmatpush.msra.mxu0 0.0
      %3172 = vmatpush.msra.mxu0 0.0
      %3173 = vmatpush.msra.mxu0 0.0
      %3174 = vmatpush.msra.mxu0 0.0
      %3175 = vmatpush.msra.mxu0 0.0
      %3176 = vmatpush.msra.mxu0 0.0
      %3177 = vmatpush.msra.mxu0 0.0
      %3178 = vmatpush.msra.mxu0 0.0
      %3179 = vmatpush.msra.mxu0 0.0
      %3180 = vmatpush.msra.mxu0 0.0
      %3181 = vmatpush.msra.mxu0 0.0
      %3182 = vmatpush.msra.mxu0 0.0
      %3183 = vmatpush.msra.mxu0 0.0
      %3184 = vmatpush.msra.mxu0 0.0
      %3185 = vmatpush.msra.mxu0 %v35
      %3186 = vmatmul.f32.gmra.mxu0 %v3168
      %v3187 = vpop.f32.mrf.mxu0
      %v3188 = vadd.f32 %v21, %v3187
      %3189 = vdwg.mxu0
      %v3190 = vmax.f32 %v3188, 0.0
      %v3191 = vpack.c.bf16 %v3190, %v3190
      %3192 = vmatpush.bf16.msra.mxu0 %v117
      %3193 = vmatpush.bf16.msra.mxu0 %v116
      %3194 = vmatpush.bf16.msra.mxu0 %v115
      %3195 = vmatpush.bf16.msra.mxu0 %v114
      %3196 = vmatpush.bf16.msra.mxu0 %v113
      %3197 = vmatpush.bf16.msra.mxu0 %v112
      %3198 = vmatpush.bf16.msra.mxu0 %v111
      %3199 = vmatpush.bf16.msra.mxu0 %v110
      %3200 = vmatmul.bf16.gmra.mxu0 %v3191
      %v3201 = vpop.f32.mrf.mxu0
      %v3202 = vadd.f32 %v22, %v3201
      %v3203 = vpop.f32.mrf.mxu0
      %3204 = vdwg.mxu0
      %v3205 = vmax.f32 %v3202, 0.0
      %v3206 = vpack.c.bf16 %v3205, %v3205
      %3207 = vmatpush.bf16.msra.mxu0 %v197
      %3208 = vmatpush.bf16.msra.mxu0 %v196
      %3209 = vmatpush.bf16.msra.mxu0 %v195
      %3210 = vmatpush.bf16.msra.mxu0 %v194
      %3211 = vmatpush.bf16.msra.mxu0 %v193
      %3212 = vmatpush.bf16.msra.mxu0 %v192
      %3213 = vmatpush.bf16.msra.mxu0 %v191
      %3214 = vmatpush.bf16.msra.mxu0 %v190
      %3215 = vmatmul.bf16.gmra.mxu0 %v3206
      %v3216 = vpop.f32.mrf.mxu0
      %v3217 = vadd.f32 %v23, %v3216
      %v3218 = vpop.f32.mrf.mxu0
      %3219 = vdwg.mxu0
      %v3220 = vmax.f32 %v3217, 0.0
      %v3221 = vpack.c.bf16 %v3220, %v3220
      %3222 = vmatpush.bf16.msra.mxu0 %v276
      %3223 = vmatpush.bf16.msra.mxu0 %v275
      %3224 = vmatpush.bf16.msra.mxu0 %v274
      %3225 = vmatpush.bf16.msra.mxu0 %v273
      %3226 = vmatpush.bf16.msra.mxu0 %v272
      %3227 = vmatpush.bf16.msra.mxu0 %v271
      %3228 = vmatpush.bf16.msra.mxu0 %v270
      %3229 = vmatpush.bf16.msra.mxu0 %v269
      %3230 = vmatmul.bf16.gmra.mxu0 %v3221
      %v3231 = vpop.f32.mrf.mxu0
      %v3232 = vadd.f32 %v20, %v3231
      %v3233 = vpop.f32.mrf.mxu0
      %3234 = vdwg.mxu0
      %v3235 = vsel %vm26, %v3232, 0.0
      %v3236 = vadd.f32 %v3166, %v3235
      %v3237 = vsel %vm26, 0.0, %v3232
      %v3238 = vmul.f32 %v3161, 0.33333334
      %v3239 = vsub.f32 %v3236, %v3238
      %v3240 = vmul.f32 %v3239, 0.1
      %v3241 = vadd.f32 %v3084, %v3240
      %v3242 = vmul.f32 %v3162, 0.33333334
      %v3243 = vsub.f32 %v3237, %v3242
      %v3244 = vmul.f32 %v3243, 0.1
      %v3245 = vadd.f32 %v3091, %v3244
      %v3247 = vsel %vm36, %v3241, 0
      %3249 = vmatpush.msra.mxu0 0.0
      %3250 = vmatpush.msra.mxu0 0.0
      %3251 = vmatpush.msra.mxu0 0.0
      %3252 = vmatpush.msra.mxu0 0.0
      %3253 = vmatpush.msra.mxu0 0.0
      %3254 = vmatpush.msra.mxu0 0.0
      %3255 = vmatpush.msra.mxu0 0.0
      %3256 = vmatpush.msra.mxu0 0.0
      %3257 = vmatpush.msra.mxu0 0.0
      %3258 = vmatpush.msra.mxu0 0.0
      %3259 = vmatpush.msra.mxu0 0.0
      %3260 = vmatpush.msra.mxu0 0.0
      %3261 = vmatpush.msra.mxu0 0.0
      %3262 = vmatpush.msra.mxu0 0.0
      %3263 = vmatpush.msra.mxu0 0.0
      %3264 = vmatpush.msra.mxu0 %v35
      %3265 = vmatmul.f32.gmra.mxu0 %v3247
      %v3266 = vpop.f32.mrf.mxu0
      %v3267 = vadd.f32 %v21, %v3266
      %3268 = vdwg.mxu0
      %v3269 = vmax.f32 %v3267, 0.0
      %v3270 = vpack.c.bf16 %v3269, %v3269
      %3271 = vmatpush.bf16.msra.mxu0 %v117
      %3272 = vmatpush.bf16.msra.mxu0 %v116
      %3273 = vmatpush.bf16.msra.mxu0 %v115
      %3274 = vmatpush.bf16.msra.mxu0 %v114
      %3275 = vmatpush.bf16.msra.mxu0 %v113
      %3276 = vmatpush.bf16.msra.mxu0 %v112
      %3277 = vmatpush.bf16.msra.mxu0 %v111
      %3278 = vmatpush.bf16.msra.mxu0 %v110
      %3279 = vmatmul.bf16.gmra.mxu0 %v3270
      %v3280 = vpop.f32.mrf.mxu0
      %v3281 = vadd.f32 %v22, %v3280
      %v3282 = vpop.f32.mrf.mxu0
      %3283 = vdwg.mxu0
      %v3284 = vmax.f32 %v3281, 0.0
      %v3285 = vpack.c.bf16 %v3284, %v3284
      %3286 = vmatpush.bf16.msra.mxu0 %v197
      %3287 = vmatpush.bf16.msra.mxu0 %v196
      %3288 = vmatpush.bf16.msra.mxu0 %v195
      %3289 = vmatpush.bf16.msra.mxu0 %v194
      %3290 = vmatpush.bf16.msra.mxu0 %v193
      %3291 = vmatpush.bf16.msra.mxu0 %v192
      %3292 = vmatpush.bf16.msra.mxu0 %v191
      %3293 = vmatpush.bf16.msra.mxu0 %v190
      %3294 = vmatmul.bf16.gmra.mxu0 %v3285
      %v3295 = vpop.f32.mrf.mxu0
      %v3296 = vadd.f32 %v23, %v3295
      %v3297 = vpop.f32.mrf.mxu0
      %3298 = vdwg.mxu0
      %v3299 = vmax.f32 %v3296, 0.0
      %v3300 = vpack.c.bf16 %v3299, %v3299
      %3301 = vmatpush.bf16.msra.mxu0 %v276
      %3302 = vmatpush.bf16.msra.mxu0 %v275
      %3303 = vmatpush.bf16.msra.mxu0 %v274
      %3304 = vmatpush.bf16.msra.mxu0 %v273
      %3305 = vmatpush.bf16.msra.mxu0 %v272
      %3306 = vmatpush.bf16.msra.mxu0 %v271
      %3307 = vmatpush.bf16.msra.mxu0 %v270
      %3308 = vmatpush.bf16.msra.mxu0 %v269
      %3309 = vmatmul.bf16.gmra.mxu0 %v3300
      %v3310 = vpop.f32.mrf.mxu0
      %v3311 = vadd.f32 %v20, %v3310
      %v3312 = vpop.f32.mrf.mxu0
      %3313 = vdwg.mxu0
      %v3314 = vsel %vm26, %v3311, 0.0
      %v3315 = vadd.f32 %v3245, %v3314
      %v3316 = vsel %vm26, 0.0, %v3311
      %v3317 = vsub.f32 %v3161, %v3236
      %v3318 = vadd.f32 %v3317, %v3315
      %v3319 = vmul.f32 %v3318, 0.1
      %v3320 = vadd.f32 %v3084, %v3319
      %v3321 = vsub.f32 %v3162, %v3237
      %v3322 = vadd.f32 %v3321, %v3316
      %v3323 = vmul.f32 %v3322, 0.1
      %v3324 = vadd.f32 %v3091, %v3323
      %v3326 = vsel %vm36, %v3320, 0
      %3328 = vmatpush.msra.mxu0 0.0
      %3329 = vmatpush.msra.mxu0 0.0
      %3330 = vmatpush.msra.mxu0 0.0
      %3331 = vmatpush.msra.mxu0 0.0
      %3332 = vmatpush.msra.mxu0 0.0
      %3333 = vmatpush.msra.mxu0 0.0
      %3334 = vmatpush.msra.mxu0 0.0
      %3335 = vmatpush.msra.mxu0 0.0
      %3336 = vmatpush.msra.mxu0 0.0
      %3337 = vmatpush.msra.mxu0 0.0
      %3338 = vmatpush.msra.mxu0 0.0
      %3339 = vmatpush.msra.mxu0 0.0
      %3340 = vmatpush.msra.mxu0 0.0
      %3341 = vmatpush.msra.mxu0 0.0
      %3342 = vmatpush.msra.mxu0 0.0
      %3343 = vmatpush.msra.mxu0 %v35
      %3344 = vmatmul.f32.gmra.mxu0 %v3326
      %v3345 = vpop.f32.mrf.mxu0
      %v3346 = vadd.f32 %v21, %v3345
      %3347 = vdwg.mxu0
      %v3348 = vmax.f32 %v3346, 0.0
      %v3349 = vpack.c.bf16 %v3348, %v3348
      %3350 = vmatpush.bf16.msra.mxu0 %v117
      %3351 = vmatpush.bf16.msra.mxu0 %v116
      %3352 = vmatpush.bf16.msra.mxu0 %v115
      %3353 = vmatpush.bf16.msra.mxu0 %v114
      %3354 = vmatpush.bf16.msra.mxu0 %v113
      %3355 = vmatpush.bf16.msra.mxu0 %v112
      %3356 = vmatpush.bf16.msra.mxu0 %v111
      %3357 = vmatpush.bf16.msra.mxu0 %v110
      %3358 = vmatmul.bf16.gmra.mxu0 %v3349
      %v3359 = vpop.f32.mrf.mxu0
      %v3360 = vadd.f32 %v22, %v3359
      %v3361 = vpop.f32.mrf.mxu0
      %3362 = vdwg.mxu0
      %v3363 = vmax.f32 %v3360, 0.0
      %v3364 = vpack.c.bf16 %v3363, %v3363
      %3365 = vmatpush.bf16.msra.mxu0 %v197
      %3366 = vmatpush.bf16.msra.mxu0 %v196
      %3367 = vmatpush.bf16.msra.mxu0 %v195
      %3368 = vmatpush.bf16.msra.mxu0 %v194
      %3369 = vmatpush.bf16.msra.mxu0 %v193
      %3370 = vmatpush.bf16.msra.mxu0 %v192
      %3371 = vmatpush.bf16.msra.mxu0 %v191
      %3372 = vmatpush.bf16.msra.mxu0 %v190
      %3373 = vmatmul.bf16.gmra.mxu0 %v3364
      %v3374 = vpop.f32.mrf.mxu0
      %v3375 = vadd.f32 %v23, %v3374
      %v3376 = vpop.f32.mrf.mxu0
      %3377 = vdwg.mxu0
      %v3378 = vmax.f32 %v3375, 0.0
      %v3379 = vpack.c.bf16 %v3378, %v3378
      %3380 = vmatpush.bf16.msra.mxu0 %v276
      %3381 = vmatpush.bf16.msra.mxu0 %v275
      %3382 = vmatpush.bf16.msra.mxu0 %v274
      %3383 = vmatpush.bf16.msra.mxu0 %v273
      %3384 = vmatpush.bf16.msra.mxu0 %v272
      %3385 = vmatpush.bf16.msra.mxu0 %v271
      %3386 = vmatpush.bf16.msra.mxu0 %v270
      %3387 = vmatpush.bf16.msra.mxu0 %v269
      %3388 = vmatmul.bf16.gmra.mxu0 %v3379
      %v3389 = vpop.f32.mrf.mxu0
      %v3390 = vadd.f32 %v20, %v3389
      %v3391 = vpop.f32.mrf.mxu0
      %3392 = vdwg.mxu0
      %v3393 = vsel %vm26, %v3390, 0.0
      %v3394 = vadd.f32 %v3324, %v3393
      %v3395 = vsel %vm26, 0.0, %v3390
      %v3396 = vadd.f32 %v3236, %v3315
      %v3397 = vmul.f32 %v3396, 3.0
      %v3398 = vadd.f32 %v3161, %v3397
      %v3399 = vadd.f32 %v3398, %v3394
      %v3400 = vmul.f32 %v3399, 0.1
      %v3401 = vmul.f32 %v3400, 0.125
      %v3402 = vadd.f32 %v3084, %v3401
      %v3403 = vadd.f32 %v3237, %v3316
      %v3404 = vmul.f32 %v3403, 3.0
      %v3405 = vadd.f32 %v3162, %v3404
      %v3406 = vadd.f32 %v3405, %v3395
      %v3407 = vmul.f32 %v3406, 0.1
      %v3408 = vmul.f32 %v3407, 0.125
      %v3409 = vadd.f32 %v3091, %v3408
      %s3410 = scalar_lea.vmem [#allocation2], %s28
      %vm3411 = vcmask 57344
      %3412 = vst.msk [vmem:[%s3410] sm:$0x1] %vm3411, %v3402
    $region22: #{dyns_solver_forward.1} parent=1 // loop_footer
      %s32 = sadd.s32 1, %s28
    $region23: #{dyns_solver_forward.1} parent=1 // loop_footer_branch
      %27 = sbr.rel target = $region19
    $region24: #{dyns_solver_forward.1} parent=1 // loop_exit
      _
    // Predicated region
    $region25: #{dyns_solver_forward.1} parent=1 // pred_check
      _
    $region26: #{dyns_solver_forward.1} parent=1 // pred_check_branch
      %3414 = sbr.rel (0) target = $region28
    $region27: #{dyns_solver_forward.1} parent=1 // pred_region
      %3416 = vsyncadd [#allocation3], 0
      %s3418 = sshll.u32 [#allocation2], 4
      %s3419 = int_to_ptr.vmem [resolvable:$true] %s3418
      %s3420 = sshll.u32 %s4, 4
      %s3421 = int_to_ptr.hbm [resolvable:$true] %s3420
      %3423 = dma.vmem_to_hbm [thread:$0]  %s3419, 128, %s3421, [#allocation3]
    $region28: #{dyns_solver_forward.1} parent=1 // pred_fallthru
      _
    // Predicated region
    $region29: #{dyns_solver_forward.1} parent=1 // pred_check
      _
    $region30: #{dyns_solver_forward.1} parent=1 // pred_check_branch
      %3425 = sbr.rel (0) target = $region32
    $region31: #{dyns_solver_forward.1} parent=1 // pred_region
      %3427 = dma.done [#allocation3], 128
    $region32: #{dyns_solver_forward.1} parent=1 // pred_fallthru
      _
    %3428 = vsyncpa [#allocation3], 1

</llo_original>
